<compile_context>
chip_gen: v7x
topology: tpu7x:2x2x1
jax: 0.10.0
libtpu: 0.0.40
codegen_flags: <defaults>
</compile_context>

<pallas_src>
import functools
import numpy as np
import jax
import jax.numpy as jnp
from jax.experimental import pallas as pl
from jax.experimental.pallas import tpu as pltpu


# ------------------------------ tiling helpers ------------------------------

_VMEM_LIMIT = 48 * 1024 * 1024     # <= v7x's 64 MiB/TC; plenty on v5e/v6e
_VOCAB_ALIGN = 256                 # vocab padded to this so the decoder tiles


def _round_up(x, m):
    return ((x + m - 1) // m) * m


def _pick_tile(dim, pref, align):
    """Largest tile <= pref that is a multiple of `align` and divides `dim`;
    falls back to the full dim (a whole-dim block is always legal).
    TODO(synk): for real shapes whose dims have no aligned divisor (odd B*S),
    pad the operand or add masked tail handling instead of this fallback."""
    if dim <= pref:
        return dim
    t = (pref // align) * align
    while t >= align:
        if dim % t == 0:
            return t
        t -= align
    return dim


# ----------------------------- Pallas kernels ------------------------------

def _matmul_kernel(x_ref, w_ref, b_ref, o_ref, acc_ref, *, activation):
    """Tiled matmul: bf16 operands on the MXU, f32 accumulator in VMEM."""
    @pl.when(pl.program_id(2) == 0)
    def _():
        acc_ref[...] = jnp.zeros_like(acc_ref)

    acc_ref[...] += jnp.dot(x_ref[...], w_ref[...],
                            preferred_element_type=jnp.float32)

    @pl.when(pl.program_id(2) == pl.num_programs(2) - 1)
    def _():
        y = acc_ref[...] + b_ref[...]
        if activation == "gelu":
            # TODO(synk): HF BERT uses erf GELU; tanh approx drifts ~1e-3.
            y = jax.nn.gelu(y, approximate=True)
        o_ref[...] = y.astype(o_ref.dtype)


def _layernorm_kernel(x_ref, g_ref, b_ref, o_ref, *, eps):
    x = x_ref[...].astype(jnp.float32)
    mu = jnp.mean(x, axis=-1, keepdims=True)
    var = jnp.mean(jnp.square(x - mu), axis=-1, keepdims=True)
    o_ref[...] = ((x - mu) * jax.lax.rsqrt(var + eps) * g_ref[...]
                  + b_ref[...]).astype(o_ref.dtype)


def _linear_ln_kernel(*refs, activation, has_residual, eps):
    """Fused (x @ w + b) [+ gelu] [+ residual] + LayerNorm (stats in f32)."""
    if has_residual:
        x_ref, w_ref, b_ref, r_ref, g_ref, beta_ref, o_ref = refs
    else:
        x_ref, w_ref, b_ref, g_ref, beta_ref, o_ref = refs
        r_ref = None
    y = jnp.dot(x_ref[...], w_ref[...],
                preferred_element_type=jnp.float32) + b_ref[...]
    if activation == "gelu":
        y = jax.nn.gelu(y, approximate=True)
    if r_ref is not None:
        y = y + r_ref[...].astype(jnp.float32)
    mu = jnp.mean(y, axis=-1, keepdims=True)
    var = jnp.mean(jnp.square(y - mu), axis=-1, keepdims=True)
    o_ref[...] = ((y - mu) * jax.lax.rsqrt(var + eps) * g_ref[...]
                  + beta_ref[...]).astype(o_ref.dtype)


def _ffn_ln_kernel(x_ref, wi_ref, bi_ref, wf_ref, bf_ref, g_ref, beta_ref,
                   o_ref, *, eps):
    """Fused FFN: gelu(x@wi+bi)@wf+bf, +residual, +LayerNorm.  The [TM, I]
    intermediate never leaves VMEM."""
    x = x_ref[...]
    h = jnp.dot(x, wi_ref[...], preferred_element_type=jnp.float32) + bi_ref[...]
    h = jax.nn.gelu(h, approximate=True)
    y = jnp.dot(h.astype(x.dtype), wf_ref[...],
                preferred_element_type=jnp.float32) + bf_ref[...]
    y = y + x.astype(jnp.float32)                       # residual
    mu = jnp.mean(y, axis=-1, keepdims=True)
    var = jnp.mean(jnp.square(y - mu), axis=-1, keepdims=True)
    o_ref[...] = ((y - mu) * jax.lax.rsqrt(var + eps) * g_ref[...]
                  + beta_ref[...]).astype(o_ref.dtype)
    # TODO(synk): at very large I, tile the I contraction with a VMEM scratch
    # instead of holding whole wi/wf blocks (BERT-base shapes fit comfortably).


def _flash_attn_kernel(q_ref, k_ref, v_ref, bias_ref, o_ref,
                       m_sc, l_sc, acc_sc, *, scale, n_heads, d_head):
    """Flash attention; all heads packed along lanes, output tile is the
    lane-dense merged [TQ, H] layout."""
    kv = pl.program_id(2)

    @pl.when(kv == 0)
    def _():
        m_sc[...] = jnp.full_like(m_sc, -jnp.inf)
        l_sc[...] = jnp.zeros_like(l_sc)
        acc_sc[...] = jnp.zeros_like(acc_sc)

    bias = bias_ref[0]                                  # [1, TK] additive mask

    for h in range(n_heads):                            # static head unroll
        sl = slice(h * d_head, (h + 1) * d_head)
        s = jax.lax.dot_general(q_ref[:, sl], k_ref[:, sl],
                                (((1,), (1,)), ((), ())),
                                preferred_element_type=jnp.float32) * scale
        s = s + bias
        m_prev = m_sc[:, h:h + 1]
        m_new = jnp.maximum(m_prev, jnp.max(s, axis=-1, keepdims=True))
        alpha = jnp.exp(m_prev - m_new)
        p = jnp.exp(s - m_new)
        l_sc[:, h:h + 1] = alpha * l_sc[:, h:h + 1] + jnp.sum(
            p, axis=-1, keepdims=True)
        acc_sc[:, sl] = alpha * acc_sc[:, sl] + jnp.dot(
            p.astype(v_ref.dtype), v_ref[:, sl],
            preferred_element_type=jnp.float32)
        m_sc[:, h:h + 1] = m_new

    @pl.when(kv == pl.num_programs(2) - 1)
    def _():
        parts = [acc_sc[:, h * d_head:(h + 1) * d_head]
                 * pl.reciprocal(l_sc[:, h:h + 1], approx=True)
                 for h in range(n_heads)]
        o_ref[...] = jnp.concatenate(parts, axis=-1).astype(o_ref.dtype)


def _mask_decoder_head_kernel(h_ref, e_ref, db_ref, a_ref,
                              wneu_ref, wpos_ref, wneg_ref, o_ref,
                              m_sc, l_sc, num_sc, *, n_neu, n_pos, n_neg):
    """Vocab-streaming kernel: decoder logits at the [MASK] rows, online
    softmax over vocab tiles, per-group probability means, verbalizer head.
    No [Bm, V] logits are ever materialized in HBM."""
    j = pl.program_id(0)

    @pl.when(j == 0)
    def _():
        m_sc[...] = jnp.full_like(m_sc, -jnp.inf)
        l_sc[...] = jnp.zeros_like(l_sc)
        num_sc[...] = jnp.zeros_like(num_sc)

    logits = jax.lax.dot_general(h_ref[...], e_ref[...],
                                 (((1,), (1,)), ((), ())),
                                 preferred_element_type=jnp.float32) + db_ref[...]
    m_new = jnp.maximum(m_sc[...], jnp.max(logits, axis=-1, keepdims=True))
    alpha = jnp.exp(m_sc[...] - m_new)
    p = jnp.exp(logits - m_new)                          # [Bm, TV] f32
    l_sc[...] = alpha * l_sc[...] + jnp.sum(p, axis=-1, keepdims=True)
    num_sc[...] = alpha * num_sc[...] + jnp.dot(
        p, a_ref[...], preferred_element_type=jnp.float32)
    m_sc[...] = m_new

    @pl.when(j == pl.num_programs(0) - 1)
    def _():
        pro = num_sc[...] / l_sc[...]                    # per-group mean probs
        # clamp avoids -inf if a group's softmax mass underflows at real V
        logp = jnp.log(jnp.maximum(pro, 1e-30))

        def score(w_ref, lo, hi):
            ew = jnp.exp(w_ref[...])                     # [1, Pg]
            a_w = ew / jnp.sum(ew)                       # softmax(w)
            return jnp.sum(logp[:, lo:hi] * a_w, axis=-1, keepdims=True)

        # same order as torch.cat([s_neutral, s_positive, s_negative], dim=1)
        o_ref[...] = jnp.concatenate(
            [score(wneu_ref, 0, n_neu),
             score(wpos_ref, n_neu, n_neu + n_pos),
             score(wneg_ref, n_neu + n_pos, n_neu + n_pos + n_neg)], axis=1)


# ------------------------------ kernel wrappers -----------------------------

def linear(x, w, b, activation=None, out_dtype=jnp.bfloat16):
    M, K = x.shape
    N = w.shape[1]
    TM = _pick_tile(M, 512, 16)
    TN = _pick_tile(N, 256, 128)
    TK = _pick_tile(K, 512, 128)
    b2 = b.reshape(1, N).astype(jnp.float32)
    return pl.pallas_call(
        functools.partial(_matmul_kernel, activation=activation),
        out_shape=jax.ShapeDtypeStruct((M, N), out_dtype),
        grid=(M // TM, N // TN, K // TK),
        in_specs=[pl.BlockSpec((TM, TK), lambda i, j, k: (i, k)),
                  pl.BlockSpec((TK, TN), lambda i, j, k: (k, j)),
                  pl.BlockSpec((1, TN), lambda i, j, k: (0, j))],
        out_specs=pl.BlockSpec((TM, TN), lambda i, j, k: (i, j)),
        scratch_shapes=[pltpu.VMEM((TM, TN), jnp.float32)],
        compiler_params=pltpu.CompilerParams(
            dimension_semantics=("parallel", "parallel", "arbitrary"),
            vmem_limit_bytes=_VMEM_LIMIT),
    )(x, w, b2)


def layernorm(x, g, b, eps=1e-12, out_dtype=jnp.bfloat16):
    M, H = x.shape
    TM = _pick_tile(M, 512, 16)
    g2 = g.reshape(1, H).astype(jnp.float32)
    b2 = b.reshape(1, H).astype(jnp.float32)
    return pl.pallas_call(
        functools.partial(_layernorm_kernel, eps=eps),
        out_shape=jax.ShapeDtypeStruct((M, H), out_dtype),
        grid=(M // TM,),
        in_specs=[pl.BlockSpec((TM, H), lambda i: (i, 0)),
                  pl.BlockSpec((1, H), lambda i: (0, 0)),
                  pl.BlockSpec((1, H), lambda i: (0, 0))],
        out_specs=pl.BlockSpec((TM, H), lambda i: (i, 0)),
        compiler_params=pltpu.CompilerParams(
            dimension_semantics=("parallel",),
            vmem_limit_bytes=_VMEM_LIMIT),
    )(x, g2, b2)


def linear_ln(x, w, b, g, beta, residual=None, activation=None,
              eps=1e-12, out_dtype=jnp.bfloat16):
    """Fused linear (+gelu) (+residual) + LayerNorm; whole weight resident,
    grid over row tiles only (N must equal the LayerNorm width)."""
    M, K = x.shape
    N = w.shape[1]
    TM = _pick_tile(M, 256, 16)
    b2 = b.reshape(1, N).astype(jnp.float32)
    g2 = g.reshape(1, N).astype(jnp.float32)
    beta2 = beta.reshape(1, N).astype(jnp.float32)
    x_spec = pl.BlockSpec((TM, K), lambda i: (i, 0))
    w_spec = pl.BlockSpec((K, N), lambda i: (0, 0))
    vec_spec = pl.BlockSpec((1, N), lambda i: (0, 0))
    if residual is None:
        args = (x, w, b2, g2, beta2)
        in_specs = [x_spec, w_spec, vec_spec, vec_spec, vec_spec]
    else:
        args = (x, w, b2, residual, g2, beta2)
        in_specs = [x_spec, w_spec, vec_spec,
                    pl.BlockSpec((TM, N), lambda i: (i, 0)),
                    vec_spec, vec_spec]
    return pl.pallas_call(
        functools.partial(_linear_ln_kernel, activation=activation,
                          has_residual=residual is not None, eps=eps),
        out_shape=jax.ShapeDtypeStruct((M, N), out_dtype),
        grid=(M // TM,),
        in_specs=in_specs,
        out_specs=pl.BlockSpec((TM, N), lambda i: (i, 0)),
        compiler_params=pltpu.CompilerParams(
            dimension_semantics=("parallel",),
            vmem_limit_bytes=_VMEM_LIMIT),
    )(*args)


def ffn_ln(x, wi, bi, wf, bf, g, beta, eps=1e-12, out_dtype=jnp.bfloat16):
    """Fused FFN (wi + GELU + wf) + residual + LayerNorm."""
    M, H = x.shape
    I = wi.shape[1]
    TM = _pick_tile(M, 256, 16)
    bi2 = bi.reshape(1, I).astype(jnp.float32)
    bf2 = bf.reshape(1, H).astype(jnp.float32)
    g2 = g.reshape(1, H).astype(jnp.float32)
    beta2 = beta.reshape(1, H).astype(jnp.float32)
    vecH = pl.BlockSpec((1, H), lambda i: (0, 0))
    return pl.pallas_call(
        functools.partial(_ffn_ln_kernel, eps=eps),
        out_shape=jax.ShapeDtypeStruct((M, H), out_dtype),
        grid=(M // TM,),
        in_specs=[pl.BlockSpec((TM, H), lambda i: (i, 0)),
                  pl.BlockSpec((H, I), lambda i: (0, 0)),
                  pl.BlockSpec((1, I), lambda i: (0, 0)),
                  pl.BlockSpec((I, H), lambda i: (0, 0)),
                  vecH, vecH, vecH],
        out_specs=pl.BlockSpec((TM, H), lambda i: (i, 0)),
        compiler_params=pltpu.CompilerParams(
            dimension_semantics=("parallel",),
            vmem_limit_bytes=_VMEM_LIMIT),
    )(x, wi, bi2, wf, bf2, g2, beta2)


def attention(qkv, bias, *, batch, seq, hidden, n_heads, scale):
    """Q/K/V read straight out of the fused [B*S, 3H] projection; output is
    the merged [B*S, H] layout (lane-dense stores, no head transposes)."""
    M, three_h = qkv.shape
    assert M == batch * seq and three_h == 3 * hidden
    d_head = hidden // n_heads
    TQ = _pick_tile(seq, 256, 16)
    TK = _pick_tile(seq, 256, 128)     # 256 fills v6e/v7x's 256-wide MXU
    SQ, SK = seq // TQ, seq // TK
    return pl.pallas_call(
        functools.partial(_flash_attn_kernel, scale=scale,
                          n_heads=n_heads, d_head=d_head),
        out_shape=jax.ShapeDtypeStruct((M, hidden), jnp.bfloat16),
        grid=(batch, SQ, SK),
        in_specs=[
            # column block 0/1/2 of the [B*S, 3H] array selects Q/K/V
            pl.BlockSpec((TQ, hidden), lambda b, qi, ki, SQ=SQ: (b * SQ + qi, 0)),
            pl.BlockSpec((TK, hidden), lambda b, qi, ki, SK=SK: (b * SK + ki, 1)),
            pl.BlockSpec((TK, hidden), lambda b, qi, ki, SK=SK: (b * SK + ki, 2)),
            pl.BlockSpec((1, 1, TK), lambda b, qi, ki: (b, 0, ki)),
        ],
        out_specs=pl.BlockSpec((TQ, hidden),
                               lambda b, qi, ki, SQ=SQ: (b * SQ + qi, 0)),
        scratch_shapes=[pltpu.VMEM((TQ, n_heads), jnp.float32),
                        pltpu.VMEM((TQ, n_heads), jnp.float32),
                        pltpu.VMEM((TQ, hidden), jnp.float32)],
        compiler_params=pltpu.CompilerParams(
            dimension_semantics=("parallel", "parallel", "arbitrary"),
            vmem_limit_bytes=_VMEM_LIMIT),
    )(qkv, qkv, qkv, bias)


def mask_decoder_head(h_mask, word_emb, dec_b, a_all, w_neu, w_pos, w_neg):
    """Fused decoder + softmax + verbalizer head, vocab-tiled reduction."""
    Bm, H = h_mask.shape
    Vp = word_emb.shape[0]
    P = a_all.shape[1]
    n_neu, n_pos, n_neg = w_neu.shape[0], w_pos.shape[0], w_neg.shape[0]
    assert n_neu + n_pos + n_neg == P and Vp % _VOCAB_ALIGN == 0
    TV = _pick_tile(Vp, 512, _VOCAB_ALIGN)
    db2 = dec_b.reshape(1, Vp).astype(jnp.float32)
    args = (h_mask, word_emb, db2, a_all.astype(jnp.float32),
            w_neu.reshape(1, -1).astype(jnp.float32),
            w_pos.reshape(1, -1).astype(jnp.float32),
            w_neg.reshape(1, -1).astype(jnp.float32))
    return pl.pallas_call(
        functools.partial(_mask_decoder_head_kernel,
                          n_neu=n_neu, n_pos=n_pos, n_neg=n_neg),
        out_shape=jax.ShapeDtypeStruct((Bm, 3), jnp.float32),
        grid=(Vp // TV,),
        in_specs=[pl.BlockSpec((Bm, H), lambda j: (0, 0)),
                  pl.BlockSpec((TV, H), lambda j: (j, 0)),
                  pl.BlockSpec((1, TV), lambda j: (0, j)),
                  pl.BlockSpec((TV, P), lambda j: (j, 0)),
                  pl.BlockSpec((1, n_neu), lambda j: (0, 0)),
                  pl.BlockSpec((1, n_pos), lambda j: (0, 0)),
                  pl.BlockSpec((1, n_neg), lambda j: (0, 0))],
        out_specs=pl.BlockSpec((Bm, 3), lambda j: (0, 0)),
        scratch_shapes=[pltpu.VMEM((Bm, 1), jnp.float32),
                        pltpu.VMEM((Bm, 1), jnp.float32),
                        pltpu.VMEM((Bm, P), jnp.float32)],
        compiler_params=pltpu.CompilerParams(
            dimension_semantics=("arbitrary",),
            vmem_limit_bytes=_VMEM_LIMIT),
    )(*args)


# ------------------------------ model / params ------------------------------

def init_params(key, cfg, n_pos, n_neu, n_neg):
    H, I, V = cfg["hidden"], cfg["intermediate"], cfg["vocab_size"]

    def nrm(k, shape):
        return (jax.random.normal(k, shape, jnp.float32) * 0.02
                ).astype(jnp.bfloat16)

    keys = iter(jax.random.split(key, 128))
    p = {
        "word_emb": nrm(next(keys), (V, H)),
        "pos_emb": nrm(next(keys), (cfg["max_pos"], H)),
        "type_emb": nrm(next(keys), (2, H)),
        "emb_ln_g": jnp.ones((H,), jnp.float32),
        "emb_ln_b": jnp.zeros((H,), jnp.float32),
        "layers": [],
        "mlm_w": nrm(next(keys), (H, H)),
        "mlm_b": jnp.zeros((H,), jnp.float32),
        "mlm_ln_g": jnp.ones((H,), jnp.float32),
        "mlm_ln_b": jnp.zeros((H,), jnp.float32),
        "decoder_b": jnp.zeros((V,), jnp.float32),
        # prompt-verbalizer weights: torch.zeros in the module __init__
        "wpostive": jnp.zeros((n_pos,), jnp.float32),
        "wneutral": jnp.zeros((n_neu,), jnp.float32),
        "wnegative": jnp.zeros((n_neg,), jnp.float32),
    }
    for _ in range(cfg["n_layers"]):
        wq = nrm(next(keys), (H, H))
        wk = nrm(next(keys), (H, H))
        wv = nrm(next(keys), (H, H))
        p["layers"].append({
            # Q, K, V fused into one [H, 3H] weight / [3H] bias
            "wqkv": jnp.concatenate([wq, wk, wv], axis=1),
            "bqkv": jnp.zeros((3 * H,), jnp.float32),
            "wo": nrm(next(keys), (H, H)), "bo": jnp.zeros((H,), jnp.float32),
            "ln1_g": jnp.ones((H,), jnp.float32), "ln1_b": jnp.zeros((H,), jnp.float32),
            "wi": nrm(next(keys), (H, I)), "bi": jnp.zeros((I,), jnp.float32),
            "wf": nrm(next(keys), (I, H)), "bf": jnp.zeros((H,), jnp.float32),
            "ln2_g": jnp.ones((H,), jnp.float32), "ln2_b": jnp.zeros((H,), jnp.float32),
        })
    return p


def build_group_matrix(tokenid_groups, vocab_padded):
    # A[v, i] = count(v in group i) / len(group i)  -> preds @ A == per-group mean
    a = np.zeros((vocab_padded, len(tokenid_groups)), np.float32)
    for i, group in enumerate(tokenid_groups):
        for t in group:
            a[t, i] += 1.0 / len(group)
    return jnp.asarray(a)


def bert_classifier_forward(params, cfg, input_ids, attention_mask,
                            token_type_ids, a_all):
    B, S = input_ids.shape
    H, nH = cfg["hidden"], cfg["n_heads"]
    dH = H // nH
    V = cfg["vocab_size"]

    # --- embeddings (gathers are XLA glue; LayerNorm is a Pallas kernel) ---
    x = (params["word_emb"][input_ids].astype(jnp.float32)
         + params["pos_emb"][None, :S, :].astype(jnp.float32)
         + params["type_emb"][token_type_ids].astype(jnp.float32))
    x = layernorm(x.reshape(B * S, H), params["emb_ln_g"], params["emb_ln_b"])

    # tiny additive mask [B, 1, S]; no [B*nH, S, S] bias is ever materialized
    bias = ((1.0 - attention_mask.astype(jnp.float32)) * -1e9).reshape(B, 1, S)
    scale = 1.0 / float(np.sqrt(dH))

    for lp in params["layers"]:
        h = x                                                   # [B*S, H] bf16
        qkv = linear(h, lp["wqkv"], lp["bqkv"])                 # fused QKV
        ctx = attention(qkv, bias, batch=B, seq=S, hidden=H,
                        n_heads=nH, scale=scale)                # [B*S, H]
        x = linear_ln(ctx, lp["wo"], lp["bo"], lp["ln1_g"], lp["ln1_b"],
                      residual=h)                               # wo + add + LN
        x = ffn_ln(x, lp["wi"], lp["bi"], lp["wf"], lp["bf"],
                   lp["ln2_g"], lp["ln2_b"])                    # FFN + add + LN

    # gather the [MASK] rows BEFORE the MLM transform (row-wise ops commute
    # with the gather): decoder / MLM FLOPs shrink by a factor of S.
    # TODO(synk): assumes exactly one [MASK] per sequence (matches torch.where
    # row order); variable mask counts need a dynamic-size gather.
    mask_pos = jnp.argmax((input_ids == cfg["mask_token_id"]).astype(jnp.int32),
                          axis=1)                                # [B]
    flat_idx = jnp.arange(B, dtype=jnp.int32) * S + mask_pos
    x_mask = jnp.take(x, flat_idx, axis=0)                       # [B, H] bf16

    hm = linear_ln(x_mask, params["mlm_w"], params["mlm_b"],
                   params["mlm_ln_g"], params["mlm_ln_b"],
                   activation="gelu")                            # [B, H] bf16

    # pad the vocab dim so the decoder tiles cleanly (padded logits ~ -1e9)
    Vp = a_all.shape[0]
    word_emb_p = params["word_emb"]
    dec_b = params["decoder_b"].astype(jnp.float32)
    if Vp > V:
        word_emb_p = jnp.pad(word_emb_p, ((0, Vp - V), (0, 0)))
        dec_b = jnp.pad(dec_b, (0, Vp - V), constant_values=-1e9)

    # fused decoder + softmax-over-vocab + verbalizer head
    return mask_decoder_head(hm, word_emb_p, dec_b, a_all,
                             params["wneutral"], params["wpostive"],
                             params["wnegative"])


# ----------------------------------- main -----------------------------------

if __name__ == "__main__":
    cfg = dict(vocab_size=512, hidden=128, n_heads=2, n_layers=2,
               intermediate=256, max_pos=128, mask_token_id=4)

    postive_tokenids = [[10, 11], [12, 13, 14], [15]]
    neutral_tokenids = [[20, 21], [22]]
    negative_tokenids = [[30], [31, 32], [33, 34, 35, 36], [37]]

    key = jax.random.PRNGKey(0)
    k_param, k_ids = jax.random.split(key)
    params = init_params(k_param, cfg,
                         n_pos=len(postive_tokenids),
                         n_neu=len(neutral_tokenids),
                         n_neg=len(negative_tokenids))

    # group matrix columns ordered [neutral | positive | negative], vocab padded
    Vp = _round_up(cfg["vocab_size"], _VOCAB_ALIGN)
    a_all = build_group_matrix(neutral_tokenids + postive_tokenids
                               + negative_tokenids, Vp)

    B, S = 2, 128
    input_ids = jax.random.randint(k_ids, (B, S), 5, cfg["vocab_size"],
                                   dtype=jnp.int32)
    # exactly one [MASK] token per sequence
    input_ids = input_ids.at[0, 3].set(cfg["mask_token_id"])
    input_ids = input_ids.at[1, 7].set(cfg["mask_token_id"])
    attention_mask = jnp.ones((B, S), jnp.int32).at[1, 96:].set(0)
    token_type_ids = jnp.zeros((B, S), jnp.int32)

    fwd = jax.jit(functools.partial(bert_classifier_forward, params, cfg))
    out = fwd(input_ids, attention_mask, token_type_ids, a_all)
    out = jax.block_until_ready(out)
    assert out.shape == (B, 3) and out.dtype == jnp.float32
    assert bool(jnp.all(jnp.isfinite(out)))
    print("KERNEL_OK")
</pallas_src>

<mosaic_0001>
module attributes {stable_mosaic.version = 11 : i64} {
  func.func @_layernorm_kernel(%arg0: i32, %arg1: memref<256x128xf32, #tpu.memory_space<vmem>>, %arg2: memref<1x128xf32, #tpu.memory_space<vmem>>, %arg3: memref<1x128xf32, #tpu.memory_space<vmem>>, %arg4: memref<256x128xbf16, #tpu.memory_space<vmem>>) attributes {dimension_semantics = [#tpu.dimension_semantics<parallel>], iteration_bounds = array<i64: 1>, scalar_prefetch = 0 : i64, scratch_operands = 0 : i64, tpu.core_type = #tpu.core_type<tc>, window_params = [{transform_indices = @transform_0, window_bounds = array<i64: 256, 128>}, {pipeline_mode = #tpu.pipeline_mode<synchronous>, transform_indices = @transform_1, window_bounds = array<i64: 1, 128>}, {pipeline_mode = #tpu.pipeline_mode<synchronous>, transform_indices = @transform_2, window_bounds = array<i64: 1, 128>}, {transform_indices = @transform_3, window_bounds = array<i64: 256, 128>}]} {
    %c0 = arith.constant 0 : index
    %c0_0 = arith.constant 0 : index
    %0 = vector.load %arg1[%c0, %c0_0] : memref<256x128xf32, #tpu.memory_space<vmem>>, vector<256x128xf32>
    %cst = arith.constant dense<0.000000e+00> : vector<256xf32>
    %1 = vector.multi_reduction <add>, %0, %cst [1] : vector<256x128xf32> to vector<256xf32>
    %2 = vector.shape_cast %1 : vector<256xf32> to vector<256x1xf32>
    %cst_1 = arith.constant 1.280000e+02 : f32
    %3 = vector.broadcast %cst_1 : f32 to vector<256x1xf32>
    %4 = arith.divf %2, %3 : vector<256x1xf32>
    %5 = vector.broadcast %4 : vector<256x1xf32> to vector<256x128xf32>
    %6 = arith.subf %0, %5 : vector<256x128xf32>
    %7 = arith.mulf %6, %6 : vector<256x128xf32>
    %cst_2 = arith.constant dense<0.000000e+00> : vector<256xf32>
    %8 = vector.multi_reduction <add>, %7, %cst_2 [1] : vector<256x128xf32> to vector<256xf32>
    %9 = vector.shape_cast %8 : vector<256xf32> to vector<256x1xf32>
    %cst_3 = arith.constant 1.280000e+02 : f32
    %10 = vector.broadcast %cst_3 : f32 to vector<256x1xf32>
    %11 = arith.divf %9, %10 : vector<256x1xf32>
    %12 = vector.broadcast %4 : vector<256x1xf32> to vector<256x128xf32>
    %13 = arith.subf %0, %12 : vector<256x128xf32>
    %cst_4 = arith.constant 9.99999996E-13 : f32
    %14 = vector.broadcast %cst_4 : f32 to vector<256x1xf32>
    %15 = arith.addf %11, %14 : vector<256x1xf32>
    %16 = math.rsqrt %15 : vector<256x1xf32>
    %17 = vector.broadcast %16 : vector<256x1xf32> to vector<256x128xf32>
    %18 = arith.mulf %13, %17 : vector<256x128xf32>
    %c0_5 = arith.constant 0 : index
    %c0_6 = arith.constant 0 : index
    %19 = vector.load %arg2[%c0_5, %c0_6] : memref<1x128xf32, #tpu.memory_space<vmem>>, vector<1x128xf32>
    %20 = vector.broadcast %19 : vector<1x128xf32> to vector<256x128xf32>
    %21 = arith.mulf %18, %20 : vector<256x128xf32>
    %c0_7 = arith.constant 0 : index
    %c0_8 = arith.constant 0 : index
    %22 = vector.load %arg3[%c0_7, %c0_8] : memref<1x128xf32, #tpu.memory_space<vmem>>, vector<1x128xf32>
    %23 = vector.broadcast %22 : vector<1x128xf32> to vector<256x128xf32>
    %24 = arith.addf %21, %23 : vector<256x128xf32>
    %25 = arith.truncf %24 : vector<256x128xf32> to vector<256x128xbf16>
    %c0_9 = arith.constant 0 : index
    %c0_10 = arith.constant 0 : index
    %26 = vector.load %arg4[%c0_9, %c0_10] : memref<256x128xbf16, #tpu.memory_space<vmem>>, vector<256x128xbf16>
    tpu.vector_store %arg4[%c0_9, %c0_10], %25 {strides = array<i32>} : memref<256x128xbf16, #tpu.memory_space<vmem>>, vector<256x128xbf16>,
    return
  }
  func.func @transform_0(%arg0: i32) -> (i32, i32) {
    %c0_i32 = arith.constant 0 : i32
    %c0_i32_0 = arith.constant 0 : i32
    return %arg0, %c0_i32 : i32, i32
  }
  func.func @transform_1(%arg0: i32) -> (i32, i32) {
    %c0_i32 = arith.constant 0 : i32
    %c0_i32_0 = arith.constant 0 : i32
    %c0_i32_1 = arith.constant 0 : i32
    return %c0_i32, %c0_i32_0 : i32, i32
  }
  func.func @transform_2(%arg0: i32) -> (i32, i32) {
    %c0_i32 = arith.constant 0 : i32
    %c0_i32_0 = arith.constant 0 : i32
    %c0_i32_1 = arith.constant 0 : i32
    return %c0_i32, %c0_i32_0 : i32, i32
  }
  func.func @transform_3(%arg0: i32) -> (i32, i32) {
    %c0_i32 = arith.constant 0 : i32
    %c0_i32_0 = arith.constant 0 : i32
    return %arg0, %c0_i32 : i32, i32
  }
}

module attributes {stable_mosaic.version = 11 : i64} {
  func.func @_matmul_kernel(%arg0: i32, %arg1: i32, %arg2: i32, %arg3: memref<256x128xbf16, #tpu.memory_space<vmem>>, %arg4: memref<128x128xbf16, #tpu.memory_space<vmem>>, %arg5: memref<1x128xf32, #tpu.memory_space<vmem>>, %arg6: memref<256x128xbf16, #tpu.memory_space<vmem>>, %arg7: memref<256x128xf32, #tpu.memory_space<vmem>>) attributes {dimension_semantics = [#tpu.dimension_semantics<parallel>, #tpu.dimension_semantics<parallel>, #tpu.dimension_semantics<arbitrary>], iteration_bounds = array<i64: 1, 3, 1>, scalar_prefetch = 0 : i64, scratch_operands = 1 : i64, tpu.core_type = #tpu.core_type<tc>, window_params = [{transform_indices = @transform_0, window_bounds = array<i64: 256, 128>}, {transform_indices = @transform_1, window_bounds = array<i64: 128, 128>}, {transform_indices = @transform_2, window_bounds = array<i64: 1, 128>}, {transform_indices = @transform_3, window_bounds = array<i64: 256, 128>}]} {
    %c0_i32 = arith.constant 0 : i32
    %0 = arith.cmpi eq, %arg2, %c0_i32 : i32
    %1 = arith.extui %0 : i1 to i32
    %c0_i32_0 = arith.constant 0 : i32
    %2 = arith.cmpi ne, %1, %c0_i32_0 : i32
    scf.if %2 {
      %cst_10 = arith.constant 0.000000e+00 : f32
      %12 = vector.broadcast %cst_10 : f32 to vector<256x128xf32>
      %c0_11 = arith.constant 0 : index
      %c0_12 = arith.constant 0 : index
      %13 = vector.load %arg7[%c0_11, %c0_12] : memref<256x128xf32, #tpu.memory_space<vmem>>, vector<256x128xf32>
      tpu.vector_store %arg7[%c0_11, %c0_12], %12 {strides = array<i32>} : memref<256x128xf32, #tpu.memory_space<vmem>>, vector<256x128xf32>,
    } else {
    }
    %c0 = arith.constant 0 : index
    %c0_1 = arith.constant 0 : index
    %3 = vector.load %arg7[%c0, %c0_1] : memref<256x128xf32, #tpu.memory_space<vmem>>, vector<256x128xf32>
    %c0_2 = arith.constant 0 : index
    %c0_3 = arith.constant 0 : index
    %4 = vector.load %arg3[%c0_2, %c0_3] : memref<256x128xbf16, #tpu.memory_space<vmem>>, vector<256x128xbf16>
    %c0_4 = arith.constant 0 : index
    %c0_5 = arith.constant 0 : index
    %5 = vector.load %arg4[%c0_4, %c0_5] : memref<128x128xbf16, #tpu.memory_space<vmem>>, vector<128x128xbf16>
    %cst = arith.constant dense<0.000000e+00> : vector<256x128xf32>
    %6 = tpu.matmul %4, %5, %cst {dimension_numbers = #tpu.dot_dimension_numbers<[1], [0], [0], [1], [0, 0, 1, 1], [], []>} : vector<256x128xbf16>, vector<128x128xbf16>, vector<256x128xf32> -> vector<256x128xf32>
    %7 = arith.addf %3, %6 : vector<256x128xf32>
    %c0_6 = arith.constant 0 : index
    %c0_7 = arith.constant 0 : index
    %8 = vector.load %arg7[%c0_6, %c0_7] : memref<256x128xf32, #tpu.memory_space<vmem>>, vector<256x128xf32>
    tpu.vector_store %arg7[%c0_6, %c0_7], %7 {strides = array<i32>} : memref<256x128xf32, #tpu.memory_space<vmem>>, vector<256x128xf32>,
    %c0_i32_8 = arith.constant 0 : i32
    %9 = arith.cmpi eq, %arg2, %c0_i32_8 : i32
    %10 = arith.extui %9 : i1 to i32
    %c0_i32_9 = arith.constant 0 : i32
    %11 = arith.cmpi ne, %10, %c0_i32_9 : i32
    scf.if %11 {
      %c0_10 = arith.constant 0 : index
      %c0_11 = arith.constant 0 : index
      %12 = vector.load %arg7[%c0_10, %c0_11] : memref<256x128xf32, #tpu.memory_space<vmem>>, vector<256x128xf32>
      %c0_12 = arith.constant 0 : index
      %c0_13 = arith.constant 0 : index
      %13 = vector.load %arg5[%c0_12, %c0_13] : memref<1x128xf32, #tpu.memory_space<vmem>>, vector<1x128xf32>
      %14 = vector.broadcast %13 : vector<1x128xf32> to vector<256x128xf32>
      %15 = arith.addf %12, %14 : vector<256x128xf32>
      %16 = arith.truncf %15 : vector<256x128xf32> to vector<256x128xbf16>
      %c0_14 = arith.constant 0 : index
      %c0_15 = arith.constant 0 : index
      %17 = vector.load %arg6[%c0_14, %c0_15] : memref<256x128xbf16, #tpu.memory_space<vmem>>, vector<256x128xbf16>
      tpu.vector_store %arg6[%c0_14, %c0_15], %16 {strides = array<i32>} : memref<256x128xbf16, #tpu.memory_space<vmem>>, vector<256x128xbf16>,
    } else {
    }
    return
  }
  func.func @transform_0(%arg0: i32, %arg1: i32, %arg2: i32) -> (i32, i32) {
    %c0_i32 = arith.constant 0 : i32
    return %arg0, %arg2 : i32, i32
  }
  func.func @transform_1(%arg0: i32, %arg1: i32, %arg2: i32) -> (i32, i32) {
    %c0_i32 = arith.constant 0 : i32
    return %arg2, %arg1 : i32, i32
  }
  func.func @transform_2(%arg0: i32, %arg1: i32, %arg2: i32) -> (i32, i32) {
    %c0_i32 = arith.constant 0 : i32
    %c0_i32_0 = arith.constant 0 : i32
    return %c0_i32, %arg1 : i32, i32
  }
  func.func @transform_3(%arg0: i32, %arg1: i32, %arg2: i32) -> (i32, i32) {
    %c0_i32 = arith.constant 0 : i32
    return %arg0, %arg1 : i32, i32
  }
}

module attributes {stable_mosaic.version = 11 : i64} {
  func.func @_flash_attn_kernel(%arg0: i32, %arg1: i32, %arg2: i32, %arg3: memref<128x128xbf16, #tpu.memory_space<vmem>>, %arg4: memref<128x128xbf16, #tpu.memory_space<vmem>>, %arg5: memref<128x128xbf16, #tpu.memory_space<vmem>>, %arg6: memref<1x1x128xf32, #tpu.memory_space<vmem>>, %arg7: memref<128x128xbf16, #tpu.memory_space<vmem>>, %arg8: memref<128x2xf32, #tpu.memory_space<vmem>>, %arg9: memref<128x2xf32, #tpu.memory_space<vmem>>, %arg10: memref<128x128xf32, #tpu.memory_space<vmem>>) attributes {dimension_semantics = [#tpu.dimension_semantics<parallel>, #tpu.dimension_semantics<parallel>, #tpu.dimension_semantics<arbitrary>], iteration_bounds = array<i64: 2, 1, 1>, scalar_prefetch = 0 : i64, scratch_operands = 3 : i64, tpu.core_type = #tpu.core_type<tc>, window_params = [{transform_indices = @transform_0, window_bounds = array<i64: 128, 128>}, {transform_indices = @transform_1, window_bounds = array<i64: 128, 128>}, {transform_indices = @transform_2, window_bounds = array<i64: 128, 128>}, {transform_indices = @transform_3, window_bounds = array<i64: 1, 1, 128>}, {transform_indices = @transform_4, window_bounds = array<i64: 128, 128>}]} {
    %c0_i32 = arith.constant 0 : i32
    %0 = arith.cmpi eq, %arg2, %c0_i32 : i32
    %1 = arith.extui %0 : i1 to i32
    %c0_i32_0 = arith.constant 0 : i32
    %2 = arith.cmpi ne, %1, %c0_i32_0 : i32
    scf.if %2 {
      %cst_48 = arith.constant 0xFF800000 : f32
      %70 = vector.broadcast %cst_48 : f32 to vector<128x2xf32>
      %c0_49 = arith.constant 0 : index
      %c0_50 = arith.constant 0 : index
      %71 = vector.load %arg8[%c0_49, %c0_50] : memref<128x2xf32, #tpu.memory_space<vmem>>, vector<128x2xf32>
      tpu.vector_store %arg8[%c0_49, %c0_50], %70 {strides = array<i32>} : memref<128x2xf32, #tpu.memory_space<vmem>>, vector<128x2xf32>,
      %cst_51 = arith.constant 0.000000e+00 : f32
      %72 = vector.broadcast %cst_51 : f32 to vector<128x2xf32>
      %c0_52 = arith.constant 0 : index
      %c0_53 = arith.constant 0 : index
      %73 = vector.load %arg9[%c0_52, %c0_53] : memref<128x2xf32, #tpu.memory_space<vmem>>, vector<128x2xf32>
      tpu.vector_store %arg9[%c0_52, %c0_53], %72 {strides = array<i32>} : memref<128x2xf32, #tpu.memory_space<vmem>>, vector<128x2xf32>,
      %cst_54 = arith.constant 0.000000e+00 : f32
      %74 = vector.broadcast %cst_54 : f32 to vector<128x128xf32>
      %c0_55 = arith.constant 0 : index
      %c0_56 = arith.constant 0 : index
      %75 = vector.load %arg10[%c0_55, %c0_56] : memref<128x128xf32, #tpu.memory_space<vmem>>, vector<128x128xf32>
      tpu.vector_store %arg10[%c0_55, %c0_56], %74 {strides = array<i32>} : memref<128x128xf32, #tpu.memory_space<vmem>>, vector<128x128xf32>,
    } else {
    }
    %c0 = arith.constant 0 : index
    %c0_1 = arith.constant 0 : index
    %c0_2 = arith.constant 0 : index
    %3 = vector.load %arg6[%c0, %c0_1, %c0_2] : memref<1x1x128xf32, #tpu.memory_space<vmem>>, vector<1x1x128xf32>
    %4 = vector.shape_cast %3 : vector<1x1x128xf32> to vector<1x128xf32>
    %c0_3 = arith.constant 0 : index
    %c0_4 = arith.constant 0 : index
    %5 = vector.load %arg3[%c0_3, %c0_4] : memref<128x128xbf16, #tpu.memory_space<vmem>>, vector<128x64xbf16>
    %c0_5 = arith.constant 0 : index
    %c0_6 = arith.constant 0 : index
    %6 = vector.load %arg4[%c0_5, %c0_6] : memref<128x128xbf16, #tpu.memory_space<vmem>>, vector<128x64xbf16>
    %cst = arith.constant dense<0.000000e+00> : vector<128x128xf32>
    %7 = tpu.matmul %5, %6, %cst {dimension_numbers = #tpu.dot_dimension_numbers<[1], [1], [0], [0], [0, 0, 1, 0], [], []>} : vector<128x64xbf16>, vector<128x64xbf16>, vector<128x128xf32> -> vector<128x128xf32>
    %cst_7 = arith.constant 1.250000e-01 : f32
    %8 = vector.broadcast %cst_7 : f32 to vector<128x128xf32>
    %9 = arith.mulf %7, %8 : vector<128x128xf32>
    %10 = vector.broadcast %4 : vector<1x128xf32> to vector<128x128xf32>
    %11 = arith.addf %9, %10 : vector<128x128xf32>
    %c0_8 = arith.constant 0 : index
    %c0_9 = arith.constant 0 : index
    %12 = vector.load %arg8[%c0_8, %c0_9] : memref<128x2xf32, #tpu.memory_space<vmem>>, vector<128x1xf32>
    %cst_10 = arith.constant dense<0xFF800000> : vector<128xf32>
    %13 = vector.multi_reduction <maximumf>, %11, %cst_10 [1] : vector<128x128xf32> to vector<128xf32>
    %14 = vector.shape_cast %13 : vector<128xf32> to vector<128x1xf32>
    %15 = arith.maximumf %12, %14 : vector<128x1xf32>
    %16 = arith.subf %12, %15 : vector<128x1xf32>
    %17 = math.exp %16 : vector<128x1xf32>
    %18 = vector.broadcast %15 : vector<128x1xf32> to vector<128x128xf32>
    %19 = arith.subf %11, %18 : vector<128x128xf32>
    %20 = math.exp %19 : vector<128x128xf32>
    %c0_11 = arith.constant 0 : index
    %c0_12 = arith.constant 0 : index
    %21 = vector.load %arg9[%c0_11, %c0_12] : memref<128x2xf32, #tpu.memory_space<vmem>>, vector<128x1xf32>
    %22 = arith.mulf %17, %21 : vector<128x1xf32>
    %cst_13 = arith.constant dense<0.000000e+00> : vector<128xf32>
    %23 = vector.multi_reduction <add>, %20, %cst_13 [1] : vector<128x128xf32> to vector<128xf32>
    %24 = vector.shape_cast %23 : vector<128xf32> to vector<128x1xf32>
    %25 = arith.addf %22, %24 : vector<128x1xf32>
    %c0_14 = arith.constant 0 : index
    %c0_15 = arith.constant 0 : index
    %26 = vector.load %arg9[%c0_14, %c0_15] : memref<128x2xf32, #tpu.memory_space<vmem>>, vector<128x1xf32>
    tpu.vector_store %arg9[%c0_14, %c0_15], %25 {strides = array<i32>} : memref<128x2xf32, #tpu.memory_space<vmem>>, vector<128x1xf32>,
    %c0_16 = arith.constant 0 : index
    %c0_17 = arith.constant 0 : index
    %27 = vector.load %arg10[%c0_16, %c0_17] : memref<128x128xf32, #tpu.memory_space<vmem>>, vector<128x64xf32>
    %28 = vector.broadcast %17 : vector<128x1xf32> to vector<128x64xf32>
    %29 = arith.mulf %28, %27 : vector<128x64xf32>
    %30 = arith.truncf %20 : vector<128x128xf32> to vector<128x128xbf16>
    %c0_18 = arith.constant 0 : index
    %c0_19 = arith.constant 0 : index
    %31 = vector.load %arg5[%c0_18, %c0_19] : memref<128x128xbf16, #tpu.memory_space<vmem>>, vector<128x64xbf16>
    %cst_20 = arith.constant dense<0.000000e+00> : vector<128x64xf32>
    %32 = tpu.matmul %30, %31, %cst_20 {dimension_numbers = #tpu.dot_dimension_numbers<[1], [0], [0], [1], [0, 0, 1, 1], [], []>} : vector<128x128xbf16>, vector<128x64xbf16>, vector<128x64xf32> -> vector<128x64xf32>
    %33 = arith.addf %29, %32 : vector<128x64xf32>
    %c0_21 = arith.constant 0 : index
    %c0_22 = arith.constant 0 : index
    %34 = vector.load %arg10[%c0_21, %c0_22] : memref<128x128xf32, #tpu.memory_space<vmem>>, vector<128x64xf32>
    tpu.vector_store %arg10[%c0_21, %c0_22], %33 {strides = array<i32>} : memref<128x128xf32, #tpu.memory_space<vmem>>, vector<128x64xf32>,
    %c0_23 = arith.constant 0 : index
    %c0_24 = arith.constant 0 : index
    %35 = vector.load %arg8[%c0_23, %c0_24] : memref<128x2xf32, #tpu.memory_space<vmem>>, vector<128x1xf32>
    tpu.vector_store %arg8[%c0_23, %c0_24], %15 {strides = array<i32>} : memref<128x2xf32, #tpu.memory_space<vmem>>, vector<128x1xf32>,
    %c0_25 = arith.constant 0 : index
    %c64 = arith.constant 64 : index
    %36 = vector.load %arg3[%c0_25, %c64] : memref<128x128xbf16, #tpu.memory_space<vmem>>, vector<128x64xbf16>
    %c0_26 = arith.constant 0 : index
    %c64_27 = arith.constant 64 : index
    %37 = vector.load %arg4[%c0_26, %c64_27] : memref<128x128xbf16, #tpu.memory_space<vmem>>, vector<128x64xbf16>
    %cst_28 = arith.constant dense<0.000000e+00> : vector<128x128xf32>
    %38 = tpu.matmul %36, %37, %cst_28 {dimension_numbers = #tpu.dot_dimension_numbers<[1], [1], [0], [0], [0, 0, 1, 0], [], []>} : vector<128x64xbf16>, vector<128x64xbf16>, vector<128x128xf32> -> vector<128x128xf32>
    %cst_29 = arith.constant 1.250000e-01 : f32
    %39 = vector.broadcast %cst_29 : f32 to vector<128x128xf32>
    %40 = arith.mulf %38, %39 : vector<128x128xf32>
    %41 = vector.broadcast %4 : vector<1x128xf32> to vector<128x128xf32>
    %42 = arith.addf %40, %41 : vector<128x128xf32>
    %c0_30 = arith.constant 0 : index
    %c1 = arith.constant 1 : index
    %43 = vector.load %arg8[%c0_30, %c1] : memref<128x2xf32, #tpu.memory_space<vmem>>, vector<128x1xf32>
    %cst_31 = arith.constant dense<0xFF800000> : vector<128xf32>
    %44 = vector.multi_reduction <maximumf>, %42, %cst_31 [1] : vector<128x128xf32> to vector<128xf32>
    %45 = vector.shape_cast %44 : vector<128xf32> to vector<128x1xf32>
    %46 = arith.maximumf %43, %45 : vector<128x1xf32>
    %47 = arith.subf %43, %46 : vector<128x1xf32>
    %48 = math.exp %47 : vector<128x1xf32>
    %49 = vector.broadcast %46 : vector<128x1xf32> to vector<128x128xf32>
    %50 = arith.subf %42, %49 : vector<128x128xf32>
    %51 = math.exp %50 : vector<128x128xf32>
    %c0_32 = arith.constant 0 : index
    %c1_33 = arith.constant 1 : index
    %52 = vector.load %arg9[%c0_32, %c1_33] : memref<128x2xf32, #tpu.memory_space<vmem>>, vector<128x1xf32>
    %53 = arith.mulf %48, %52 : vector<128x1xf32>
    %cst_34 = arith.constant dense<0.000000e+00> : vector<128xf32>
    %54 = vector.multi_reduction <add>, %51, %cst_34 [1] : vector<128x128xf32> to vector<128xf32>
    %55 = vector.shape_cast %54 : vector<128xf32> to vector<128x1xf32>
    %56 = arith.addf %53, %55 : vector<128x1xf32>
    %c0_35 = arith.constant 0 : index
    %c1_36 = arith.constant 1 : index
    %57 = vector.load %arg9[%c0_35, %c1_36] : memref<128x2xf32, #tpu.memory_space<vmem>>, vector<128x1xf32>
    tpu.vector_store %arg9[%c0_35, %c1_36], %56 {strides = array<i32>} : memref<128x2xf32, #tpu.memory_space<vmem>>, vector<128x1xf32>,
    %c0_37 = arith.constant 0 : index
    %c64_38 = arith.constant 64 : index
    %58 = vector.load %arg10[%c0_37, %c64_38] : memref<128x128xf32, #tpu.memory_space<vmem>>, vector<128x64xf32>
    %59 = vector.broadcast %48 : vector<128x1xf32> to vector<128x64xf32>
    %60 = arith.mulf %59, %58 : vector<128x64xf32>
    %61 = arith.truncf %51 : vector<128x128xf32> to vector<128x128xbf16>
    %c0_39 = arith.constant 0 : index
    %c64_40 = arith.constant 64 : index
    %62 = vector.load %arg5[%c0_39, %c64_40] : memref<128x128xbf16, #tpu.memory_space<vmem>>, vector<128x64xbf16>
    %cst_41 = arith.constant dense<0.000000e+00> : vector<128x64xf32>
    %63 = tpu.matmul %61, %62, %cst_41 {dimension_numbers = #tpu.dot_dimension_numbers<[1], [0], [0], [1], [0, 0, 1, 1], [], []>} : vector<128x128xbf16>, vector<128x64xbf16>, vector<128x64xf32> -> vector<128x64xf32>
    %64 = arith.addf %60, %63 : vector<128x64xf32>
    %c0_42 = arith.constant 0 : index
    %c64_43 = arith.constant 64 : index
    %65 = vector.load %arg10[%c0_42, %c64_43] : memref<128x128xf32, #tpu.memory_space<vmem>>, vector<128x64xf32>
    tpu.vector_store %arg10[%c0_42, %c64_43], %64 {strides = array<i32>} : memref<128x128xf32, #tpu.memory_space<vmem>>, vector<128x64xf32>,
    %c0_44 = arith.constant 0 : index
    %c1_45 = arith.constant 1 : index
    %66 = vector.load %arg8[%c0_44, %c1_45] : memref<128x2xf32, #tpu.memory_space<vmem>>, vector<128x1xf32>
    tpu.vector_store %arg8[%c0_44, %c1_45], %46 {strides = array<i32>} : memref<128x2xf32, #tpu.memory_space<vmem>>, vector<128x1xf32>,
    %c0_i32_46 = arith.constant 0 : i32
    %67 = arith.cmpi eq, %arg2, %c0_i32_46 : i32
    %68 = arith.extui %67 : i1 to i32
    %c0_i32_47 = arith.constant 0 : i32
    %69 = arith.cmpi ne, %68, %c0_i32_47 : i32
    scf.if %69 {
      %c0_48 = arith.constant 0 : index
      %c0_49 = arith.constant 0 : index
      %70 = vector.load %arg10[%c0_48, %c0_49] : memref<128x128xf32, #tpu.memory_space<vmem>>, vector<128x64xf32>
      %c0_50 = arith.constant 0 : index
      %c0_51 = arith.constant 0 : index
      %71 = vector.load %arg9[%c0_50, %c0_51] : memref<128x2xf32, #tpu.memory_space<vmem>>, vector<128x1xf32>
      %72 = tpu.reciprocal %71 {approx = true} : vector<128x1xf32> -> vector<128x1xf32>
      %73 = vector.broadcast %72 : vector<128x1xf32> to vector<128x64xf32>
      %74 = arith.mulf %70, %73 : vector<128x64xf32>
      %c0_52 = arith.constant 0 : index
      %c64_53 = arith.constant 64 : index
      %75 = vector.load %arg10[%c0_52, %c64_53] : memref<128x128xf32, #tpu.memory_space<vmem>>, vector<128x64xf32>
      %c0_54 = arith.constant 0 : index
      %c1_55 = arith.constant 1 : index
      %76 = vector.load %arg9[%c0_54, %c1_55] : memref<128x2xf32, #tpu.memory_space<vmem>>, vector<128x1xf32>
      %77 = tpu.reciprocal %76 {approx = true} : vector<128x1xf32> -> vector<128x1xf32>
      %78 = vector.broadcast %77 : vector<128x1xf32> to vector<128x64xf32>
      %79 = arith.mulf %75, %78 : vector<128x64xf32>
      %80 = tpu.concatenate %74, %79 in 1 : vector<128x64xf32>, vector<128x64xf32> -> vector<128x128xf32>
      %81 = arith.truncf %80 : vector<128x128xf32> to vector<128x128xbf16>
      %c0_56 = arith.constant 0 : index
      %c0_57 = arith.constant 0 : index
      %82 = vector.load %arg7[%c0_56, %c0_57] : memref<128x128xbf16, #tpu.memory_space<vmem>>, vector<128x128xbf16>
      tpu.vector_store %arg7[%c0_56, %c0_57], %81 {strides = array<i32>} : memref<128x128xbf16, #tpu.memory_space<vmem>>, vector<128x128xbf16>,
    } else {
    }
    return
  }
  func.func @transform_0(%arg0: i32, %arg1: i32, %arg2: i32) -> (i32, i32) {
    %c1_i32 = arith.constant 1 : i32
    %0 = arith.muli %arg0, %c1_i32 : i32
    %1 = arith.addi %0, %arg1 : i32
    %c0_i32 = arith.constant 0 : i32
    %c0_i32_0 = arith.constant 0 : i32
    return %1, %c0_i32 : i32, i32
  }
  func.func @transform_1(%arg0: i32, %arg1: i32, %arg2: i32) -> (i32, i32) {
    %c1_i32 = arith.constant 1 : i32
    %0 = arith.muli %arg0, %c1_i32 : i32
    %1 = arith.addi %0, %arg2 : i32
    %c1_i32_0 = arith.constant 1 : i32
    %c0_i32 = arith.constant 0 : i32
    return %1, %c1_i32_0 : i32, i32
  }
  func.func @transform_2(%arg0: i32, %arg1: i32, %arg2: i32) -> (i32, i32) {
    %c1_i32 = arith.constant 1 : i32
    %0 = arith.muli %arg0, %c1_i32 : i32
    %1 = arith.addi %0, %arg2 : i32
    %c2_i32 = arith.constant 2 : i32
    %c0_i32 = arith.constant 0 : i32
    return %1, %c2_i32 : i32, i32
  }
  func.func @transform_3(%arg0: i32, %arg1: i32, %arg2: i32) -> (i32, i32, i32) {
    %c0_i32 = arith.constant 0 : i32
    %c0_i32_0 = arith.constant 0 : i32
    return %arg0, %c0_i32, %arg2 : i32, i32, i32
  }
  func.func @transform_4(%arg0: i32, %arg1: i32, %arg2: i32) -> (i32, i32) {
    %c1_i32 = arith.constant 1 : i32
    %0 = arith.muli %arg0, %c1_i32 : i32
    %1 = arith.addi %0, %arg1 : i32
    %c0_i32 = arith.constant 0 : i32
    %c0_i32_0 = arith.constant 0 : i32
    return %1, %c0_i32 : i32, i32
  }
}

module attributes {stable_mosaic.version = 11 : i64} {
  func.func @_linear_ln_kernel(%arg0: i32, %arg1: memref<256x128xbf16, #tpu.memory_space<vmem>>, %arg2: memref<128x128xbf16, #tpu.memory_space<vmem>>, %arg3: memref<1x128xf32, #tpu.memory_space<vmem>>, %arg4: memref<256x128xbf16, #tpu.memory_space<vmem>>, %arg5: memref<1x128xf32, #tpu.memory_space<vmem>>, %arg6: memref<1x128xf32, #tpu.memory_space<vmem>>, %arg7: memref<256x128xbf16, #tpu.memory_space<vmem>>) attributes {dimension_semantics = [#tpu.dimension_semantics<parallel>], iteration_bounds = array<i64: 1>, scalar_prefetch = 0 : i64, scratch_operands = 0 : i64, tpu.core_type = #tpu.core_type<tc>, window_params = [{transform_indices = @transform_0, window_bounds = array<i64: 256, 128>}, {pipeline_mode = #tpu.pipeline_mode<synchronous>, transform_indices = @transform_1, window_bounds = array<i64: 128, 128>}, {pipeline_mode = #tpu.pipeline_mode<synchronous>, transform_indices = @transform_2, window_bounds = array<i64: 1, 128>}, {transform_indices = @transform_3, window_bounds = array<i64: 256, 128>}, {pipeline_mode = #tpu.pipeline_mode<synchronous>, transform_indices = @transform_4, window_bounds = array<i64: 1, 128>}, {pipeline_mode = #tpu.pipeline_mode<synchronous>, transform_indices = @transform_5, window_bounds = array<i64: 1, 128>}, {transform_indices = @transform_6, window_bounds = array<i64: 256, 128>}]} {
    %c0 = arith.constant 0 : index
    %c0_0 = arith.constant 0 : index
    %0 = vector.load %arg1[%c0, %c0_0] : memref<256x128xbf16, #tpu.memory_space<vmem>>, vector<256x128xbf16>
    %c0_1 = arith.constant 0 : index
    %c0_2 = arith.constant 0 : index
    %1 = vector.load %arg2[%c0_1, %c0_2] : memref<128x128xbf16, #tpu.memory_space<vmem>>, vector<128x128xbf16>
    %cst = arith.constant dense<0.000000e+00> : vector<256x128xf32>
    %2 = tpu.matmul %0, %1, %cst {dimension_numbers = #tpu.dot_dimension_numbers<[1], [0], [0], [1], [0, 0, 1, 1], [], []>} : vector<256x128xbf16>, vector<128x128xbf16>, vector<256x128xf32> -> vector<256x128xf32>
    %c0_3 = arith.constant 0 : index
    %c0_4 = arith.constant 0 : index
    %3 = vector.load %arg3[%c0_3, %c0_4] : memref<1x128xf32, #tpu.memory_space<vmem>>, vector<1x128xf32>
    %4 = vector.broadcast %3 : vector<1x128xf32> to vector<256x128xf32>
    %5 = arith.addf %2, %4 : vector<256x128xf32>
    %c0_5 = arith.constant 0 : index
    %c0_6 = arith.constant 0 : index
    %6 = vector.load %arg4[%c0_5, %c0_6] : memref<256x128xbf16, #tpu.memory_space<vmem>>, vector<256x128xbf16>
    %7 = arith.extf %6 : vector<256x128xbf16> to vector<256x128xf32>
    %8 = arith.addf %5, %7 : vector<256x128xf32>
    %cst_7 = arith.constant dense<0.000000e+00> : vector<256xf32>
    %9 = vector.multi_reduction <add>, %8, %cst_7 [1] : vector<256x128xf32> to vector<256xf32>
    %10 = vector.shape_cast %9 : vector<256xf32> to vector<256x1xf32>
    %cst_8 = arith.constant 1.280000e+02 : f32
    %11 = vector.broadcast %cst_8 : f32 to vector<256x1xf32>
    %12 = arith.divf %10, %11 : vector<256x1xf32>
    %13 = vector.broadcast %12 : vector<256x1xf32> to vector<256x128xf32>
    %14 = arith.subf %8, %13 : vector<256x128xf32>
    %15 = arith.mulf %14, %14 : vector<256x128xf32>
    %cst_9 = arith.constant dense<0.000000e+00> : vector<256xf32>
    %16 = vector.multi_reduction <add>, %15, %cst_9 [1] : vector<256x128xf32> to vector<256xf32>
    %17 = vector.shape_cast %16 : vector<256xf32> to vector<256x1xf32>
    %cst_10 = arith.constant 1.280000e+02 : f32
    %18 = vector.broadcast %cst_10 : f32 to vector<256x1xf32>
    %19 = arith.divf %17, %18 : vector<256x1xf32>
    %20 = vector.broadcast %12 : vector<256x1xf32> to vector<256x128xf32>
    %21 = arith.subf %8, %20 : vector<256x128xf32>
    %cst_11 = arith.constant 9.99999996E-13 : f32
    %22 = vector.broadcast %cst_11 : f32 to vector<256x1xf32>
    %23 = arith.addf %19, %22 : vector<256x1xf32>
    %24 = math.rsqrt %23 : vector<256x1xf32>
    %25 = vector.broadcast %24 : vector<256x1xf32> to vector<256x128xf32>
    %26 = arith.mulf %21, %25 : vector<256x128xf32>
    %c0_12 = arith.constant 0 : index
    %c0_13 = arith.constant 0 : index
    %27 = vector.load %arg5[%c0_12, %c0_13] : memref<1x128xf32, #tpu.memory_space<vmem>>, vector<1x128xf32>
    %28 = vector.broadcast %27 : vector<1x128xf32> to vector<256x128xf32>
    %29 = arith.mulf %26, %28 : vector<256x128xf32>
    %c0_14 = arith.constant 0 : index
    %c0_15 = arith.constant 0 : index
    %30 = vector.load %arg6[%c0_14, %c0_15] : memref<1x128xf32, #tpu.memory_space<vmem>>, vector<1x128xf32>
    %31 = vector.broadcast %30 : vector<1x128xf32> to vector<256x128xf32>
    %32 = arith.addf %29, %31 : vector<256x128xf32>
    %33 = arith.truncf %32 : vector<256x128xf32> to vector<256x128xbf16>
    %c0_16 = arith.constant 0 : index
    %c0_17 = arith.constant 0 : index
    %34 = vector.load %arg7[%c0_16, %c0_17] : memref<256x128xbf16, #tpu.memory_space<vmem>>, vector<256x128xbf16>
    tpu.vector_store %arg7[%c0_16, %c0_17], %33 {strides = array<i32>} : memref<256x128xbf16, #tpu.memory_space<vmem>>, vector<256x128xbf16>,
    return
  }
  func.func @transform_0(%arg0: i32) -> (i32, i32) {
    %c0_i32 = arith.constant 0 : i32
    %c0_i32_0 = arith.constant 0 : i32
    return %arg0, %c0_i32 : i32, i32
  }
  func.func @transform_1(%arg0: i32) -> (i32, i32) {
    %c0_i32 = arith.constant 0 : i32
    %c0_i32_0 = arith.constant 0 : i32
    %c0_i32_1 = arith.constant 0 : i32
    return %c0_i32, %c0_i32_0 : i32, i32
  }
  func.func @transform_2(%arg0: i32) -> (i32, i32) {
    %c0_i32 = arith.constant 0 : i32
    %c0_i32_0 = arith.constant 0 : i32
    %c0_i32_1 = arith.constant 0 : i32
    return %c0_i32, %c0_i32_0 : i32, i32
  }
  func.func @transform_3(%arg0: i32) -> (i32, i32) {
    %c0_i32 = arith.constant 0 : i32
    %c0_i32_0 = arith.constant 0 : i32
    return %arg0, %c0_i32 : i32, i32
  }
  func.func @transform_4(%arg0: i32) -> (i32, i32) {
    %c0_i32 = arith.constant 0 : i32
    %c0_i32_0 = arith.constant 0 : i32
    %c0_i32_1 = arith.constant 0 : i32
    return %c0_i32, %c0_i32_0 : i32, i32
  }
  func.func @transform_5(%arg0: i32) -> (i32, i32) {
    %c0_i32 = arith.constant 0 : i32
    %c0_i32_0 = arith.constant 0 : i32
    %c0_i32_1 = arith.constant 0 : i32
    return %c0_i32, %c0_i32_0 : i32, i32
  }
  func.func @transform_6(%arg0: i32) -> (i32, i32) {
    %c0_i32 = arith.constant 0 : i32
    %c0_i32_0 = arith.constant 0 : i32
    return %arg0, %c0_i32 : i32, i32
  }
}

module attributes {stable_mosaic.version = 11 : i64} {
  func.func @_ffn_ln_kernel(%arg0: i32, %arg1: memref<256x128xbf16, #tpu.memory_space<vmem>>, %arg2: memref<128x256xbf16, #tpu.memory_space<vmem>>, %arg3: memref<1x256xf32, #tpu.memory_space<vmem>>, %arg4: memref<256x128xbf16, #tpu.memory_space<vmem>>, %arg5: memref<1x128xf32, #tpu.memory_space<vmem>>, %arg6: memref<1x128xf32, #tpu.memory_space<vmem>>, %arg7: memref<1x128xf32, #tpu.memory_space<vmem>>, %arg8: memref<256x128xbf16, #tpu.memory_space<vmem>>) attributes {dimension_semantics = [#tpu.dimension_semantics<parallel>], iteration_bounds = array<i64: 1>, scalar_prefetch = 0 : i64, scratch_operands = 0 : i64, tpu.core_type = #tpu.core_type<tc>, window_params = [{transform_indices = @transform_0, window_bounds = array<i64: 256, 128>}, {pipeline_mode = #tpu.pipeline_mode<synchronous>, transform_indices = @transform_1, window_bounds = array<i64: 128, 256>}, {pipeline_mode = #tpu.pipeline_mode<synchronous>, transform_indices = @transform_2, window_bounds = array<i64: 1, 256>}, {pipeline_mode = #tpu.pipeline_mode<synchronous>, transform_indices = @transform_3, window_bounds = array<i64: 256, 128>}, {pipeline_mode = #tpu.pipeline_mode<synchronous>, transform_indices = @transform_4, window_bounds = array<i64: 1, 128>}, {pipeline_mode = #tpu.pipeline_mode<synchronous>, transform_indices = @transform_5, window_bounds = array<i64: 1, 128>}, {pipeline_mode = #tpu.pipeline_mode<synchronous>, transform_indices = @transform_6, window_bounds = array<i64: 1, 128>}, {transform_indices = @transform_7, window_bounds = array<i64: 256, 128>}]} {
    %c0 = arith.constant 0 : index
    %c0_0 = arith.constant 0 : index
    %0 = vector.load %arg1[%c0, %c0_0] : memref<256x128xbf16, #tpu.memory_space<vmem>>, vector<256x128xbf16>
    %c0_1 = arith.constant 0 : index
    %c0_2 = arith.constant 0 : index
    %1 = vector.load %arg2[%c0_1, %c0_2] : memref<128x256xbf16, #tpu.memory_space<vmem>>, vector<128x256xbf16>
    %cst = arith.constant dense<0.000000e+00> : vector<256x256xf32>
    %2 = tpu.matmul %0, %1, %cst {dimension_numbers = #tpu.dot_dimension_numbers<[1], [0], [0], [1], [0, 0, 1, 1], [], []>} : vector<256x128xbf16>, vector<128x256xbf16>, vector<256x256xf32> -> vector<256x256xf32>
    %c0_3 = arith.constant 0 : index
    %c0_4 = arith.constant 0 : index
    %3 = vector.load %arg3[%c0_3, %c0_4] : memref<1x256xf32, #tpu.memory_space<vmem>>, vector<1x256xf32>
    %4 = vector.broadcast %3 : vector<1x256xf32> to vector<256x256xf32>
    %5 = arith.addf %2, %4 : vector<256x256xf32>
    %6 = arith.mulf %5, %5 : vector<256x256xf32>
    %7 = arith.mulf %5, %6 : vector<256x256xf32>
    %cst_5 = arith.constant 4.471500e-02 : f32
    %8 = vector.broadcast %cst_5 : f32 to vector<256x256xf32>
    %9 = arith.mulf %8, %7 : vector<256x256xf32>
    %10 = arith.addf %5, %9 : vector<256x256xf32>
    %cst_6 = arith.constant 0.797884583 : f32
    %11 = vector.broadcast %cst_6 : f32 to vector<256x256xf32>
    %12 = arith.mulf %11, %10 : vector<256x256xf32>
    %13 = math.tanh %12 : vector<256x256xf32>
    %cst_7 = arith.constant 1.000000e+00 : f32
    %14 = vector.broadcast %cst_7 : f32 to vector<256x256xf32>
    %15 = arith.addf %14, %13 : vector<256x256xf32>
    %cst_8 = arith.constant 5.000000e-01 : f32
    %16 = vector.broadcast %cst_8 : f32 to vector<256x256xf32>
    %17 = arith.mulf %16, %15 : vector<256x256xf32>
    %18 = arith.mulf %5, %17 : vector<256x256xf32>
    %19 = arith.truncf %18 : vector<256x256xf32> to vector<256x256xbf16>
    %c0_9 = arith.constant 0 : index
    %c0_10 = arith.constant 0 : index
    %20 = vector.load %arg4[%c0_9, %c0_10] : memref<256x128xbf16, #tpu.memory_space<vmem>>, vector<256x128xbf16>
    %cst_11 = arith.constant dense<0.000000e+00> : vector<256x128xf32>
    %21 = tpu.matmul %19, %20, %cst_11 {dimension_numbers = #tpu.dot_dimension_numbers<[1], [0], [0], [1], [0, 0, 1, 1], [], []>} : vector<256x256xbf16>, vector<256x128xbf16>, vector<256x128xf32> -> vector<256x128xf32>
    %c0_12 = arith.constant 0 : index
    %c0_13 = arith.constant 0 : index
    %22 = vector.load %arg5[%c0_12, %c0_13] : memref<1x128xf32, #tpu.memory_space<vmem>>, vector<1x128xf32>
    %23 = vector.broadcast %22 : vector<1x128xf32> to vector<256x128xf32>
    %24 = arith.addf %21, %23 : vector<256x128xf32>
    %25 = arith.extf %0 : vector<256x128xbf16> to vector<256x128xf32>
    %26 = arith.addf %24, %25 : vector<256x128xf32>
    %cst_14 = arith.constant dense<0.000000e+00> : vector<256xf32>
    %27 = vector.multi_reduction <add>, %26, %cst_14 [1] : vector<256x128xf32> to vector<256xf32>
    %28 = vector.shape_cast %27 : vector<256xf32> to vector<256x1xf32>
    %cst_15 = arith.constant 1.280000e+02 : f32
    %29 = vector.broadcast %cst_15 : f32 to vector<256x1xf32>
    %30 = arith.divf %28, %29 : vector<256x1xf32>
    %31 = vector.broadcast %30 : vector<256x1xf32> to vector<256x128xf32>
    %32 = arith.subf %26, %31 : vector<256x128xf32>
    %33 = arith.mulf %32, %32 : vector<256x128xf32>
    %cst_16 = arith.constant dense<0.000000e+00> : vector<256xf32>
    %34 = vector.multi_reduction <add>, %33, %cst_16 [1] : vector<256x128xf32> to vector<256xf32>
    %35 = vector.shape_cast %34 : vector<256xf32> to vector<256x1xf32>
    %cst_17 = arith.constant 1.280000e+02 : f32
    %36 = vector.broadcast %cst_17 : f32 to vector<256x1xf32>
    %37 = arith.divf %35, %36 : vector<256x1xf32>
    %38 = vector.broadcast %30 : vector<256x1xf32> to vector<256x128xf32>
    %39 = arith.subf %26, %38 : vector<256x128xf32>
    %cst_18 = arith.constant 9.99999996E-13 : f32
    %40 = vector.broadcast %cst_18 : f32 to vector<256x1xf32>
    %41 = arith.addf %37, %40 : vector<256x1xf32>
    %42 = math.rsqrt %41 : vector<256x1xf32>
    %43 = vector.broadcast %42 : vector<256x1xf32> to vector<256x128xf32>
    %44 = arith.mulf %39, %43 : vector<256x128xf32>
    %c0_19 = arith.constant 0 : index
    %c0_20 = arith.constant 0 : index
    %45 = vector.load %arg6[%c0_19, %c0_20] : memref<1x128xf32, #tpu.memory_space<vmem>>, vector<1x128xf32>
    %46 = vector.broadcast %45 : vector<1x128xf32> to vector<256x128xf32>
    %47 = arith.mulf %44, %46 : vector<256x128xf32>
    %c0_21 = arith.constant 0 : index
    %c0_22 = arith.constant 0 : index
    %48 = vector.load %arg7[%c0_21, %c0_22] : memref<1x128xf32, #tpu.memory_space<vmem>>, vector<1x128xf32>
    %49 = vector.broadcast %48 : vector<1x128xf32> to vector<256x128xf32>
    %50 = arith.addf %47, %49 : vector<256x128xf32>
    %51 = arith.truncf %50 : vector<256x128xf32> to vector<256x128xbf16>
    %c0_23 = arith.constant 0 : index
    %c0_24 = arith.constant 0 : index
    %52 = vector.load %arg8[%c0_23, %c0_24] : memref<256x128xbf16, #tpu.memory_space<vmem>>, vector<256x128xbf16>
    tpu.vector_store %arg8[%c0_23, %c0_24], %51 {strides = array<i32>} : memref<256x128xbf16, #tpu.memory_space<vmem>>, vector<256x128xbf16>,
    return
  }
  func.func @transform_0(%arg0: i32) -> (i32, i32) {
    %c0_i32 = arith.constant 0 : i32
    %c0_i32_0 = arith.constant 0 : i32
    return %arg0, %c0_i32 : i32, i32
  }
  func.func @transform_1(%arg0: i32) -> (i32, i32) {
    %c0_i32 = arith.constant 0 : i32
    %c0_i32_0 = arith.constant 0 : i32
    %c0_i32_1 = arith.constant 0 : i32
    return %c0_i32, %c0_i32_0 : i32, i32
  }
  func.func @transform_2(%arg0: i32) -> (i32, i32) {
    %c0_i32 = arith.constant 0 : i32
    %c0_i32_0 = arith.constant 0 : i32
    %c0_i32_1 = arith.constant 0 : i32
    return %c0_i32, %c0_i32_0 : i32, i32
  }
  func.func @transform_3(%arg0: i32) -> (i32, i32) {
    %c0_i32 = arith.constant 0 : i32
    %c0_i32_0 = arith.constant 0 : i32
    %c0_i32_1 = arith.constant 0 : i32
    return %c0_i32, %c0_i32_0 : i32, i32
  }
  func.func @transform_4(%arg0: i32) -> (i32, i32) {
    %c0_i32 = arith.constant 0 : i32
    %c0_i32_0 = arith.constant 0 : i32
    %c0_i32_1 = arith.constant 0 : i32
    return %c0_i32, %c0_i32_0 : i32, i32
  }
  func.func @transform_5(%arg0: i32) -> (i32, i32) {
    %c0_i32 = arith.constant 0 : i32
    %c0_i32_0 = arith.constant 0 : i32
    %c0_i32_1 = arith.constant 0 : i32
    return %c0_i32, %c0_i32_0 : i32, i32
  }
  func.func @transform_6(%arg0: i32) -> (i32, i32) {
    %c0_i32 = arith.constant 0 : i32
    %c0_i32_0 = arith.constant 0 : i32
    %c0_i32_1 = arith.constant 0 : i32
    return %c0_i32, %c0_i32_0 : i32, i32
  }
  func.func @transform_7(%arg0: i32) -> (i32, i32) {
    %c0_i32 = arith.constant 0 : i32
    %c0_i32_0 = arith.constant 0 : i32
    return %arg0, %c0_i32 : i32, i32
  }
}

module attributes {stable_mosaic.version = 11 : i64} {
  func.func @_linear_ln_kernel(%arg0: i32, %arg1: memref<2x128xbf16, #tpu.memory_space<vmem>>, %arg2: memref<128x128xbf16, #tpu.memory_space<vmem>>, %arg3: memref<1x128xf32, #tpu.memory_space<vmem>>, %arg4: memref<1x128xf32, #tpu.memory_space<vmem>>, %arg5: memref<1x128xf32, #tpu.memory_space<vmem>>, %arg6: memref<2x128xbf16, #tpu.memory_space<vmem>>) attributes {dimension_semantics = [#tpu.dimension_semantics<parallel>], iteration_bounds = array<i64: 1>, scalar_prefetch = 0 : i64, scratch_operands = 0 : i64, tpu.core_type = #tpu.core_type<tc>, window_params = [{transform_indices = @transform_0, window_bounds = array<i64: 2, 128>}, {pipeline_mode = #tpu.pipeline_mode<synchronous>, transform_indices = @transform_1, window_bounds = array<i64: 128, 128>}, {pipeline_mode = #tpu.pipeline_mode<synchronous>, transform_indices = @transform_2, window_bounds = array<i64: 1, 128>}, {pipeline_mode = #tpu.pipeline_mode<synchronous>, transform_indices = @transform_3, window_bounds = array<i64: 1, 128>}, {pipeline_mode = #tpu.pipeline_mode<synchronous>, transform_indices = @transform_4, window_bounds = array<i64: 1, 128>}, {transform_indices = @transform_5, window_bounds = array<i64: 2, 128>}]} {
    %c0 = arith.constant 0 : index
    %c0_0 = arith.constant 0 : index
    %0 = vector.load %arg1[%c0, %c0_0] : memref<2x128xbf16, #tpu.memory_space<vmem>>, vector<2x128xbf16>
    %c0_1 = arith.constant 0 : index
    %c0_2 = arith.constant 0 : index
    %1 = vector.load %arg2[%c0_1, %c0_2] : memref<128x128xbf16, #tpu.memory_space<vmem>>, vector<128x128xbf16>
    %cst = arith.constant dense<0.000000e+00> : vector<2x128xf32>
    %2 = tpu.matmul %0, %1, %cst {dimension_numbers = #tpu.dot_dimension_numbers<[1], [0], [0], [1], [0, 0, 1, 1], [], []>} : vector<2x128xbf16>, vector<128x128xbf16>, vector<2x128xf32> -> vector<2x128xf32>
    %c0_3 = arith.constant 0 : index
    %c0_4 = arith.constant 0 : index
    %3 = vector.load %arg3[%c0_3, %c0_4] : memref<1x128xf32, #tpu.memory_space<vmem>>, vector<1x128xf32>
    %4 = vector.broadcast %3 : vector<1x128xf32> to vector<2x128xf32>
    %5 = arith.addf %2, %4 : vector<2x128xf32>
    %6 = arith.mulf %5, %5 : vector<2x128xf32>
    %7 = arith.mulf %5, %6 : vector<2x128xf32>
    %cst_5 = arith.constant 4.471500e-02 : f32
    %8 = vector.broadcast %cst_5 : f32 to vector<2x128xf32>
    %9 = arith.mulf %8, %7 : vector<2x128xf32>
    %10 = arith.addf %5, %9 : vector<2x128xf32>
    %cst_6 = arith.constant 0.797884583 : f32
    %11 = vector.broadcast %cst_6 : f32 to vector<2x128xf32>
    %12 = arith.mulf %11, %10 : vector<2x128xf32>
    %13 = math.tanh %12 : vector<2x128xf32>
    %cst_7 = arith.constant 1.000000e+00 : f32
    %14 = vector.broadcast %cst_7 : f32 to vector<2x128xf32>
    %15 = arith.addf %14, %13 : vector<2x128xf32>
    %cst_8 = arith.constant 5.000000e-01 : f32
    %16 = vector.broadcast %cst_8 : f32 to vector<2x128xf32>
    %17 = arith.mulf %16, %15 : vector<2x128xf32>
    %18 = arith.mulf %5, %17 : vector<2x128xf32>
    %cst_9 = arith.constant dense<0.000000e+00> : vector<2xf32>
    %19 = vector.multi_reduction <add>, %18, %cst_9 [1] : vector<2x128xf32> to vector<2xf32>
    %20 = vector.shape_cast %19 : vector<2xf32> to vector<2x1xf32>
    %cst_10 = arith.constant 1.280000e+02 : f32
    %21 = vector.broadcast %cst_10 : f32 to vector<2x1xf32>
    %22 = arith.divf %20, %21 : vector<2x1xf32>
    %23 = vector.broadcast %22 : vector<2x1xf32> to vector<2x128xf32>
    %24 = arith.subf %18, %23 : vector<2x128xf32>
    %25 = arith.mulf %24, %24 : vector<2x128xf32>
    %cst_11 = arith.constant dense<0.000000e+00> : vector<2xf32>
    %26 = vector.multi_reduction <add>, %25, %cst_11 [1] : vector<2x128xf32> to vector<2xf32>
    %27 = vector.shape_cast %26 : vector<2xf32> to vector<2x1xf32>
    %cst_12 = arith.constant 1.280000e+02 : f32
    %28 = vector.broadcast %cst_12 : f32 to vector<2x1xf32>
    %29 = arith.divf %27, %28 : vector<2x1xf32>
    %30 = vector.broadcast %22 : vector<2x1xf32> to vector<2x128xf32>
    %31 = arith.subf %18, %30 : vector<2x128xf32>
    %cst_13 = arith.constant 9.99999996E-13 : f32
    %32 = vector.broadcast %cst_13 : f32 to vector<2x1xf32>
    %33 = arith.addf %29, %32 : vector<2x1xf32>
    %34 = math.rsqrt %33 : vector<2x1xf32>
    %35 = vector.broadcast %34 : vector<2x1xf32> to vector<2x128xf32>
    %36 = arith.mulf %31, %35 : vector<2x128xf32>
    %c0_14 = arith.constant 0 : index
    %c0_15 = arith.constant 0 : index
    %37 = vector.load %arg4[%c0_14, %c0_15] : memref<1x128xf32, #tpu.memory_space<vmem>>, vector<1x128xf32>
    %38 = vector.broadcast %37 : vector<1x128xf32> to vector<2x128xf32>
    %39 = arith.mulf %36, %38 : vector<2x128xf32>
    %c0_16 = arith.constant 0 : index
    %c0_17 = arith.constant 0 : index
    %40 = vector.load %arg5[%c0_16, %c0_17] : memref<1x128xf32, #tpu.memory_space<vmem>>, vector<1x128xf32>
    %41 = vector.broadcast %40 : vector<1x128xf32> to vector<2x128xf32>
    %42 = arith.addf %39, %41 : vector<2x128xf32>
    %43 = arith.truncf %42 : vector<2x128xf32> to vector<2x128xbf16>
    %c0_18 = arith.constant 0 : index
    %c0_19 = arith.constant 0 : index
    %44 = vector.load %arg6[%c0_18, %c0_19] : memref<2x128xbf16, #tpu.memory_space<vmem>>, vector<2x128xbf16>
    tpu.vector_store %arg6[%c0_18, %c0_19], %43 {strides = array<i32>} : memref<2x128xbf16, #tpu.memory_space<vmem>>, vector<2x128xbf16>,
    return
  }
  func.func @transform_0(%arg0: i32) -> (i32, i32) {
    %c0_i32 = arith.constant 0 : i32
    %c0_i32_0 = arith.constant 0 : i32
    return %arg0, %c0_i32 : i32, i32
  }
  func.func @transform_1(%arg0: i32) -> (i32, i32) {
    %c0_i32 = arith.constant 0 : i32
    %c0_i32_0 = arith.constant 0 : i32
    %c0_i32_1 = arith.constant 0 : i32
    return %c0_i32, %c0_i32_0 : i32, i32
  }
  func.func @transform_2(%arg0: i32) -> (i32, i32) {
    %c0_i32 = arith.constant 0 : i32
    %c0_i32_0 = arith.constant 0 : i32
    %c0_i32_1 = arith.constant 0 : i32
    return %c0_i32, %c0_i32_0 : i32, i32
  }
  func.func @transform_3(%arg0: i32) -> (i32, i32) {
    %c0_i32 = arith.constant 0 : i32
    %c0_i32_0 = arith.constant 0 : i32
    %c0_i32_1 = arith.constant 0 : i32
    return %c0_i32, %c0_i32_0 : i32, i32
  }
  func.func @transform_4(%arg0: i32) -> (i32, i32) {
    %c0_i32 = arith.constant 0 : i32
    %c0_i32_0 = arith.constant 0 : i32
    %c0_i32_1 = arith.constant 0 : i32
    return %c0_i32, %c0_i32_0 : i32, i32
  }
  func.func @transform_5(%arg0: i32) -> (i32, i32) {
    %c0_i32 = arith.constant 0 : i32
    %c0_i32_0 = arith.constant 0 : i32
    return %arg0, %c0_i32 : i32, i32
  }
}

module attributes {stable_mosaic.version = 11 : i64} {
  func.func @_mask_decoder_head_kernel(%arg0: i32, %arg1: memref<2x128xbf16, #tpu.memory_space<vmem>>, %arg2: memref<512x128xbf16, #tpu.memory_space<vmem>>, %arg3: memref<1x512xf32, #tpu.memory_space<vmem>>, %arg4: memref<512x9xf32, #tpu.memory_space<vmem>>, %arg5: memref<1x2xf32, #tpu.memory_space<vmem>>, %arg6: memref<1x3xf32, #tpu.memory_space<vmem>>, %arg7: memref<1x4xf32, #tpu.memory_space<vmem>>, %arg8: memref<2x3xf32, #tpu.memory_space<vmem>>, %arg9: memref<2x1xf32, #tpu.memory_space<vmem>>, %arg10: memref<2x1xf32, #tpu.memory_space<vmem>>, %arg11: memref<2x9xf32, #tpu.memory_space<vmem>>) attributes {dimension_semantics = [#tpu.dimension_semantics<arbitrary>], iteration_bounds = array<i64: 1>, scalar_prefetch = 0 : i64, scratch_operands = 3 : i64, tpu.core_type = #tpu.core_type<tc>, window_params = [{pipeline_mode = #tpu.pipeline_mode<synchronous>, transform_indices = @transform_0, window_bounds = array<i64: 2, 128>}, {transform_indices = @transform_1, window_bounds = array<i64: 512, 128>}, {transform_indices = @transform_2, window_bounds = array<i64: 1, 512>}, {transform_indices = @transform_3, window_bounds = array<i64: 512, 9>}, {pipeline_mode = #tpu.pipeline_mode<synchronous>, transform_indices = @transform_4, window_bounds = array<i64: 1, 2>}, {pipeline_mode = #tpu.pipeline_mode<synchronous>, transform_indices = @transform_5, window_bounds = array<i64: 1, 3>}, {pipeline_mode = #tpu.pipeline_mode<synchronous>, transform_indices = @transform_6, window_bounds = array<i64: 1, 4>}, {pipeline_mode = #tpu.pipeline_mode<synchronous>, transform_indices = @transform_7, window_bounds = array<i64: 2, 3>}]} {
    %c0_i32 = arith.constant 0 : i32
    %0 = arith.cmpi eq, %arg0, %c0_i32 : i32
    %1 = arith.extui %0 : i1 to i32
    %c0_i32_0 = arith.constant 0 : i32
    %2 = arith.cmpi ne, %1, %c0_i32_0 : i32
    scf.if %2 {
      %cst_27 = arith.constant 0xFF800000 : f32
      %36 = vector.broadcast %cst_27 : f32 to vector<2x1xf32>
      %c0_28 = arith.constant 0 : index
      %c0_29 = arith.constant 0 : index
      %37 = vector.load %arg9[%c0_28, %c0_29] : memref<2x1xf32, #tpu.memory_space<vmem>>, vector<2x1xf32>
      tpu.vector_store %arg9[%c0_28, %c0_29], %36 {strides = array<i32>} : memref<2x1xf32, #tpu.memory_space<vmem>>, vector<2x1xf32>,
      %cst_30 = arith.constant 0.000000e+00 : f32
      %38 = vector.broadcast %cst_30 : f32 to vector<2x1xf32>
      %c0_31 = arith.constant 0 : index
      %c0_32 = arith.constant 0 : index
      %39 = vector.load %arg10[%c0_31, %c0_32] : memref<2x1xf32, #tpu.memory_space<vmem>>, vector<2x1xf32>
      tpu.vector_store %arg10[%c0_31, %c0_32], %38 {strides = array<i32>} : memref<2x1xf32, #tpu.memory_space<vmem>>, vector<2x1xf32>,
      %cst_33 = arith.constant 0.000000e+00 : f32
      %40 = vector.broadcast %cst_33 : f32 to vector<2x9xf32>
      %c0_34 = arith.constant 0 : index
      %c0_35 = arith.constant 0 : index
      %41 = vector.load %arg11[%c0_34, %c0_35] : memref<2x9xf32, #tpu.memory_space<vmem>>, vector<2x9xf32>
      tpu.vector_store %arg11[%c0_34, %c0_35], %40 {strides = array<i32>} : memref<2x9xf32, #tpu.memory_space<vmem>>, vector<2x9xf32>,
    } else {
    }
    %c0 = arith.constant 0 : index
    %c0_1 = arith.constant 0 : index
    %3 = vector.load %arg1[%c0, %c0_1] : memref<2x128xbf16, #tpu.memory_space<vmem>>, vector<2x128xbf16>
    %c0_2 = arith.constant 0 : index
    %c0_3 = arith.constant 0 : index
    %4 = vector.load %arg2[%c0_2, %c0_3] : memref<512x128xbf16, #tpu.memory_space<vmem>>, vector<512x128xbf16>
    %cst = arith.constant dense<0.000000e+00> : vector<2x512xf32>
    %5 = tpu.matmul %3, %4, %cst {dimension_numbers = #tpu.dot_dimension_numbers<[1], [1], [0], [0], [0, 0, 1, 0], [], []>} : vector<2x128xbf16>, vector<512x128xbf16>, vector<2x512xf32> -> vector<2x512xf32>
    %c0_4 = arith.constant 0 : index
    %c0_5 = arith.constant 0 : index
    %6 = vector.load %arg3[%c0_4, %c0_5] : memref<1x512xf32, #tpu.memory_space<vmem>>, vector<1x512xf32>
    %7 = vector.broadcast %6 : vector<1x512xf32> to vector<2x512xf32>
    %8 = arith.addf %5, %7 : vector<2x512xf32>
    %c0_6 = arith.constant 0 : index
    %c0_7 = arith.constant 0 : index
    %9 = vector.load %arg9[%c0_6, %c0_7] : memref<2x1xf32, #tpu.memory_space<vmem>>, vector<2x1xf32>
    %cst_8 = arith.constant dense<0xFF800000> : vector<2xf32>
    %10 = vector.multi_reduction <maximumf>, %8, %cst_8 [1] : vector<2x512xf32> to vector<2xf32>
    %11 = vector.shape_cast %10 : vector<2xf32> to vector<2x1xf32>
    %12 = arith.maximumf %9, %11 : vector<2x1xf32>
    %c0_9 = arith.constant 0 : index
    %c0_10 = arith.constant 0 : index
    %13 = vector.load %arg9[%c0_9, %c0_10] : memref<2x1xf32, #tpu.memory_space<vmem>>, vector<2x1xf32>
    %14 = arith.subf %13, %12 : vector<2x1xf32>
    %15 = math.exp %14 : vector<2x1xf32>
    %16 = vector.broadcast %12 : vector<2x1xf32> to vector<2x512xf32>
    %17 = arith.subf %8, %16 : vector<2x512xf32>
    %18 = math.exp %17 : vector<2x512xf32>
    %c0_11 = arith.constant 0 : index
    %c0_12 = arith.constant 0 : index
    %19 = vector.load %arg10[%c0_11, %c0_12] : memref<2x1xf32, #tpu.memory_space<vmem>>, vector<2x1xf32>
    %20 = arith.mulf %15, %19 : vector<2x1xf32>
    %cst_13 = arith.constant dense<0.000000e+00> : vector<2xf32>
    %21 = vector.multi_reduction <add>, %18, %cst_13 [1] : vector<2x512xf32> to vector<2xf32>
    %22 = vector.shape_cast %21 : vector<2xf32> to vector<2x1xf32>
    %23 = arith.addf %20, %22 : vector<2x1xf32>
    %c0_14 = arith.constant 0 : index
    %c0_15 = arith.constant 0 : index
    %24 = vector.load %arg10[%c0_14, %c0_15] : memref<2x1xf32, #tpu.memory_space<vmem>>, vector<2x1xf32>
    tpu.vector_store %arg10[%c0_14, %c0_15], %23 {strides = array<i32>} : memref<2x1xf32, #tpu.memory_space<vmem>>, vector<2x1xf32>,
    %c0_16 = arith.constant 0 : index
    %c0_17 = arith.constant 0 : index
    %25 = vector.load %arg11[%c0_16, %c0_17] : memref<2x9xf32, #tpu.memory_space<vmem>>, vector<2x9xf32>
    %26 = vector.broadcast %15 : vector<2x1xf32> to vector<2x9xf32>
    %27 = arith.mulf %26, %25 : vector<2x9xf32>
    %c0_18 = arith.constant 0 : index
    %c0_19 = arith.constant 0 : index
    %28 = vector.load %arg4[%c0_18, %c0_19] : memref<512x9xf32, #tpu.memory_space<vmem>>, vector<512x9xf32>
    %cst_20 = arith.constant dense<0.000000e+00> : vector<2x9xf32>
    %29 = tpu.matmul %18, %28, %cst_20 {dimension_numbers = #tpu.dot_dimension_numbers<[1], [0], [0], [1], [0, 0, 1, 1], [], []>} : vector<2x512xf32>, vector<512x9xf32>, vector<2x9xf32> -> vector<2x9xf32>
    %30 = arith.addf %27, %29 : vector<2x9xf32>
    %c0_21 = arith.constant 0 : index
    %c0_22 = arith.constant 0 : index
    %31 = vector.load %arg11[%c0_21, %c0_22] : memref<2x9xf32, #tpu.memory_space<vmem>>, vector<2x9xf32>
    tpu.vector_store %arg11[%c0_21, %c0_22], %30 {strides = array<i32>} : memref<2x9xf32, #tpu.memory_space<vmem>>, vector<2x9xf32>,
    %c0_23 = arith.constant 0 : index
    %c0_24 = arith.constant 0 : index
    %32 = vector.load %arg9[%c0_23, %c0_24] : memref<2x1xf32, #tpu.memory_space<vmem>>, vector<2x1xf32>
    tpu.vector_store %arg9[%c0_23, %c0_24], %12 {strides = array<i32>} : memref<2x1xf32, #tpu.memory_space<vmem>>, vector<2x1xf32>,
    %c0_i32_25 = arith.constant 0 : i32
    %33 = arith.cmpi eq, %arg0, %c0_i32_25 : i32
    %34 = arith.extui %33 : i1 to i32
    %c0_i32_26 = arith.constant 0 : i32
    %35 = arith.cmpi ne, %34, %c0_i32_26 : i32
    scf.if %35 {
      %c0_27 = arith.constant 0 : index
      %c0_28 = arith.constant 0 : index
      %36 = vector.load %arg11[%c0_27, %c0_28] : memref<2x9xf32, #tpu.memory_space<vmem>>, vector<2x9xf32>
      %c0_29 = arith.constant 0 : index
      %c0_30 = arith.constant 0 : index
      %37 = vector.load %arg10[%c0_29, %c0_30] : memref<2x1xf32, #tpu.memory_space<vmem>>, vector<2x1xf32>
      %38 = vector.broadcast %37 : vector<2x1xf32> to vector<2x9xf32>
      %39 = arith.divf %36, %38 : vector<2x9xf32>
      %cst_31 = arith.constant 1.000000e-30 : f32
      %40 = vector.broadcast %cst_31 : f32 to vector<2x9xf32>
      %41 = arith.maximumf %39, %40 : vector<2x9xf32>
      %42 = math.log %41 : vector<2x9xf32>
      %c0_32 = arith.constant 0 : index
      %c0_33 = arith.constant 0 : index
      %43 = vector.load %arg5[%c0_32, %c0_33] : memref<1x2xf32, #tpu.memory_space<vmem>>, vector<1x2xf32>
      %44 = math.exp %43 : vector<1x2xf32>
      %45 = vector.shape_cast %44 : vector<1x2xf32> to vector<1x1x2xf32>
      %cst_34 = arith.constant dense<0.000000e+00> : vector<1xf32>
      %46 = vector.multi_reduction <add>, %45, %cst_34 [1, 2] : vector<1x1x2xf32> to vector<1xf32>
      %47 = vector.shape_cast %46 : vector<1xf32> to vector<1x1x1xf32>
      %48 = vector.extract %47[0, 0, 0] : f32 from vector<1x1x1xf32>
      %49 = vector.broadcast %48 : f32 to vector<1x2xf32>
      %50 = arith.divf %44, %49 : vector<1x2xf32>
      %51 = vector.extract_strided_slice %42 {offsets = [0, 0], sizes = [2, 2], strides = [1, 1]} : vector<2x9xf32> to vector<2x2xf32>
      %52 = vector.broadcast %50 : vector<1x2xf32> to vector<2x2xf32>
      %53 = arith.mulf %51, %52 : vector<2x2xf32>
      %cst_35 = arith.constant dense<0.000000e+00> : vector<2xf32>
      %54 = vector.multi_reduction <add>, %53, %cst_35 [1] : vector<2x2xf32> to vector<2xf32>
      %55 = vector.shape_cast %54 : vector<2xf32> to vector<2x1xf32>
      %c0_36 = arith.constant 0 : index
      %c0_37 = arith.constant 0 : index
      %56 = vector.load %arg6[%c0_36, %c0_37] : memref<1x3xf32, #tpu.memory_space<vmem>>, vector<1x3xf32>
      %57 = math.exp %56 : vector<1x3xf32>
      %58 = vector.shape_cast %57 : vector<1x3xf32> to vector<1x1x3xf32>
      %cst_38 = arith.constant dense<0.000000e+00> : vector<1xf32>
      %59 = vector.multi_reduction <add>, %58, %cst_38 [1, 2] : vector<1x1x3xf32> to vector<1xf32>
      %60 = vector.shape_cast %59 : vector<1xf32> to vector<1x1x1xf32>
      %61 = vector.extract %60[0, 0, 0] : f32 from vector<1x1x1xf32>
      %62 = vector.broadcast %61 : f32 to vector<1x3xf32>
      %63 = arith.divf %57, %62 : vector<1x3xf32>
      %64 = vector.extract_strided_slice %42 {offsets = [0, 2], sizes = [2, 3], strides = [1, 1]} : vector<2x9xf32> to vector<2x3xf32>
      %65 = vector.broadcast %63 : vector<1x3xf32> to vector<2x3xf32>
      %66 = arith.mulf %64, %65 : vector<2x3xf32>
      %cst_39 = arith.constant dense<0.000000e+00> : vector<2xf32>
      %67 = vector.multi_reduction <add>, %66, %cst_39 [1] : vector<2x3xf32> to vector<2xf32>
      %68 = vector.shape_cast %67 : vector<2xf32> to vector<2x1xf32>
      %c0_40 = arith.constant 0 : index
      %c0_41 = arith.constant 0 : index
      %69 = vector.load %arg7[%c0_40, %c0_41] : memref<1x4xf32, #tpu.memory_space<vmem>>, vector<1x4xf32>
      %70 = math.exp %69 : vector<1x4xf32>
      %71 = vector.shape_cast %70 : vector<1x4xf32> to vector<1x1x4xf32>
      %cst_42 = arith.constant dense<0.000000e+00> : vector<1xf32>
      %72 = vector.multi_reduction <add>, %71, %cst_42 [1, 2] : vector<1x1x4xf32> to vector<1xf32>
      %73 = vector.shape_cast %72 : vector<1xf32> to vector<1x1x1xf32>
      %74 = vector.extract %73[0, 0, 0] : f32 from vector<1x1x1xf32>
      %75 = vector.broadcast %74 : f32 to vector<1x4xf32>
      %76 = arith.divf %70, %75 : vector<1x4xf32>
      %77 = vector.extract_strided_slice %42 {offsets = [0, 5], sizes = [2, 4], strides = [1, 1]} : vector<2x9xf32> to vector<2x4xf32>
      %78 = vector.broadcast %76 : vector<1x4xf32> to vector<2x4xf32>
      %79 = arith.mulf %77, %78 : vector<2x4xf32>
      %cst_43 = arith.constant dense<0.000000e+00> : vector<2xf32>
      %80 = vector.multi_reduction <add>, %79, %cst_43 [1] : vector<2x4xf32> to vector<2xf32>
      %81 = vector.shape_cast %80 : vector<2xf32> to vector<2x1xf32>
      %82 = tpu.concatenate %55, %68, %81 in 1 : vector<2x1xf32>, vector<2x1xf32>, vector<2x1xf32> -> vector<2x3xf32>
      %c0_44 = arith.constant 0 : index
      %c0_45 = arith.constant 0 : index
      %83 = vector.load %arg8[%c0_44, %c0_45] : memref<2x3xf32, #tpu.memory_space<vmem>>, vector<2x3xf32>
      tpu.vector_store %arg8[%c0_44, %c0_45], %82 {strides = array<i32>} : memref<2x3xf32, #tpu.memory_space<vmem>>, vector<2x3xf32>,
    } else {
    }
    return
  }
  func.func @transform_0(%arg0: i32) -> (i32, i32) {
    %c0_i32 = arith.constant 0 : i32
    %c0_i32_0 = arith.constant 0 : i32
    %c0_i32_1 = arith.constant 0 : i32
    return %c0_i32, %c0_i32_0 : i32, i32
  }
  func.func @transform_1(%arg0: i32) -> (i32, i32) {
    %c0_i32 = arith.constant 0 : i32
    %c0_i32_0 = arith.constant 0 : i32
    return %arg0, %c0_i32 : i32, i32
  }
  func.func @transform_2(%arg0: i32) -> (i32, i32) {
    %c0_i32 = arith.constant 0 : i32
    %c0_i32_0 = arith.constant 0 : i32
    return %c0_i32, %arg0 : i32, i32
  }
  func.func @transform_3(%arg0: i32) -> (i32, i32) {
    %c0_i32 = arith.constant 0 : i32
    %c0_i32_0 = arith.constant 0 : i32
    return %arg0, %c0_i32 : i32, i32
  }
  func.func @transform_4(%arg0: i32) -> (i32, i32) {
    %c0_i32 = arith.constant 0 : i32
    %c0_i32_0 = arith.constant 0 : i32
    %c0_i32_1 = arith.constant 0 : i32
    return %c0_i32, %c0_i32_0 : i32, i32
  }
  func.func @transform_5(%arg0: i32) -> (i32, i32) {
    %c0_i32 = arith.constant 0 : i32
    %c0_i32_0 = arith.constant 0 : i32
    %c0_i32_1 = arith.constant 0 : i32
    return %c0_i32, %c0_i32_0 : i32, i32
  }
  func.func @transform_6(%arg0: i32) -> (i32, i32) {
    %c0_i32 = arith.constant 0 : i32
    %c0_i32_0 = arith.constant 0 : i32
    %c0_i32_1 = arith.constant 0 : i32
    return %c0_i32, %c0_i32_0 : i32, i32
  }
  func.func @transform_7(%arg0: i32) -> (i32, i32) {
    %c0_i32 = arith.constant 0 : i32
    %c0_i32_0 = arith.constant 0 : i32
    %c0_i32_1 = arith.constant 0 : i32
    return %c0_i32, %c0_i32_0 : i32, i32
  }
}

</mosaic_0001>

<llo_original>
// kernel: bert_classifier_forward.11
$region0: #{bert_classifier_forward.11}
  #allocation0 [shape = 'u32[]', space=smem, size = 0x4, offset = 0x4, fixed_abs, tag = 'smem constant byte address 0x4 - core index']
  #allocation1 [shape = 'u32[144,128]{1,0:T(1,128)}', space=vmem, size = 0x12000, scoped, tag = 'internal scratch']
  %s0 = inlined_call_operand.vmem [shape: f32[256,128], index: 0, kind: input, shape index: {}]
  %s1 = inlined_call_operand.vmem [shape: f32[1,128], index: 1, kind: input, shape index: {}]
  %s2 = inlined_call_operand.vmem [shape: f32[1,128], index: 2, kind: input, shape index: {}]
  %s3 = inlined_call_operand.vmem [shape: bf16[256,128], index: 3, kind: output, shape index: {}]
  %s4 = sld [smem:[#allocation0]]
  $region22: #{bert_classifier_forward.11} parent=0
    _
  %s6 = ssub.s32 1, %s4
  %s7 = scalar_select 0, %s6, %s4
  // Predicated region
  $region2: #{bert_classifier_forward.11} parent=0 // pred_check
    _
  $region3: #{bert_classifier_forward.11} parent=0 // pred_check_branch
    %9 = sbr.rel (0) target = $region5
  $region4: #{bert_classifier_forward.11} parent=0 // pred_region
    _
  $region5: #{bert_classifier_forward.11} parent=0 // pred_fallthru
    _
  // Predicated region
  $region6: #{bert_classifier_forward.11} parent=0 // pred_check
    _
  $region7: #{bert_classifier_forward.11} parent=0 // pred_check_branch
    %11 = sbr.rel (0) target = $region9
  $region8: #{bert_classifier_forward.11} parent=0 // pred_region
    _
  $region9: #{bert_classifier_forward.11} parent=0 // pred_fallthru
    _
  // Predicated region
  $region10: #{bert_classifier_forward.11} parent=0 // pred_check
    _
  $region11: #{bert_classifier_forward.11} parent=0 // pred_check_branch
    %13 = sbr.rel (0) target = $region13
  $region12: #{bert_classifier_forward.11} parent=0 // pred_region
    _
  $region13: #{bert_classifier_forward.11} parent=0 // pred_fallthru
    _
  %v14 = vld [vmem:[%s0] sm:$0xff]
  %v15 = vld [vmem:[%s0 + $0x8] sm:$0xff]
  %v16 = vld [vmem:[%s0 + $0x10] sm:$0xff]
  %v17 = vld [vmem:[%s0 + $0x18] sm:$0xff]
  %v18 = vld [vmem:[%s0 + $0x20] sm:$0xff]
  %v19 = vld [vmem:[%s0 + $0x28] sm:$0xff]
  %v20 = vld [vmem:[%s0 + $0x30] sm:$0xff]
  %v21 = vld [vmem:[%s0 + $0x38] sm:$0xff]
  %v22 = vld [vmem:[%s0 + $0x40] sm:$0xff]
  %v23 = vld [vmem:[%s0 + $0x48] sm:$0xff]
  %v24 = vld [vmem:[%s0 + $0x50] sm:$0xff]
  %v25 = vld [vmem:[%s0 + $0x58] sm:$0xff]
  %v26 = vld [vmem:[%s0 + $0x60] sm:$0xff]
  %v27 = vld [vmem:[%s0 + $0x68] sm:$0xff]
  %v28 = vld [vmem:[%s0 + $0x70] sm:$0xff]
  %v29 = vld [vmem:[%s0 + $0x78] sm:$0xff]
  %v30 = vld [vmem:[%s0 + $0x80] sm:$0xff]
  %v31 = vld [vmem:[%s0 + $0x88] sm:$0xff]
  %v32 = vld [vmem:[%s0 + $0x90] sm:$0xff]
  %v33 = vld [vmem:[%s0 + $0x98] sm:$0xff]
  %v34 = vld [vmem:[%s0 + $0xa0] sm:$0xff]
  %v35 = vld [vmem:[%s0 + $0xa8] sm:$0xff]
  %v36 = vld [vmem:[%s0 + $0xb0] sm:$0xff]
  %v37 = vld [vmem:[%s0 + $0xb8] sm:$0xff]
  %v38 = vld [vmem:[%s0 + $0xc0] sm:$0xff]
  %v39 = vld [vmem:[%s0 + $0xc8] sm:$0xff]
  %v40 = vld [vmem:[%s0 + $0xd0] sm:$0xff]
  %v41 = vld [vmem:[%s0 + $0xd8] sm:$0xff]
  %v42 = vld [vmem:[%s0 + $0xe0] sm:$0xff]
  %v43 = vld [vmem:[%s0 + $0xe8] sm:$0xff]
  %v44 = vld [vmem:[%s0 + $0xf0] sm:$0xff]
  %v45 = vld [vmem:[%s0 + $0xf8] sm:$0xff]
  %46 = vadd.xlane.f32.xlu0 %v14
  %v47 = vpop.xlane.xlu0 %46
  %48 = vadd.xlane.f32.xlu0 %v15
  %v49 = vpop.xlane.xlu0 %48
  %50 = vadd.xlane.f32.xlu0 %v16
  %v51 = vpop.xlane.xlu0 %50
  %52 = vadd.xlane.f32.xlu0 %v17
  %v53 = vpop.xlane.xlu0 %52
  %54 = vadd.xlane.f32.xlu0 %v18
  %v55 = vpop.xlane.xlu0 %54
  %56 = vadd.xlane.f32.xlu0 %v19
  %v57 = vpop.xlane.xlu0 %56
  %58 = vadd.xlane.f32.xlu0 %v20
  %v59 = vpop.xlane.xlu0 %58
  %60 = vadd.xlane.f32.xlu0 %v21
  %v61 = vpop.xlane.xlu0 %60
  %62 = vadd.xlane.f32.xlu0 %v22
  %v63 = vpop.xlane.xlu0 %62
  %64 = vadd.xlane.f32.xlu0 %v23
  %v65 = vpop.xlane.xlu0 %64
  %66 = vadd.xlane.f32.xlu0 %v24
  %v67 = vpop.xlane.xlu0 %66
  %68 = vadd.xlane.f32.xlu0 %v25
  %v69 = vpop.xlane.xlu0 %68
  %70 = vadd.xlane.f32.xlu0 %v26
  %v71 = vpop.xlane.xlu0 %70
  %72 = vadd.xlane.f32.xlu0 %v27
  %v73 = vpop.xlane.xlu0 %72
  %74 = vadd.xlane.f32.xlu0 %v28
  %v75 = vpop.xlane.xlu0 %74
  %76 = vadd.xlane.f32.xlu0 %v29
  %v77 = vpop.xlane.xlu0 %76
  %78 = vadd.xlane.f32.xlu0 %v30
  %v79 = vpop.xlane.xlu0 %78
  %80 = vadd.xlane.f32.xlu0 %v31
  %v81 = vpop.xlane.xlu0 %80
  %82 = vadd.xlane.f32.xlu0 %v32
  %v83 = vpop.xlane.xlu0 %82
  %84 = vadd.xlane.f32.xlu0 %v33
  %v85 = vpop.xlane.xlu0 %84
  %86 = vadd.xlane.f32.xlu0 %v34
  %v87 = vpop.xlane.xlu0 %86
  %88 = vadd.xlane.f32.xlu0 %v35
  %v89 = vpop.xlane.xlu0 %88
  %90 = vadd.xlane.f32.xlu0 %v36
  %v91 = vpop.xlane.xlu0 %90
  %92 = vadd.xlane.f32.xlu0 %v37
  %v93 = vpop.xlane.xlu0 %92
  %94 = vadd.xlane.f32.xlu0 %v38
  %v95 = vpop.xlane.xlu0 %94
  %96 = vadd.xlane.f32.xlu0 %v39
  %v97 = vpop.xlane.xlu0 %96
  %98 = vadd.xlane.f32.xlu0 %v40
  %v99 = vpop.xlane.xlu0 %98
  %100 = vadd.xlane.f32.xlu0 %v41
  %v101 = vpop.xlane.xlu0 %100
  %102 = vadd.xlane.f32.xlu0 %v42
  %v103 = vpop.xlane.xlu0 %102
  %104 = vadd.xlane.f32.xlu0 %v43
  %v105 = vpop.xlane.xlu0 %104
  %106 = vadd.xlane.f32.xlu0 %v44
  %v107 = vpop.xlane.xlu0 %106
  %108 = vadd.xlane.f32.xlu0 %v45
  %v109 = vpop.xlane.xlu0 %108
  %v110 = vrcp.pop 128.0
  %v111 = vmul.f32 %v47, %v110
  %v112 = vmul.f32 %v49, %v110
  %v113 = vmul.f32 %v51, %v110
  %v114 = vmul.f32 %v53, %v110
  %v115 = vmul.f32 %v55, %v110
  %v116 = vmul.f32 %v57, %v110
  %v117 = vmul.f32 %v59, %v110
  %v118 = vmul.f32 %v61, %v110
  %v119 = vmul.f32 %v63, %v110
  %v120 = vmul.f32 %v65, %v110
  %v121 = vmul.f32 %v67, %v110
  %v122 = vmul.f32 %v69, %v110
  %v123 = vmul.f32 %v71, %v110
  %v124 = vmul.f32 %v73, %v110
  %v125 = vmul.f32 %v75, %v110
  %v126 = vmul.f32 %v77, %v110
  %v127 = vmul.f32 %v79, %v110
  %v128 = vmul.f32 %v81, %v110
  %v129 = vmul.f32 %v83, %v110
  %v130 = vmul.f32 %v85, %v110
  %v131 = vmul.f32 %v87, %v110
  %v132 = vmul.f32 %v89, %v110
  %v133 = vmul.f32 %v91, %v110
  %v134 = vmul.f32 %v93, %v110
  %v135 = vmul.f32 %v95, %v110
  %v136 = vmul.f32 %v97, %v110
  %v137 = vmul.f32 %v99, %v110
  %v138 = vmul.f32 %v101, %v110
  %v139 = vmul.f32 %v103, %v110
  %v140 = vmul.f32 %v105, %v110
  %v141 = vmul.f32 %v107, %v110
  %v142 = vmul.f32 %v109, %v110
  %v143 = vsub.f32 %v14, %v111
  %v144 = vsub.f32 %v15, %v112
  %v145 = vsub.f32 %v16, %v113
  %v146 = vsub.f32 %v17, %v114
  %v147 = vsub.f32 %v18, %v115
  %v148 = vsub.f32 %v19, %v116
  %v149 = vsub.f32 %v20, %v117
  %v150 = vsub.f32 %v21, %v118
  %v151 = vsub.f32 %v22, %v119
  %v152 = vsub.f32 %v23, %v120
  %v153 = vsub.f32 %v24, %v121
  %v154 = vsub.f32 %v25, %v122
  %v155 = vsub.f32 %v26, %v123
  %v156 = vsub.f32 %v27, %v124
  %v157 = vsub.f32 %v28, %v125
  %v158 = vsub.f32 %v29, %v126
  %v159 = vsub.f32 %v30, %v127
  %v160 = vsub.f32 %v31, %v128
  %v161 = vsub.f32 %v32, %v129
  %v162 = vsub.f32 %v33, %v130
  %v163 = vsub.f32 %v34, %v131
  %v164 = vsub.f32 %v35, %v132
  %v165 = vsub.f32 %v36, %v133
  %v166 = vsub.f32 %v37, %v134
  %v167 = vsub.f32 %v38, %v135
  %v168 = vsub.f32 %v39, %v136
  %v169 = vsub.f32 %v40, %v137
  %v170 = vsub.f32 %v41, %v138
  %v171 = vsub.f32 %v42, %v139
  %v172 = vsub.f32 %v43, %v140
  %v173 = vsub.f32 %v44, %v141
  %v174 = vsub.f32 %v45, %v142
  %v175 = vmul.f32 %v143, %v143
  %v176 = vmul.f32 %v144, %v144
  %v177 = vmul.f32 %v145, %v145
  %v178 = vmul.f32 %v146, %v146
  %v179 = vmul.f32 %v147, %v147
  %v180 = vmul.f32 %v148, %v148
  %v181 = vmul.f32 %v149, %v149
  %v182 = vmul.f32 %v150, %v150
  %v183 = vmul.f32 %v151, %v151
  %v184 = vmul.f32 %v152, %v152
  %v185 = vmul.f32 %v153, %v153
  %v186 = vmul.f32 %v154, %v154
  %v187 = vmul.f32 %v155, %v155
  %v188 = vmul.f32 %v156, %v156
  %v189 = vmul.f32 %v157, %v157
  %v190 = vmul.f32 %v158, %v158
  %v191 = vmul.f32 %v159, %v159
  %v192 = vmul.f32 %v160, %v160
  %v193 = vmul.f32 %v161, %v161
  %v194 = vmul.f32 %v162, %v162
  %v195 = vmul.f32 %v163, %v163
  %v196 = vmul.f32 %v164, %v164
  %v197 = vmul.f32 %v165, %v165
  %v198 = vmul.f32 %v166, %v166
  %v199 = vmul.f32 %v167, %v167
  %v200 = vmul.f32 %v168, %v168
  %v201 = vmul.f32 %v169, %v169
  %v202 = vmul.f32 %v170, %v170
  %v203 = vmul.f32 %v171, %v171
  %v204 = vmul.f32 %v172, %v172
  %v205 = vmul.f32 %v173, %v173
  %v206 = vmul.f32 %v174, %v174
  %207 = vadd.xlane.f32.xlu0 %v175
  %v208 = vpop.xlane.xlu0 %207
  %209 = vadd.xlane.f32.xlu0 %v176
  %v210 = vpop.xlane.xlu0 %209
  %211 = vadd.xlane.f32.xlu0 %v177
  %v212 = vpop.xlane.xlu0 %211
  %213 = vadd.xlane.f32.xlu0 %v178
  %v214 = vpop.xlane.xlu0 %213
  %215 = vadd.xlane.f32.xlu0 %v179
  %v216 = vpop.xlane.xlu0 %215
  %217 = vadd.xlane.f32.xlu0 %v180
  %v218 = vpop.xlane.xlu0 %217
  %219 = vadd.xlane.f32.xlu0 %v181
  %v220 = vpop.xlane.xlu0 %219
  %221 = vadd.xlane.f32.xlu0 %v182
  %v222 = vpop.xlane.xlu0 %221
  %223 = vadd.xlane.f32.xlu0 %v183
  %v224 = vpop.xlane.xlu0 %223
  %225 = vadd.xlane.f32.xlu0 %v184
  %v226 = vpop.xlane.xlu0 %225
  %227 = vadd.xlane.f32.xlu0 %v185
  %v228 = vpop.xlane.xlu0 %227
  %229 = vadd.xlane.f32.xlu0 %v186
  %v230 = vpop.xlane.xlu0 %229
  %231 = vadd.xlane.f32.xlu0 %v187
  %v232 = vpop.xlane.xlu0 %231
  %233 = vadd.xlane.f32.xlu0 %v188
  %v234 = vpop.xlane.xlu0 %233
  %235 = vadd.xlane.f32.xlu0 %v189
  %v236 = vpop.xlane.xlu0 %235
  %237 = vadd.xlane.f32.xlu0 %v190
  %v238 = vpop.xlane.xlu0 %237
  %239 = vadd.xlane.f32.xlu0 %v191
  %v240 = vpop.xlane.xlu0 %239
  %241 = vadd.xlane.f32.xlu0 %v192
  %v242 = vpop.xlane.xlu0 %241
  %243 = vadd.xlane.f32.xlu0 %v193
  %v244 = vpop.xlane.xlu0 %243
  %245 = vadd.xlane.f32.xlu0 %v194
  %v246 = vpop.xlane.xlu0 %245
  %247 = vadd.xlane.f32.xlu0 %v195
  %v248 = vpop.xlane.xlu0 %247
  %249 = vadd.xlane.f32.xlu0 %v196
  %v250 = vpop.xlane.xlu0 %249
  %251 = vadd.xlane.f32.xlu0 %v197
  %v252 = vpop.xlane.xlu0 %251
  %253 = vadd.xlane.f32.xlu0 %v198
  %v254 = vpop.xlane.xlu0 %253
  %255 = vadd.xlane.f32.xlu0 %v199
  %v256 = vpop.xlane.xlu0 %255
  %257 = vadd.xlane.f32.xlu0 %v200
  %v258 = vpop.xlane.xlu0 %257
  %259 = vadd.xlane.f32.xlu0 %v201
  %v260 = vpop.xlane.xlu0 %259
  %261 = vadd.xlane.f32.xlu0 %v202
  %v262 = vpop.xlane.xlu0 %261
  %263 = vadd.xlane.f32.xlu0 %v203
  %v264 = vpop.xlane.xlu0 %263
  %265 = vadd.xlane.f32.xlu0 %v204
  %v266 = vpop.xlane.xlu0 %265
  %267 = vadd.xlane.f32.xlu0 %v205
  %v268 = vpop.xlane.xlu0 %267
  %269 = vadd.xlane.f32.xlu0 %v206
  %v270 = vpop.xlane.xlu0 %269
  %v271 = vmul.f32 %v208, %v110
  %v272 = vmul.f32 %v210, %v110
  %v273 = vmul.f32 %v212, %v110
  %v274 = vmul.f32 %v214, %v110
  %v275 = vmul.f32 %v216, %v110
  %v276 = vmul.f32 %v218, %v110
  %v277 = vmul.f32 %v220, %v110
  %v278 = vmul.f32 %v222, %v110
  %v279 = vmul.f32 %v224, %v110
  %v280 = vmul.f32 %v226, %v110
  %v281 = vmul.f32 %v228, %v110
  %v282 = vmul.f32 %v230, %v110
  %v283 = vmul.f32 %v232, %v110
  %v284 = vmul.f32 %v234, %v110
  %v285 = vmul.f32 %v236, %v110
  %v286 = vmul.f32 %v238, %v110
  %v287 = vmul.f32 %v240, %v110
  %v288 = vmul.f32 %v242, %v110
  %v289 = vmul.f32 %v244, %v110
  %v290 = vmul.f32 %v246, %v110
  %v291 = vmul.f32 %v248, %v110
  %v292 = vmul.f32 %v250, %v110
  %v293 = vmul.f32 %v252, %v110
  %v294 = vmul.f32 %v254, %v110
  %v295 = vmul.f32 %v256, %v110
  %v296 = vmul.f32 %v258, %v110
  %v297 = vmul.f32 %v260, %v110
  %v298 = vmul.f32 %v262, %v110
  %v299 = vmul.f32 %v264, %v110
  %v300 = vmul.f32 %v266, %v110
  %v301 = vmul.f32 %v268, %v110
  %v302 = vmul.f32 %v270, %v110
  %v303 = vadd.f32 %v271, 1e-12
  %v304 = vadd.f32 %v272, 1e-12
  %v305 = vadd.f32 %v273, 1e-12
  %v306 = vadd.f32 %v274, 1e-12
  %v307 = vadd.f32 %v275, 1e-12
  %v308 = vadd.f32 %v276, 1e-12
  %v309 = vadd.f32 %v277, 1e-12
  %v310 = vadd.f32 %v278, 1e-12
  %v311 = vadd.f32 %v279, 1e-12
  %v312 = vadd.f32 %v280, 1e-12
  %v313 = vadd.f32 %v281, 1e-12
  %v314 = vadd.f32 %v282, 1e-12
  %v315 = vadd.f32 %v283, 1e-12
  %v316 = vadd.f32 %v284, 1e-12
  %v317 = vadd.f32 %v285, 1e-12
  %v318 = vadd.f32 %v286, 1e-12
  %v319 = vadd.f32 %v287, 1e-12
  %v320 = vadd.f32 %v288, 1e-12
  %v321 = vadd.f32 %v289, 1e-12
  %v322 = vadd.f32 %v290, 1e-12
  %v323 = vadd.f32 %v291, 1e-12
  %v324 = vadd.f32 %v292, 1e-12
  %v325 = vadd.f32 %v293, 1e-12
  %v326 = vadd.f32 %v294, 1e-12
  %v327 = vadd.f32 %v295, 1e-12
  %v328 = vadd.f32 %v296, 1e-12
  %v329 = vadd.f32 %v297, 1e-12
  %v330 = vadd.f32 %v298, 1e-12
  %v331 = vadd.f32 %v299, 1e-12
  %v332 = vadd.f32 %v300, 1e-12
  %v333 = vadd.f32 %v301, 1e-12
  %v334 = vadd.f32 %v302, 1e-12
  %v335 = vrsqrt.pop %v303
  %v336 = vrsqrt.pop %v304
  %v337 = vrsqrt.pop %v305
  %v338 = vrsqrt.pop %v306
  %v339 = vrsqrt.pop %v307
  %v340 = vrsqrt.pop %v308
  %v341 = vrsqrt.pop %v309
  %v342 = vrsqrt.pop %v310
  %v343 = vrsqrt.pop %v311
  %v344 = vrsqrt.pop %v312
  %v345 = vrsqrt.pop %v313
  %v346 = vrsqrt.pop %v314
  %v347 = vrsqrt.pop %v315
  %v348 = vrsqrt.pop %v316
  %v349 = vrsqrt.pop %v317
  %v350 = vrsqrt.pop %v318
  %v351 = vrsqrt.pop %v319
  %v352 = vrsqrt.pop %v320
  %v353 = vrsqrt.pop %v321
  %v354 = vrsqrt.pop %v322
  %v355 = vrsqrt.pop %v323
  %v356 = vrsqrt.pop %v324
  %v357 = vrsqrt.pop %v325
  %v358 = vrsqrt.pop %v326
  %v359 = vrsqrt.pop %v327
  %v360 = vrsqrt.pop %v328
  %v361 = vrsqrt.pop %v329
  %v362 = vrsqrt.pop %v330
  %v363 = vrsqrt.pop %v331
  %v364 = vrsqrt.pop %v332
  %v365 = vrsqrt.pop %v333
  %v366 = vrsqrt.pop %v334
  %v367 = vmul.f32 %v143, %v335
  %v368 = vmul.f32 %v144, %v336
  %v369 = vmul.f32 %v145, %v337
  %v370 = vmul.f32 %v146, %v338
  %v371 = vmul.f32 %v147, %v339
  %v372 = vmul.f32 %v148, %v340
  %v373 = vmul.f32 %v149, %v341
  %v374 = vmul.f32 %v150, %v342
  %v375 = vmul.f32 %v151, %v343
  %v376 = vmul.f32 %v152, %v344
  %v377 = vmul.f32 %v153, %v345
  %v378 = vmul.f32 %v154, %v346
  %v379 = vmul.f32 %v155, %v347
  %v380 = vmul.f32 %v156, %v348
  %v381 = vmul.f32 %v157, %v349
  %v382 = vmul.f32 %v158, %v350
  %v383 = vmul.f32 %v159, %v351
  %v384 = vmul.f32 %v160, %v352
  %v385 = vmul.f32 %v161, %v353
  %v386 = vmul.f32 %v162, %v354
  %v387 = vmul.f32 %v163, %v355
  %v388 = vmul.f32 %v164, %v356
  %v389 = vmul.f32 %v165, %v357
  %v390 = vmul.f32 %v166, %v358
  %v391 = vmul.f32 %v167, %v359
  %v392 = vmul.f32 %v168, %v360
  %v393 = vmul.f32 %v169, %v361
  %v394 = vmul.f32 %v170, %v362
  %v395 = vmul.f32 %v171, %v363
  %v396 = vmul.f32 %v172, %v364
  %v397 = vmul.f32 %v173, %v365
  %v398 = vmul.f32 %v174, %v366
  %v399 = vld [vmem:[%s1] sm:$0x1]
  %v401 = vlaneseq
  %v402 = vshrl.u32 %v401, 7
  %v403 = vsub.s32 0, %v402
  %v404 = vrot.slane %v399, %v403
  %v406 = vmul.f32 %v367, %v404
  %v407 = vmul.f32 %v368, %v404
  %v408 = vmul.f32 %v369, %v404
  %v409 = vmul.f32 %v370, %v404
  %v410 = vmul.f32 %v371, %v404
  %v411 = vmul.f32 %v372, %v404
  %v412 = vmul.f32 %v373, %v404
  %v413 = vmul.f32 %v374, %v404
  %v414 = vmul.f32 %v375, %v404
  %v415 = vmul.f32 %v376, %v404
  %v416 = vmul.f32 %v377, %v404
  %v417 = vmul.f32 %v378, %v404
  %v418 = vmul.f32 %v379, %v404
  %v419 = vmul.f32 %v380, %v404
  %v420 = vmul.f32 %v381, %v404
  %v421 = vmul.f32 %v382, %v404
  %v422 = vmul.f32 %v383, %v404
  %v423 = vmul.f32 %v384, %v404
  %v424 = vmul.f32 %v385, %v404
  %v425 = vmul.f32 %v386, %v404
  %v426 = vmul.f32 %v387, %v404
  %v427 = vmul.f32 %v388, %v404
  %v428 = vmul.f32 %v389, %v404
  %v429 = vmul.f32 %v390, %v404
  %v430 = vmul.f32 %v391, %v404
  %v431 = vmul.f32 %v392, %v404
  %v432 = vmul.f32 %v393, %v404
  %v433 = vmul.f32 %v394, %v404
  %v434 = vmul.f32 %v395, %v404
  %v435 = vmul.f32 %v396, %v404
  %v436 = vmul.f32 %v397, %v404
  %v437 = vmul.f32 %v398, %v404
  %v438 = vld [vmem:[%s2] sm:$0x1]
  %v440 = vlaneseq
  %v441 = vshrl.u32 %v440, 7
  %v442 = vsub.s32 0, %v441
  %v443 = vrot.slane %v438, %v442
  %v445 = vadd.f32 %v406, %v443
  %v446 = vadd.f32 %v407, %v443
  %v447 = vadd.f32 %v408, %v443
  %v448 = vadd.f32 %v409, %v443
  %v449 = vadd.f32 %v410, %v443
  %v450 = vadd.f32 %v411, %v443
  %v451 = vadd.f32 %v412, %v443
  %v452 = vadd.f32 %v413, %v443
  %v453 = vadd.f32 %v414, %v443
  %v454 = vadd.f32 %v415, %v443
  %v455 = vadd.f32 %v416, %v443
  %v456 = vadd.f32 %v417, %v443
  %v457 = vadd.f32 %v418, %v443
  %v458 = vadd.f32 %v419, %v443
  %v459 = vadd.f32 %v420, %v443
  %v460 = vadd.f32 %v421, %v443
  %v461 = vadd.f32 %v422, %v443
  %v462 = vadd.f32 %v423, %v443
  %v463 = vadd.f32 %v424, %v443
  %v464 = vadd.f32 %v425, %v443
  %v465 = vadd.f32 %v426, %v443
  %v466 = vadd.f32 %v427, %v443
  %v467 = vadd.f32 %v428, %v443
  %v468 = vadd.f32 %v429, %v443
  %v469 = vadd.f32 %v430, %v443
  %v470 = vadd.f32 %v431, %v443
  %v471 = vadd.f32 %v432, %v443
  %v472 = vadd.f32 %v433, %v443
  %v473 = vadd.f32 %v434, %v443
  %v474 = vadd.f32 %v435, %v443
  %v475 = vadd.f32 %v436, %v443
  %v476 = vadd.f32 %v437, %v443
  %v477 = vpack.c.bf16 %v446, %v445
  %v478 = vpack.c.bf16 %v448, %v447
  %v479 = vpack.c.bf16 %v450, %v449
  %v480 = vpack.c.bf16 %v452, %v451
  %v481 = vpack.c.bf16 %v454, %v453
  %v482 = vpack.c.bf16 %v456, %v455
  %v483 = vpack.c.bf16 %v458, %v457
  %v484 = vpack.c.bf16 %v460, %v459
  %v485 = vpack.c.bf16 %v462, %v461
  %v486 = vpack.c.bf16 %v464, %v463
  %v487 = vpack.c.bf16 %v466, %v465
  %v488 = vpack.c.bf16 %v468, %v467
  %v489 = vpack.c.bf16 %v470, %v469
  %v490 = vpack.c.bf16 %v472, %v471
  %v491 = vpack.c.bf16 %v474, %v473
  %v492 = vpack.c.bf16 %v476, %v475
  %v509 = vunpack.c.l.b16 %v477
  %v510 = vunpack.c.h.b16 %v477
  %v511 = vunpack.c.l.b16 %v478
  %v512 = vunpack.c.h.b16 %v478
  %v513 = vunpack.c.l.b16 %v479
  %v514 = vunpack.c.h.b16 %v479
  %v515 = vunpack.c.l.b16 %v480
  %v516 = vunpack.c.h.b16 %v480
  %v517 = vunpack.c.l.b16 %v481
  %v518 = vunpack.c.h.b16 %v481
  %v519 = vunpack.c.l.b16 %v482
  %v520 = vunpack.c.h.b16 %v482
  %v521 = vunpack.c.l.b16 %v483
  %v522 = vunpack.c.h.b16 %v483
  %v523 = vunpack.c.l.b16 %v484
  %v524 = vunpack.c.h.b16 %v484
  %v525 = vunpack.c.l.b16 %v485
  %v526 = vunpack.c.h.b16 %v485
  %v527 = vunpack.c.l.b16 %v486
  %v528 = vunpack.c.h.b16 %v486
  %v529 = vunpack.c.l.b16 %v487
  %v530 = vunpack.c.h.b16 %v487
  %v531 = vunpack.c.l.b16 %v488
  %v532 = vunpack.c.h.b16 %v488
  %v533 = vunpack.c.l.b16 %v489
  %v534 = vunpack.c.h.b16 %v489
  %v535 = vunpack.c.l.b16 %v490
  %v536 = vunpack.c.h.b16 %v490
  %v537 = vunpack.c.l.b16 %v491
  %v538 = vunpack.c.h.b16 %v491
  %v539 = vunpack.c.l.b16 %v492
  %v540 = vunpack.c.h.b16 %v492
  %v541 = vpack.c.b16 %v509, %v509
  %v542 = vpack.c.b16 %v510, %v510
  %v543 = vpack.c.b16 %v511, %v511
  %v544 = vpack.c.b16 %v512, %v512
  %v545 = vpack.c.b16 %v513, %v513
  %v546 = vpack.c.b16 %v514, %v514
  %v547 = vpack.c.b16 %v515, %v515
  %v548 = vpack.c.b16 %v516, %v516
  %v549 = vpack.c.b16 %v517, %v517
  %v550 = vpack.c.b16 %v518, %v518
  %v551 = vpack.c.b16 %v519, %v519
  %v552 = vpack.c.b16 %v520, %v520
  %v553 = vpack.c.b16 %v521, %v521
  %v554 = vpack.c.b16 %v522, %v522
  %v555 = vpack.c.b16 %v523, %v523
  %v556 = vpack.c.b16 %v524, %v524
  %v557 = vpack.c.b16 %v525, %v525
  %v558 = vpack.c.b16 %v526, %v526
  %v559 = vpack.c.b16 %v527, %v527
  %v560 = vpack.c.b16 %v528, %v528
  %v561 = vpack.c.b16 %v529, %v529
  %v562 = vpack.c.b16 %v530, %v530
  %v563 = vpack.c.b16 %v531, %v531
  %v564 = vpack.c.b16 %v532, %v532
  %v565 = vpack.c.b16 %v533, %v533
  %v566 = vpack.c.b16 %v534, %v534
  %v567 = vpack.c.b16 %v535, %v535
  %v568 = vpack.c.b16 %v536, %v536
  %v569 = vpack.c.b16 %v537, %v537
  %v570 = vpack.c.b16 %v538, %v538
  %v571 = vpack.c.b16 %v539, %v539
  %v572 = vpack.c.b16 %v540, %v540
  %605 = vst [vmem:[%s3] sm:$0xf] %v541
  %606 = vst [vmem:[%s3 + $0x4] sm:$0xf] %v542
  %607 = vst [vmem:[%s3 + $0x8] sm:$0xf] %v543
  %608 = vst [vmem:[%s3 + $0xc] sm:$0xf] %v544
  %609 = vst [vmem:[%s3 + $0x10] sm:$0xf] %v545
  %610 = vst [vmem:[%s3 + $0x14] sm:$0xf] %v546
  %611 = vst [vmem:[%s3 + $0x18] sm:$0xf] %v547
  %612 = vst [vmem:[%s3 + $0x1c] sm:$0xf] %v548
  %613 = vst [vmem:[%s3 + $0x20] sm:$0xf] %v549
  %614 = vst [vmem:[%s3 + $0x24] sm:$0xf] %v550
  %615 = vst [vmem:[%s3 + $0x28] sm:$0xf] %v551
  %616 = vst [vmem:[%s3 + $0x2c] sm:$0xf] %v552
  %617 = vst [vmem:[%s3 + $0x30] sm:$0xf] %v553
  %618 = vst [vmem:[%s3 + $0x34] sm:$0xf] %v554
  %619 = vst [vmem:[%s3 + $0x38] sm:$0xf] %v555
  %620 = vst [vmem:[%s3 + $0x3c] sm:$0xf] %v556
  %621 = vst [vmem:[%s3 + $0x40] sm:$0xf] %v557
  %622 = vst [vmem:[%s3 + $0x44] sm:$0xf] %v558
  %623 = vst [vmem:[%s3 + $0x48] sm:$0xf] %v559
  %624 = vst [vmem:[%s3 + $0x4c] sm:$0xf] %v560
  %625 = vst [vmem:[%s3 + $0x50] sm:$0xf] %v561
  %626 = vst [vmem:[%s3 + $0x54] sm:$0xf] %v562
  %627 = vst [vmem:[%s3 + $0x58] sm:$0xf] %v563
  %628 = vst [vmem:[%s3 + $0x5c] sm:$0xf] %v564
  %629 = vst [vmem:[%s3 + $0x60] sm:$0xf] %v565
  %630 = vst [vmem:[%s3 + $0x64] sm:$0xf] %v566
  %631 = vst [vmem:[%s3 + $0x68] sm:$0xf] %v567
  %632 = vst [vmem:[%s3 + $0x6c] sm:$0xf] %v568
  %633 = vst [vmem:[%s3 + $0x70] sm:$0xf] %v569
  %634 = vst [vmem:[%s3 + $0x74] sm:$0xf] %v570
  %635 = vst [vmem:[%s3 + $0x78] sm:$0xf] %v571
  %636 = vst [vmem:[%s3 + $0x7c] sm:$0xf] %v572
  // Predicated region
  $region14: #{bert_classifier_forward.11} parent=0 // pred_check
    _
  $region15: #{bert_classifier_forward.11} parent=0 // pred_check_branch
    %638 = sbr.rel (0) target = $region17
  $region16: #{bert_classifier_forward.11} parent=0 // pred_region
    _
  $region17: #{bert_classifier_forward.11} parent=0 // pred_fallthru
    _
  // Predicated region
  $region18: #{bert_classifier_forward.11} parent=0 // pred_check
    _
  $region19: #{bert_classifier_forward.11} parent=0 // pred_check_branch
    %640 = sbr.rel (0) target = $region21
  $region20: #{bert_classifier_forward.11} parent=0 // pred_region
    _
  $region21: #{bert_classifier_forward.11} parent=0 // pred_fallthru
    _

// kernel: bert_classifier_forward.12
$region0: #{bert_classifier_forward.12}
  #allocation0 [shape = 'u32[]', space=smem, size = 0x4, offset = 0x4, fixed_abs, tag = 'smem constant byte address 0x4 - core index']
  #allocation1 [shape = 'u32[144,128]{1,0:T(1,128)}', space=vmem, size = 0x12000, scoped, tag = 'internal scratch']
  #allocation2 [shape = 'f32[256,128]{1,0:T(8,128)}', space=vmem, size = 0x20000, scoped, tag = 'scratch operand']
  %s0 = inlined_call_operand.vmem [shape: bf16[256,128], index: 0, kind: input, shape index: {}]
  %s1 = inlined_call_operand.vmem [shape: bf16[128,384], index: 1, kind: input, shape index: {}]
  %s2 = inlined_call_operand.vmem [shape: f32[1,384], index: 2, kind: input, shape index: {}]
  %s3 = inlined_call_operand.vmem [shape: bf16[256,384], index: 3, kind: output, shape index: {}]
  %s4 = sld [smem:[#allocation0]]
  $region131: #{bert_classifier_forward.12} parent=0
    _
  %s6 = ssub.s32 1, %s4
  %s7 = scalar_select 0, %s6, %s4
  $region1: #{bert_classifier_forward.12} parent=0
    #allocation3 [shape = 'u8[65536]{0}', space=vmem, size = 0x10000, scoped, tag = 'input window, operand 1']
    #allocation4 [shape = 'u8[131072]{0}', space=vmem, size = 0x20000, scoped, tag = 'output window, operand 0']
    loop: start=0, step=1, limit=5
    $region2: #{bert_classifier_forward.12} parent=1 // loop_pre_header
      _
    $region3: #{bert_classifier_forward.12} parent=1 // loop_header
      %s9 = sphi 0, %s13
      %p10 = scmp.ge.s32.totalorder %s9, 5
      %s16 = sphi 0, %s35
      %s17 = sphi 0, %s31
      %s18 = sphi 0, %s27
      %s19 = sphi 0, %s16
      %s20 = sphi 0, %s17
      %s21 = sphi 0, %s18
      %s22 = sphi 0, %s19
      %s23 = sphi 0, %s20
      %s24 = sphi 0, %s21
      %s40 = sphi 0, %s42
      %s43 = sphi 0, %s40
      %s44 = sphi 0, %s43
      %s60 = sphi 0, %s44
      %s68 = sphi 0, %s70
      %s71 = sphi 0, %s68
      %s72 = sphi 0, %s71
      %s88 = sphi 0, %s72
      %s94 = sphi 0, %s96
      %s97 = sphi 0, %s94
      %s98 = sphi 0, %s97
      %s114 = sphi 0, %s98
      %s122 = sphi 0, %s124
      %s125 = sphi 0, %s122
      %s126 = sphi 0, %s125
      %s142 = sphi 0, %s126
    $region4: #{bert_classifier_forward.12} parent=1 // loop_header_branch
      %12 = sbr.rel (%p10) target = $region8
    $region5: #{bert_classifier_forward.12} parent=1 // loop_body
      %s14 = ssub.s32 %s9, 1
      %s15 = ssub.s32 %s9, 2
      %s25 = sadd.s32 1, %s18
      %p26 = scmp.ge.s32.totalorder %s25, 1
      %s27 = scalar_select %p26, 0, %s25
      %s28 = sadd.s32 1, %s17
      %s29 = scalar_select %p26, %s28, %s17
      %p30 = scmp.ge.s32.totalorder %s29, 3
      %s31 = scalar_select %p30, 0, %s29
      %s32 = sadd.s32 1, %s16
      %s33 = scalar_select %p30, %s32, %s16
      %p34 = scmp.ge.s32.totalorder %s33, 1
      %s35 = scalar_select %p34, 0, %s33
      %s36 = ssub.s32 %s16, %s35
      %s37 = ssub.s32 %s18, %s27
      %s38 = sor.u32 %s36, %s37
      %p39 = scmp.eq.s32.totalorder %s38, 0
      %s41 = sadd.s32 %s40, 1
      %s42 = scalar_select %p39, %s40, %s41
      %p45 = pneg %p39
      %p46 = scmp.eq.s32.totalorder %s9, 2
      %p47 = por %p45, %p46
      %p48 = scmp.ne.s32.totalorder %s40, %s43
      %p49 = scmp.eq.s32.totalorder %s9, 0
      %p50 = por %p48, %p49
      %p51 = scmp.ne.s32.totalorder %s40, %s43
      %p52 = scmp.eq.s32.totalorder %s14, 2
      %p53 = por %p51, %p52
      %p54 = scmp.ne.s32.totalorder %s43, %s44
      %p55 = scmp.eq.s32.totalorder %s14, 0
      %p56 = por %p54, %p55
      %p57 = scmp.ne.s32.totalorder %s43, %s44
      %p58 = scmp.eq.s32.totalorder %s15, 2
      %p59 = por %p57, %p58
      %p61 = scmp.ne.s32.totalorder %s44, %s60
      %p62 = scmp.eq.s32.totalorder %s15, 0
      %p63 = por %p61, %p62
      %s64 = ssub.s32 %s18, %s27
      %s65 = ssub.s32 %s17, %s31
      %s66 = sor.u32 %s64, %s65
      %p67 = scmp.eq.s32.totalorder %s66, 0
      %s69 = sadd.s32 %s68, 1
      %s70 = scalar_select %p67, %s68, %s69
      %p73 = pneg %p67
      %p74 = scmp.eq.s32.totalorder %s9, 2
      %p75 = por %p73, %p74
      %p76 = scmp.ne.s32.totalorder %s68, %s71
      %p77 = scmp.eq.s32.totalorder %s9, 0
      %p78 = por %p76, %p77
      %p79 = scmp.ne.s32.totalorder %s68, %s71
      %p80 = scmp.eq.s32.totalorder %s14, 2
      %p81 = por %p79, %p80
      %p82 = scmp.ne.s32.totalorder %s71, %s72
      %p83 = scmp.eq.s32.totalorder %s14, 0
      %p84 = por %p82, %p83
      %p85 = scmp.ne.s32.totalorder %s71, %s72
      %p86 = scmp.eq.s32.totalorder %s15, 2
      %p87 = por %p85, %p86
      %p89 = scmp.ne.s32.totalorder %s72, %s88
      %p90 = scmp.eq.s32.totalorder %s15, 0
      %p91 = por %p89, %p90
      %s92 = ssub.s32 %s17, %s31
      %p93 = scmp.eq.s32.totalorder %s92, 0
      %s95 = sadd.s32 %s94, 1
      %s96 = scalar_select %p93, %s94, %s95
      %p99 = pneg %p93
      %p100 = scmp.eq.s32.totalorder %s9, 2
      %p101 = por %p99, %p100
      %p102 = scmp.ne.s32.totalorder %s94, %s97
      %p103 = scmp.eq.s32.totalorder %s9, 0
      %p104 = por %p102, %p103
      %p105 = scmp.ne.s32.totalorder %s94, %s97
      %p106 = scmp.eq.s32.totalorder %s14, 2
      %p107 = por %p105, %p106
      %p108 = scmp.ne.s32.totalorder %s97, %s98
      %p109 = scmp.eq.s32.totalorder %s14, 0
      %p110 = por %p108, %p109
      %p111 = scmp.ne.s32.totalorder %s97, %s98
      %p112 = scmp.eq.s32.totalorder %s15, 2
      %p113 = por %p111, %p112
      %p115 = scmp.ne.s32.totalorder %s98, %s114
      %p116 = scmp.eq.s32.totalorder %s15, 0
      %p117 = por %p115, %p116
      %s118 = ssub.s32 %s16, %s35
      %s119 = ssub.s32 %s17, %s31
      %s120 = sor.u32 %s118, %s119
      %p121 = scmp.eq.s32.totalorder %s120, 0
      %s123 = sadd.s32 %s122, 1
      %s124 = scalar_select %p121, %s122, %s123
      %p127 = pneg %p121
      %p128 = scmp.eq.s32.totalorder %s9, 2
      %p129 = por %p127, %p128
      %p130 = scmp.ne.s32.totalorder %s122, %s125
      %p131 = scmp.eq.s32.totalorder %s9, 0
      %p132 = por %p130, %p131
      %p133 = scmp.ne.s32.totalorder %s122, %s125
      %p134 = scmp.eq.s32.totalorder %s14, 2
      %p135 = por %p133, %p134
      %p136 = scmp.ne.s32.totalorder %s125, %s126
      %p137 = scmp.eq.s32.totalorder %s14, 0
      %p138 = por %p136, %p137
      %p139 = scmp.ne.s32.totalorder %s125, %s126
      %p140 = scmp.eq.s32.totalorder %s15, 2
      %p141 = por %p139, %p140
      %p143 = scmp.ne.s32.totalorder %s126, %s142
      %p144 = scmp.eq.s32.totalorder %s15, 0
      %p145 = por %p143, %p144
      %p146 = scmp.le.s32.totalorder 1, %s9
      %p147 = scmp.lt.s32.totalorder %s9, 4
      %p148 = pnand %p146, %p147
      %p149 = pneg %p148
      // Predicated region
      $region9: #{bert_classifier_forward.12} parent=5 // pred_check
        _
      $region10: #{bert_classifier_forward.12} parent=5 // pred_check_branch
        %151 = sbr.rel (%p148) target = $region12
      $region11: #{bert_classifier_forward.12} parent=5 // pred_region
        %s152 = ssub.s32 %s9, 1
        // Predicated region
        $region13: #{bert_classifier_forward.12} parent=11 // pred_check
          %p153 = pneg %p56
        $region14: #{bert_classifier_forward.12} parent=11 // pred_check_branch
          %155 = sbr.rel (%p153) target = $region16
        $region15: #{bert_classifier_forward.12} parent=11 // pred_region
          %s156 = smul.u32 32, %s19
          %p157 = scmp.lt.s32.totalorder %s156, 31
          %s158 = scalar_select %p157, %s156, 31
          %p159 = scmp.lt.s32.totalorder %s21, 0
          %s160 = scalar_select %p159, %s21, 0
          %s161 = sadd.s32 %s160, %s158
          %s162 = smul.addr %s161, 4
          %s163 = scalar_lea.vmem %s0, %s162
          %s164 = smul.u32 32, %s19
        $region16: #{bert_classifier_forward.12} parent=11 // pred_fallthru
          _
      $region12: #{bert_classifier_forward.12} parent=5 // pred_fallthru
        _
      %p165 = scmp.lt.s32.totalorder %s9, 3
      // Predicated region
      $region17: #{bert_classifier_forward.12} parent=5 // pred_check
        %p166 = pneg %p165
      $region18: #{bert_classifier_forward.12} parent=5 // pred_check_branch
        %168 = sbr.rel (%p166) target = $region20
      $region19: #{bert_classifier_forward.12} parent=5 // pred_region
        // Predicated region
        $region21: #{bert_classifier_forward.12} parent=19 // pred_check
          %p169 = pneg %p78
        $region22: #{bert_classifier_forward.12} parent=19 // pred_check_branch
          %171 = sbr.rel (%p169) target = $region24
        $region23: #{bert_classifier_forward.12} parent=19 // pred_region
          %s172 = sand.u32 %s68, 1
          %s173 = sand.u32 %s68, 1
          %s174 = smul.addr %s173, 64
          %s175 = scalar_lea.vmem [#allocation3], %s174
          %s176 = smul.u32 16, %s18
          %s177 = smul.addr %s176, 3
          %s178 = sadd.s32 %s17, %s177
          %s179 = smul.addr %s178, 4
          %s180 = scalar_lea.vmem %s1, %s179
          // Predicated region
          $region25: #{bert_classifier_forward.12} parent=23 // pred_check
            _
          $region26: #{bert_classifier_forward.12} parent=23 // pred_check_branch
            %182 = sbr.rel (0) target = $region28
          $region27: #{bert_classifier_forward.12} parent=23 // pred_region
            // Predicated region
            $region29: #{bert_classifier_forward.12} parent=27 // pred_check
              _
            $region30: #{bert_classifier_forward.12} parent=27 // pred_check_branch
              %184 = sbr.rel target = $region32
            $region31: #{bert_classifier_forward.12} parent=27 // pred_region
              // Predicated region
              $region44: #{bert_classifier_forward.12} parent=31 // pred_check
                _
              $region45: #{bert_classifier_forward.12} parent=31 // pred_check_branch
                %229 = sbr.rel (0) target = $region47
              $region46: #{bert_classifier_forward.12} parent=31 // pred_region
                loop: start=0, step=1, limit=1
                $region48: #{bert_classifier_forward.12} parent=46 // loop_pre_header
                  _
                $region49: #{bert_classifier_forward.12} parent=46 // loop_header
                  %s231 = sphi 0, %s235
                  %p232 = scmp.ge.s32.totalorder %s231, 1
                  %s236 = sphi %s180, %s180
                  %s237 = sphi %s175, %s175
                $region50: #{bert_classifier_forward.12} parent=46 // loop_header_branch
                  %234 = sbr.rel (%p232) target = $region54
                $region51: #{bert_classifier_forward.12} parent=46 // loop_body
                  _
                $region52: #{bert_classifier_forward.12} parent=46 // loop_footer
                  %s235 = sadd.s32 1, %s231
                $region53: #{bert_classifier_forward.12} parent=46 // loop_footer_branch
                  %230 = sbr.rel target = $region49
                $region54: #{bert_classifier_forward.12} parent=46 // loop_exit
                  _
                loop: start=0, step=1, limit=1
                $region55: #{bert_classifier_forward.12} parent=46 // loop_pre_header
                  _
                $region56: #{bert_classifier_forward.12} parent=46 // loop_header
                  %s240 = sphi 0, %s244
                  %p241 = scmp.ge.s32.totalorder %s240, 1
                  %s245 = sphi %s180, %s180
                  %s246 = sphi %s175, %s175
                $region57: #{bert_classifier_forward.12} parent=46 // loop_header_branch
                  %243 = sbr.rel (%p241) target = $region61
                $region58: #{bert_classifier_forward.12} parent=46 // loop_body
                  %v247 = vld [vmem:[%s245] sm:$0xf]
                  %248 = vst [vmem:[%s246] sm:$0xf] %v247
                  %v249 = vld [vmem:[%s245 + $0xc] sm:$0xf]
                  %250 = vst [vmem:[%s246 + $0x4] sm:$0xf] %v249
                  %v251 = vld [vmem:[%s245 + $0x18] sm:$0xf]
                  %252 = vst [vmem:[%s246 + $0x8] sm:$0xf] %v251
                  %v253 = vld [vmem:[%s245 + $0x24] sm:$0xf]
                  %254 = vst [vmem:[%s246 + $0xc] sm:$0xf] %v253
                  %v255 = vld [vmem:[%s245 + $0x30] sm:$0xf]
                  %256 = vst [vmem:[%s246 + $0x10] sm:$0xf] %v255
                  %v257 = vld [vmem:[%s245 + $0x3c] sm:$0xf]
                  %258 = vst [vmem:[%s246 + $0x14] sm:$0xf] %v257
                  %v259 = vld [vmem:[%s245 + $0x48] sm:$0xf]
                  %260 = vst [vmem:[%s246 + $0x18] sm:$0xf] %v259
                  %v261 = vld [vmem:[%s245 + $0x54] sm:$0xf]
                  %262 = vst [vmem:[%s246 + $0x1c] sm:$0xf] %v261
                  %v263 = vld [vmem:[%s245 + $0x60] sm:$0xf]
                  %264 = vst [vmem:[%s246 + $0x20] sm:$0xf] %v263
                  %v265 = vld [vmem:[%s245 + $0x6c] sm:$0xf]
                  %266 = vst [vmem:[%s246 + $0x24] sm:$0xf] %v265
                  %v267 = vld [vmem:[%s245 + $0x78] sm:$0xf]
                  %268 = vst [vmem:[%s246 + $0x28] sm:$0xf] %v267
                  %v269 = vld [vmem:[%s245 + $0x84] sm:$0xf]
                  %270 = vst [vmem:[%s246 + $0x2c] sm:$0xf] %v269
                  %v271 = vld [vmem:[%s245 + $0x90] sm:$0xf]
                  %272 = vst [vmem:[%s246 + $0x30] sm:$0xf] %v271
                  %v273 = vld [vmem:[%s245 + $0x9c] sm:$0xf]
                  %274 = vst [vmem:[%s246 + $0x34] sm:$0xf] %v273
                  %v275 = vld [vmem:[%s245 + $0xa8] sm:$0xf]
                  %276 = vst [vmem:[%s246 + $0x38] sm:$0xf] %v275
                  %v277 = vld [vmem:[%s245 + $0xb4] sm:$0xf]
                  %278 = vst [vmem:[%s246 + $0x3c] sm:$0xf] %v277
                $region59: #{bert_classifier_forward.12} parent=46 // loop_footer
                  %s244 = sadd.s32 1, %s240
                $region60: #{bert_classifier_forward.12} parent=46 // loop_footer_branch
                  %239 = sbr.rel target = $region56
                $region61: #{bert_classifier_forward.12} parent=46 // loop_exit
                  _
              $region47: #{bert_classifier_forward.12} parent=31 // pred_fallthru
                _
            $region32: #{bert_classifier_forward.12} parent=27 // pred_fallthru
              _
            // Predicated region
            $region33: #{bert_classifier_forward.12} parent=27 // pred_check
              _
            $region34: #{bert_classifier_forward.12} parent=27 // pred_check_branch
              %186 = sbr.rel (0) target = $region36
            $region35: #{bert_classifier_forward.12} parent=27 // pred_region
              loop: start=0, step=1, limit=1
              $region37: #{bert_classifier_forward.12} parent=35 // loop_pre_header
                _
              $region38: #{bert_classifier_forward.12} parent=35 // loop_header
                %s189 = sphi 0, %s193
                %p190 = scmp.ge.s32.totalorder %s189, 1
                %s194 = sphi %s180, %s180
                %s195 = sphi %s175, %s175
              $region39: #{bert_classifier_forward.12} parent=35 // loop_header_branch
                %192 = sbr.rel (%p190) target = $region43
              $region40: #{bert_classifier_forward.12} parent=35 // loop_body
                %v196 = vld [vmem:[%s194] sm:$0xf]
                %197 = vst [vmem:[%s195] sm:$0xf] %v196
                %v198 = vld [vmem:[%s194 + $0xc] sm:$0xf]
                %199 = vst [vmem:[%s195 + $0x4] sm:$0xf] %v198
                %v200 = vld [vmem:[%s194 + $0x18] sm:$0xf]
                %201 = vst [vmem:[%s195 + $0x8] sm:$0xf] %v200
                %v202 = vld [vmem:[%s194 + $0x24] sm:$0xf]
                %203 = vst [vmem:[%s195 + $0xc] sm:$0xf] %v202
                %v204 = vld [vmem:[%s194 + $0x30] sm:$0xf]
                %205 = vst [vmem:[%s195 + $0x10] sm:$0xf] %v204
                %v206 = vld [vmem:[%s194 + $0x3c] sm:$0xf]
                %207 = vst [vmem:[%s195 + $0x14] sm:$0xf] %v206
                %v208 = vld [vmem:[%s194 + $0x48] sm:$0xf]
                %209 = vst [vmem:[%s195 + $0x18] sm:$0xf] %v208
                %v210 = vld [vmem:[%s194 + $0x54] sm:$0xf]
                %211 = vst [vmem:[%s195 + $0x1c] sm:$0xf] %v210
                %v212 = vld [vmem:[%s194 + $0x60] sm:$0xf]
                %213 = vst [vmem:[%s195 + $0x20] sm:$0xf] %v212
                %v214 = vld [vmem:[%s194 + $0x6c] sm:$0xf]
                %215 = vst [vmem:[%s195 + $0x24] sm:$0xf] %v214
                %v216 = vld [vmem:[%s194 + $0x78] sm:$0xf]
                %217 = vst [vmem:[%s195 + $0x28] sm:$0xf] %v216
                %v218 = vld [vmem:[%s194 + $0x84] sm:$0xf]
                %219 = vst [vmem:[%s195 + $0x2c] sm:$0xf] %v218
                %v220 = vld [vmem:[%s194 + $0x90] sm:$0xf]
                %221 = vst [vmem:[%s195 + $0x30] sm:$0xf] %v220
                %v222 = vld [vmem:[%s194 + $0x9c] sm:$0xf]
                %223 = vst [vmem:[%s195 + $0x34] sm:$0xf] %v222
                %v224 = vld [vmem:[%s194 + $0xa8] sm:$0xf]
                %225 = vst [vmem:[%s195 + $0x38] sm:$0xf] %v224
                %v226 = vld [vmem:[%s194 + $0xb4] sm:$0xf]
                %227 = vst [vmem:[%s195 + $0x3c] sm:$0xf] %v226
              $region41: #{bert_classifier_forward.12} parent=35 // loop_footer
                %s193 = sadd.s32 1, %s189
              $region42: #{bert_classifier_forward.12} parent=35 // loop_footer_branch
                %188 = sbr.rel target = $region38
              $region43: #{bert_classifier_forward.12} parent=35 // loop_exit
                _
            $region36: #{bert_classifier_forward.12} parent=27 // pred_fallthru
              _
          $region28: #{bert_classifier_forward.12} parent=23 // pred_fallthru
            _
          %279 = vnop
        $region24: #{bert_classifier_forward.12} parent=19 // pred_fallthru
          _
        // Predicated region
        $region62: #{bert_classifier_forward.12} parent=19 // pred_check
          %p280 = pneg %p104
        $region63: #{bert_classifier_forward.12} parent=19 // pred_check_branch
          %282 = sbr.rel (%p280) target = $region65
        $region64: #{bert_classifier_forward.12} parent=19 // pred_region
          %p283 = scmp.lt.s32.totalorder %s17, 2
          %s284 = scalar_select %p283, %s17, 2
          %s285 = scalar_lea.vmem %s2, %s284
        $region65: #{bert_classifier_forward.12} parent=19 // pred_fallthru
          _
      $region20: #{bert_classifier_forward.12} parent=5 // pred_fallthru
        _
      %p286 = scmp.le.s32.totalorder 1, %s9
      %p287 = scmp.lt.s32.totalorder %s9, 4
      %p288 = pnand %p286, %p287
      %p289 = pneg %p288
      // Predicated region
      $region66: #{bert_classifier_forward.12} parent=5 // pred_check
        _
      $region67: #{bert_classifier_forward.12} parent=5 // pred_check_branch
        %291 = sbr.rel (%p288) target = $region69
      $region68: #{bert_classifier_forward.12} parent=5 // pred_region
        %s292 = ssub.s32 %s9, 1
        %s293 = sand.u32 %s71, 1
        %s294 = sand.u32 %s71, 1
        %s295 = smul.addr %s294, 64
        %s296 = scalar_lea.vmem [#allocation3], %s295
        // Predicated region
        $region70: #{bert_classifier_forward.12} parent=68 // pred_check
          %p297 = pneg %p84
        $region71: #{bert_classifier_forward.12} parent=68 // pred_check_branch
          %299 = sbr.rel (%p297) target = $region73
        $region72: #{bert_classifier_forward.12} parent=68 // pred_region
          _
        $region73: #{bert_classifier_forward.12} parent=68 // pred_fallthru
          _
        %s300 = smul.u32 32, %s19
        %p301 = scmp.lt.s32.totalorder %s300, 31
        %s302 = scalar_select %p301, %s300, 31
        %p303 = scmp.lt.s32.totalorder %s21, 0
        %s304 = scalar_select %p303, %s21, 0
        %s305 = sadd.s32 %s304, %s302
        %s306 = smul.addr %s305, 4
        %s307 = scalar_lea.vmem %s0, %s306
        %p308 = pneg %p56
        %p309 = pneg %p53
        %s310 = sand.u32 %s71, 1
        %s311 = sand.u32 %s71, 1
        %s312 = smul.addr %s311, 64
        %s313 = scalar_lea.vmem [#allocation3], %s312
        %p314 = pneg %p84
        %p315 = pneg %p81
        %p316 = scmp.lt.s32.totalorder %s20, 2
        %s317 = scalar_select %p316, %s20, 2
        %s318 = scalar_lea.vmem %s2, %s317
        %p319 = pneg %p110
        %p320 = pneg %p107
        %p321 = pneg %p138
        %p322 = pneg %p135
        %s323 = sand.u32 %s125, 1
        %s324 = sand.u32 %s125, 1
        %s325 = smul.addr %s324, 128
        %s326 = scalar_lea.vmem [#allocation4], %s325
        %s327 = smul.u32 32, %s19
        %p328 = scmp.lt.s32.totalorder %s327, 31
        %s329 = scalar_select %p328, %s327, 31
        %p330 = scmp.lt.s32.totalorder %s21, 0
        %s331 = scalar_select %p330, %s21, 0
        %s332 = sadd.s32 %s331, %s329
        %s333 = smul.addr %s332, 4
        %s334 = scalar_lea.vmem %s0, %s333
        %s335 = smul.u32 32, %s19
        %s336 = smul.u32 16, %s21
        %p337 = scmp.lt.s32.totalorder %s20, 2
        %s338 = scalar_select %p337, %s20, 2
        %s339 = scalar_lea.vmem %s2, %s338
        %s340 = smul.u32 32, %s19
        %p342 = scmp.eq.s32.totalorder %s21, 0
        // Predicated region
        $region74: #{bert_classifier_forward.12} parent=68 // pred_check
          %p343 = pneg %p342
        $region75: #{bert_classifier_forward.12} parent=68 // pred_check_branch
          %345 = sbr.rel (%p343) target = $region77
        $region76: #{bert_classifier_forward.12} parent=68 // pred_region
          %346 = vst [vmem:[#allocation2] sm:$0xff] 0.0
          %347 = vst [vmem:[#allocation2 + $0x8] sm:$0xff] 0.0
          %348 = vst [vmem:[#allocation2 + $0x10] sm:$0xff] 0.0
          %349 = vst [vmem:[#allocation2 + $0x18] sm:$0xff] 0.0
          %350 = vst [vmem:[#allocation2 + $0x20] sm:$0xff] 0.0
          %351 = vst [vmem:[#allocation2 + $0x28] sm:$0xff] 0.0
          %352 = vst [vmem:[#allocation2 + $0x30] sm:$0xff] 0.0
          %353 = vst [vmem:[#allocation2 + $0x38] sm:$0xff] 0.0
          %354 = vst [vmem:[#allocation2 + $0x40] sm:$0xff] 0.0
          %355 = vst [vmem:[#allocation2 + $0x48] sm:$0xff] 0.0
          %356 = vst [vmem:[#allocation2 + $0x50] sm:$0xff] 0.0
          %357 = vst [vmem:[#allocation2 + $0x58] sm:$0xff] 0.0
          %358 = vst [vmem:[#allocation2 + $0x60] sm:$0xff] 0.0
          %359 = vst [vmem:[#allocation2 + $0x68] sm:$0xff] 0.0
          %360 = vst [vmem:[#allocation2 + $0x70] sm:$0xff] 0.0
          %361 = vst [vmem:[#allocation2 + $0x78] sm:$0xff] 0.0
          %362 = vst [vmem:[#allocation2 + $0x80] sm:$0xff] 0.0
          %363 = vst [vmem:[#allocation2 + $0x88] sm:$0xff] 0.0
          %364 = vst [vmem:[#allocation2 + $0x90] sm:$0xff] 0.0
          %365 = vst [vmem:[#allocation2 + $0x98] sm:$0xff] 0.0
          %366 = vst [vmem:[#allocation2 + $0xa0] sm:$0xff] 0.0
          %367 = vst [vmem:[#allocation2 + $0xa8] sm:$0xff] 0.0
          %368 = vst [vmem:[#allocation2 + $0xb0] sm:$0xff] 0.0
          %369 = vst [vmem:[#allocation2 + $0xb8] sm:$0xff] 0.0
          %370 = vst [vmem:[#allocation2 + $0xc0] sm:$0xff] 0.0
          %371 = vst [vmem:[#allocation2 + $0xc8] sm:$0xff] 0.0
          %372 = vst [vmem:[#allocation2 + $0xd0] sm:$0xff] 0.0
          %373 = vst [vmem:[#allocation2 + $0xd8] sm:$0xff] 0.0
          %374 = vst [vmem:[#allocation2 + $0xe0] sm:$0xff] 0.0
          %375 = vst [vmem:[#allocation2 + $0xe8] sm:$0xff] 0.0
          %376 = vst [vmem:[#allocation2 + $0xf0] sm:$0xff] 0.0
          %377 = vst [vmem:[#allocation2 + $0xf8] sm:$0xff] 0.0
        $region77: #{bert_classifier_forward.12} parent=68 // pred_fallthru
          _
        %v378 = vld [vmem:[#allocation2] sm:$0xff]
        %v379 = vld [vmem:[#allocation2 + $0x8] sm:$0xff]
        %v380 = vld [vmem:[#allocation2 + $0x10] sm:$0xff]
        %v381 = vld [vmem:[#allocation2 + $0x18] sm:$0xff]
        %v382 = vld [vmem:[#allocation2 + $0x20] sm:$0xff]
        %v383 = vld [vmem:[#allocation2 + $0x28] sm:$0xff]
        %v384 = vld [vmem:[#allocation2 + $0x30] sm:$0xff]
        %v385 = vld [vmem:[#allocation2 + $0x38] sm:$0xff]
        %v386 = vld [vmem:[#allocation2 + $0x40] sm:$0xff]
        %v387 = vld [vmem:[#allocation2 + $0x48] sm:$0xff]
        %v388 = vld [vmem:[#allocation2 + $0x50] sm:$0xff]
        %v389 = vld [vmem:[#allocation2 + $0x58] sm:$0xff]
        %v390 = vld [vmem:[#allocation2 + $0x60] sm:$0xff]
        %v391 = vld [vmem:[#allocation2 + $0x68] sm:$0xff]
        %v392 = vld [vmem:[#allocation2 + $0x70] sm:$0xff]
        %v393 = vld [vmem:[#allocation2 + $0x78] sm:$0xff]
        %v394 = vld [vmem:[#allocation2 + $0x80] sm:$0xff]
        %v395 = vld [vmem:[#allocation2 + $0x88] sm:$0xff]
        %v396 = vld [vmem:[#allocation2 + $0x90] sm:$0xff]
        %v397 = vld [vmem:[#allocation2 + $0x98] sm:$0xff]
        %v398 = vld [vmem:[#allocation2 + $0xa0] sm:$0xff]
        %v399 = vld [vmem:[#allocation2 + $0xa8] sm:$0xff]
        %v400 = vld [vmem:[#allocation2 + $0xb0] sm:$0xff]
        %v401 = vld [vmem:[#allocation2 + $0xb8] sm:$0xff]
        %v402 = vld [vmem:[#allocation2 + $0xc0] sm:$0xff]
        %v403 = vld [vmem:[#allocation2 + $0xc8] sm:$0xff]
        %v404 = vld [vmem:[#allocation2 + $0xd0] sm:$0xff]
        %v405 = vld [vmem:[#allocation2 + $0xd8] sm:$0xff]
        %v406 = vld [vmem:[#allocation2 + $0xe0] sm:$0xff]
        %v407 = vld [vmem:[#allocation2 + $0xe8] sm:$0xff]
        %v408 = vld [vmem:[#allocation2 + $0xf0] sm:$0xff]
        %v409 = vld [vmem:[#allocation2 + $0xf8] sm:$0xff]
        %v410 = vld [vmem:[%s334] sm:$0xf]
        %v411 = vld [vmem:[%s334 + $0x4] sm:$0xf]
        %v412 = vld [vmem:[%s334 + $0x8] sm:$0xf]
        %v413 = vld [vmem:[%s334 + $0xc] sm:$0xf]
        %v414 = vld [vmem:[%s334 + $0x10] sm:$0xf]
        %v415 = vld [vmem:[%s334 + $0x14] sm:$0xf]
        %v416 = vld [vmem:[%s334 + $0x18] sm:$0xf]
        %v417 = vld [vmem:[%s334 + $0x1c] sm:$0xf]
        %v418 = vld [vmem:[%s334 + $0x20] sm:$0xf]
        %v419 = vld [vmem:[%s334 + $0x24] sm:$0xf]
        %v420 = vld [vmem:[%s334 + $0x28] sm:$0xf]
        %v421 = vld [vmem:[%s334 + $0x2c] sm:$0xf]
        %v422 = vld [vmem:[%s334 + $0x30] sm:$0xf]
        %v423 = vld [vmem:[%s334 + $0x34] sm:$0xf]
        %v424 = vld [vmem:[%s334 + $0x38] sm:$0xf]
        %v425 = vld [vmem:[%s334 + $0x3c] sm:$0xf]
        %v426 = vld [vmem:[%s334 + $0x40] sm:$0xf]
        %v427 = vld [vmem:[%s334 + $0x44] sm:$0xf]
        %v428 = vld [vmem:[%s334 + $0x48] sm:$0xf]
        %v429 = vld [vmem:[%s334 + $0x4c] sm:$0xf]
        %v430 = vld [vmem:[%s334 + $0x50] sm:$0xf]
        %v431 = vld [vmem:[%s334 + $0x54] sm:$0xf]
        %v432 = vld [vmem:[%s334 + $0x58] sm:$0xf]
        %v433 = vld [vmem:[%s334 + $0x5c] sm:$0xf]
        %v434 = vld [vmem:[%s334 + $0x60] sm:$0xf]
        %v435 = vld [vmem:[%s334 + $0x64] sm:$0xf]
        %v436 = vld [vmem:[%s334 + $0x68] sm:$0xf]
        %v437 = vld [vmem:[%s334 + $0x6c] sm:$0xf]
        %v438 = vld [vmem:[%s334 + $0x70] sm:$0xf]
        %v439 = vld [vmem:[%s334 + $0x74] sm:$0xf]
        %v440 = vld [vmem:[%s334 + $0x78] sm:$0xf]
        %v441 = vld [vmem:[%s334 + $0x7c] sm:$0xf]
        %v442 = vld [vmem:[%s296] sm:$0xf]
        %v443 = vld [vmem:[%s296 + $0x4] sm:$0xf]
        %v444 = vld [vmem:[%s296 + $0x8] sm:$0xf]
        %v445 = vld [vmem:[%s296 + $0xc] sm:$0xf]
        %v446 = vld [vmem:[%s296 + $0x10] sm:$0xf]
        %v447 = vld [vmem:[%s296 + $0x14] sm:$0xf]
        %v448 = vld [vmem:[%s296 + $0x18] sm:$0xf]
        %v449 = vld [vmem:[%s296 + $0x1c] sm:$0xf]
        %v450 = vld [vmem:[%s296 + $0x20] sm:$0xf]
        %v451 = vld [vmem:[%s296 + $0x24] sm:$0xf]
        %v452 = vld [vmem:[%s296 + $0x28] sm:$0xf]
        %v453 = vld [vmem:[%s296 + $0x2c] sm:$0xf]
        %v454 = vld [vmem:[%s296 + $0x30] sm:$0xf]
        %v455 = vld [vmem:[%s296 + $0x34] sm:$0xf]
        %v456 = vld [vmem:[%s296 + $0x38] sm:$0xf]
        %v457 = vld [vmem:[%s296 + $0x3c] sm:$0xf]
        %v490 = vunpack.c.l.b16 %v410
        %v491 = vunpack.c.l.b16 %v411
        %v492 = vunpack.c.l.b16 %v412
        %v493 = vunpack.c.l.b16 %v413
        %v494 = vunpack.c.l.b16 %v414
        %v495 = vunpack.c.l.b16 %v415
        %v496 = vunpack.c.l.b16 %v416
        %v497 = vunpack.c.l.b16 %v417
        %v498 = vunpack.c.l.b16 %v418
        %v499 = vunpack.c.l.b16 %v419
        %v500 = vunpack.c.l.b16 %v420
        %v501 = vunpack.c.l.b16 %v421
        %v502 = vunpack.c.l.b16 %v422
        %v503 = vunpack.c.l.b16 %v423
        %v504 = vunpack.c.l.b16 %v424
        %v505 = vunpack.c.l.b16 %v425
        %v506 = vunpack.c.l.b16 %v426
        %v507 = vunpack.c.l.b16 %v427
        %v508 = vunpack.c.l.b16 %v428
        %v509 = vunpack.c.l.b16 %v429
        %v510 = vunpack.c.l.b16 %v430
        %v511 = vunpack.c.l.b16 %v431
        %v512 = vunpack.c.l.b16 %v432
        %v513 = vunpack.c.l.b16 %v433
        %v514 = vunpack.c.l.b16 %v434
        %v515 = vunpack.c.l.b16 %v435
        %v516 = vunpack.c.l.b16 %v436
        %v517 = vunpack.c.l.b16 %v437
        %v518 = vunpack.c.l.b16 %v438
        %v519 = vunpack.c.l.b16 %v439
        %v520 = vunpack.c.l.b16 %v440
        %v521 = vunpack.c.l.b16 %v441
        %v522 = vpack.c.b16 %v491, %v490
        %v523 = vpack.c.b16 %v493, %v492
        %v524 = vpack.c.b16 %v495, %v494
        %v525 = vpack.c.b16 %v497, %v496
        %v526 = vpack.c.b16 %v499, %v498
        %v527 = vpack.c.b16 %v501, %v500
        %v528 = vpack.c.b16 %v503, %v502
        %v529 = vpack.c.b16 %v505, %v504
        %v530 = vpack.c.b16 %v507, %v506
        %v531 = vpack.c.b16 %v509, %v508
        %v532 = vpack.c.b16 %v511, %v510
        %v533 = vpack.c.b16 %v513, %v512
        %v534 = vpack.c.b16 %v515, %v514
        %v535 = vpack.c.b16 %v517, %v516
        %v536 = vpack.c.b16 %v519, %v518
        %v537 = vpack.c.b16 %v521, %v520
        %v570 = vunpack.c.l.b16 %v442
        %v571 = vunpack.c.l.b16 %v443
        %v572 = vunpack.c.l.b16 %v444
        %v573 = vunpack.c.l.b16 %v445
        %v574 = vunpack.c.l.b16 %v446
        %v575 = vunpack.c.l.b16 %v447
        %v576 = vunpack.c.l.b16 %v448
        %v577 = vunpack.c.l.b16 %v449
        %v578 = vunpack.c.l.b16 %v450
        %v579 = vunpack.c.l.b16 %v451
        %v580 = vunpack.c.l.b16 %v452
        %v581 = vunpack.c.l.b16 %v453
        %v582 = vunpack.c.l.b16 %v454
        %v583 = vunpack.c.l.b16 %v455
        %v584 = vunpack.c.l.b16 %v456
        %v585 = vunpack.c.l.b16 %v457
        %v586 = vpack.c.b16 %v571, %v570
        %v587 = vpack.c.b16 %v573, %v572
        %v588 = vpack.c.b16 %v575, %v574
        %v589 = vpack.c.b16 %v577, %v576
        %v590 = vpack.c.b16 %v579, %v578
        %v591 = vpack.c.b16 %v581, %v580
        %v592 = vpack.c.b16 %v583, %v582
        %v593 = vpack.c.b16 %v585, %v584
        %602 = vmatprep.subr.bf16.mxu0 0
        %603 = vmatpush1.bf16.msra.mxu0 %v586
        %604 = vmatprep.subr.bf16.mxu0 0
        %605 = vmatpush1.bf16.msra.mxu0 %v587
        %606 = vmatprep.subr.bf16.mxu0 0
        %607 = vmatpush1.bf16.msra.mxu0 %v588
        %608 = vmatprep.subr.bf16.mxu0 0
        %609 = vmatpush1.bf16.msra.mxu0 %v589
        %610 = vmatprep.subr.bf16.mxu0 0
        %611 = vmatpush1.bf16.msra.mxu0 %v590
        %612 = vmatprep.subr.bf16.mxu0 0
        %613 = vmatpush1.bf16.msra.mxu0 %v591
        %614 = vmatprep.subr.bf16.mxu0 0
        %615 = vmatpush1.bf16.msra.mxu0 %v592
        %616 = vmatprep.subr.bf16.mxu0 0
        %617 = vmatpush1.bf16.msra.mxu0 %v593
        %618 = vmatprep.subr.bf16.mxu0 0
        %619 = vmatpush1.bf16.msra.mxu0 0
        %620 = vmatprep.subr.bf16.mxu0 0
        %621 = vmatpush1.bf16.msra.mxu0 0
        %622 = vmatprep.subr.bf16.mxu0 0
        %623 = vmatpush1.bf16.msra.mxu0 0
        %624 = vmatprep.subr.bf16.mxu0 0
        %625 = vmatpush1.bf16.msra.mxu0 0
        %626 = vmatprep.subr.bf16.mxu0 0
        %627 = vmatpush1.bf16.msra.mxu0 0
        %628 = vmatprep.subr.bf16.mxu0 0
        %629 = vmatpush1.bf16.msra.mxu0 0
        %630 = vmatprep.subr.bf16.mxu0 0
        %631 = vmatpush1.bf16.msra.mxu0 0
        %632 = vmatprep.subr.bf16.mxu0 0
        %633 = vmatpush1.bf16.msra.mxu0 0
        %634 = vmatprep.mubr.bf16.mxu0 0
        %635 = vmatmul.mubr.bf16.gmra.mrb[0].mxu0 %v522
        %v636 = vpop.f32.mrb[0].mxu0
        %v637 = vadd.f32 0.0, %v636
        %v638 = vpop.f32.mrb[0].mxu0
        %v639 = vpop.f32.mrb[0].mxu0
        %v640 = vadd.f32 0.0, %v639
        %v641 = vpop.f32.mrb[0].mxu0
        %642 = vmatprep.mubr.bf16.mxu0 0
        %643 = vmatmul.mubr.bf16.gmra.mrb[0].mxu0 %v523
        %v644 = vpop.f32.mrb[0].mxu0
        %v645 = vadd.f32 0.0, %v644
        %v646 = vpop.f32.mrb[0].mxu0
        %v647 = vpop.f32.mrb[0].mxu0
        %v648 = vadd.f32 0.0, %v647
        %v649 = vpop.f32.mrb[0].mxu0
        %650 = vmatprep.mubr.bf16.mxu0 0
        %651 = vmatmul.mubr.bf16.gmra.mrb[0].mxu0 %v524
        %v652 = vpop.f32.mrb[0].mxu0
        %v653 = vadd.f32 0.0, %v652
        %v654 = vpop.f32.mrb[0].mxu0
        %v655 = vpop.f32.mrb[0].mxu0
        %v656 = vadd.f32 0.0, %v655
        %v657 = vpop.f32.mrb[0].mxu0
        %658 = vmatprep.mubr.bf16.mxu0 0
        %659 = vmatmul.mubr.bf16.gmra.mrb[0].mxu0 %v525
        %v660 = vpop.f32.mrb[0].mxu0
        %v661 = vadd.f32 0.0, %v660
        %v662 = vpop.f32.mrb[0].mxu0
        %v663 = vpop.f32.mrb[0].mxu0
        %v664 = vadd.f32 0.0, %v663
        %v665 = vpop.f32.mrb[0].mxu0
        %666 = vmatprep.mubr.bf16.mxu0 0
        %667 = vmatmul.mubr.bf16.gmra.mrb[0].mxu0 %v526
        %v668 = vpop.f32.mrb[0].mxu0
        %v669 = vadd.f32 0.0, %v668
        %v670 = vpop.f32.mrb[0].mxu0
        %v671 = vpop.f32.mrb[0].mxu0
        %v672 = vadd.f32 0.0, %v671
        %v673 = vpop.f32.mrb[0].mxu0
        %674 = vmatprep.mubr.bf16.mxu0 0
        %675 = vmatmul.mubr.bf16.gmra.mrb[0].mxu0 %v527
        %v676 = vpop.f32.mrb[0].mxu0
        %v677 = vadd.f32 0.0, %v676
        %v678 = vpop.f32.mrb[0].mxu0
        %v679 = vpop.f32.mrb[0].mxu0
        %v680 = vadd.f32 0.0, %v679
        %v681 = vpop.f32.mrb[0].mxu0
        %682 = vmatprep.mubr.bf16.mxu0 0
        %683 = vmatmul.mubr.bf16.gmra.mrb[0].mxu0 %v528
        %v684 = vpop.f32.mrb[0].mxu0
        %v685 = vadd.f32 0.0, %v684
        %v686 = vpop.f32.mrb[0].mxu0
        %v687 = vpop.f32.mrb[0].mxu0
        %v688 = vadd.f32 0.0, %v687
        %v689 = vpop.f32.mrb[0].mxu0
        %690 = vmatprep.mubr.bf16.mxu0 0
        %691 = vmatmul.mubr.bf16.gmra.mrb[0].mxu0 %v529
        %v692 = vpop.f32.mrb[0].mxu0
        %v693 = vadd.f32 0.0, %v692
        %v694 = vpop.f32.mrb[0].mxu0
        %v695 = vpop.f32.mrb[0].mxu0
        %v696 = vadd.f32 0.0, %v695
        %v697 = vpop.f32.mrb[0].mxu0
        %698 = vmatprep.mubr.bf16.mxu0 0
        %699 = vmatmul.mubr.bf16.gmra.mrb[0].mxu0 %v530
        %v700 = vpop.f32.mrb[0].mxu0
        %v701 = vadd.f32 0.0, %v700
        %v702 = vpop.f32.mrb[0].mxu0
        %v703 = vpop.f32.mrb[0].mxu0
        %v704 = vadd.f32 0.0, %v703
        %v705 = vpop.f32.mrb[0].mxu0
        %706 = vmatprep.mubr.bf16.mxu0 0
        %707 = vmatmul.mubr.bf16.gmra.mrb[0].mxu0 %v531
        %v708 = vpop.f32.mrb[0].mxu0
        %v709 = vadd.f32 0.0, %v708
        %v710 = vpop.f32.mrb[0].mxu0
        %v711 = vpop.f32.mrb[0].mxu0
        %v712 = vadd.f32 0.0, %v711
        %v713 = vpop.f32.mrb[0].mxu0
        %714 = vmatprep.mubr.bf16.mxu0 0
        %715 = vmatmul.mubr.bf16.gmra.mrb[0].mxu0 %v532
        %v716 = vpop.f32.mrb[0].mxu0
        %v717 = vadd.f32 0.0, %v716
        %v718 = vpop.f32.mrb[0].mxu0
        %v719 = vpop.f32.mrb[0].mxu0
        %v720 = vadd.f32 0.0, %v719
        %v721 = vpop.f32.mrb[0].mxu0
        %722 = vmatprep.mubr.bf16.mxu0 0
        %723 = vmatmul.mubr.bf16.gmra.mrb[0].mxu0 %v533
        %v724 = vpop.f32.mrb[0].mxu0
        %v725 = vadd.f32 0.0, %v724
        %v726 = vpop.f32.mrb[0].mxu0
        %v727 = vpop.f32.mrb[0].mxu0
        %v728 = vadd.f32 0.0, %v727
        %v729 = vpop.f32.mrb[0].mxu0
        %730 = vmatprep.mubr.bf16.mxu0 0
        %731 = vmatmul.mubr.bf16.gmra.mrb[0].mxu0 %v534
        %v732 = vpop.f32.mrb[0].mxu0
        %v733 = vadd.f32 0.0, %v732
        %v734 = vpop.f32.mrb[0].mxu0
        %v735 = vpop.f32.mrb[0].mxu0
        %v736 = vadd.f32 0.0, %v735
        %v737 = vpop.f32.mrb[0].mxu0
        %738 = vmatprep.mubr.bf16.mxu0 0
        %739 = vmatmul.mubr.bf16.gmra.mrb[0].mxu0 %v535
        %v740 = vpop.f32.mrb[0].mxu0
        %v741 = vadd.f32 0.0, %v740
        %v742 = vpop.f32.mrb[0].mxu0
        %v743 = vpop.f32.mrb[0].mxu0
        %v744 = vadd.f32 0.0, %v743
        %v745 = vpop.f32.mrb[0].mxu0
        %746 = vmatprep.mubr.bf16.mxu0 0
        %747 = vmatmul.mubr.bf16.gmra.mrb[0].mxu0 %v536
        %v748 = vpop.f32.mrb[0].mxu0
        %v749 = vadd.f32 0.0, %v748
        %v750 = vpop.f32.mrb[0].mxu0
        %v751 = vpop.f32.mrb[0].mxu0
        %v752 = vadd.f32 0.0, %v751
        %v753 = vpop.f32.mrb[0].mxu0
        %754 = vmatprep.mubr.bf16.mxu0 0
        %755 = vmatmul.mubr.bf16.gmra.mrb[0].mxu0 %v537
        %v756 = vpop.f32.mrb[0].mxu0
        %v757 = vadd.f32 0.0, %v756
        %v758 = vpop.f32.mrb[0].mxu0
        %v759 = vpop.f32.mrb[0].mxu0
        %v760 = vadd.f32 0.0, %v759
        %v761 = vpop.f32.mrb[0].mxu0
        %762 = vdwg.mxu0
        %v763 = vadd.f32 %v378, %v637
        %v764 = vadd.f32 %v379, %v640
        %v765 = vadd.f32 %v380, %v645
        %v766 = vadd.f32 %v381, %v648
        %v767 = vadd.f32 %v382, %v653
        %v768 = vadd.f32 %v383, %v656
        %v769 = vadd.f32 %v384, %v661
        %v770 = vadd.f32 %v385, %v664
        %v771 = vadd.f32 %v386, %v669
        %v772 = vadd.f32 %v387, %v672
        %v773 = vadd.f32 %v388, %v677
        %v774 = vadd.f32 %v389, %v680
        %v775 = vadd.f32 %v390, %v685
        %v776 = vadd.f32 %v391, %v688
        %v777 = vadd.f32 %v392, %v693
        %v778 = vadd.f32 %v393, %v696
        %v779 = vadd.f32 %v394, %v701
        %v780 = vadd.f32 %v395, %v704
        %v781 = vadd.f32 %v396, %v709
        %v782 = vadd.f32 %v397, %v712
        %v783 = vadd.f32 %v398, %v717
        %v784 = vadd.f32 %v399, %v720
        %v785 = vadd.f32 %v400, %v725
        %v786 = vadd.f32 %v401, %v728
        %v787 = vadd.f32 %v402, %v733
        %v788 = vadd.f32 %v403, %v736
        %v789 = vadd.f32 %v404, %v741
        %v790 = vadd.f32 %v405, %v744
        %v791 = vadd.f32 %v406, %v749
        %v792 = vadd.f32 %v407, %v752
        %v793 = vadd.f32 %v408, %v757
        %v794 = vadd.f32 %v409, %v760
        %795 = vst [vmem:[#allocation2] sm:$0xff] %v763
        %796 = vst [vmem:[#allocation2 + $0x8] sm:$0xff] %v764
        %797 = vst [vmem:[#allocation2 + $0x10] sm:$0xff] %v765
        %798 = vst [vmem:[#allocation2 + $0x18] sm:$0xff] %v766
        %799 = vst [vmem:[#allocation2 + $0x20] sm:$0xff] %v767
        %800 = vst [vmem:[#allocation2 + $0x28] sm:$0xff] %v768
        %801 = vst [vmem:[#allocation2 + $0x30] sm:$0xff] %v769
        %802 = vst [vmem:[#allocation2 + $0x38] sm:$0xff] %v770
        %803 = vst [vmem:[#allocation2 + $0x40] sm:$0xff] %v771
        %804 = vst [vmem:[#allocation2 + $0x48] sm:$0xff] %v772
        %805 = vst [vmem:[#allocation2 + $0x50] sm:$0xff] %v773
        %806 = vst [vmem:[#allocation2 + $0x58] sm:$0xff] %v774
        %807 = vst [vmem:[#allocation2 + $0x60] sm:$0xff] %v775
        %808 = vst [vmem:[#allocation2 + $0x68] sm:$0xff] %v776
        %809 = vst [vmem:[#allocation2 + $0x70] sm:$0xff] %v777
        %810 = vst [vmem:[#allocation2 + $0x78] sm:$0xff] %v778
        %811 = vst [vmem:[#allocation2 + $0x80] sm:$0xff] %v779
        %812 = vst [vmem:[#allocation2 + $0x88] sm:$0xff] %v780
        %813 = vst [vmem:[#allocation2 + $0x90] sm:$0xff] %v781
        %814 = vst [vmem:[#allocation2 + $0x98] sm:$0xff] %v782
        %815 = vst [vmem:[#allocation2 + $0xa0] sm:$0xff] %v783
        %816 = vst [vmem:[#allocation2 + $0xa8] sm:$0xff] %v784
        %817 = vst [vmem:[#allocation2 + $0xb0] sm:$0xff] %v785
        %818 = vst [vmem:[#allocation2 + $0xb8] sm:$0xff] %v786
        %819 = vst [vmem:[#allocation2 + $0xc0] sm:$0xff] %v787
        %820 = vst [vmem:[#allocation2 + $0xc8] sm:$0xff] %v788
        %821 = vst [vmem:[#allocation2 + $0xd0] sm:$0xff] %v789
        %822 = vst [vmem:[#allocation2 + $0xd8] sm:$0xff] %v790
        %823 = vst [vmem:[#allocation2 + $0xe0] sm:$0xff] %v791
        %824 = vst [vmem:[#allocation2 + $0xe8] sm:$0xff] %v792
        %825 = vst [vmem:[#allocation2 + $0xf0] sm:$0xff] %v793
        %826 = vst [vmem:[#allocation2 + $0xf8] sm:$0xff] %v794
        // Predicated region
        $region78: #{bert_classifier_forward.12} parent=68 // pred_check
          %p827 = pneg %p342
        $region79: #{bert_classifier_forward.12} parent=68 // pred_check_branch
          %829 = sbr.rel (%p827) target = $region81
        $region80: #{bert_classifier_forward.12} parent=68 // pred_region
          %v830 = vld [vmem:[#allocation2] sm:$0xff]
          %v831 = vld [vmem:[#allocation2 + $0x8] sm:$0xff]
          %v832 = vld [vmem:[#allocation2 + $0x10] sm:$0xff]
          %v833 = vld [vmem:[#allocation2 + $0x18] sm:$0xff]
          %v834 = vld [vmem:[#allocation2 + $0x20] sm:$0xff]
          %v835 = vld [vmem:[#allocation2 + $0x28] sm:$0xff]
          %v836 = vld [vmem:[#allocation2 + $0x30] sm:$0xff]
          %v837 = vld [vmem:[#allocation2 + $0x38] sm:$0xff]
          %v838 = vld [vmem:[#allocation2 + $0x40] sm:$0xff]
          %v839 = vld [vmem:[#allocation2 + $0x48] sm:$0xff]
          %v840 = vld [vmem:[#allocation2 + $0x50] sm:$0xff]
          %v841 = vld [vmem:[#allocation2 + $0x58] sm:$0xff]
          %v842 = vld [vmem:[#allocation2 + $0x60] sm:$0xff]
          %v843 = vld [vmem:[#allocation2 + $0x68] sm:$0xff]
          %v844 = vld [vmem:[#allocation2 + $0x70] sm:$0xff]
          %v845 = vld [vmem:[#allocation2 + $0x78] sm:$0xff]
          %v846 = vld [vmem:[#allocation2 + $0x80] sm:$0xff]
          %v847 = vld [vmem:[#allocation2 + $0x88] sm:$0xff]
          %v848 = vld [vmem:[#allocation2 + $0x90] sm:$0xff]
          %v849 = vld [vmem:[#allocation2 + $0x98] sm:$0xff]
          %v850 = vld [vmem:[#allocation2 + $0xa0] sm:$0xff]
          %v851 = vld [vmem:[#allocation2 + $0xa8] sm:$0xff]
          %v852 = vld [vmem:[#allocation2 + $0xb0] sm:$0xff]
          %v853 = vld [vmem:[#allocation2 + $0xb8] sm:$0xff]
          %v854 = vld [vmem:[#allocation2 + $0xc0] sm:$0xff]
          %v855 = vld [vmem:[#allocation2 + $0xc8] sm:$0xff]
          %v856 = vld [vmem:[#allocation2 + $0xd0] sm:$0xff]
          %v857 = vld [vmem:[#allocation2 + $0xd8] sm:$0xff]
          %v858 = vld [vmem:[#allocation2 + $0xe0] sm:$0xff]
          %v859 = vld [vmem:[#allocation2 + $0xe8] sm:$0xff]
          %v860 = vld [vmem:[#allocation2 + $0xf0] sm:$0xff]
          %v861 = vld [vmem:[#allocation2 + $0xf8] sm:$0xff]
          %v862 = vld [vmem:[%s339] sm:$0x1]
          %v864 = vlaneseq
          %v865 = vshrl.u32 %v864, 7
          %v866 = vsub.s32 0, %v865
          %v867 = vrot.slane %v862, %v866
          %v869 = vadd.f32 %v830, %v867
          %v870 = vadd.f32 %v831, %v867
          %v871 = vadd.f32 %v832, %v867
          %v872 = vadd.f32 %v833, %v867
          %v873 = vadd.f32 %v834, %v867
          %v874 = vadd.f32 %v835, %v867
          %v875 = vadd.f32 %v836, %v867
          %v876 = vadd.f32 %v837, %v867
          %v877 = vadd.f32 %v838, %v867
          %v878 = vadd.f32 %v839, %v867
          %v879 = vadd.f32 %v840, %v867
          %v880 = vadd.f32 %v841, %v867
          %v881 = vadd.f32 %v842, %v867
          %v882 = vadd.f32 %v843, %v867
          %v883 = vadd.f32 %v844, %v867
          %v884 = vadd.f32 %v845, %v867
          %v885 = vadd.f32 %v846, %v867
          %v886 = vadd.f32 %v847, %v867
          %v887 = vadd.f32 %v848, %v867
          %v888 = vadd.f32 %v849, %v867
          %v889 = vadd.f32 %v850, %v867
          %v890 = vadd.f32 %v851, %v867
          %v891 = vadd.f32 %v852, %v867
          %v892 = vadd.f32 %v853, %v867
          %v893 = vadd.f32 %v854, %v867
          %v894 = vadd.f32 %v855, %v867
          %v895 = vadd.f32 %v856, %v867
          %v896 = vadd.f32 %v857, %v867
          %v897 = vadd.f32 %v858, %v867
          %v898 = vadd.f32 %v859, %v867
          %v899 = vadd.f32 %v860, %v867
          %v900 = vadd.f32 %v861, %v867
          %v901 = vpack.c.bf16 %v870, %v869
          %v902 = vpack.c.bf16 %v872, %v871
          %v903 = vpack.c.bf16 %v874, %v873
          %v904 = vpack.c.bf16 %v876, %v875
          %v905 = vpack.c.bf16 %v878, %v877
          %v906 = vpack.c.bf16 %v880, %v879
          %v907 = vpack.c.bf16 %v882, %v881
          %v908 = vpack.c.bf16 %v884, %v883
          %v909 = vpack.c.bf16 %v886, %v885
          %v910 = vpack.c.bf16 %v888, %v887
          %v911 = vpack.c.bf16 %v890, %v889
          %v912 = vpack.c.bf16 %v892, %v891
          %v913 = vpack.c.bf16 %v894, %v893
          %v914 = vpack.c.bf16 %v896, %v895
          %v915 = vpack.c.bf16 %v898, %v897
          %v916 = vpack.c.bf16 %v900, %v899
          %v933 = vunpack.c.l.b16 %v901
          %v934 = vunpack.c.h.b16 %v901
          %v935 = vunpack.c.l.b16 %v902
          %v936 = vunpack.c.h.b16 %v902
          %v937 = vunpack.c.l.b16 %v903
          %v938 = vunpack.c.h.b16 %v903
          %v939 = vunpack.c.l.b16 %v904
          %v940 = vunpack.c.h.b16 %v904
          %v941 = vunpack.c.l.b16 %v905
          %v942 = vunpack.c.h.b16 %v905
          %v943 = vunpack.c.l.b16 %v906
          %v944 = vunpack.c.h.b16 %v906
          %v945 = vunpack.c.l.b16 %v907
          %v946 = vunpack.c.h.b16 %v907
          %v947 = vunpack.c.l.b16 %v908
          %v948 = vunpack.c.h.b16 %v908
          %v949 = vunpack.c.l.b16 %v909
          %v950 = vunpack.c.h.b16 %v909
          %v951 = vunpack.c.l.b16 %v910
          %v952 = vunpack.c.h.b16 %v910
          %v953 = vunpack.c.l.b16 %v911
          %v954 = vunpack.c.h.b16 %v911
          %v955 = vunpack.c.l.b16 %v912
          %v956 = vunpack.c.h.b16 %v912
          %v957 = vunpack.c.l.b16 %v913
          %v958 = vunpack.c.h.b16 %v913
          %v959 = vunpack.c.l.b16 %v914
          %v960 = vunpack.c.h.b16 %v914
          %v961 = vunpack.c.l.b16 %v915
          %v962 = vunpack.c.h.b16 %v915
          %v963 = vunpack.c.l.b16 %v916
          %v964 = vunpack.c.h.b16 %v916
          %v965 = vpack.c.b16 %v933, %v933
          %v966 = vpack.c.b16 %v934, %v934
          %v967 = vpack.c.b16 %v935, %v935
          %v968 = vpack.c.b16 %v936, %v936
          %v969 = vpack.c.b16 %v937, %v937
          %v970 = vpack.c.b16 %v938, %v938
          %v971 = vpack.c.b16 %v939, %v939
          %v972 = vpack.c.b16 %v940, %v940
          %v973 = vpack.c.b16 %v941, %v941
          %v974 = vpack.c.b16 %v942, %v942
          %v975 = vpack.c.b16 %v943, %v943
          %v976 = vpack.c.b16 %v944, %v944
          %v977 = vpack.c.b16 %v945, %v945
          %v978 = vpack.c.b16 %v946, %v946
          %v979 = vpack.c.b16 %v947, %v947
          %v980 = vpack.c.b16 %v948, %v948
          %v981 = vpack.c.b16 %v949, %v949
          %v982 = vpack.c.b16 %v950, %v950
          %v983 = vpack.c.b16 %v951, %v951
          %v984 = vpack.c.b16 %v952, %v952
          %v985 = vpack.c.b16 %v953, %v953
          %v986 = vpack.c.b16 %v954, %v954
          %v987 = vpack.c.b16 %v955, %v955
          %v988 = vpack.c.b16 %v956, %v956
          %v989 = vpack.c.b16 %v957, %v957
          %v990 = vpack.c.b16 %v958, %v958
          %v991 = vpack.c.b16 %v959, %v959
          %v992 = vpack.c.b16 %v960, %v960
          %v993 = vpack.c.b16 %v961, %v961
          %v994 = vpack.c.b16 %v962, %v962
          %v995 = vpack.c.b16 %v963, %v963
          %v996 = vpack.c.b16 %v964, %v964
          %1029 = vst [vmem:[%s326] sm:$0xf] %v965
          %1030 = vst [vmem:[%s326 + $0x4] sm:$0xf] %v966
          %1031 = vst [vmem:[%s326 + $0x8] sm:$0xf] %v967
          %1032 = vst [vmem:[%s326 + $0xc] sm:$0xf] %v968
          %1033 = vst [vmem:[%s326 + $0x10] sm:$0xf] %v969
          %1034 = vst [vmem:[%s326 + $0x14] sm:$0xf] %v970
          %1035 = vst [vmem:[%s326 + $0x18] sm:$0xf] %v971
          %1036 = vst [vmem:[%s326 + $0x1c] sm:$0xf] %v972
          %1037 = vst [vmem:[%s326 + $0x20] sm:$0xf] %v973
          %1038 = vst [vmem:[%s326 + $0x24] sm:$0xf] %v974
          %1039 = vst [vmem:[%s326 + $0x28] sm:$0xf] %v975
          %1040 = vst [vmem:[%s326 + $0x2c] sm:$0xf] %v976
          %1041 = vst [vmem:[%s326 + $0x30] sm:$0xf] %v977
          %1042 = vst [vmem:[%s326 + $0x34] sm:$0xf] %v978
          %1043 = vst [vmem:[%s326 + $0x38] sm:$0xf] %v979
          %1044 = vst [vmem:[%s326 + $0x3c] sm:$0xf] %v980
          %1045 = vst [vmem:[%s326 + $0x40] sm:$0xf] %v981
          %1046 = vst [vmem:[%s326 + $0x44] sm:$0xf] %v982
          %1047 = vst [vmem:[%s326 + $0x48] sm:$0xf] %v983
          %1048 = vst [vmem:[%s326 + $0x4c] sm:$0xf] %v984
          %1049 = vst [vmem:[%s326 + $0x50] sm:$0xf] %v985
          %1050 = vst [vmem:[%s326 + $0x54] sm:$0xf] %v986
          %1051 = vst [vmem:[%s326 + $0x58] sm:$0xf] %v987
          %1052 = vst [vmem:[%s326 + $0x5c] sm:$0xf] %v988
          %1053 = vst [vmem:[%s326 + $0x60] sm:$0xf] %v989
          %1054 = vst [vmem:[%s326 + $0x64] sm:$0xf] %v990
          %1055 = vst [vmem:[%s326 + $0x68] sm:$0xf] %v991
          %1056 = vst [vmem:[%s326 + $0x6c] sm:$0xf] %v992
          %1057 = vst [vmem:[%s326 + $0x70] sm:$0xf] %v993
          %1058 = vst [vmem:[%s326 + $0x74] sm:$0xf] %v994
          %1059 = vst [vmem:[%s326 + $0x78] sm:$0xf] %v995
          %1060 = vst [vmem:[%s326 + $0x7c] sm:$0xf] %v996
        $region81: #{bert_classifier_forward.12} parent=68 // pred_fallthru
          _
        %s1061 = sand.u32 %s125, 1
        %s1062 = sand.u32 %s125, 1
        %s1063 = smul.addr %s1062, 128
        %s1064 = scalar_lea.vmem [#allocation4], %s1063
        // Predicated region
        $region82: #{bert_classifier_forward.12} parent=68 // pred_check
          %p1065 = pneg %p135
        $region83: #{bert_classifier_forward.12} parent=68 // pred_check_branch
          %1067 = sbr.rel (%p1065) target = $region85
        $region84: #{bert_classifier_forward.12} parent=68 // pred_region
          %s1068 = smul.u32 32, %s19
          %s1069 = smul.addr %s1068, 3
          %s1070 = sadd.s32 %s20, %s1069
          %s1071 = smul.addr %s1070, 4
          %s1072 = scalar_lea.vmem %s3, %s1071
          // Predicated region
          $region86: #{bert_classifier_forward.12} parent=84 // pred_check
            _
          $region87: #{bert_classifier_forward.12} parent=84 // pred_check_branch
            %1074 = sbr.rel (0) target = $region89
          $region88: #{bert_classifier_forward.12} parent=84 // pred_region
            // Predicated region
            $region90: #{bert_classifier_forward.12} parent=88 // pred_check
              _
            $region91: #{bert_classifier_forward.12} parent=88 // pred_check_branch
              %1076 = sbr.rel target = $region93
            $region92: #{bert_classifier_forward.12} parent=88 // pred_region
              // Predicated region
              $region105: #{bert_classifier_forward.12} parent=92 // pred_check
                _
              $region106: #{bert_classifier_forward.12} parent=92 // pred_check_branch
                %1153 = sbr.rel (0) target = $region108
              $region107: #{bert_classifier_forward.12} parent=92 // pred_region
                loop: start=0, step=1, limit=1
                $region109: #{bert_classifier_forward.12} parent=107 // loop_pre_header
                  _
                $region110: #{bert_classifier_forward.12} parent=107 // loop_header
                  %s1155 = sphi 0, %s1159
                  %p1156 = scmp.ge.s32.totalorder %s1155, 1
                  %s1160 = sphi %s1064, %s1064
                  %s1161 = sphi %s1072, %s1072
                $region111: #{bert_classifier_forward.12} parent=107 // loop_header_branch
                  %1158 = sbr.rel (%p1156) target = $region115
                $region112: #{bert_classifier_forward.12} parent=107 // loop_body
                  _
                $region113: #{bert_classifier_forward.12} parent=107 // loop_footer
                  %s1159 = sadd.s32 1, %s1155
                $region114: #{bert_classifier_forward.12} parent=107 // loop_footer_branch
                  %1154 = sbr.rel target = $region110
                $region115: #{bert_classifier_forward.12} parent=107 // loop_exit
                  _
                loop: start=0, step=1, limit=1
                $region116: #{bert_classifier_forward.12} parent=107 // loop_pre_header
                  _
                $region117: #{bert_classifier_forward.12} parent=107 // loop_header
                  %s1164 = sphi 0, %s1168
                  %p1165 = scmp.ge.s32.totalorder %s1164, 1
                  %s1169 = sphi %s1064, %s1064
                  %s1170 = sphi %s1072, %s1072
                $region118: #{bert_classifier_forward.12} parent=107 // loop_header_branch
                  %1167 = sbr.rel (%p1165) target = $region122
                $region119: #{bert_classifier_forward.12} parent=107 // loop_body
                  %v1171 = vld [vmem:[%s1169] sm:$0xf]
                  %1172 = vst [vmem:[%s1170] sm:$0xf] %v1171
                  %v1173 = vld [vmem:[%s1169 + $0x4] sm:$0xf]
                  %1174 = vst [vmem:[%s1170 + $0xc] sm:$0xf] %v1173
                  %v1175 = vld [vmem:[%s1169 + $0x8] sm:$0xf]
                  %1176 = vst [vmem:[%s1170 + $0x18] sm:$0xf] %v1175
                  %v1177 = vld [vmem:[%s1169 + $0xc] sm:$0xf]
                  %1178 = vst [vmem:[%s1170 + $0x24] sm:$0xf] %v1177
                  %v1179 = vld [vmem:[%s1169 + $0x10] sm:$0xf]
                  %1180 = vst [vmem:[%s1170 + $0x30] sm:$0xf] %v1179
                  %v1181 = vld [vmem:[%s1169 + $0x14] sm:$0xf]
                  %1182 = vst [vmem:[%s1170 + $0x3c] sm:$0xf] %v1181
                  %v1183 = vld [vmem:[%s1169 + $0x18] sm:$0xf]
                  %1184 = vst [vmem:[%s1170 + $0x48] sm:$0xf] %v1183
                  %v1185 = vld [vmem:[%s1169 + $0x1c] sm:$0xf]
                  %1186 = vst [vmem:[%s1170 + $0x54] sm:$0xf] %v1185
                  %v1187 = vld [vmem:[%s1169 + $0x20] sm:$0xf]
                  %1188 = vst [vmem:[%s1170 + $0x60] sm:$0xf] %v1187
                  %v1189 = vld [vmem:[%s1169 + $0x24] sm:$0xf]
                  %1190 = vst [vmem:[%s1170 + $0x6c] sm:$0xf] %v1189
                  %v1191 = vld [vmem:[%s1169 + $0x28] sm:$0xf]
                  %1192 = vst [vmem:[%s1170 + $0x78] sm:$0xf] %v1191
                  %v1193 = vld [vmem:[%s1169 + $0x2c] sm:$0xf]
                  %1194 = vst [vmem:[%s1170 + $0x84] sm:$0xf] %v1193
                  %v1195 = vld [vmem:[%s1169 + $0x30] sm:$0xf]
                  %1196 = vst [vmem:[%s1170 + $0x90] sm:$0xf] %v1195
                  %v1197 = vld [vmem:[%s1169 + $0x34] sm:$0xf]
                  %1198 = vst [vmem:[%s1170 + $0x9c] sm:$0xf] %v1197
                  %v1199 = vld [vmem:[%s1169 + $0x38] sm:$0xf]
                  %1200 = vst [vmem:[%s1170 + $0xa8] sm:$0xf] %v1199
                  %v1201 = vld [vmem:[%s1169 + $0x3c] sm:$0xf]
                  %1202 = vst [vmem:[%s1170 + $0xb4] sm:$0xf] %v1201
                  %v1203 = vld [vmem:[%s1169 + $0x40] sm:$0xf]
                  %1204 = vst [vmem:[%s1170 + $0xc0] sm:$0xf] %v1203
                  %v1205 = vld [vmem:[%s1169 + $0x44] sm:$0xf]
                  %1206 = vst [vmem:[%s1170 + $0xcc] sm:$0xf] %v1205
                  %v1207 = vld [vmem:[%s1169 + $0x48] sm:$0xf]
                  %1208 = vst [vmem:[%s1170 + $0xd8] sm:$0xf] %v1207
                  %v1209 = vld [vmem:[%s1169 + $0x4c] sm:$0xf]
                  %1210 = vst [vmem:[%s1170 + $0xe4] sm:$0xf] %v1209
                  %v1211 = vld [vmem:[%s1169 + $0x50] sm:$0xf]
                  %1212 = vst [vmem:[%s1170 + $0xf0] sm:$0xf] %v1211
                  %v1213 = vld [vmem:[%s1169 + $0x54] sm:$0xf]
                  %1214 = vst [vmem:[%s1170 + $0xfc] sm:$0xf] %v1213
                  %v1215 = vld [vmem:[%s1169 + $0x58] sm:$0xf]
                  %1216 = vst [vmem:[%s1170 + $0x108] sm:$0xf] %v1215
                  %v1217 = vld [vmem:[%s1169 + $0x5c] sm:$0xf]
                  %1218 = vst [vmem:[%s1170 + $0x114] sm:$0xf] %v1217
                  %v1219 = vld [vmem:[%s1169 + $0x60] sm:$0xf]
                  %1220 = vst [vmem:[%s1170 + $0x120] sm:$0xf] %v1219
                  %v1221 = vld [vmem:[%s1169 + $0x64] sm:$0xf]
                  %1222 = vst [vmem:[%s1170 + $0x12c] sm:$0xf] %v1221
                  %v1223 = vld [vmem:[%s1169 + $0x68] sm:$0xf]
                  %1224 = vst [vmem:[%s1170 + $0x138] sm:$0xf] %v1223
                  %v1225 = vld [vmem:[%s1169 + $0x6c] sm:$0xf]
                  %1226 = vst [vmem:[%s1170 + $0x144] sm:$0xf] %v1225
                  %v1227 = vld [vmem:[%s1169 + $0x70] sm:$0xf]
                  %1228 = vst [vmem:[%s1170 + $0x150] sm:$0xf] %v1227
                  %v1229 = vld [vmem:[%s1169 + $0x74] sm:$0xf]
                  %1230 = vst [vmem:[%s1170 + $0x15c] sm:$0xf] %v1229
                  %v1231 = vld [vmem:[%s1169 + $0x78] sm:$0xf]
                  %1232 = vst [vmem:[%s1170 + $0x168] sm:$0xf] %v1231
                  %v1233 = vld [vmem:[%s1169 + $0x7c] sm:$0xf]
                  %1234 = vst [vmem:[%s1170 + $0x174] sm:$0xf] %v1233
                $region120: #{bert_classifier_forward.12} parent=107 // loop_footer
                  %s1168 = sadd.s32 1, %s1164
                $region121: #{bert_classifier_forward.12} parent=107 // loop_footer_branch
                  %1163 = sbr.rel target = $region117
                $region122: #{bert_classifier_forward.12} parent=107 // loop_exit
                  _
              $region108: #{bert_classifier_forward.12} parent=92 // pred_fallthru
                _
            $region93: #{bert_classifier_forward.12} parent=88 // pred_fallthru
              _
            // Predicated region
            $region94: #{bert_classifier_forward.12} parent=88 // pred_check
              _
            $region95: #{bert_classifier_forward.12} parent=88 // pred_check_branch
              %1078 = sbr.rel (0) target = $region97
            $region96: #{bert_classifier_forward.12} parent=88 // pred_region
              loop: start=0, step=1, limit=1
              $region98: #{bert_classifier_forward.12} parent=96 // loop_pre_header
                _
              $region99: #{bert_classifier_forward.12} parent=96 // loop_header
                %s1081 = sphi 0, %s1085
                %p1082 = scmp.ge.s32.totalorder %s1081, 1
                %s1086 = sphi %s1064, %s1064
                %s1087 = sphi %s1072, %s1072
              $region100: #{bert_classifier_forward.12} parent=96 // loop_header_branch
                %1084 = sbr.rel (%p1082) target = $region104
              $region101: #{bert_classifier_forward.12} parent=96 // loop_body
                %v1088 = vld [vmem:[%s1086] sm:$0xf]
                %1089 = vst [vmem:[%s1087] sm:$0xf] %v1088
                %v1090 = vld [vmem:[%s1086 + $0x4] sm:$0xf]
                %1091 = vst [vmem:[%s1087 + $0xc] sm:$0xf] %v1090
                %v1092 = vld [vmem:[%s1086 + $0x8] sm:$0xf]
                %1093 = vst [vmem:[%s1087 + $0x18] sm:$0xf] %v1092
                %v1094 = vld [vmem:[%s1086 + $0xc] sm:$0xf]
                %1095 = vst [vmem:[%s1087 + $0x24] sm:$0xf] %v1094
                %v1096 = vld [vmem:[%s1086 + $0x10] sm:$0xf]
                %1097 = vst [vmem:[%s1087 + $0x30] sm:$0xf] %v1096
                %v1098 = vld [vmem:[%s1086 + $0x14] sm:$0xf]
                %1099 = vst [vmem:[%s1087 + $0x3c] sm:$0xf] %v1098
                %v1100 = vld [vmem:[%s1086 + $0x18] sm:$0xf]
                %1101 = vst [vmem:[%s1087 + $0x48] sm:$0xf] %v1100
                %v1102 = vld [vmem:[%s1086 + $0x1c] sm:$0xf]
                %1103 = vst [vmem:[%s1087 + $0x54] sm:$0xf] %v1102
                %v1104 = vld [vmem:[%s1086 + $0x20] sm:$0xf]
                %1105 = vst [vmem:[%s1087 + $0x60] sm:$0xf] %v1104
                %v1106 = vld [vmem:[%s1086 + $0x24] sm:$0xf]
                %1107 = vst [vmem:[%s1087 + $0x6c] sm:$0xf] %v1106
                %v1108 = vld [vmem:[%s1086 + $0x28] sm:$0xf]
                %1109 = vst [vmem:[%s1087 + $0x78] sm:$0xf] %v1108
                %v1110 = vld [vmem:[%s1086 + $0x2c] sm:$0xf]
                %1111 = vst [vmem:[%s1087 + $0x84] sm:$0xf] %v1110
                %v1112 = vld [vmem:[%s1086 + $0x30] sm:$0xf]
                %1113 = vst [vmem:[%s1087 + $0x90] sm:$0xf] %v1112
                %v1114 = vld [vmem:[%s1086 + $0x34] sm:$0xf]
                %1115 = vst [vmem:[%s1087 + $0x9c] sm:$0xf] %v1114
                %v1116 = vld [vmem:[%s1086 + $0x38] sm:$0xf]
                %1117 = vst [vmem:[%s1087 + $0xa8] sm:$0xf] %v1116
                %v1118 = vld [vmem:[%s1086 + $0x3c] sm:$0xf]
                %1119 = vst [vmem:[%s1087 + $0xb4] sm:$0xf] %v1118
                %v1120 = vld [vmem:[%s1086 + $0x40] sm:$0xf]
                %1121 = vst [vmem:[%s1087 + $0xc0] sm:$0xf] %v1120
                %v1122 = vld [vmem:[%s1086 + $0x44] sm:$0xf]
                %1123 = vst [vmem:[%s1087 + $0xcc] sm:$0xf] %v1122
                %v1124 = vld [vmem:[%s1086 + $0x48] sm:$0xf]
                %1125 = vst [vmem:[%s1087 + $0xd8] sm:$0xf] %v1124
                %v1126 = vld [vmem:[%s1086 + $0x4c] sm:$0xf]
                %1127 = vst [vmem:[%s1087 + $0xe4] sm:$0xf] %v1126
                %v1128 = vld [vmem:[%s1086 + $0x50] sm:$0xf]
                %1129 = vst [vmem:[%s1087 + $0xf0] sm:$0xf] %v1128
                %v1130 = vld [vmem:[%s1086 + $0x54] sm:$0xf]
                %1131 = vst [vmem:[%s1087 + $0xfc] sm:$0xf] %v1130
                %v1132 = vld [vmem:[%s1086 + $0x58] sm:$0xf]
                %1133 = vst [vmem:[%s1087 + $0x108] sm:$0xf] %v1132
                %v1134 = vld [vmem:[%s1086 + $0x5c] sm:$0xf]
                %1135 = vst [vmem:[%s1087 + $0x114] sm:$0xf] %v1134
                %v1136 = vld [vmem:[%s1086 + $0x60] sm:$0xf]
                %1137 = vst [vmem:[%s1087 + $0x120] sm:$0xf] %v1136
                %v1138 = vld [vmem:[%s1086 + $0x64] sm:$0xf]
                %1139 = vst [vmem:[%s1087 + $0x12c] sm:$0xf] %v1138
                %v1140 = vld [vmem:[%s1086 + $0x68] sm:$0xf]
                %1141 = vst [vmem:[%s1087 + $0x138] sm:$0xf] %v1140
                %v1142 = vld [vmem:[%s1086 + $0x6c] sm:$0xf]
                %1143 = vst [vmem:[%s1087 + $0x144] sm:$0xf] %v1142
                %v1144 = vld [vmem:[%s1086 + $0x70] sm:$0xf]
                %1145 = vst [vmem:[%s1087 + $0x150] sm:$0xf] %v1144
                %v1146 = vld [vmem:[%s1086 + $0x74] sm:$0xf]
                %1147 = vst [vmem:[%s1087 + $0x15c] sm:$0xf] %v1146
                %v1148 = vld [vmem:[%s1086 + $0x78] sm:$0xf]
                %1149 = vst [vmem:[%s1087 + $0x168] sm:$0xf] %v1148
                %v1150 = vld [vmem:[%s1086 + $0x7c] sm:$0xf]
                %1151 = vst [vmem:[%s1087 + $0x174] sm:$0xf] %v1150
              $region102: #{bert_classifier_forward.12} parent=96 // loop_footer
                %s1085 = sadd.s32 1, %s1081
              $region103: #{bert_classifier_forward.12} parent=96 // loop_footer_branch
                %1080 = sbr.rel target = $region99
              $region104: #{bert_classifier_forward.12} parent=96 // loop_exit
                _
            $region97: #{bert_classifier_forward.12} parent=88 // pred_fallthru
              _
          $region89: #{bert_classifier_forward.12} parent=84 // pred_fallthru
            _
          %1235 = vnop
        $region85: #{bert_classifier_forward.12} parent=68 // pred_fallthru
          _
      $region69: #{bert_classifier_forward.12} parent=5 // pred_fallthru
        _
      %p1236 = scmp.le.s32.totalorder 2, %s9
      // Predicated region
      $region123: #{bert_classifier_forward.12} parent=5 // pred_check
        %p1237 = pneg %p1236
      $region124: #{bert_classifier_forward.12} parent=5 // pred_check_branch
        %1239 = sbr.rel (%p1237) target = $region126
      $region125: #{bert_classifier_forward.12} parent=5 // pred_region
        %s1240 = ssub.s32 %s9, 2
        // Predicated region
        $region127: #{bert_classifier_forward.12} parent=125 // pred_check
          %p1241 = pneg %p141
        $region128: #{bert_classifier_forward.12} parent=125 // pred_check_branch
          %1243 = sbr.rel (%p1241) target = $region130
        $region129: #{bert_classifier_forward.12} parent=125 // pred_region
          %s1244 = sand.u32 %s126, 1
          %s1245 = sand.u32 %s126, 1
          %s1246 = smul.addr %s1245, 128
          %s1247 = scalar_lea.vmem [#allocation4], %s1246
        $region130: #{bert_classifier_forward.12} parent=125 // pred_fallthru
          _
      $region126: #{bert_classifier_forward.12} parent=5 // pred_fallthru
        _
    $region6: #{bert_classifier_forward.12} parent=1 // loop_footer
      %s13 = sadd.s32 1, %s9
    $region7: #{bert_classifier_forward.12} parent=1 // loop_footer_branch
      %8 = sbr.rel target = $region3
    $region8: #{bert_classifier_forward.12} parent=1 // loop_exit
      _

// kernel: bert_classifier_forward.14
$region0: #{bert_classifier_forward.14}
  #allocation0 [shape = 'u32[]', space=smem, size = 0x4, offset = 0x4, fixed_abs, tag = 'smem constant byte address 0x4 - core index']
  #allocation1 [shape = 'u32[144,128]{1,0:T(1,128)}', space=vmem, size = 0x12000, scoped, tag = 'internal scratch']
  %s0 = inlined_call_operand.vmem [shape: bf16[256,128], index: 0, kind: input, shape index: {}]
  %s1 = inlined_call_operand.vmem [shape: bf16[128,128], index: 1, kind: input, shape index: {}]
  %s2 = inlined_call_operand.vmem [shape: f32[1,128], index: 2, kind: input, shape index: {}, may-alias: {2,5}]
  %s3 = inlined_call_operand.vmem [shape: bf16[256,128], index: 3, kind: input, shape index: {}]
  %s4 = inlined_call_operand.vmem [shape: f32[1,128], index: 4, kind: input, shape index: {}]
  %s5 = inlined_call_operand.vmem [shape: f32[1,128], index: 5, kind: input, shape index: {}, may-alias: {2,5}]
  %s6 = inlined_call_operand.vmem [shape: bf16[256,128], index: 6, kind: output, shape index: {}]
  %s7 = sld [smem:[#allocation0]]
  $region34: #{bert_classifier_forward.14} parent=0
    _
  %s9 = ssub.s32 1, %s7
  %s10 = scalar_select 0, %s9, %s7
  // Predicated region
  $region2: #{bert_classifier_forward.14} parent=0 // pred_check
    _
  $region3: #{bert_classifier_forward.14} parent=0 // pred_check_branch
    %12 = sbr.rel (0) target = $region5
  $region4: #{bert_classifier_forward.14} parent=0 // pred_region
    _
  $region5: #{bert_classifier_forward.14} parent=0 // pred_fallthru
    _
  // Predicated region
  $region6: #{bert_classifier_forward.14} parent=0 // pred_check
    _
  $region7: #{bert_classifier_forward.14} parent=0 // pred_check_branch
    %14 = sbr.rel (0) target = $region9
  $region8: #{bert_classifier_forward.14} parent=0 // pred_region
    _
  $region9: #{bert_classifier_forward.14} parent=0 // pred_fallthru
    _
  // Predicated region
  $region10: #{bert_classifier_forward.14} parent=0 // pred_check
    _
  $region11: #{bert_classifier_forward.14} parent=0 // pred_check_branch
    %16 = sbr.rel (0) target = $region13
  $region12: #{bert_classifier_forward.14} parent=0 // pred_region
    _
  $region13: #{bert_classifier_forward.14} parent=0 // pred_fallthru
    _
  // Predicated region
  $region14: #{bert_classifier_forward.14} parent=0 // pred_check
    _
  $region15: #{bert_classifier_forward.14} parent=0 // pred_check_branch
    %18 = sbr.rel (0) target = $region17
  $region16: #{bert_classifier_forward.14} parent=0 // pred_region
    _
  $region17: #{bert_classifier_forward.14} parent=0 // pred_fallthru
    _
  // Predicated region
  $region18: #{bert_classifier_forward.14} parent=0 // pred_check
    _
  $region19: #{bert_classifier_forward.14} parent=0 // pred_check_branch
    %20 = sbr.rel (0) target = $region21
  $region20: #{bert_classifier_forward.14} parent=0 // pred_region
    _
  $region21: #{bert_classifier_forward.14} parent=0 // pred_fallthru
    _
  // Predicated region
  $region22: #{bert_classifier_forward.14} parent=0 // pred_check
    _
  $region23: #{bert_classifier_forward.14} parent=0 // pred_check_branch
    %22 = sbr.rel (0) target = $region25
  $region24: #{bert_classifier_forward.14} parent=0 // pred_region
    _
  $region25: #{bert_classifier_forward.14} parent=0 // pred_fallthru
    _
  %v24 = vld [vmem:[%s0] sm:$0xf]
  %v25 = vld [vmem:[%s0 + $0x4] sm:$0xf]
  %v26 = vld [vmem:[%s0 + $0x8] sm:$0xf]
  %v27 = vld [vmem:[%s0 + $0xc] sm:$0xf]
  %v28 = vld [vmem:[%s0 + $0x10] sm:$0xf]
  %v29 = vld [vmem:[%s0 + $0x14] sm:$0xf]
  %v30 = vld [vmem:[%s0 + $0x18] sm:$0xf]
  %v31 = vld [vmem:[%s0 + $0x1c] sm:$0xf]
  %v32 = vld [vmem:[%s0 + $0x20] sm:$0xf]
  %v33 = vld [vmem:[%s0 + $0x24] sm:$0xf]
  %v34 = vld [vmem:[%s0 + $0x28] sm:$0xf]
  %v35 = vld [vmem:[%s0 + $0x2c] sm:$0xf]
  %v36 = vld [vmem:[%s0 + $0x30] sm:$0xf]
  %v37 = vld [vmem:[%s0 + $0x34] sm:$0xf]
  %v38 = vld [vmem:[%s0 + $0x38] sm:$0xf]
  %v39 = vld [vmem:[%s0 + $0x3c] sm:$0xf]
  %v40 = vld [vmem:[%s0 + $0x40] sm:$0xf]
  %v41 = vld [vmem:[%s0 + $0x44] sm:$0xf]
  %v42 = vld [vmem:[%s0 + $0x48] sm:$0xf]
  %v43 = vld [vmem:[%s0 + $0x4c] sm:$0xf]
  %v44 = vld [vmem:[%s0 + $0x50] sm:$0xf]
  %v45 = vld [vmem:[%s0 + $0x54] sm:$0xf]
  %v46 = vld [vmem:[%s0 + $0x58] sm:$0xf]
  %v47 = vld [vmem:[%s0 + $0x5c] sm:$0xf]
  %v48 = vld [vmem:[%s0 + $0x60] sm:$0xf]
  %v49 = vld [vmem:[%s0 + $0x64] sm:$0xf]
  %v50 = vld [vmem:[%s0 + $0x68] sm:$0xf]
  %v51 = vld [vmem:[%s0 + $0x6c] sm:$0xf]
  %v52 = vld [vmem:[%s0 + $0x70] sm:$0xf]
  %v53 = vld [vmem:[%s0 + $0x74] sm:$0xf]
  %v54 = vld [vmem:[%s0 + $0x78] sm:$0xf]
  %v55 = vld [vmem:[%s0 + $0x7c] sm:$0xf]
  %v56 = vld [vmem:[%s1] sm:$0xf]
  %v57 = vld [vmem:[%s1 + $0x4] sm:$0xf]
  %v58 = vld [vmem:[%s1 + $0x8] sm:$0xf]
  %v59 = vld [vmem:[%s1 + $0xc] sm:$0xf]
  %v60 = vld [vmem:[%s1 + $0x10] sm:$0xf]
  %v61 = vld [vmem:[%s1 + $0x14] sm:$0xf]
  %v62 = vld [vmem:[%s1 + $0x18] sm:$0xf]
  %v63 = vld [vmem:[%s1 + $0x1c] sm:$0xf]
  %v64 = vld [vmem:[%s1 + $0x20] sm:$0xf]
  %v65 = vld [vmem:[%s1 + $0x24] sm:$0xf]
  %v66 = vld [vmem:[%s1 + $0x28] sm:$0xf]
  %v67 = vld [vmem:[%s1 + $0x2c] sm:$0xf]
  %v68 = vld [vmem:[%s1 + $0x30] sm:$0xf]
  %v69 = vld [vmem:[%s1 + $0x34] sm:$0xf]
  %v70 = vld [vmem:[%s1 + $0x38] sm:$0xf]
  %v71 = vld [vmem:[%s1 + $0x3c] sm:$0xf]
  %v72 = vld [vmem:[%s2] sm:$0x1]
  %v74 = vlaneseq
  %v75 = vshrl.u32 %v74, 7
  %v76 = vsub.s32 0, %v75
  %v77 = vrot.slane %v72, %v76
  %v111 = vunpack.c.l.b16 %v24
  %v112 = vunpack.c.l.b16 %v25
  %v113 = vunpack.c.l.b16 %v26
  %v114 = vunpack.c.l.b16 %v27
  %v115 = vunpack.c.l.b16 %v28
  %v116 = vunpack.c.l.b16 %v29
  %v117 = vunpack.c.l.b16 %v30
  %v118 = vunpack.c.l.b16 %v31
  %v119 = vunpack.c.l.b16 %v32
  %v120 = vunpack.c.l.b16 %v33
  %v121 = vunpack.c.l.b16 %v34
  %v122 = vunpack.c.l.b16 %v35
  %v123 = vunpack.c.l.b16 %v36
  %v124 = vunpack.c.l.b16 %v37
  %v125 = vunpack.c.l.b16 %v38
  %v126 = vunpack.c.l.b16 %v39
  %v127 = vunpack.c.l.b16 %v40
  %v128 = vunpack.c.l.b16 %v41
  %v129 = vunpack.c.l.b16 %v42
  %v130 = vunpack.c.l.b16 %v43
  %v131 = vunpack.c.l.b16 %v44
  %v132 = vunpack.c.l.b16 %v45
  %v133 = vunpack.c.l.b16 %v46
  %v134 = vunpack.c.l.b16 %v47
  %v135 = vunpack.c.l.b16 %v48
  %v136 = vunpack.c.l.b16 %v49
  %v137 = vunpack.c.l.b16 %v50
  %v138 = vunpack.c.l.b16 %v51
  %v139 = vunpack.c.l.b16 %v52
  %v140 = vunpack.c.l.b16 %v53
  %v141 = vunpack.c.l.b16 %v54
  %v142 = vunpack.c.l.b16 %v55
  %v143 = vpack.c.b16 %v112, %v111
  %v144 = vpack.c.b16 %v114, %v113
  %v145 = vpack.c.b16 %v116, %v115
  %v146 = vpack.c.b16 %v118, %v117
  %v147 = vpack.c.b16 %v120, %v119
  %v148 = vpack.c.b16 %v122, %v121
  %v149 = vpack.c.b16 %v124, %v123
  %v150 = vpack.c.b16 %v126, %v125
  %v151 = vpack.c.b16 %v128, %v127
  %v152 = vpack.c.b16 %v130, %v129
  %v153 = vpack.c.b16 %v132, %v131
  %v154 = vpack.c.b16 %v134, %v133
  %v155 = vpack.c.b16 %v136, %v135
  %v156 = vpack.c.b16 %v138, %v137
  %v157 = vpack.c.b16 %v140, %v139
  %v158 = vpack.c.b16 %v142, %v141
  %v191 = vunpack.c.l.b16 %v56
  %v192 = vunpack.c.l.b16 %v57
  %v193 = vunpack.c.l.b16 %v58
  %v194 = vunpack.c.l.b16 %v59
  %v195 = vunpack.c.l.b16 %v60
  %v196 = vunpack.c.l.b16 %v61
  %v197 = vunpack.c.l.b16 %v62
  %v198 = vunpack.c.l.b16 %v63
  %v199 = vunpack.c.l.b16 %v64
  %v200 = vunpack.c.l.b16 %v65
  %v201 = vunpack.c.l.b16 %v66
  %v202 = vunpack.c.l.b16 %v67
  %v203 = vunpack.c.l.b16 %v68
  %v204 = vunpack.c.l.b16 %v69
  %v205 = vunpack.c.l.b16 %v70
  %v206 = vunpack.c.l.b16 %v71
  %v207 = vpack.c.b16 %v192, %v191
  %v208 = vpack.c.b16 %v194, %v193
  %v209 = vpack.c.b16 %v196, %v195
  %v210 = vpack.c.b16 %v198, %v197
  %v211 = vpack.c.b16 %v200, %v199
  %v212 = vpack.c.b16 %v202, %v201
  %v213 = vpack.c.b16 %v204, %v203
  %v214 = vpack.c.b16 %v206, %v205
  %223 = vmatprep.subr.bf16.mxu0 0
  %224 = vmatpush1.bf16.msra.mxu0 %v207
  %225 = vmatprep.subr.bf16.mxu0 0
  %226 = vmatpush1.bf16.msra.mxu0 %v208
  %227 = vmatprep.subr.bf16.mxu0 0
  %228 = vmatpush1.bf16.msra.mxu0 %v209
  %229 = vmatprep.subr.bf16.mxu0 0
  %230 = vmatpush1.bf16.msra.mxu0 %v210
  %231 = vmatprep.subr.bf16.mxu0 0
  %232 = vmatpush1.bf16.msra.mxu0 %v211
  %233 = vmatprep.subr.bf16.mxu0 0
  %234 = vmatpush1.bf16.msra.mxu0 %v212
  %235 = vmatprep.subr.bf16.mxu0 0
  %236 = vmatpush1.bf16.msra.mxu0 %v213
  %237 = vmatprep.subr.bf16.mxu0 0
  %238 = vmatpush1.bf16.msra.mxu0 %v214
  %239 = vmatprep.subr.bf16.mxu0 0
  %240 = vmatpush1.bf16.msra.mxu0 0
  %241 = vmatprep.subr.bf16.mxu0 0
  %242 = vmatpush1.bf16.msra.mxu0 0
  %243 = vmatprep.subr.bf16.mxu0 0
  %244 = vmatpush1.bf16.msra.mxu0 0
  %245 = vmatprep.subr.bf16.mxu0 0
  %246 = vmatpush1.bf16.msra.mxu0 0
  %247 = vmatprep.subr.bf16.mxu0 0
  %248 = vmatpush1.bf16.msra.mxu0 0
  %249 = vmatprep.subr.bf16.mxu0 0
  %250 = vmatpush1.bf16.msra.mxu0 0
  %251 = vmatprep.subr.bf16.mxu0 0
  %252 = vmatpush1.bf16.msra.mxu0 0
  %253 = vmatprep.subr.bf16.mxu0 0
  %254 = vmatpush1.bf16.msra.mxu0 0
  %255 = vmatprep.mubr.bf16.mxu0 0
  %256 = vmatmul.mubr.bf16.gmra.mrb[0].mxu0 %v143
  %v257 = vpop.f32.mrb[0].mxu0
  %v258 = vadd.f32 %v77, %v257
  %v259 = vpop.f32.mrb[0].mxu0
  %v260 = vpop.f32.mrb[0].mxu0
  %v261 = vadd.f32 %v77, %v260
  %v262 = vpop.f32.mrb[0].mxu0
  %263 = vmatprep.mubr.bf16.mxu0 0
  %264 = vmatmul.mubr.bf16.gmra.mrb[0].mxu0 %v144
  %v265 = vpop.f32.mrb[0].mxu0
  %v266 = vadd.f32 %v77, %v265
  %v267 = vpop.f32.mrb[0].mxu0
  %v268 = vpop.f32.mrb[0].mxu0
  %v269 = vadd.f32 %v77, %v268
  %v270 = vpop.f32.mrb[0].mxu0
  %271 = vmatprep.mubr.bf16.mxu0 0
  %272 = vmatmul.mubr.bf16.gmra.mrb[0].mxu0 %v145
  %v273 = vpop.f32.mrb[0].mxu0
  %v274 = vadd.f32 %v77, %v273
  %v275 = vpop.f32.mrb[0].mxu0
  %v276 = vpop.f32.mrb[0].mxu0
  %v277 = vadd.f32 %v77, %v276
  %v278 = vpop.f32.mrb[0].mxu0
  %279 = vmatprep.mubr.bf16.mxu0 0
  %280 = vmatmul.mubr.bf16.gmra.mrb[0].mxu0 %v146
  %v281 = vpop.f32.mrb[0].mxu0
  %v282 = vadd.f32 %v77, %v281
  %v283 = vpop.f32.mrb[0].mxu0
  %v284 = vpop.f32.mrb[0].mxu0
  %v285 = vadd.f32 %v77, %v284
  %v286 = vpop.f32.mrb[0].mxu0
  %287 = vmatprep.mubr.bf16.mxu0 0
  %288 = vmatmul.mubr.bf16.gmra.mrb[0].mxu0 %v147
  %v289 = vpop.f32.mrb[0].mxu0
  %v290 = vadd.f32 %v77, %v289
  %v291 = vpop.f32.mrb[0].mxu0
  %v292 = vpop.f32.mrb[0].mxu0
  %v293 = vadd.f32 %v77, %v292
  %v294 = vpop.f32.mrb[0].mxu0
  %295 = vmatprep.mubr.bf16.mxu0 0
  %296 = vmatmul.mubr.bf16.gmra.mrb[0].mxu0 %v148
  %v297 = vpop.f32.mrb[0].mxu0
  %v298 = vadd.f32 %v77, %v297
  %v299 = vpop.f32.mrb[0].mxu0
  %v300 = vpop.f32.mrb[0].mxu0
  %v301 = vadd.f32 %v77, %v300
  %v302 = vpop.f32.mrb[0].mxu0
  %303 = vmatprep.mubr.bf16.mxu0 0
  %304 = vmatmul.mubr.bf16.gmra.mrb[0].mxu0 %v149
  %v305 = vpop.f32.mrb[0].mxu0
  %v306 = vadd.f32 %v77, %v305
  %v307 = vpop.f32.mrb[0].mxu0
  %v308 = vpop.f32.mrb[0].mxu0
  %v309 = vadd.f32 %v77, %v308
  %v310 = vpop.f32.mrb[0].mxu0
  %311 = vmatprep.mubr.bf16.mxu0 0
  %312 = vmatmul.mubr.bf16.gmra.mrb[0].mxu0 %v150
  %v313 = vpop.f32.mrb[0].mxu0
  %v314 = vadd.f32 %v77, %v313
  %v315 = vpop.f32.mrb[0].mxu0
  %v316 = vpop.f32.mrb[0].mxu0
  %v317 = vadd.f32 %v77, %v316
  %v318 = vpop.f32.mrb[0].mxu0
  %319 = vmatprep.mubr.bf16.mxu0 0
  %320 = vmatmul.mubr.bf16.gmra.mrb[0].mxu0 %v151
  %v321 = vpop.f32.mrb[0].mxu0
  %v322 = vadd.f32 %v77, %v321
  %v323 = vpop.f32.mrb[0].mxu0
  %v324 = vpop.f32.mrb[0].mxu0
  %v325 = vadd.f32 %v77, %v324
  %v326 = vpop.f32.mrb[0].mxu0
  %327 = vmatprep.mubr.bf16.mxu0 0
  %328 = vmatmul.mubr.bf16.gmra.mrb[0].mxu0 %v152
  %v329 = vpop.f32.mrb[0].mxu0
  %v330 = vadd.f32 %v77, %v329
  %v331 = vpop.f32.mrb[0].mxu0
  %v332 = vpop.f32.mrb[0].mxu0
  %v333 = vadd.f32 %v77, %v332
  %v334 = vpop.f32.mrb[0].mxu0
  %335 = vmatprep.mubr.bf16.mxu0 0
  %336 = vmatmul.mubr.bf16.gmra.mrb[0].mxu0 %v153
  %v337 = vpop.f32.mrb[0].mxu0
  %v338 = vadd.f32 %v77, %v337
  %v339 = vpop.f32.mrb[0].mxu0
  %v340 = vpop.f32.mrb[0].mxu0
  %v341 = vadd.f32 %v77, %v340
  %v342 = vpop.f32.mrb[0].mxu0
  %343 = vmatprep.mubr.bf16.mxu0 0
  %344 = vmatmul.mubr.bf16.gmra.mrb[0].mxu0 %v154
  %v345 = vpop.f32.mrb[0].mxu0
  %v346 = vadd.f32 %v77, %v345
  %v347 = vpop.f32.mrb[0].mxu0
  %v348 = vpop.f32.mrb[0].mxu0
  %v349 = vadd.f32 %v77, %v348
  %v350 = vpop.f32.mrb[0].mxu0
  %351 = vmatprep.mubr.bf16.mxu0 0
  %352 = vmatmul.mubr.bf16.gmra.mrb[0].mxu0 %v155
  %v353 = vpop.f32.mrb[0].mxu0
  %v354 = vadd.f32 %v77, %v353
  %v355 = vpop.f32.mrb[0].mxu0
  %v356 = vpop.f32.mrb[0].mxu0
  %v357 = vadd.f32 %v77, %v356
  %v358 = vpop.f32.mrb[0].mxu0
  %359 = vmatprep.mubr.bf16.mxu0 0
  %360 = vmatmul.mubr.bf16.gmra.mrb[0].mxu0 %v156
  %v361 = vpop.f32.mrb[0].mxu0
  %v362 = vadd.f32 %v77, %v361
  %v363 = vpop.f32.mrb[0].mxu0
  %v364 = vpop.f32.mrb[0].mxu0
  %v365 = vadd.f32 %v77, %v364
  %v366 = vpop.f32.mrb[0].mxu0
  %367 = vmatprep.mubr.bf16.mxu0 0
  %368 = vmatmul.mubr.bf16.gmra.mrb[0].mxu0 %v157
  %v369 = vpop.f32.mrb[0].mxu0
  %v370 = vadd.f32 %v77, %v369
  %v371 = vpop.f32.mrb[0].mxu0
  %v372 = vpop.f32.mrb[0].mxu0
  %v373 = vadd.f32 %v77, %v372
  %v374 = vpop.f32.mrb[0].mxu0
  %375 = vmatprep.mubr.bf16.mxu0 0
  %376 = vmatmul.mubr.bf16.gmra.mrb[0].mxu0 %v158
  %v377 = vpop.f32.mrb[0].mxu0
  %v378 = vadd.f32 %v77, %v377
  %v379 = vpop.f32.mrb[0].mxu0
  %v380 = vpop.f32.mrb[0].mxu0
  %v381 = vadd.f32 %v77, %v380
  %v382 = vpop.f32.mrb[0].mxu0
  %383 = vdwg.mxu0
  %v384 = vld [vmem:[%s3] sm:$0xf]
  %v385 = vld [vmem:[%s3 + $0x4] sm:$0xf]
  %v386 = vld [vmem:[%s3 + $0x8] sm:$0xf]
  %v387 = vld [vmem:[%s3 + $0xc] sm:$0xf]
  %v388 = vld [vmem:[%s3 + $0x10] sm:$0xf]
  %v389 = vld [vmem:[%s3 + $0x14] sm:$0xf]
  %v390 = vld [vmem:[%s3 + $0x18] sm:$0xf]
  %v391 = vld [vmem:[%s3 + $0x1c] sm:$0xf]
  %v392 = vld [vmem:[%s3 + $0x20] sm:$0xf]
  %v393 = vld [vmem:[%s3 + $0x24] sm:$0xf]
  %v394 = vld [vmem:[%s3 + $0x28] sm:$0xf]
  %v395 = vld [vmem:[%s3 + $0x2c] sm:$0xf]
  %v396 = vld [vmem:[%s3 + $0x30] sm:$0xf]
  %v397 = vld [vmem:[%s3 + $0x34] sm:$0xf]
  %v398 = vld [vmem:[%s3 + $0x38] sm:$0xf]
  %v399 = vld [vmem:[%s3 + $0x3c] sm:$0xf]
  %v400 = vld [vmem:[%s3 + $0x40] sm:$0xf]
  %v401 = vld [vmem:[%s3 + $0x44] sm:$0xf]
  %v402 = vld [vmem:[%s3 + $0x48] sm:$0xf]
  %v403 = vld [vmem:[%s3 + $0x4c] sm:$0xf]
  %v404 = vld [vmem:[%s3 + $0x50] sm:$0xf]
  %v405 = vld [vmem:[%s3 + $0x54] sm:$0xf]
  %v406 = vld [vmem:[%s3 + $0x58] sm:$0xf]
  %v407 = vld [vmem:[%s3 + $0x5c] sm:$0xf]
  %v408 = vld [vmem:[%s3 + $0x60] sm:$0xf]
  %v409 = vld [vmem:[%s3 + $0x64] sm:$0xf]
  %v410 = vld [vmem:[%s3 + $0x68] sm:$0xf]
  %v411 = vld [vmem:[%s3 + $0x6c] sm:$0xf]
  %v412 = vld [vmem:[%s3 + $0x70] sm:$0xf]
  %v413 = vld [vmem:[%s3 + $0x74] sm:$0xf]
  %v414 = vld [vmem:[%s3 + $0x78] sm:$0xf]
  %v415 = vld [vmem:[%s3 + $0x7c] sm:$0xf]
  %v416 = vunpack.c.l.bf16 %v384
  %v417 = vunpack.c.l.bf16 %v385
  %v418 = vunpack.c.l.bf16 %v386
  %v419 = vunpack.c.l.bf16 %v387
  %v420 = vunpack.c.l.bf16 %v388
  %v421 = vunpack.c.l.bf16 %v389
  %v422 = vunpack.c.l.bf16 %v390
  %v423 = vunpack.c.l.bf16 %v391
  %v424 = vunpack.c.l.bf16 %v392
  %v425 = vunpack.c.l.bf16 %v393
  %v426 = vunpack.c.l.bf16 %v394
  %v427 = vunpack.c.l.bf16 %v395
  %v428 = vunpack.c.l.bf16 %v396
  %v429 = vunpack.c.l.bf16 %v397
  %v430 = vunpack.c.l.bf16 %v398
  %v431 = vunpack.c.l.bf16 %v399
  %v432 = vunpack.c.l.bf16 %v400
  %v433 = vunpack.c.l.bf16 %v401
  %v434 = vunpack.c.l.bf16 %v402
  %v435 = vunpack.c.l.bf16 %v403
  %v436 = vunpack.c.l.bf16 %v404
  %v437 = vunpack.c.l.bf16 %v405
  %v438 = vunpack.c.l.bf16 %v406
  %v439 = vunpack.c.l.bf16 %v407
  %v440 = vunpack.c.l.bf16 %v408
  %v441 = vunpack.c.l.bf16 %v409
  %v442 = vunpack.c.l.bf16 %v410
  %v443 = vunpack.c.l.bf16 %v411
  %v444 = vunpack.c.l.bf16 %v412
  %v445 = vunpack.c.l.bf16 %v413
  %v446 = vunpack.c.l.bf16 %v414
  %v447 = vunpack.c.l.bf16 %v415
  %v448 = vadd.f32 %v258, %v416
  %v449 = vadd.f32 %v261, %v417
  %v450 = vadd.f32 %v266, %v418
  %v451 = vadd.f32 %v269, %v419
  %v452 = vadd.f32 %v274, %v420
  %v453 = vadd.f32 %v277, %v421
  %v454 = vadd.f32 %v282, %v422
  %v455 = vadd.f32 %v285, %v423
  %v456 = vadd.f32 %v290, %v424
  %v457 = vadd.f32 %v293, %v425
  %v458 = vadd.f32 %v298, %v426
  %v459 = vadd.f32 %v301, %v427
  %v460 = vadd.f32 %v306, %v428
  %v461 = vadd.f32 %v309, %v429
  %v462 = vadd.f32 %v314, %v430
  %v463 = vadd.f32 %v317, %v431
  %v464 = vadd.f32 %v322, %v432
  %v465 = vadd.f32 %v325, %v433
  %v466 = vadd.f32 %v330, %v434
  %v467 = vadd.f32 %v333, %v435
  %v468 = vadd.f32 %v338, %v436
  %v469 = vadd.f32 %v341, %v437
  %v470 = vadd.f32 %v346, %v438
  %v471 = vadd.f32 %v349, %v439
  %v472 = vadd.f32 %v354, %v440
  %v473 = vadd.f32 %v357, %v441
  %v474 = vadd.f32 %v362, %v442
  %v475 = vadd.f32 %v365, %v443
  %v476 = vadd.f32 %v370, %v444
  %v477 = vadd.f32 %v373, %v445
  %v478 = vadd.f32 %v378, %v446
  %v479 = vadd.f32 %v381, %v447
  %480 = vadd.xlane.f32.xlu0 %v448
  %v481 = vpop.xlane.xlu0 %480
  %482 = vadd.xlane.f32.xlu0 %v449
  %v483 = vpop.xlane.xlu0 %482
  %484 = vadd.xlane.f32.xlu0 %v450
  %v485 = vpop.xlane.xlu0 %484
  %486 = vadd.xlane.f32.xlu0 %v451
  %v487 = vpop.xlane.xlu0 %486
  %488 = vadd.xlane.f32.xlu0 %v452
  %v489 = vpop.xlane.xlu0 %488
  %490 = vadd.xlane.f32.xlu0 %v453
  %v491 = vpop.xlane.xlu0 %490
  %492 = vadd.xlane.f32.xlu0 %v454
  %v493 = vpop.xlane.xlu0 %492
  %494 = vadd.xlane.f32.xlu0 %v455
  %v495 = vpop.xlane.xlu0 %494
  %496 = vadd.xlane.f32.xlu0 %v456
  %v497 = vpop.xlane.xlu0 %496
  %498 = vadd.xlane.f32.xlu0 %v457
  %v499 = vpop.xlane.xlu0 %498
  %500 = vadd.xlane.f32.xlu0 %v458
  %v501 = vpop.xlane.xlu0 %500
  %502 = vadd.xlane.f32.xlu0 %v459
  %v503 = vpop.xlane.xlu0 %502
  %504 = vadd.xlane.f32.xlu0 %v460
  %v505 = vpop.xlane.xlu0 %504
  %506 = vadd.xlane.f32.xlu0 %v461
  %v507 = vpop.xlane.xlu0 %506
  %508 = vadd.xlane.f32.xlu0 %v462
  %v509 = vpop.xlane.xlu0 %508
  %510 = vadd.xlane.f32.xlu0 %v463
  %v511 = vpop.xlane.xlu0 %510
  %512 = vadd.xlane.f32.xlu0 %v464
  %v513 = vpop.xlane.xlu0 %512
  %514 = vadd.xlane.f32.xlu0 %v465
  %v515 = vpop.xlane.xlu0 %514
  %516 = vadd.xlane.f32.xlu0 %v466
  %v517 = vpop.xlane.xlu0 %516
  %518 = vadd.xlane.f32.xlu0 %v467
  %v519 = vpop.xlane.xlu0 %518
  %520 = vadd.xlane.f32.xlu0 %v468
  %v521 = vpop.xlane.xlu0 %520
  %522 = vadd.xlane.f32.xlu0 %v469
  %v523 = vpop.xlane.xlu0 %522
  %524 = vadd.xlane.f32.xlu0 %v470
  %v525 = vpop.xlane.xlu0 %524
  %526 = vadd.xlane.f32.xlu0 %v471
  %v527 = vpop.xlane.xlu0 %526
  %528 = vadd.xlane.f32.xlu0 %v472
  %v529 = vpop.xlane.xlu0 %528
  %530 = vadd.xlane.f32.xlu0 %v473
  %v531 = vpop.xlane.xlu0 %530
  %532 = vadd.xlane.f32.xlu0 %v474
  %v533 = vpop.xlane.xlu0 %532
  %534 = vadd.xlane.f32.xlu0 %v475
  %v535 = vpop.xlane.xlu0 %534
  %536 = vadd.xlane.f32.xlu0 %v476
  %v537 = vpop.xlane.xlu0 %536
  %538 = vadd.xlane.f32.xlu0 %v477
  %v539 = vpop.xlane.xlu0 %538
  %540 = vadd.xlane.f32.xlu0 %v478
  %v541 = vpop.xlane.xlu0 %540
  %542 = vadd.xlane.f32.xlu0 %v479
  %v543 = vpop.xlane.xlu0 %542
  %v544 = vrcp.pop 128.0
  %v545 = vmul.f32 %v481, %v544
  %v546 = vmul.f32 %v483, %v544
  %v547 = vmul.f32 %v485, %v544
  %v548 = vmul.f32 %v487, %v544
  %v549 = vmul.f32 %v489, %v544
  %v550 = vmul.f32 %v491, %v544
  %v551 = vmul.f32 %v493, %v544
  %v552 = vmul.f32 %v495, %v544
  %v553 = vmul.f32 %v497, %v544
  %v554 = vmul.f32 %v499, %v544
  %v555 = vmul.f32 %v501, %v544
  %v556 = vmul.f32 %v503, %v544
  %v557 = vmul.f32 %v505, %v544
  %v558 = vmul.f32 %v507, %v544
  %v559 = vmul.f32 %v509, %v544
  %v560 = vmul.f32 %v511, %v544
  %v561 = vmul.f32 %v513, %v544
  %v562 = vmul.f32 %v515, %v544
  %v563 = vmul.f32 %v517, %v544
  %v564 = vmul.f32 %v519, %v544
  %v565 = vmul.f32 %v521, %v544
  %v566 = vmul.f32 %v523, %v544
  %v567 = vmul.f32 %v525, %v544
  %v568 = vmul.f32 %v527, %v544
  %v569 = vmul.f32 %v529, %v544
  %v570 = vmul.f32 %v531, %v544
  %v571 = vmul.f32 %v533, %v544
  %v572 = vmul.f32 %v535, %v544
  %v573 = vmul.f32 %v537, %v544
  %v574 = vmul.f32 %v539, %v544
  %v575 = vmul.f32 %v541, %v544
  %v576 = vmul.f32 %v543, %v544
  %v577 = vsub.f32 %v448, %v545
  %v578 = vsub.f32 %v449, %v546
  %v579 = vsub.f32 %v450, %v547
  %v580 = vsub.f32 %v451, %v548
  %v581 = vsub.f32 %v452, %v549
  %v582 = vsub.f32 %v453, %v550
  %v583 = vsub.f32 %v454, %v551
  %v584 = vsub.f32 %v455, %v552
  %v585 = vsub.f32 %v456, %v553
  %v586 = vsub.f32 %v457, %v554
  %v587 = vsub.f32 %v458, %v555
  %v588 = vsub.f32 %v459, %v556
  %v589 = vsub.f32 %v460, %v557
  %v590 = vsub.f32 %v461, %v558
  %v591 = vsub.f32 %v462, %v559
  %v592 = vsub.f32 %v463, %v560
  %v593 = vsub.f32 %v464, %v561
  %v594 = vsub.f32 %v465, %v562
  %v595 = vsub.f32 %v466, %v563
  %v596 = vsub.f32 %v467, %v564
  %v597 = vsub.f32 %v468, %v565
  %v598 = vsub.f32 %v469, %v566
  %v599 = vsub.f32 %v470, %v567
  %v600 = vsub.f32 %v471, %v568
  %v601 = vsub.f32 %v472, %v569
  %v602 = vsub.f32 %v473, %v570
  %v603 = vsub.f32 %v474, %v571
  %v604 = vsub.f32 %v475, %v572
  %v605 = vsub.f32 %v476, %v573
  %v606 = vsub.f32 %v477, %v574
  %v607 = vsub.f32 %v478, %v575
  %v608 = vsub.f32 %v479, %v576
  %v609 = vmul.f32 %v577, %v577
  %v610 = vmul.f32 %v578, %v578
  %v611 = vmul.f32 %v579, %v579
  %v612 = vmul.f32 %v580, %v580
  %v613 = vmul.f32 %v581, %v581
  %v614 = vmul.f32 %v582, %v582
  %v615 = vmul.f32 %v583, %v583
  %v616 = vmul.f32 %v584, %v584
  %v617 = vmul.f32 %v585, %v585
  %v618 = vmul.f32 %v586, %v586
  %v619 = vmul.f32 %v587, %v587
  %v620 = vmul.f32 %v588, %v588
  %v621 = vmul.f32 %v589, %v589
  %v622 = vmul.f32 %v590, %v590
  %v623 = vmul.f32 %v591, %v591
  %v624 = vmul.f32 %v592, %v592
  %v625 = vmul.f32 %v593, %v593
  %v626 = vmul.f32 %v594, %v594
  %v627 = vmul.f32 %v595, %v595
  %v628 = vmul.f32 %v596, %v596
  %v629 = vmul.f32 %v597, %v597
  %v630 = vmul.f32 %v598, %v598
  %v631 = vmul.f32 %v599, %v599
  %v632 = vmul.f32 %v600, %v600
  %v633 = vmul.f32 %v601, %v601
  %v634 = vmul.f32 %v602, %v602
  %v635 = vmul.f32 %v603, %v603
  %v636 = vmul.f32 %v604, %v604
  %v637 = vmul.f32 %v605, %v605
  %v638 = vmul.f32 %v606, %v606
  %v639 = vmul.f32 %v607, %v607
  %v640 = vmul.f32 %v608, %v608
  %641 = vadd.xlane.f32.xlu0 %v609
  %v642 = vpop.xlane.xlu0 %641
  %643 = vadd.xlane.f32.xlu0 %v610
  %v644 = vpop.xlane.xlu0 %643
  %645 = vadd.xlane.f32.xlu0 %v611
  %v646 = vpop.xlane.xlu0 %645
  %647 = vadd.xlane.f32.xlu0 %v612
  %v648 = vpop.xlane.xlu0 %647
  %649 = vadd.xlane.f32.xlu0 %v613
  %v650 = vpop.xlane.xlu0 %649
  %651 = vadd.xlane.f32.xlu0 %v614
  %v652 = vpop.xlane.xlu0 %651
  %653 = vadd.xlane.f32.xlu0 %v615
  %v654 = vpop.xlane.xlu0 %653
  %655 = vadd.xlane.f32.xlu0 %v616
  %v656 = vpop.xlane.xlu0 %655
  %657 = vadd.xlane.f32.xlu0 %v617
  %v658 = vpop.xlane.xlu0 %657
  %659 = vadd.xlane.f32.xlu0 %v618
  %v660 = vpop.xlane.xlu0 %659
  %661 = vadd.xlane.f32.xlu0 %v619
  %v662 = vpop.xlane.xlu0 %661
  %663 = vadd.xlane.f32.xlu0 %v620
  %v664 = vpop.xlane.xlu0 %663
  %665 = vadd.xlane.f32.xlu0 %v621
  %v666 = vpop.xlane.xlu0 %665
  %667 = vadd.xlane.f32.xlu0 %v622
  %v668 = vpop.xlane.xlu0 %667
  %669 = vadd.xlane.f32.xlu0 %v623
  %v670 = vpop.xlane.xlu0 %669
  %671 = vadd.xlane.f32.xlu0 %v624
  %v672 = vpop.xlane.xlu0 %671
  %673 = vadd.xlane.f32.xlu0 %v625
  %v674 = vpop.xlane.xlu0 %673
  %675 = vadd.xlane.f32.xlu0 %v626
  %v676 = vpop.xlane.xlu0 %675
  %677 = vadd.xlane.f32.xlu0 %v627
  %v678 = vpop.xlane.xlu0 %677
  %679 = vadd.xlane.f32.xlu0 %v628
  %v680 = vpop.xlane.xlu0 %679
  %681 = vadd.xlane.f32.xlu0 %v629
  %v682 = vpop.xlane.xlu0 %681
  %683 = vadd.xlane.f32.xlu0 %v630
  %v684 = vpop.xlane.xlu0 %683
  %685 = vadd.xlane.f32.xlu0 %v631
  %v686 = vpop.xlane.xlu0 %685
  %687 = vadd.xlane.f32.xlu0 %v632
  %v688 = vpop.xlane.xlu0 %687
  %689 = vadd.xlane.f32.xlu0 %v633
  %v690 = vpop.xlane.xlu0 %689
  %691 = vadd.xlane.f32.xlu0 %v634
  %v692 = vpop.xlane.xlu0 %691
  %693 = vadd.xlane.f32.xlu0 %v635
  %v694 = vpop.xlane.xlu0 %693
  %695 = vadd.xlane.f32.xlu0 %v636
  %v696 = vpop.xlane.xlu0 %695
  %697 = vadd.xlane.f32.xlu0 %v637
  %v698 = vpop.xlane.xlu0 %697
  %699 = vadd.xlane.f32.xlu0 %v638
  %v700 = vpop.xlane.xlu0 %699
  %701 = vadd.xlane.f32.xlu0 %v639
  %v702 = vpop.xlane.xlu0 %701
  %703 = vadd.xlane.f32.xlu0 %v640
  %v704 = vpop.xlane.xlu0 %703
  %v705 = vmul.f32 %v642, %v544
  %v706 = vmul.f32 %v644, %v544
  %v707 = vmul.f32 %v646, %v544
  %v708 = vmul.f32 %v648, %v544
  %v709 = vmul.f32 %v650, %v544
  %v710 = vmul.f32 %v652, %v544
  %v711 = vmul.f32 %v654, %v544
  %v712 = vmul.f32 %v656, %v544
  %v713 = vmul.f32 %v658, %v544
  %v714 = vmul.f32 %v660, %v544
  %v715 = vmul.f32 %v662, %v544
  %v716 = vmul.f32 %v664, %v544
  %v717 = vmul.f32 %v666, %v544
  %v718 = vmul.f32 %v668, %v544
  %v719 = vmul.f32 %v670, %v544
  %v720 = vmul.f32 %v672, %v544
  %v721 = vmul.f32 %v674, %v544
  %v722 = vmul.f32 %v676, %v544
  %v723 = vmul.f32 %v678, %v544
  %v724 = vmul.f32 %v680, %v544
  %v725 = vmul.f32 %v682, %v544
  %v726 = vmul.f32 %v684, %v544
  %v727 = vmul.f32 %v686, %v544
  %v728 = vmul.f32 %v688, %v544
  %v729 = vmul.f32 %v690, %v544
  %v730 = vmul.f32 %v692, %v544
  %v731 = vmul.f32 %v694, %v544
  %v732 = vmul.f32 %v696, %v544
  %v733 = vmul.f32 %v698, %v544
  %v734 = vmul.f32 %v700, %v544
  %v735 = vmul.f32 %v702, %v544
  %v736 = vmul.f32 %v704, %v544
  %v737 = vadd.f32 %v705, 1e-12
  %v738 = vadd.f32 %v706, 1e-12
  %v739 = vadd.f32 %v707, 1e-12
  %v740 = vadd.f32 %v708, 1e-12
  %v741 = vadd.f32 %v709, 1e-12
  %v742 = vadd.f32 %v710, 1e-12
  %v743 = vadd.f32 %v711, 1e-12
  %v744 = vadd.f32 %v712, 1e-12
  %v745 = vadd.f32 %v713, 1e-12
  %v746 = vadd.f32 %v714, 1e-12
  %v747 = vadd.f32 %v715, 1e-12
  %v748 = vadd.f32 %v716, 1e-12
  %v749 = vadd.f32 %v717, 1e-12
  %v750 = vadd.f32 %v718, 1e-12
  %v751 = vadd.f32 %v719, 1e-12
  %v752 = vadd.f32 %v720, 1e-12
  %v753 = vadd.f32 %v721, 1e-12
  %v754 = vadd.f32 %v722, 1e-12
  %v755 = vadd.f32 %v723, 1e-12
  %v756 = vadd.f32 %v724, 1e-12
  %v757 = vadd.f32 %v725, 1e-12
  %v758 = vadd.f32 %v726, 1e-12
  %v759 = vadd.f32 %v727, 1e-12
  %v760 = vadd.f32 %v728, 1e-12
  %v761 = vadd.f32 %v729, 1e-12
  %v762 = vadd.f32 %v730, 1e-12
  %v763 = vadd.f32 %v731, 1e-12
  %v764 = vadd.f32 %v732, 1e-12
  %v765 = vadd.f32 %v733, 1e-12
  %v766 = vadd.f32 %v734, 1e-12
  %v767 = vadd.f32 %v735, 1e-12
  %v768 = vadd.f32 %v736, 1e-12
  %v769 = vrsqrt.pop %v737
  %v770 = vrsqrt.pop %v738
  %v771 = vrsqrt.pop %v739
  %v772 = vrsqrt.pop %v740
  %v773 = vrsqrt.pop %v741
  %v774 = vrsqrt.pop %v742
  %v775 = vrsqrt.pop %v743
  %v776 = vrsqrt.pop %v744
  %v777 = vrsqrt.pop %v745
  %v778 = vrsqrt.pop %v746
  %v779 = vrsqrt.pop %v747
  %v780 = vrsqrt.pop %v748
  %v781 = vrsqrt.pop %v749
  %v782 = vrsqrt.pop %v750
  %v783 = vrsqrt.pop %v751
  %v784 = vrsqrt.pop %v752
  %v785 = vrsqrt.pop %v753
  %v786 = vrsqrt.pop %v754
  %v787 = vrsqrt.pop %v755
  %v788 = vrsqrt.pop %v756
  %v789 = vrsqrt.pop %v757
  %v790 = vrsqrt.pop %v758
  %v791 = vrsqrt.pop %v759
  %v792 = vrsqrt.pop %v760
  %v793 = vrsqrt.pop %v761
  %v794 = vrsqrt.pop %v762
  %v795 = vrsqrt.pop %v763
  %v796 = vrsqrt.pop %v764
  %v797 = vrsqrt.pop %v765
  %v798 = vrsqrt.pop %v766
  %v799 = vrsqrt.pop %v767
  %v800 = vrsqrt.pop %v768
  %v801 = vmul.f32 %v577, %v769
  %v802 = vmul.f32 %v578, %v770
  %v803 = vmul.f32 %v579, %v771
  %v804 = vmul.f32 %v580, %v772
  %v805 = vmul.f32 %v581, %v773
  %v806 = vmul.f32 %v582, %v774
  %v807 = vmul.f32 %v583, %v775
  %v808 = vmul.f32 %v584, %v776
  %v809 = vmul.f32 %v585, %v777
  %v810 = vmul.f32 %v586, %v778
  %v811 = vmul.f32 %v587, %v779
  %v812 = vmul.f32 %v588, %v780
  %v813 = vmul.f32 %v589, %v781
  %v814 = vmul.f32 %v590, %v782
  %v815 = vmul.f32 %v591, %v783
  %v816 = vmul.f32 %v592, %v784
  %v817 = vmul.f32 %v593, %v785
  %v818 = vmul.f32 %v594, %v786
  %v819 = vmul.f32 %v595, %v787
  %v820 = vmul.f32 %v596, %v788
  %v821 = vmul.f32 %v597, %v789
  %v822 = vmul.f32 %v598, %v790
  %v823 = vmul.f32 %v599, %v791
  %v824 = vmul.f32 %v600, %v792
  %v825 = vmul.f32 %v601, %v793
  %v826 = vmul.f32 %v602, %v794
  %v827 = vmul.f32 %v603, %v795
  %v828 = vmul.f32 %v604, %v796
  %v829 = vmul.f32 %v605, %v797
  %v830 = vmul.f32 %v606, %v798
  %v831 = vmul.f32 %v607, %v799
  %v832 = vmul.f32 %v608, %v800
  %v833 = vld [vmem:[%s4] sm:$0x1]
  %v835 = vlaneseq
  %v836 = vshrl.u32 %v835, 7
  %v837 = vsub.s32 0, %v836
  %v838 = vrot.slane %v833, %v837
  %v840 = vmul.f32 %v801, %v838
  %v841 = vmul.f32 %v802, %v838
  %v842 = vmul.f32 %v803, %v838
  %v843 = vmul.f32 %v804, %v838
  %v844 = vmul.f32 %v805, %v838
  %v845 = vmul.f32 %v806, %v838
  %v846 = vmul.f32 %v807, %v838
  %v847 = vmul.f32 %v808, %v838
  %v848 = vmul.f32 %v809, %v838
  %v849 = vmul.f32 %v810, %v838
  %v850 = vmul.f32 %v811, %v838
  %v851 = vmul.f32 %v812, %v838
  %v852 = vmul.f32 %v813, %v838
  %v853 = vmul.f32 %v814, %v838
  %v854 = vmul.f32 %v815, %v838
  %v855 = vmul.f32 %v816, %v838
  %v856 = vmul.f32 %v817, %v838
  %v857 = vmul.f32 %v818, %v838
  %v858 = vmul.f32 %v819, %v838
  %v859 = vmul.f32 %v820, %v838
  %v860 = vmul.f32 %v821, %v838
  %v861 = vmul.f32 %v822, %v838
  %v862 = vmul.f32 %v823, %v838
  %v863 = vmul.f32 %v824, %v838
  %v864 = vmul.f32 %v825, %v838
  %v865 = vmul.f32 %v826, %v838
  %v866 = vmul.f32 %v827, %v838
  %v867 = vmul.f32 %v828, %v838
  %v868 = vmul.f32 %v829, %v838
  %v869 = vmul.f32 %v830, %v838
  %v870 = vmul.f32 %v831, %v838
  %v871 = vmul.f32 %v832, %v838
  %v872 = vld [vmem:[%s5] sm:$0x1]
  %v874 = vlaneseq
  %v875 = vshrl.u32 %v874, 7
  %v876 = vsub.s32 0, %v875
  %v877 = vrot.slane %v872, %v876
  %v879 = vadd.f32 %v840, %v877
  %v880 = vadd.f32 %v841, %v877
  %v881 = vadd.f32 %v842, %v877
  %v882 = vadd.f32 %v843, %v877
  %v883 = vadd.f32 %v844, %v877
  %v884 = vadd.f32 %v845, %v877
  %v885 = vadd.f32 %v846, %v877
  %v886 = vadd.f32 %v847, %v877
  %v887 = vadd.f32 %v848, %v877
  %v888 = vadd.f32 %v849, %v877
  %v889 = vadd.f32 %v850, %v877
  %v890 = vadd.f32 %v851, %v877
  %v891 = vadd.f32 %v852, %v877
  %v892 = vadd.f32 %v853, %v877
  %v893 = vadd.f32 %v854, %v877
  %v894 = vadd.f32 %v855, %v877
  %v895 = vadd.f32 %v856, %v877
  %v896 = vadd.f32 %v857, %v877
  %v897 = vadd.f32 %v858, %v877
  %v898 = vadd.f32 %v859, %v877
  %v899 = vadd.f32 %v860, %v877
  %v900 = vadd.f32 %v861, %v877
  %v901 = vadd.f32 %v862, %v877
  %v902 = vadd.f32 %v863, %v877
  %v903 = vadd.f32 %v864, %v877
  %v904 = vadd.f32 %v865, %v877
  %v905 = vadd.f32 %v866, %v877
  %v906 = vadd.f32 %v867, %v877
  %v907 = vadd.f32 %v868, %v877
  %v908 = vadd.f32 %v869, %v877
  %v909 = vadd.f32 %v870, %v877
  %v910 = vadd.f32 %v871, %v877
  %v911 = vpack.c.bf16 %v880, %v879
  %v912 = vpack.c.bf16 %v882, %v881
  %v913 = vpack.c.bf16 %v884, %v883
  %v914 = vpack.c.bf16 %v886, %v885
  %v915 = vpack.c.bf16 %v888, %v887
  %v916 = vpack.c.bf16 %v890, %v889
  %v917 = vpack.c.bf16 %v892, %v891
  %v918 = vpack.c.bf16 %v894, %v893
  %v919 = vpack.c.bf16 %v896, %v895
  %v920 = vpack.c.bf16 %v898, %v897
  %v921 = vpack.c.bf16 %v900, %v899
  %v922 = vpack.c.bf16 %v902, %v901
  %v923 = vpack.c.bf16 %v904, %v903
  %v924 = vpack.c.bf16 %v906, %v905
  %v925 = vpack.c.bf16 %v908, %v907
  %v926 = vpack.c.bf16 %v910, %v909
  %v943 = vunpack.c.l.b16 %v911
  %v944 = vunpack.c.h.b16 %v911
  %v945 = vunpack.c.l.b16 %v912
  %v946 = vunpack.c.h.b16 %v912
  %v947 = vunpack.c.l.b16 %v913
  %v948 = vunpack.c.h.b16 %v913
  %v949 = vunpack.c.l.b16 %v914
  %v950 = vunpack.c.h.b16 %v914
  %v951 = vunpack.c.l.b16 %v915
  %v952 = vunpack.c.h.b16 %v915
  %v953 = vunpack.c.l.b16 %v916
  %v954 = vunpack.c.h.b16 %v916
  %v955 = vunpack.c.l.b16 %v917
  %v956 = vunpack.c.h.b16 %v917
  %v957 = vunpack.c.l.b16 %v918
  %v958 = vunpack.c.h.b16 %v918
  %v959 = vunpack.c.l.b16 %v919
  %v960 = vunpack.c.h.b16 %v919
  %v961 = vunpack.c.l.b16 %v920
  %v962 = vunpack.c.h.b16 %v920
  %v963 = vunpack.c.l.b16 %v921
  %v964 = vunpack.c.h.b16 %v921
  %v965 = vunpack.c.l.b16 %v922
  %v966 = vunpack.c.h.b16 %v922
  %v967 = vunpack.c.l.b16 %v923
  %v968 = vunpack.c.h.b16 %v923
  %v969 = vunpack.c.l.b16 %v924
  %v970 = vunpack.c.h.b16 %v924
  %v971 = vunpack.c.l.b16 %v925
  %v972 = vunpack.c.h.b16 %v925
  %v973 = vunpack.c.l.b16 %v926
  %v974 = vunpack.c.h.b16 %v926
  %v975 = vpack.c.b16 %v943, %v943
  %v976 = vpack.c.b16 %v944, %v944
  %v977 = vpack.c.b16 %v945, %v945
  %v978 = vpack.c.b16 %v946, %v946
  %v979 = vpack.c.b16 %v947, %v947
  %v980 = vpack.c.b16 %v948, %v948
  %v981 = vpack.c.b16 %v949, %v949
  %v982 = vpack.c.b16 %v950, %v950
  %v983 = vpack.c.b16 %v951, %v951
  %v984 = vpack.c.b16 %v952, %v952
  %v985 = vpack.c.b16 %v953, %v953
  %v986 = vpack.c.b16 %v954, %v954
  %v987 = vpack.c.b16 %v955, %v955
  %v988 = vpack.c.b16 %v956, %v956
  %v989 = vpack.c.b16 %v957, %v957
  %v990 = vpack.c.b16 %v958, %v958
  %v991 = vpack.c.b16 %v959, %v959
  %v992 = vpack.c.b16 %v960, %v960
  %v993 = vpack.c.b16 %v961, %v961
  %v994 = vpack.c.b16 %v962, %v962
  %v995 = vpack.c.b16 %v963, %v963
  %v996 = vpack.c.b16 %v964, %v964
  %v997 = vpack.c.b16 %v965, %v965
  %v998 = vpack.c.b16 %v966, %v966
  %v999 = vpack.c.b16 %v967, %v967
  %v1000 = vpack.c.b16 %v968, %v968
  %v1001 = vpack.c.b16 %v969, %v969
  %v1002 = vpack.c.b16 %v970, %v970
  %v1003 = vpack.c.b16 %v971, %v971
  %v1004 = vpack.c.b16 %v972, %v972
  %v1005 = vpack.c.b16 %v973, %v973
  %v1006 = vpack.c.b16 %v974, %v974
  %1039 = vst [vmem:[%s6] sm:$0xf] %v975
  %1040 = vst [vmem:[%s6 + $0x4] sm:$0xf] %v976
  %1041 = vst [vmem:[%s6 + $0x8] sm:$0xf] %v977
  %1042 = vst [vmem:[%s6 + $0xc] sm:$0xf] %v978
  %1043 = vst [vmem:[%s6 + $0x10] sm:$0xf] %v979
  %1044 = vst [vmem:[%s6 + $0x14] sm:$0xf] %v980
  %1045 = vst [vmem:[%s6 + $0x18] sm:$0xf] %v981
  %1046 = vst [vmem:[%s6 + $0x1c] sm:$0xf] %v982
  %1047 = vst [vmem:[%s6 + $0x20] sm:$0xf] %v983
  %1048 = vst [vmem:[%s6 + $0x24] sm:$0xf] %v984
  %1049 = vst [vmem:[%s6 + $0x28] sm:$0xf] %v985
  %1050 = vst [vmem:[%s6 + $0x2c] sm:$0xf] %v986
  %1051 = vst [vmem:[%s6 + $0x30] sm:$0xf] %v987
  %1052 = vst [vmem:[%s6 + $0x34] sm:$0xf] %v988
  %1053 = vst [vmem:[%s6 + $0x38] sm:$0xf] %v989
  %1054 = vst [vmem:[%s6 + $0x3c] sm:$0xf] %v990
  %1055 = vst [vmem:[%s6 + $0x40] sm:$0xf] %v991
  %1056 = vst [vmem:[%s6 + $0x44] sm:$0xf] %v992
  %1057 = vst [vmem:[%s6 + $0x48] sm:$0xf] %v993
  %1058 = vst [vmem:[%s6 + $0x4c] sm:$0xf] %v994
  %1059 = vst [vmem:[%s6 + $0x50] sm:$0xf] %v995
  %1060 = vst [vmem:[%s6 + $0x54] sm:$0xf] %v996
  %1061 = vst [vmem:[%s6 + $0x58] sm:$0xf] %v997
  %1062 = vst [vmem:[%s6 + $0x5c] sm:$0xf] %v998
  %1063 = vst [vmem:[%s6 + $0x60] sm:$0xf] %v999
  %1064 = vst [vmem:[%s6 + $0x64] sm:$0xf] %v1000
  %1065 = vst [vmem:[%s6 + $0x68] sm:$0xf] %v1001
  %1066 = vst [vmem:[%s6 + $0x6c] sm:$0xf] %v1002
  %1067 = vst [vmem:[%s6 + $0x70] sm:$0xf] %v1003
  %1068 = vst [vmem:[%s6 + $0x74] sm:$0xf] %v1004
  %1069 = vst [vmem:[%s6 + $0x78] sm:$0xf] %v1005
  %1070 = vst [vmem:[%s6 + $0x7c] sm:$0xf] %v1006
  // Predicated region
  $region26: #{bert_classifier_forward.14} parent=0 // pred_check
    _
  $region27: #{bert_classifier_forward.14} parent=0 // pred_check_branch
    %1072 = sbr.rel (0) target = $region29
  $region28: #{bert_classifier_forward.14} parent=0 // pred_region
    _
  $region29: #{bert_classifier_forward.14} parent=0 // pred_fallthru
    _
  // Predicated region
  $region30: #{bert_classifier_forward.14} parent=0 // pred_check
    _
  $region31: #{bert_classifier_forward.14} parent=0 // pred_check_branch
    %1074 = sbr.rel (0) target = $region33
  $region32: #{bert_classifier_forward.14} parent=0 // pred_region
    _
  $region33: #{bert_classifier_forward.14} parent=0 // pred_fallthru
    _

// kernel: bert_classifier_forward.13
$region0: #{bert_classifier_forward.13}
  #allocation0 [shape = 'u32[]', space=smem, size = 0x4, offset = 0x4, fixed_abs, tag = 'smem constant byte address 0x4 - core index']
  #allocation1 [shape = 'u32[144,128]{1,0:T(1,128)}', space=vmem, size = 0x12000, scoped, tag = 'internal scratch']
  #allocation2 [shape = 'f32[128,2]{1,0:T(8,128)}', space=vmem, size = 0x10000, scoped, tag = 'scratch operand']
  #allocation3 [shape = 'f32[128,2]{1,0:T(8,128)}', space=vmem, size = 0x10000, scoped, tag = 'scratch operand']
  #allocation4 [shape = 'f32[128,128]{1,0:T(8,128)}', space=vmem, size = 0x10000, scoped, tag = 'scratch operand']
  %s0 = inlined_call_operand.vmem [shape: bf16[256,384], index: 0, kind: input, shape index: {}, may-alias: {0,1,2}]
  %s1 = inlined_call_operand.vmem [shape: bf16[256,384], index: 1, kind: input, shape index: {}, may-alias: {0,1,2}]
  %s2 = inlined_call_operand.vmem [shape: bf16[256,384], index: 2, kind: input, shape index: {}, may-alias: {0,1,2}]
  %s3 = inlined_call_operand.vmem [shape: f32[2,1,128], index: 3, kind: input, shape index: {}]
  %s4 = inlined_call_operand.vmem [shape: bf16[256,128], index: 4, kind: output, shape index: {}]
  %s5 = sld [smem:[#allocation0]]
  $region180: #{bert_classifier_forward.13} parent=0
    _
  %s7 = ssub.s32 1, %s5
  %s8 = scalar_select 0, %s7, %s5
  $region1: #{bert_classifier_forward.13} parent=0
    #allocation5 [shape = 'u8[65536]{0}', space=vmem, size = 0x10000, scoped, tag = 'input window, operand 0']
    #allocation6 [shape = 'u8[65536]{0}', space=vmem, size = 0x10000, scoped, tag = 'input window, operand 1']
    #allocation7 [shape = 'u8[65536]{0}', space=vmem, size = 0x10000, scoped, tag = 'input window, operand 2']
    loop: start=0, step=1, limit=4
    $region2: #{bert_classifier_forward.13} parent=1 // loop_pre_header
      _
    $region3: #{bert_classifier_forward.13} parent=1 // loop_header
      %s10 = sphi 0, %s14
      %p11 = scmp.ge.s32.totalorder %s10, 4
      %s17 = sphi 0, %s36
      %s18 = sphi 0, %s32
      %s19 = sphi 0, %s28
      %s20 = sphi 0, %s17
      %s21 = sphi 0, %s18
      %s22 = sphi 0, %s19
      %s23 = sphi 0, %s20
      %s24 = sphi 0, %s21
      %s25 = sphi 0, %s22
      %s41 = sphi 0, %s43
      %s44 = sphi 0, %s41
      %s45 = sphi 0, %s44
      %s61 = sphi 0, %s45
      %s69 = sphi 0, %s71
      %s72 = sphi 0, %s69
      %s73 = sphi 0, %s72
      %s89 = sphi 0, %s73
      %s97 = sphi 0, %s99
      %s100 = sphi 0, %s97
      %s101 = sphi 0, %s100
      %s117 = sphi 0, %s101
      %s125 = sphi 0, %s127
      %s128 = sphi 0, %s125
      %s129 = sphi 0, %s128
      %s145 = sphi 0, %s129
      %s153 = sphi 0, %s155
      %s156 = sphi 0, %s153
      %s157 = sphi 0, %s156
      %s173 = sphi 0, %s157
    $region4: #{bert_classifier_forward.13} parent=1 // loop_header_branch
      %13 = sbr.rel (%p11) target = $region8
    $region5: #{bert_classifier_forward.13} parent=1 // loop_body
      %s15 = ssub.s32 %s10, 1
      %s16 = ssub.s32 %s10, 2
      %s26 = sadd.s32 1, %s19
      %p27 = scmp.ge.s32.totalorder %s26, 1
      %s28 = scalar_select %p27, 0, %s26
      %s29 = sadd.s32 1, %s18
      %s30 = scalar_select %p27, %s29, %s18
      %p31 = scmp.ge.s32.totalorder %s30, 1
      %s32 = scalar_select %p31, 0, %s30
      %s33 = sadd.s32 1, %s17
      %s34 = scalar_select %p31, %s33, %s17
      %p35 = scmp.ge.s32.totalorder %s34, 2
      %s36 = scalar_select %p35, 0, %s34
      %s37 = sadd.s32 %s17, %s18
      %s38 = sadd.s32 %s36, %s32
      %s39 = ssub.s32 %s37, %s38
      %p40 = scmp.eq.s32.totalorder %s39, 0
      %s42 = sadd.s32 %s41, 1
      %s43 = scalar_select %p40, %s41, %s42
      %p46 = pneg %p40
      %p47 = scmp.eq.s32.totalorder %s10, 1
      %p48 = por %p46, %p47
      %p49 = scmp.ne.s32.totalorder %s41, %s44
      %p50 = scmp.eq.s32.totalorder %s10, 0
      %p51 = por %p49, %p50
      %p52 = scmp.ne.s32.totalorder %s41, %s44
      %p53 = scmp.eq.s32.totalorder %s15, 1
      %p54 = por %p52, %p53
      %p55 = scmp.ne.s32.totalorder %s44, %s45
      %p56 = scmp.eq.s32.totalorder %s15, 0
      %p57 = por %p55, %p56
      %p58 = scmp.ne.s32.totalorder %s44, %s45
      %p59 = scmp.eq.s32.totalorder %s16, 1
      %p60 = por %p58, %p59
      %p62 = scmp.ne.s32.totalorder %s45, %s61
      %p63 = scmp.eq.s32.totalorder %s16, 0
      %p64 = por %p62, %p63
      %s65 = sadd.s32 %s17, %s19
      %s66 = sadd.s32 %s36, %s28
      %s67 = ssub.s32 %s65, %s66
      %p68 = scmp.eq.s32.totalorder %s67, 0
      %s70 = sadd.s32 %s69, 1
      %s71 = scalar_select %p68, %s69, %s70
      %p74 = pneg %p68
      %p75 = scmp.eq.s32.totalorder %s10, 1
      %p76 = por %p74, %p75
      %p77 = scmp.ne.s32.totalorder %s69, %s72
      %p78 = scmp.eq.s32.totalorder %s10, 0
      %p79 = por %p77, %p78
      %p80 = scmp.ne.s32.totalorder %s69, %s72
      %p81 = scmp.eq.s32.totalorder %s15, 1
      %p82 = por %p80, %p81
      %p83 = scmp.ne.s32.totalorder %s72, %s73
      %p84 = scmp.eq.s32.totalorder %s15, 0
      %p85 = por %p83, %p84
      %p86 = scmp.ne.s32.totalorder %s72, %s73
      %p87 = scmp.eq.s32.totalorder %s16, 1
      %p88 = por %p86, %p87
      %p90 = scmp.ne.s32.totalorder %s73, %s89
      %p91 = scmp.eq.s32.totalorder %s16, 0
      %p92 = por %p90, %p91
      %s93 = sadd.s32 %s17, %s19
      %s94 = sadd.s32 %s36, %s28
      %s95 = ssub.s32 %s93, %s94
      %p96 = scmp.eq.s32.totalorder %s95, 0
      %s98 = sadd.s32 %s97, 1
      %s99 = scalar_select %p96, %s97, %s98
      %p102 = pneg %p96
      %p103 = scmp.eq.s32.totalorder %s10, 1
      %p104 = por %p102, %p103
      %p105 = scmp.ne.s32.totalorder %s97, %s100
      %p106 = scmp.eq.s32.totalorder %s10, 0
      %p107 = por %p105, %p106
      %p108 = scmp.ne.s32.totalorder %s97, %s100
      %p109 = scmp.eq.s32.totalorder %s15, 1
      %p110 = por %p108, %p109
      %p111 = scmp.ne.s32.totalorder %s100, %s101
      %p112 = scmp.eq.s32.totalorder %s15, 0
      %p113 = por %p111, %p112
      %p114 = scmp.ne.s32.totalorder %s100, %s101
      %p115 = scmp.eq.s32.totalorder %s16, 1
      %p116 = por %p114, %p115
      %p118 = scmp.ne.s32.totalorder %s101, %s117
      %p119 = scmp.eq.s32.totalorder %s16, 0
      %p120 = por %p118, %p119
      %s121 = ssub.s32 %s17, %s36
      %s122 = ssub.s32 %s19, %s28
      %s123 = sor.u32 %s121, %s122
      %p124 = scmp.eq.s32.totalorder %s123, 0
      %s126 = sadd.s32 %s125, 1
      %s127 = scalar_select %p124, %s125, %s126
      %p130 = pneg %p124
      %p131 = scmp.eq.s32.totalorder %s10, 1
      %p132 = por %p130, %p131
      %p133 = scmp.ne.s32.totalorder %s125, %s128
      %p134 = scmp.eq.s32.totalorder %s10, 0
      %p135 = por %p133, %p134
      %p136 = scmp.ne.s32.totalorder %s125, %s128
      %p137 = scmp.eq.s32.totalorder %s15, 1
      %p138 = por %p136, %p137
      %p139 = scmp.ne.s32.totalorder %s128, %s129
      %p140 = scmp.eq.s32.totalorder %s15, 0
      %p141 = por %p139, %p140
      %p142 = scmp.ne.s32.totalorder %s128, %s129
      %p143 = scmp.eq.s32.totalorder %s16, 1
      %p144 = por %p142, %p143
      %p146 = scmp.ne.s32.totalorder %s129, %s145
      %p147 = scmp.eq.s32.totalorder %s16, 0
      %p148 = por %p146, %p147
      %s149 = sadd.s32 %s17, %s18
      %s150 = sadd.s32 %s36, %s32
      %s151 = ssub.s32 %s149, %s150
      %p152 = scmp.eq.s32.totalorder %s151, 0
      %s154 = sadd.s32 %s153, 1
      %s155 = scalar_select %p152, %s153, %s154
      %p158 = pneg %p152
      %p159 = scmp.eq.s32.totalorder %s10, 1
      %p160 = por %p158, %p159
      %p161 = scmp.ne.s32.totalorder %s153, %s156
      %p162 = scmp.eq.s32.totalorder %s10, 0
      %p163 = por %p161, %p162
      %p164 = scmp.ne.s32.totalorder %s153, %s156
      %p165 = scmp.eq.s32.totalorder %s15, 1
      %p166 = por %p164, %p165
      %p167 = scmp.ne.s32.totalorder %s156, %s157
      %p168 = scmp.eq.s32.totalorder %s15, 0
      %p169 = por %p167, %p168
      %p170 = scmp.ne.s32.totalorder %s156, %s157
      %p171 = scmp.eq.s32.totalorder %s16, 1
      %p172 = por %p170, %p171
      %p174 = scmp.ne.s32.totalorder %s157, %s173
      %p175 = scmp.eq.s32.totalorder %s16, 0
      %p176 = por %p174, %p175
      %p177 = scmp.le.s32.totalorder 1, %s10
      %p178 = scmp.lt.s32.totalorder %s10, 3
      %p179 = pnand %p177, %p178
      %p180 = pneg %p179
      // Predicated region
      $region9: #{bert_classifier_forward.13} parent=5 // pred_check
        _
      $region10: #{bert_classifier_forward.13} parent=5 // pred_check_branch
        %182 = sbr.rel (%p179) target = $region12
      $region11: #{bert_classifier_forward.13} parent=5 // pred_region
        %s183 = ssub.s32 %s10, 1
      $region12: #{bert_classifier_forward.13} parent=5 // pred_fallthru
        _
      %p184 = scmp.lt.s32.totalorder %s10, 2
      // Predicated region
      $region13: #{bert_classifier_forward.13} parent=5 // pred_check
        %p185 = pneg %p184
      $region14: #{bert_classifier_forward.13} parent=5 // pred_check_branch
        %187 = sbr.rel (%p185) target = $region16
      $region15: #{bert_classifier_forward.13} parent=5 // pred_region
        // Predicated region
        $region17: #{bert_classifier_forward.13} parent=15 // pred_check
          %p188 = pneg %p51
        $region18: #{bert_classifier_forward.13} parent=15 // pred_check_branch
          %190 = sbr.rel (%p188) target = $region20
        $region19: #{bert_classifier_forward.13} parent=15 // pred_region
          %s191 = sand.u32 %s41, 1
          %s192 = sand.u32 %s41, 1
          %s193 = smul.addr %s192, 64
          %s194 = scalar_lea.vmem [#allocation5], %s193
          %s195 = sadd.s32 %s17, %s18
          %s196 = smul.u32 16, %s195
          %s197 = smul.addr %s196, 3
          %s198 = smul.addr %s197, 4
          %s199 = scalar_lea.vmem %s0, %s198
          // Predicated region
          $region21: #{bert_classifier_forward.13} parent=19 // pred_check
            _
          $region22: #{bert_classifier_forward.13} parent=19 // pred_check_branch
            %201 = sbr.rel (0) target = $region24
          $region23: #{bert_classifier_forward.13} parent=19 // pred_region
            // Predicated region
            $region25: #{bert_classifier_forward.13} parent=23 // pred_check
              _
            $region26: #{bert_classifier_forward.13} parent=23 // pred_check_branch
              %203 = sbr.rel target = $region28
            $region27: #{bert_classifier_forward.13} parent=23 // pred_region
              // Predicated region
              $region40: #{bert_classifier_forward.13} parent=27 // pred_check
                _
              $region41: #{bert_classifier_forward.13} parent=27 // pred_check_branch
                %248 = sbr.rel (0) target = $region43
              $region42: #{bert_classifier_forward.13} parent=27 // pred_region
                loop: start=0, step=1, limit=1
                $region44: #{bert_classifier_forward.13} parent=42 // loop_pre_header
                  _
                $region45: #{bert_classifier_forward.13} parent=42 // loop_header
                  %s250 = sphi 0, %s254
                  %p251 = scmp.ge.s32.totalorder %s250, 1
                  %s255 = sphi %s199, %s199
                  %s256 = sphi %s194, %s194
                $region46: #{bert_classifier_forward.13} parent=42 // loop_header_branch
                  %253 = sbr.rel (%p251) target = $region50
                $region47: #{bert_classifier_forward.13} parent=42 // loop_body
                  _
                $region48: #{bert_classifier_forward.13} parent=42 // loop_footer
                  %s254 = sadd.s32 1, %s250
                $region49: #{bert_classifier_forward.13} parent=42 // loop_footer_branch
                  %249 = sbr.rel target = $region45
                $region50: #{bert_classifier_forward.13} parent=42 // loop_exit
                  _
                loop: start=0, step=1, limit=1
                $region51: #{bert_classifier_forward.13} parent=42 // loop_pre_header
                  _
                $region52: #{bert_classifier_forward.13} parent=42 // loop_header
                  %s259 = sphi 0, %s263
                  %p260 = scmp.ge.s32.totalorder %s259, 1
                  %s264 = sphi %s199, %s199
                  %s265 = sphi %s194, %s194
                $region53: #{bert_classifier_forward.13} parent=42 // loop_header_branch
                  %262 = sbr.rel (%p260) target = $region57
                $region54: #{bert_classifier_forward.13} parent=42 // loop_body
                  %v266 = vld [vmem:[%s264] sm:$0xf]
                  %267 = vst [vmem:[%s265] sm:$0xf] %v266
                  %v268 = vld [vmem:[%s264 + $0xc] sm:$0xf]
                  %269 = vst [vmem:[%s265 + $0x4] sm:$0xf] %v268
                  %v270 = vld [vmem:[%s264 + $0x18] sm:$0xf]
                  %271 = vst [vmem:[%s265 + $0x8] sm:$0xf] %v270
                  %v272 = vld [vmem:[%s264 + $0x24] sm:$0xf]
                  %273 = vst [vmem:[%s265 + $0xc] sm:$0xf] %v272
                  %v274 = vld [vmem:[%s264 + $0x30] sm:$0xf]
                  %275 = vst [vmem:[%s265 + $0x10] sm:$0xf] %v274
                  %v276 = vld [vmem:[%s264 + $0x3c] sm:$0xf]
                  %277 = vst [vmem:[%s265 + $0x14] sm:$0xf] %v276
                  %v278 = vld [vmem:[%s264 + $0x48] sm:$0xf]
                  %279 = vst [vmem:[%s265 + $0x18] sm:$0xf] %v278
                  %v280 = vld [vmem:[%s264 + $0x54] sm:$0xf]
                  %281 = vst [vmem:[%s265 + $0x1c] sm:$0xf] %v280
                  %v282 = vld [vmem:[%s264 + $0x60] sm:$0xf]
                  %283 = vst [vmem:[%s265 + $0x20] sm:$0xf] %v282
                  %v284 = vld [vmem:[%s264 + $0x6c] sm:$0xf]
                  %285 = vst [vmem:[%s265 + $0x24] sm:$0xf] %v284
                  %v286 = vld [vmem:[%s264 + $0x78] sm:$0xf]
                  %287 = vst [vmem:[%s265 + $0x28] sm:$0xf] %v286
                  %v288 = vld [vmem:[%s264 + $0x84] sm:$0xf]
                  %289 = vst [vmem:[%s265 + $0x2c] sm:$0xf] %v288
                  %v290 = vld [vmem:[%s264 + $0x90] sm:$0xf]
                  %291 = vst [vmem:[%s265 + $0x30] sm:$0xf] %v290
                  %v292 = vld [vmem:[%s264 + $0x9c] sm:$0xf]
                  %293 = vst [vmem:[%s265 + $0x34] sm:$0xf] %v292
                  %v294 = vld [vmem:[%s264 + $0xa8] sm:$0xf]
                  %295 = vst [vmem:[%s265 + $0x38] sm:$0xf] %v294
                  %v296 = vld [vmem:[%s264 + $0xb4] sm:$0xf]
                  %297 = vst [vmem:[%s265 + $0x3c] sm:$0xf] %v296
                $region55: #{bert_classifier_forward.13} parent=42 // loop_footer
                  %s263 = sadd.s32 1, %s259
                $region56: #{bert_classifier_forward.13} parent=42 // loop_footer_branch
                  %258 = sbr.rel target = $region52
                $region57: #{bert_classifier_forward.13} parent=42 // loop_exit
                  _
              $region43: #{bert_classifier_forward.13} parent=27 // pred_fallthru
                _
            $region28: #{bert_classifier_forward.13} parent=23 // pred_fallthru
              _
            // Predicated region
            $region29: #{bert_classifier_forward.13} parent=23 // pred_check
              _
            $region30: #{bert_classifier_forward.13} parent=23 // pred_check_branch
              %205 = sbr.rel (0) target = $region32
            $region31: #{bert_classifier_forward.13} parent=23 // pred_region
              loop: start=0, step=1, limit=1
              $region33: #{bert_classifier_forward.13} parent=31 // loop_pre_header
                _
              $region34: #{bert_classifier_forward.13} parent=31 // loop_header
                %s208 = sphi 0, %s212
                %p209 = scmp.ge.s32.totalorder %s208, 1
                %s213 = sphi %s199, %s199
                %s214 = sphi %s194, %s194
              $region35: #{bert_classifier_forward.13} parent=31 // loop_header_branch
                %211 = sbr.rel (%p209) target = $region39
              $region36: #{bert_classifier_forward.13} parent=31 // loop_body
                %v215 = vld [vmem:[%s213] sm:$0xf]
                %216 = vst [vmem:[%s214] sm:$0xf] %v215
                %v217 = vld [vmem:[%s213 + $0xc] sm:$0xf]
                %218 = vst [vmem:[%s214 + $0x4] sm:$0xf] %v217
                %v219 = vld [vmem:[%s213 + $0x18] sm:$0xf]
                %220 = vst [vmem:[%s214 + $0x8] sm:$0xf] %v219
                %v221 = vld [vmem:[%s213 + $0x24] sm:$0xf]
                %222 = vst [vmem:[%s214 + $0xc] sm:$0xf] %v221
                %v223 = vld [vmem:[%s213 + $0x30] sm:$0xf]
                %224 = vst [vmem:[%s214 + $0x10] sm:$0xf] %v223
                %v225 = vld [vmem:[%s213 + $0x3c] sm:$0xf]
                %226 = vst [vmem:[%s214 + $0x14] sm:$0xf] %v225
                %v227 = vld [vmem:[%s213 + $0x48] sm:$0xf]
                %228 = vst [vmem:[%s214 + $0x18] sm:$0xf] %v227
                %v229 = vld [vmem:[%s213 + $0x54] sm:$0xf]
                %230 = vst [vmem:[%s214 + $0x1c] sm:$0xf] %v229
                %v231 = vld [vmem:[%s213 + $0x60] sm:$0xf]
                %232 = vst [vmem:[%s214 + $0x20] sm:$0xf] %v231
                %v233 = vld [vmem:[%s213 + $0x6c] sm:$0xf]
                %234 = vst [vmem:[%s214 + $0x24] sm:$0xf] %v233
                %v235 = vld [vmem:[%s213 + $0x78] sm:$0xf]
                %236 = vst [vmem:[%s214 + $0x28] sm:$0xf] %v235
                %v237 = vld [vmem:[%s213 + $0x84] sm:$0xf]
                %238 = vst [vmem:[%s214 + $0x2c] sm:$0xf] %v237
                %v239 = vld [vmem:[%s213 + $0x90] sm:$0xf]
                %240 = vst [vmem:[%s214 + $0x30] sm:$0xf] %v239
                %v241 = vld [vmem:[%s213 + $0x9c] sm:$0xf]
                %242 = vst [vmem:[%s214 + $0x34] sm:$0xf] %v241
                %v243 = vld [vmem:[%s213 + $0xa8] sm:$0xf]
                %244 = vst [vmem:[%s214 + $0x38] sm:$0xf] %v243
                %v245 = vld [vmem:[%s213 + $0xb4] sm:$0xf]
                %246 = vst [vmem:[%s214 + $0x3c] sm:$0xf] %v245
              $region37: #{bert_classifier_forward.13} parent=31 // loop_footer
                %s212 = sadd.s32 1, %s208
              $region38: #{bert_classifier_forward.13} parent=31 // loop_footer_branch
                %207 = sbr.rel target = $region34
              $region39: #{bert_classifier_forward.13} parent=31 // loop_exit
                _
            $region32: #{bert_classifier_forward.13} parent=23 // pred_fallthru
              _
          $region24: #{bert_classifier_forward.13} parent=19 // pred_fallthru
            _
          %298 = vnop
        $region20: #{bert_classifier_forward.13} parent=15 // pred_fallthru
          _
        // Predicated region
        $region58: #{bert_classifier_forward.13} parent=15 // pred_check
          %p299 = pneg %p79
        $region59: #{bert_classifier_forward.13} parent=15 // pred_check_branch
          %301 = sbr.rel (%p299) target = $region61
        $region60: #{bert_classifier_forward.13} parent=15 // pred_region
          %s302 = sand.u32 %s69, 1
          %s303 = sand.u32 %s69, 1
          %s304 = smul.addr %s303, 64
          %s305 = scalar_lea.vmem [#allocation6], %s304
          %s306 = sadd.s32 %s17, %s19
          %s307 = smul.u32 16, %s306
          %s308 = smul.addr %s307, 3
          %s309 = sadd.s32 1, %s308
          %s310 = smul.addr %s309, 4
          %s311 = scalar_lea.vmem %s1, %s310
          // Predicated region
          $region62: #{bert_classifier_forward.13} parent=60 // pred_check
            _
          $region63: #{bert_classifier_forward.13} parent=60 // pred_check_branch
            %313 = sbr.rel (0) target = $region65
          $region64: #{bert_classifier_forward.13} parent=60 // pred_region
            // Predicated region
            $region66: #{bert_classifier_forward.13} parent=64 // pred_check
              _
            $region67: #{bert_classifier_forward.13} parent=64 // pred_check_branch
              %315 = sbr.rel target = $region69
            $region68: #{bert_classifier_forward.13} parent=64 // pred_region
              // Predicated region
              $region81: #{bert_classifier_forward.13} parent=68 // pred_check
                _
              $region82: #{bert_classifier_forward.13} parent=68 // pred_check_branch
                %360 = sbr.rel (0) target = $region84
              $region83: #{bert_classifier_forward.13} parent=68 // pred_region
                loop: start=0, step=1, limit=1
                $region85: #{bert_classifier_forward.13} parent=83 // loop_pre_header
                  _
                $region86: #{bert_classifier_forward.13} parent=83 // loop_header
                  %s362 = sphi 0, %s366
                  %p363 = scmp.ge.s32.totalorder %s362, 1
                  %s367 = sphi %s311, %s311
                  %s368 = sphi %s305, %s305
                $region87: #{bert_classifier_forward.13} parent=83 // loop_header_branch
                  %365 = sbr.rel (%p363) target = $region91
                $region88: #{bert_classifier_forward.13} parent=83 // loop_body
                  _
                $region89: #{bert_classifier_forward.13} parent=83 // loop_footer
                  %s366 = sadd.s32 1, %s362
                $region90: #{bert_classifier_forward.13} parent=83 // loop_footer_branch
                  %361 = sbr.rel target = $region86
                $region91: #{bert_classifier_forward.13} parent=83 // loop_exit
                  _
                loop: start=0, step=1, limit=1
                $region92: #{bert_classifier_forward.13} parent=83 // loop_pre_header
                  _
                $region93: #{bert_classifier_forward.13} parent=83 // loop_header
                  %s371 = sphi 0, %s375
                  %p372 = scmp.ge.s32.totalorder %s371, 1
                  %s376 = sphi %s311, %s311
                  %s377 = sphi %s305, %s305
                $region94: #{bert_classifier_forward.13} parent=83 // loop_header_branch
                  %374 = sbr.rel (%p372) target = $region98
                $region95: #{bert_classifier_forward.13} parent=83 // loop_body
                  %v378 = vld [vmem:[%s376] sm:$0xf]
                  %379 = vst [vmem:[%s377] sm:$0xf] %v378
                  %v380 = vld [vmem:[%s376 + $0xc] sm:$0xf]
                  %381 = vst [vmem:[%s377 + $0x4] sm:$0xf] %v380
                  %v382 = vld [vmem:[%s376 + $0x18] sm:$0xf]
                  %383 = vst [vmem:[%s377 + $0x8] sm:$0xf] %v382
                  %v384 = vld [vmem:[%s376 + $0x24] sm:$0xf]
                  %385 = vst [vmem:[%s377 + $0xc] sm:$0xf] %v384
                  %v386 = vld [vmem:[%s376 + $0x30] sm:$0xf]
                  %387 = vst [vmem:[%s377 + $0x10] sm:$0xf] %v386
                  %v388 = vld [vmem:[%s376 + $0x3c] sm:$0xf]
                  %389 = vst [vmem:[%s377 + $0x14] sm:$0xf] %v388
                  %v390 = vld [vmem:[%s376 + $0x48] sm:$0xf]
                  %391 = vst [vmem:[%s377 + $0x18] sm:$0xf] %v390
                  %v392 = vld [vmem:[%s376 + $0x54] sm:$0xf]
                  %393 = vst [vmem:[%s377 + $0x1c] sm:$0xf] %v392
                  %v394 = vld [vmem:[%s376 + $0x60] sm:$0xf]
                  %395 = vst [vmem:[%s377 + $0x20] sm:$0xf] %v394
                  %v396 = vld [vmem:[%s376 + $0x6c] sm:$0xf]
                  %397 = vst [vmem:[%s377 + $0x24] sm:$0xf] %v396
                  %v398 = vld [vmem:[%s376 + $0x78] sm:$0xf]
                  %399 = vst [vmem:[%s377 + $0x28] sm:$0xf] %v398
                  %v400 = vld [vmem:[%s376 + $0x84] sm:$0xf]
                  %401 = vst [vmem:[%s377 + $0x2c] sm:$0xf] %v400
                  %v402 = vld [vmem:[%s376 + $0x90] sm:$0xf]
                  %403 = vst [vmem:[%s377 + $0x30] sm:$0xf] %v402
                  %v404 = vld [vmem:[%s376 + $0x9c] sm:$0xf]
                  %405 = vst [vmem:[%s377 + $0x34] sm:$0xf] %v404
                  %v406 = vld [vmem:[%s376 + $0xa8] sm:$0xf]
                  %407 = vst [vmem:[%s377 + $0x38] sm:$0xf] %v406
                  %v408 = vld [vmem:[%s376 + $0xb4] sm:$0xf]
                  %409 = vst [vmem:[%s377 + $0x3c] sm:$0xf] %v408
                $region96: #{bert_classifier_forward.13} parent=83 // loop_footer
                  %s375 = sadd.s32 1, %s371
                $region97: #{bert_classifier_forward.13} parent=83 // loop_footer_branch
                  %370 = sbr.rel target = $region93
                $region98: #{bert_classifier_forward.13} parent=83 // loop_exit
                  _
              $region84: #{bert_classifier_forward.13} parent=68 // pred_fallthru
                _
            $region69: #{bert_classifier_forward.13} parent=64 // pred_fallthru
              _
            // Predicated region
            $region70: #{bert_classifier_forward.13} parent=64 // pred_check
              _
            $region71: #{bert_classifier_forward.13} parent=64 // pred_check_branch
              %317 = sbr.rel (0) target = $region73
            $region72: #{bert_classifier_forward.13} parent=64 // pred_region
              loop: start=0, step=1, limit=1
              $region74: #{bert_classifier_forward.13} parent=72 // loop_pre_header
                _
              $region75: #{bert_classifier_forward.13} parent=72 // loop_header
                %s320 = sphi 0, %s324
                %p321 = scmp.ge.s32.totalorder %s320, 1
                %s325 = sphi %s311, %s311
                %s326 = sphi %s305, %s305
              $region76: #{bert_classifier_forward.13} parent=72 // loop_header_branch
                %323 = sbr.rel (%p321) target = $region80
              $region77: #{bert_classifier_forward.13} parent=72 // loop_body
                %v327 = vld [vmem:[%s325] sm:$0xf]
                %328 = vst [vmem:[%s326] sm:$0xf] %v327
                %v329 = vld [vmem:[%s325 + $0xc] sm:$0xf]
                %330 = vst [vmem:[%s326 + $0x4] sm:$0xf] %v329
                %v331 = vld [vmem:[%s325 + $0x18] sm:$0xf]
                %332 = vst [vmem:[%s326 + $0x8] sm:$0xf] %v331
                %v333 = vld [vmem:[%s325 + $0x24] sm:$0xf]
                %334 = vst [vmem:[%s326 + $0xc] sm:$0xf] %v333
                %v335 = vld [vmem:[%s325 + $0x30] sm:$0xf]
                %336 = vst [vmem:[%s326 + $0x10] sm:$0xf] %v335
                %v337 = vld [vmem:[%s325 + $0x3c] sm:$0xf]
                %338 = vst [vmem:[%s326 + $0x14] sm:$0xf] %v337
                %v339 = vld [vmem:[%s325 + $0x48] sm:$0xf]
                %340 = vst [vmem:[%s326 + $0x18] sm:$0xf] %v339
                %v341 = vld [vmem:[%s325 + $0x54] sm:$0xf]
                %342 = vst [vmem:[%s326 + $0x1c] sm:$0xf] %v341
                %v343 = vld [vmem:[%s325 + $0x60] sm:$0xf]
                %344 = vst [vmem:[%s326 + $0x20] sm:$0xf] %v343
                %v345 = vld [vmem:[%s325 + $0x6c] sm:$0xf]
                %346 = vst [vmem:[%s326 + $0x24] sm:$0xf] %v345
                %v347 = vld [vmem:[%s325 + $0x78] sm:$0xf]
                %348 = vst [vmem:[%s326 + $0x28] sm:$0xf] %v347
                %v349 = vld [vmem:[%s325 + $0x84] sm:$0xf]
                %350 = vst [vmem:[%s326 + $0x2c] sm:$0xf] %v349
                %v351 = vld [vmem:[%s325 + $0x90] sm:$0xf]
                %352 = vst [vmem:[%s326 + $0x30] sm:$0xf] %v351
                %v353 = vld [vmem:[%s325 + $0x9c] sm:$0xf]
                %354 = vst [vmem:[%s326 + $0x34] sm:$0xf] %v353
                %v355 = vld [vmem:[%s325 + $0xa8] sm:$0xf]
                %356 = vst [vmem:[%s326 + $0x38] sm:$0xf] %v355
                %v357 = vld [vmem:[%s325 + $0xb4] sm:$0xf]
                %358 = vst [vmem:[%s326 + $0x3c] sm:$0xf] %v357
              $region78: #{bert_classifier_forward.13} parent=72 // loop_footer
                %s324 = sadd.s32 1, %s320
              $region79: #{bert_classifier_forward.13} parent=72 // loop_footer_branch
                %319 = sbr.rel target = $region75
              $region80: #{bert_classifier_forward.13} parent=72 // loop_exit
                _
            $region73: #{bert_classifier_forward.13} parent=64 // pred_fallthru
              _
          $region65: #{bert_classifier_forward.13} parent=60 // pred_fallthru
            _
          %410 = vnop
        $region61: #{bert_classifier_forward.13} parent=15 // pred_fallthru
          _
        // Predicated region
        $region99: #{bert_classifier_forward.13} parent=15 // pred_check
          %p411 = pneg %p107
        $region100: #{bert_classifier_forward.13} parent=15 // pred_check_branch
          %413 = sbr.rel (%p411) target = $region102
        $region101: #{bert_classifier_forward.13} parent=15 // pred_region
          %s414 = sand.u32 %s97, 1
          %s415 = sand.u32 %s97, 1
          %s416 = smul.addr %s415, 64
          %s417 = scalar_lea.vmem [#allocation7], %s416
          %s418 = sadd.s32 %s17, %s19
          %s419 = smul.u32 16, %s418
          %s420 = smul.addr %s419, 3
          %s421 = sadd.s32 2, %s420
          %s422 = smul.addr %s421, 4
          %s423 = scalar_lea.vmem %s2, %s422
          // Predicated region
          $region103: #{bert_classifier_forward.13} parent=101 // pred_check
            _
          $region104: #{bert_classifier_forward.13} parent=101 // pred_check_branch
            %425 = sbr.rel (0) target = $region106
          $region105: #{bert_classifier_forward.13} parent=101 // pred_region
            // Predicated region
            $region107: #{bert_classifier_forward.13} parent=105 // pred_check
              _
            $region108: #{bert_classifier_forward.13} parent=105 // pred_check_branch
              %427 = sbr.rel target = $region110
            $region109: #{bert_classifier_forward.13} parent=105 // pred_region
              // Predicated region
              $region122: #{bert_classifier_forward.13} parent=109 // pred_check
                _
              $region123: #{bert_classifier_forward.13} parent=109 // pred_check_branch
                %472 = sbr.rel (0) target = $region125
              $region124: #{bert_classifier_forward.13} parent=109 // pred_region
                loop: start=0, step=1, limit=1
                $region126: #{bert_classifier_forward.13} parent=124 // loop_pre_header
                  _
                $region127: #{bert_classifier_forward.13} parent=124 // loop_header
                  %s474 = sphi 0, %s478
                  %p475 = scmp.ge.s32.totalorder %s474, 1
                  %s479 = sphi %s423, %s423
                  %s480 = sphi %s417, %s417
                $region128: #{bert_classifier_forward.13} parent=124 // loop_header_branch
                  %477 = sbr.rel (%p475) target = $region132
                $region129: #{bert_classifier_forward.13} parent=124 // loop_body
                  _
                $region130: #{bert_classifier_forward.13} parent=124 // loop_footer
                  %s478 = sadd.s32 1, %s474
                $region131: #{bert_classifier_forward.13} parent=124 // loop_footer_branch
                  %473 = sbr.rel target = $region127
                $region132: #{bert_classifier_forward.13} parent=124 // loop_exit
                  _
                loop: start=0, step=1, limit=1
                $region133: #{bert_classifier_forward.13} parent=124 // loop_pre_header
                  _
                $region134: #{bert_classifier_forward.13} parent=124 // loop_header
                  %s483 = sphi 0, %s487
                  %p484 = scmp.ge.s32.totalorder %s483, 1
                  %s488 = sphi %s423, %s423
                  %s489 = sphi %s417, %s417
                $region135: #{bert_classifier_forward.13} parent=124 // loop_header_branch
                  %486 = sbr.rel (%p484) target = $region139
                $region136: #{bert_classifier_forward.13} parent=124 // loop_body
                  %v490 = vld [vmem:[%s488] sm:$0xf]
                  %491 = vst [vmem:[%s489] sm:$0xf] %v490
                  %v492 = vld [vmem:[%s488 + $0xc] sm:$0xf]
                  %493 = vst [vmem:[%s489 + $0x4] sm:$0xf] %v492
                  %v494 = vld [vmem:[%s488 + $0x18] sm:$0xf]
                  %495 = vst [vmem:[%s489 + $0x8] sm:$0xf] %v494
                  %v496 = vld [vmem:[%s488 + $0x24] sm:$0xf]
                  %497 = vst [vmem:[%s489 + $0xc] sm:$0xf] %v496
                  %v498 = vld [vmem:[%s488 + $0x30] sm:$0xf]
                  %499 = vst [vmem:[%s489 + $0x10] sm:$0xf] %v498
                  %v500 = vld [vmem:[%s488 + $0x3c] sm:$0xf]
                  %501 = vst [vmem:[%s489 + $0x14] sm:$0xf] %v500
                  %v502 = vld [vmem:[%s488 + $0x48] sm:$0xf]
                  %503 = vst [vmem:[%s489 + $0x18] sm:$0xf] %v502
                  %v504 = vld [vmem:[%s488 + $0x54] sm:$0xf]
                  %505 = vst [vmem:[%s489 + $0x1c] sm:$0xf] %v504
                  %v506 = vld [vmem:[%s488 + $0x60] sm:$0xf]
                  %507 = vst [vmem:[%s489 + $0x20] sm:$0xf] %v506
                  %v508 = vld [vmem:[%s488 + $0x6c] sm:$0xf]
                  %509 = vst [vmem:[%s489 + $0x24] sm:$0xf] %v508
                  %v510 = vld [vmem:[%s488 + $0x78] sm:$0xf]
                  %511 = vst [vmem:[%s489 + $0x28] sm:$0xf] %v510
                  %v512 = vld [vmem:[%s488 + $0x84] sm:$0xf]
                  %513 = vst [vmem:[%s489 + $0x2c] sm:$0xf] %v512
                  %v514 = vld [vmem:[%s488 + $0x90] sm:$0xf]
                  %515 = vst [vmem:[%s489 + $0x30] sm:$0xf] %v514
                  %v516 = vld [vmem:[%s488 + $0x9c] sm:$0xf]
                  %517 = vst [vmem:[%s489 + $0x34] sm:$0xf] %v516
                  %v518 = vld [vmem:[%s488 + $0xa8] sm:$0xf]
                  %519 = vst [vmem:[%s489 + $0x38] sm:$0xf] %v518
                  %v520 = vld [vmem:[%s488 + $0xb4] sm:$0xf]
                  %521 = vst [vmem:[%s489 + $0x3c] sm:$0xf] %v520
                $region137: #{bert_classifier_forward.13} parent=124 // loop_footer
                  %s487 = sadd.s32 1, %s483
                $region138: #{bert_classifier_forward.13} parent=124 // loop_footer_branch
                  %482 = sbr.rel target = $region134
                $region139: #{bert_classifier_forward.13} parent=124 // loop_exit
                  _
              $region125: #{bert_classifier_forward.13} parent=109 // pred_fallthru
                _
            $region110: #{bert_classifier_forward.13} parent=105 // pred_fallthru
              _
            // Predicated region
            $region111: #{bert_classifier_forward.13} parent=105 // pred_check
              _
            $region112: #{bert_classifier_forward.13} parent=105 // pred_check_branch
              %429 = sbr.rel (0) target = $region114
            $region113: #{bert_classifier_forward.13} parent=105 // pred_region
              loop: start=0, step=1, limit=1
              $region115: #{bert_classifier_forward.13} parent=113 // loop_pre_header
                _
              $region116: #{bert_classifier_forward.13} parent=113 // loop_header
                %s432 = sphi 0, %s436
                %p433 = scmp.ge.s32.totalorder %s432, 1
                %s437 = sphi %s423, %s423
                %s438 = sphi %s417, %s417
              $region117: #{bert_classifier_forward.13} parent=113 // loop_header_branch
                %435 = sbr.rel (%p433) target = $region121
              $region118: #{bert_classifier_forward.13} parent=113 // loop_body
                %v439 = vld [vmem:[%s437] sm:$0xf]
                %440 = vst [vmem:[%s438] sm:$0xf] %v439
                %v441 = vld [vmem:[%s437 + $0xc] sm:$0xf]
                %442 = vst [vmem:[%s438 + $0x4] sm:$0xf] %v441
                %v443 = vld [vmem:[%s437 + $0x18] sm:$0xf]
                %444 = vst [vmem:[%s438 + $0x8] sm:$0xf] %v443
                %v445 = vld [vmem:[%s437 + $0x24] sm:$0xf]
                %446 = vst [vmem:[%s438 + $0xc] sm:$0xf] %v445
                %v447 = vld [vmem:[%s437 + $0x30] sm:$0xf]
                %448 = vst [vmem:[%s438 + $0x10] sm:$0xf] %v447
                %v449 = vld [vmem:[%s437 + $0x3c] sm:$0xf]
                %450 = vst [vmem:[%s438 + $0x14] sm:$0xf] %v449
                %v451 = vld [vmem:[%s437 + $0x48] sm:$0xf]
                %452 = vst [vmem:[%s438 + $0x18] sm:$0xf] %v451
                %v453 = vld [vmem:[%s437 + $0x54] sm:$0xf]
                %454 = vst [vmem:[%s438 + $0x1c] sm:$0xf] %v453
                %v455 = vld [vmem:[%s437 + $0x60] sm:$0xf]
                %456 = vst [vmem:[%s438 + $0x20] sm:$0xf] %v455
                %v457 = vld [vmem:[%s437 + $0x6c] sm:$0xf]
                %458 = vst [vmem:[%s438 + $0x24] sm:$0xf] %v457
                %v459 = vld [vmem:[%s437 + $0x78] sm:$0xf]
                %460 = vst [vmem:[%s438 + $0x28] sm:$0xf] %v459
                %v461 = vld [vmem:[%s437 + $0x84] sm:$0xf]
                %462 = vst [vmem:[%s438 + $0x2c] sm:$0xf] %v461
                %v463 = vld [vmem:[%s437 + $0x90] sm:$0xf]
                %464 = vst [vmem:[%s438 + $0x30] sm:$0xf] %v463
                %v465 = vld [vmem:[%s437 + $0x9c] sm:$0xf]
                %466 = vst [vmem:[%s438 + $0x34] sm:$0xf] %v465
                %v467 = vld [vmem:[%s437 + $0xa8] sm:$0xf]
                %468 = vst [vmem:[%s438 + $0x38] sm:$0xf] %v467
                %v469 = vld [vmem:[%s437 + $0xb4] sm:$0xf]
                %470 = vst [vmem:[%s438 + $0x3c] sm:$0xf] %v469
              $region119: #{bert_classifier_forward.13} parent=113 // loop_footer
                %s436 = sadd.s32 1, %s432
              $region120: #{bert_classifier_forward.13} parent=113 // loop_footer_branch
                %431 = sbr.rel target = $region116
              $region121: #{bert_classifier_forward.13} parent=113 // loop_exit
                _
            $region114: #{bert_classifier_forward.13} parent=105 // pred_fallthru
              _
          $region106: #{bert_classifier_forward.13} parent=101 // pred_fallthru
            _
          %522 = vnop
        $region102: #{bert_classifier_forward.13} parent=15 // pred_fallthru
          _
        // Predicated region
        $region140: #{bert_classifier_forward.13} parent=15 // pred_check
          %p523 = pneg %p135
        $region141: #{bert_classifier_forward.13} parent=15 // pred_check_branch
          %525 = sbr.rel (%p523) target = $region143
        $region142: #{bert_classifier_forward.13} parent=15 // pred_region
          %p526 = scmp.lt.s32.totalorder %s17, 1
          %s527 = scalar_select %p526, %s17, 1
          %p528 = scmp.lt.s32.totalorder %s19, 0
          %s529 = scalar_select %p528, %s19, 0
          %s530 = sadd.s32 %s529, %s527
          %s531 = scalar_lea.vmem %s3, %s530
        $region143: #{bert_classifier_forward.13} parent=15 // pred_fallthru
          _
      $region16: #{bert_classifier_forward.13} parent=5 // pred_fallthru
        _
      %p532 = scmp.le.s32.totalorder 1, %s10
      %p533 = scmp.lt.s32.totalorder %s10, 3
      %p534 = pnand %p532, %p533
      %p535 = pneg %p534
      // Predicated region
      $region144: #{bert_classifier_forward.13} parent=5 // pred_check
        _
      $region145: #{bert_classifier_forward.13} parent=5 // pred_check_branch
        %537 = sbr.rel (%p534) target = $region147
      $region146: #{bert_classifier_forward.13} parent=5 // pred_region
        %s538 = ssub.s32 %s10, 1
        %s539 = sand.u32 %s44, 1
        %s540 = sand.u32 %s44, 1
        %s541 = smul.addr %s540, 64
        %s542 = scalar_lea.vmem [#allocation5], %s541
        // Predicated region
        $region148: #{bert_classifier_forward.13} parent=146 // pred_check
          %p543 = pneg %p57
        $region149: #{bert_classifier_forward.13} parent=146 // pred_check_branch
          %545 = sbr.rel (%p543) target = $region151
        $region150: #{bert_classifier_forward.13} parent=146 // pred_region
          _
        $region151: #{bert_classifier_forward.13} parent=146 // pred_fallthru
          _
        %s546 = sand.u32 %s72, 1
        %s547 = sand.u32 %s72, 1
        %s548 = smul.addr %s547, 64
        %s549 = scalar_lea.vmem [#allocation6], %s548
        // Predicated region
        $region152: #{bert_classifier_forward.13} parent=146 // pred_check
          %p550 = pneg %p85
        $region153: #{bert_classifier_forward.13} parent=146 // pred_check_branch
          %552 = sbr.rel (%p550) target = $region155
        $region154: #{bert_classifier_forward.13} parent=146 // pred_region
          _
        $region155: #{bert_classifier_forward.13} parent=146 // pred_fallthru
          _
        %s553 = sand.u32 %s100, 1
        %s554 = sand.u32 %s100, 1
        %s555 = smul.addr %s554, 64
        %s556 = scalar_lea.vmem [#allocation7], %s555
        // Predicated region
        $region156: #{bert_classifier_forward.13} parent=146 // pred_check
          %p557 = pneg %p113
        $region157: #{bert_classifier_forward.13} parent=146 // pred_check_branch
          %559 = sbr.rel (%p557) target = $region159
        $region158: #{bert_classifier_forward.13} parent=146 // pred_region
          _
        $region159: #{bert_classifier_forward.13} parent=146 // pred_fallthru
          _
        %s560 = sand.u32 %s44, 1
        %s561 = sand.u32 %s44, 1
        %s562 = smul.addr %s561, 64
        %s563 = scalar_lea.vmem [#allocation5], %s562
        %p564 = pneg %p57
        %p565 = pneg %p54
        %s566 = sand.u32 %s72, 1
        %s567 = sand.u32 %s72, 1
        %s568 = smul.addr %s567, 64
        %s569 = scalar_lea.vmem [#allocation6], %s568
        %p570 = pneg %p85
        %p571 = pneg %p82
        %s572 = sand.u32 %s100, 1
        %s573 = sand.u32 %s100, 1
        %s574 = smul.addr %s573, 64
        %s575 = scalar_lea.vmem [#allocation7], %s574
        %p576 = pneg %p113
        %p577 = pneg %p110
        %p578 = scmp.lt.s32.totalorder %s20, 1
        %s579 = scalar_select %p578, %s20, 1
        %p580 = scmp.lt.s32.totalorder %s22, 0
        %s581 = scalar_select %p580, %s22, 0
        %s582 = sadd.s32 %s581, %s579
        %s583 = scalar_lea.vmem %s3, %s582
        %p584 = pneg %p141
        %p585 = pneg %p138
        %p586 = pneg %p169
        %p587 = pneg %p166
        %s588 = sadd.s32 %s20, %s21
        %s589 = smul.u32 16, %s588
        %p590 = scmp.lt.s32.totalorder %s589, 31
        %s591 = scalar_select %p590, %s589, 31
        %s592 = smul.addr %s591, 4
        %s593 = scalar_lea.vmem %s4, %s592
        %s594 = sadd.s32 %s20, %s21
        %s595 = smul.u32 16, %s594
        %s596 = sadd.s32 %s20, %s22
        %s597 = smul.u32 16, %s596
        %s598 = sadd.s32 %s20, %s22
        %s599 = smul.u32 16, %s598
        %p600 = scmp.lt.s32.totalorder %s20, 1
        %s601 = scalar_select %p600, %s20, 1
        %p602 = scmp.lt.s32.totalorder %s22, 0
        %s603 = scalar_select %p602, %s22, 0
        %s604 = sadd.s32 %s603, %s601
        %s605 = scalar_lea.vmem %s3, %s604
        %s606 = sadd.s32 %s20, %s21
        %s607 = smul.u32 16, %s606
        %p608 = scmp.lt.s32.totalorder %s607, 31
        %s609 = scalar_select %p608, %s607, 31
        %s610 = smul.addr %s609, 4
        %s611 = scalar_lea.vmem %s4, %s610
        %s612 = sadd.s32 %s20, %s21
        %s613 = smul.u32 16, %s612
        %p615 = scmp.eq.s32.totalorder %s22, 0
        // Predicated region
        $region160: #{bert_classifier_forward.13} parent=146 // pred_check
          %p616 = pneg %p615
        $region161: #{bert_classifier_forward.13} parent=146 // pred_check_branch
          %618 = sbr.rel (%p616) target = $region163
        $region162: #{bert_classifier_forward.13} parent=146 // pred_region
          %vm619 = vcmask 15360
          %620 = vst.msk [vmem:[#allocation2] sm:$0xff] %vm619, -inf
          %621 = vst.msk [vmem:[#allocation2 + $0x8] sm:$0xff] %vm619, -inf
          %622 = vst.msk [vmem:[#allocation2 + $0x10] sm:$0xff] %vm619, -inf
          %623 = vst.msk [vmem:[#allocation2 + $0x18] sm:$0xff] %vm619, -inf
          %624 = vst.msk [vmem:[#allocation2 + $0x20] sm:$0xff] %vm619, -inf
          %625 = vst.msk [vmem:[#allocation2 + $0x28] sm:$0xff] %vm619, -inf
          %626 = vst.msk [vmem:[#allocation2 + $0x30] sm:$0xff] %vm619, -inf
          %627 = vst.msk [vmem:[#allocation2 + $0x38] sm:$0xff] %vm619, -inf
          %628 = vst.msk [vmem:[#allocation2 + $0x40] sm:$0xff] %vm619, -inf
          %629 = vst.msk [vmem:[#allocation2 + $0x48] sm:$0xff] %vm619, -inf
          %630 = vst.msk [vmem:[#allocation2 + $0x50] sm:$0xff] %vm619, -inf
          %631 = vst.msk [vmem:[#allocation2 + $0x58] sm:$0xff] %vm619, -inf
          %632 = vst.msk [vmem:[#allocation2 + $0x60] sm:$0xff] %vm619, -inf
          %633 = vst.msk [vmem:[#allocation2 + $0x68] sm:$0xff] %vm619, -inf
          %634 = vst.msk [vmem:[#allocation2 + $0x70] sm:$0xff] %vm619, -inf
          %635 = vst.msk [vmem:[#allocation2 + $0x78] sm:$0xff] %vm619, -inf
          %636 = vst.msk [vmem:[#allocation3] sm:$0xff] %vm619, 0.0
          %637 = vst.msk [vmem:[#allocation3 + $0x8] sm:$0xff] %vm619, 0.0
          %638 = vst.msk [vmem:[#allocation3 + $0x10] sm:$0xff] %vm619, 0.0
          %639 = vst.msk [vmem:[#allocation3 + $0x18] sm:$0xff] %vm619, 0.0
          %640 = vst.msk [vmem:[#allocation3 + $0x20] sm:$0xff] %vm619, 0.0
          %641 = vst.msk [vmem:[#allocation3 + $0x28] sm:$0xff] %vm619, 0.0
          %642 = vst.msk [vmem:[#allocation3 + $0x30] sm:$0xff] %vm619, 0.0
          %643 = vst.msk [vmem:[#allocation3 + $0x38] sm:$0xff] %vm619, 0.0
          %644 = vst.msk [vmem:[#allocation3 + $0x40] sm:$0xff] %vm619, 0.0
          %645 = vst.msk [vmem:[#allocation3 + $0x48] sm:$0xff] %vm619, 0.0
          %646 = vst.msk [vmem:[#allocation3 + $0x50] sm:$0xff] %vm619, 0.0
          %647 = vst.msk [vmem:[#allocation3 + $0x58] sm:$0xff] %vm619, 0.0
          %648 = vst.msk [vmem:[#allocation3 + $0x60] sm:$0xff] %vm619, 0.0
          %649 = vst.msk [vmem:[#allocation3 + $0x68] sm:$0xff] %vm619, 0.0
          %650 = vst.msk [vmem:[#allocation3 + $0x70] sm:$0xff] %vm619, 0.0
          %651 = vst.msk [vmem:[#allocation3 + $0x78] sm:$0xff] %vm619, 0.0
          %652 = vst [vmem:[#allocation4] sm:$0xff] 0.0
          %653 = vst [vmem:[#allocation4 + $0x8] sm:$0xff] 0.0
          %654 = vst [vmem:[#allocation4 + $0x10] sm:$0xff] 0.0
          %655 = vst [vmem:[#allocation4 + $0x18] sm:$0xff] 0.0
          %656 = vst [vmem:[#allocation4 + $0x20] sm:$0xff] 0.0
          %657 = vst [vmem:[#allocation4 + $0x28] sm:$0xff] 0.0
          %658 = vst [vmem:[#allocation4 + $0x30] sm:$0xff] 0.0
          %659 = vst [vmem:[#allocation4 + $0x38] sm:$0xff] 0.0
          %660 = vst [vmem:[#allocation4 + $0x40] sm:$0xff] 0.0
          %661 = vst [vmem:[#allocation4 + $0x48] sm:$0xff] 0.0
          %662 = vst [vmem:[#allocation4 + $0x50] sm:$0xff] 0.0
          %663 = vst [vmem:[#allocation4 + $0x58] sm:$0xff] 0.0
          %664 = vst [vmem:[#allocation4 + $0x60] sm:$0xff] 0.0
          %665 = vst [vmem:[#allocation4 + $0x68] sm:$0xff] 0.0
          %666 = vst [vmem:[#allocation4 + $0x70] sm:$0xff] 0.0
          %667 = vst [vmem:[#allocation4 + $0x78] sm:$0xff] 0.0
        $region163: #{bert_classifier_forward.13} parent=146 // pred_fallthru
          _
        %v668 = vld [vmem:[%s605] sm:$0x1]
        %v669 = vld [vmem:[%s542] sm:$0xf]
        %v670 = vld [vmem:[%s542 + $0x4] sm:$0xf]
        %v671 = vld [vmem:[%s542 + $0x8] sm:$0xf]
        %v672 = vld [vmem:[%s542 + $0xc] sm:$0xf]
        %v673 = vld [vmem:[%s542 + $0x10] sm:$0xf]
        %v674 = vld [vmem:[%s542 + $0x14] sm:$0xf]
        %v675 = vld [vmem:[%s542 + $0x18] sm:$0xf]
        %v676 = vld [vmem:[%s542 + $0x1c] sm:$0xf]
        %v677 = vld [vmem:[%s542 + $0x20] sm:$0xf]
        %v678 = vld [vmem:[%s542 + $0x24] sm:$0xf]
        %v679 = vld [vmem:[%s542 + $0x28] sm:$0xf]
        %v680 = vld [vmem:[%s542 + $0x2c] sm:$0xf]
        %v681 = vld [vmem:[%s542 + $0x30] sm:$0xf]
        %v682 = vld [vmem:[%s542 + $0x34] sm:$0xf]
        %v683 = vld [vmem:[%s542 + $0x38] sm:$0xf]
        %v684 = vld [vmem:[%s542 + $0x3c] sm:$0xf]
        %v685 = vld [vmem:[%s549] sm:$0xf]
        %v686 = vld [vmem:[%s549 + $0x4] sm:$0xf]
        %v687 = vld [vmem:[%s549 + $0x8] sm:$0xf]
        %v688 = vld [vmem:[%s549 + $0xc] sm:$0xf]
        %v689 = vld [vmem:[%s549 + $0x10] sm:$0xf]
        %v690 = vld [vmem:[%s549 + $0x14] sm:$0xf]
        %v691 = vld [vmem:[%s549 + $0x18] sm:$0xf]
        %v692 = vld [vmem:[%s549 + $0x1c] sm:$0xf]
        %v693 = vld [vmem:[%s549 + $0x20] sm:$0xf]
        %v694 = vld [vmem:[%s549 + $0x24] sm:$0xf]
        %v695 = vld [vmem:[%s549 + $0x28] sm:$0xf]
        %v696 = vld [vmem:[%s549 + $0x2c] sm:$0xf]
        %v697 = vld [vmem:[%s549 + $0x30] sm:$0xf]
        %v698 = vld [vmem:[%s549 + $0x34] sm:$0xf]
        %v699 = vld [vmem:[%s549 + $0x38] sm:$0xf]
        %v700 = vld [vmem:[%s549 + $0x3c] sm:$0xf]
        %v717 = vunpack.c.l.b16 %v669
        %v718 = vunpack.c.l.b16 %v670
        %v719 = vunpack.c.l.b16 %v671
        %v720 = vunpack.c.l.b16 %v672
        %v721 = vunpack.c.l.b16 %v673
        %v722 = vunpack.c.l.b16 %v674
        %v723 = vunpack.c.l.b16 %v675
        %v724 = vunpack.c.l.b16 %v676
        %v725 = vunpack.c.l.b16 %v677
        %v726 = vunpack.c.l.b16 %v678
        %v727 = vunpack.c.l.b16 %v679
        %v728 = vunpack.c.l.b16 %v680
        %v729 = vunpack.c.l.b16 %v681
        %v730 = vunpack.c.l.b16 %v682
        %v731 = vunpack.c.l.b16 %v683
        %v732 = vunpack.c.l.b16 %v684
        %v733 = vpack.c.b16 %v718, %v717
        %v734 = vpack.c.b16 %v720, %v719
        %v735 = vpack.c.b16 %v722, %v721
        %v736 = vpack.c.b16 %v724, %v723
        %v737 = vpack.c.b16 %v726, %v725
        %v738 = vpack.c.b16 %v728, %v727
        %v739 = vpack.c.b16 %v730, %v729
        %v740 = vpack.c.b16 %v732, %v731
        %v757 = vunpack.c.l.b16 %v685
        %v758 = vunpack.c.l.b16 %v686
        %v759 = vunpack.c.l.b16 %v687
        %v760 = vunpack.c.l.b16 %v688
        %v761 = vunpack.c.l.b16 %v689
        %v762 = vunpack.c.l.b16 %v690
        %v763 = vunpack.c.l.b16 %v691
        %v764 = vunpack.c.l.b16 %v692
        %v765 = vunpack.c.l.b16 %v693
        %v766 = vunpack.c.l.b16 %v694
        %v767 = vunpack.c.l.b16 %v695
        %v768 = vunpack.c.l.b16 %v696
        %v769 = vunpack.c.l.b16 %v697
        %v770 = vunpack.c.l.b16 %v698
        %v771 = vunpack.c.l.b16 %v699
        %v772 = vunpack.c.l.b16 %v700
        %v773 = vpack.c.b16 %v758, %v757
        %v774 = vpack.c.b16 %v760, %v759
        %v775 = vpack.c.b16 %v762, %v761
        %v776 = vpack.c.b16 %v764, %v763
        %v777 = vpack.c.b16 %v766, %v765
        %v778 = vpack.c.b16 %v768, %v767
        %v779 = vpack.c.b16 %v770, %v769
        %v780 = vpack.c.b16 %v772, %v771
        %vm781 = vcmask 523264
        %v783 = vsel %vm781, %v733, 0
        %v786 = vsel %vm781, %v734, 0
        %v789 = vsel %vm781, %v735, 0
        %v792 = vsel %vm781, %v736, 0
        %v795 = vsel %vm781, %v737, 0
        %v798 = vsel %vm781, %v738, 0
        %v801 = vsel %vm781, %v739, 0
        %v804 = vsel %vm781, %v740, 0
        %v807 = vsel %vm781, %v773, 0
        %v810 = vsel %vm781, %v774, 0
        %v813 = vsel %vm781, %v775, 0
        %v816 = vsel %vm781, %v776, 0
        %v819 = vsel %vm781, %v777, 0
        %v822 = vsel %vm781, %v778, 0
        %v825 = vsel %vm781, %v779, 0
        %v828 = vsel %vm781, %v780, 0
        %830 = vmatprep.subr.bf16.mxu0 0
        %831 = vmatpush1.bf16.xpose.msra.mxu0 %v807
        %832 = vmatprep.subr.bf16.mxu0 0
        %833 = vmatpush1.bf16.xpose.msra.mxu0 %v810
        %834 = vmatprep.subr.bf16.mxu0 0
        %835 = vmatpush1.bf16.xpose.msra.mxu0 %v813
        %836 = vmatprep.subr.bf16.mxu0 0
        %837 = vmatpush1.bf16.xpose.msra.mxu0 %v816
        %838 = vmatprep.subr.bf16.mxu0 0
        %839 = vmatpush1.bf16.xpose.msra.mxu0 %v819
        %840 = vmatprep.subr.bf16.mxu0 0
        %841 = vmatpush1.bf16.xpose.msra.mxu0 %v822
        %842 = vmatprep.subr.bf16.mxu0 0
        %843 = vmatpush1.bf16.xpose.msra.mxu0 %v825
        %844 = vmatprep.subr.bf16.mxu0 0
        %845 = vmatpush1.bf16.xpose.msra.mxu0 %v828
        %846 = vmatprep.subr.bf16.mxu0 0
        %847 = vmatpush1.bf16.xpose.msra.mxu0 0
        %848 = vmatprep.subr.bf16.mxu0 0
        %849 = vmatpush1.bf16.xpose.msra.mxu0 0
        %850 = vmatprep.subr.bf16.mxu0 0
        %851 = vmatpush1.bf16.xpose.msra.mxu0 0
        %852 = vmatprep.subr.bf16.mxu0 0
        %853 = vmatpush1.bf16.xpose.msra.mxu0 0
        %854 = vmatprep.subr.bf16.mxu0 0
        %855 = vmatpush1.bf16.xpose.msra.mxu0 0
        %856 = vmatprep.subr.bf16.mxu0 0
        %857 = vmatpush1.bf16.xpose.msra.mxu0 0
        %858 = vmatprep.subr.bf16.mxu0 0
        %859 = vmatpush1.bf16.xpose.msra.mxu0 0
        %860 = vmatprep.subr.bf16.mxu0 0
        %861 = vmatpush1.bf16.xpose.msra.mxu0 0
        %862 = vmatprep.mubr.bf16.mxu0 0
        %863 = vmatmul.mubr.bf16.gmra.mrb[0].mxu0 %v783
        %v864 = vpop.f32.mrb[0].mxu0
        %v865 = vadd.f32 0.0, %v864
        %v866 = vpop.f32.mrb[0].mxu0
        %v867 = vpop.f32.mrb[0].mxu0
        %v868 = vadd.f32 0.0, %v867
        %v869 = vpop.f32.mrb[0].mxu0
        %870 = vmatprep.mubr.bf16.mxu0 0
        %871 = vmatmul.mubr.bf16.gmra.mrb[0].mxu0 %v786
        %v872 = vpop.f32.mrb[0].mxu0
        %v873 = vadd.f32 0.0, %v872
        %v874 = vpop.f32.mrb[0].mxu0
        %v875 = vpop.f32.mrb[0].mxu0
        %v876 = vadd.f32 0.0, %v875
        %v877 = vpop.f32.mrb[0].mxu0
        %878 = vmatprep.mubr.bf16.mxu0 0
        %879 = vmatmul.mubr.bf16.gmra.mrb[0].mxu0 %v789
        %v880 = vpop.f32.mrb[0].mxu0
        %v881 = vadd.f32 0.0, %v880
        %v882 = vpop.f32.mrb[0].mxu0
        %v883 = vpop.f32.mrb[0].mxu0
        %v884 = vadd.f32 0.0, %v883
        %v885 = vpop.f32.mrb[0].mxu0
        %886 = vmatprep.mubr.bf16.mxu0 0
        %887 = vmatmul.mubr.bf16.gmra.mrb[0].mxu0 %v792
        %v888 = vpop.f32.mrb[0].mxu0
        %v889 = vadd.f32 0.0, %v888
        %v890 = vpop.f32.mrb[0].mxu0
        %v891 = vpop.f32.mrb[0].mxu0
        %v892 = vadd.f32 0.0, %v891
        %v893 = vpop.f32.mrb[0].mxu0
        %894 = vmatprep.mubr.bf16.mxu0 0
        %895 = vmatmul.mubr.bf16.gmra.mrb[0].mxu0 %v795
        %v896 = vpop.f32.mrb[0].mxu0
        %v897 = vadd.f32 0.0, %v896
        %v898 = vpop.f32.mrb[0].mxu0
        %v899 = vpop.f32.mrb[0].mxu0
        %v900 = vadd.f32 0.0, %v899
        %v901 = vpop.f32.mrb[0].mxu0
        %902 = vmatprep.mubr.bf16.mxu0 0
        %903 = vmatmul.mubr.bf16.gmra.mrb[0].mxu0 %v798
        %v904 = vpop.f32.mrb[0].mxu0
        %v905 = vadd.f32 0.0, %v904
        %v906 = vpop.f32.mrb[0].mxu0
        %v907 = vpop.f32.mrb[0].mxu0
        %v908 = vadd.f32 0.0, %v907
        %v909 = vpop.f32.mrb[0].mxu0
        %910 = vmatprep.mubr.bf16.mxu0 0
        %911 = vmatmul.mubr.bf16.gmra.mrb[0].mxu0 %v801
        %v912 = vpop.f32.mrb[0].mxu0
        %v913 = vadd.f32 0.0, %v912
        %v914 = vpop.f32.mrb[0].mxu0
        %v915 = vpop.f32.mrb[0].mxu0
        %v916 = vadd.f32 0.0, %v915
        %v917 = vpop.f32.mrb[0].mxu0
        %918 = vmatprep.mubr.bf16.mxu0 0
        %919 = vmatmul.mubr.bf16.gmra.mrb[0].mxu0 %v804
        %v920 = vpop.f32.mrb[0].mxu0
        %v921 = vadd.f32 0.0, %v920
        %v922 = vpop.f32.mrb[0].mxu0
        %v923 = vpop.f32.mrb[0].mxu0
        %v924 = vadd.f32 0.0, %v923
        %v925 = vpop.f32.mrb[0].mxu0
        %926 = vdwg.mxu0
        %v927 = vmul.f32 %v865, 0.125
        %v928 = vmul.f32 %v868, 0.125
        %v929 = vmul.f32 %v873, 0.125
        %v930 = vmul.f32 %v876, 0.125
        %v931 = vmul.f32 %v881, 0.125
        %v932 = vmul.f32 %v884, 0.125
        %v933 = vmul.f32 %v889, 0.125
        %v934 = vmul.f32 %v892, 0.125
        %v935 = vmul.f32 %v897, 0.125
        %v936 = vmul.f32 %v900, 0.125
        %v937 = vmul.f32 %v905, 0.125
        %v938 = vmul.f32 %v908, 0.125
        %v939 = vmul.f32 %v913, 0.125
        %v940 = vmul.f32 %v916, 0.125
        %v941 = vmul.f32 %v921, 0.125
        %v942 = vmul.f32 %v924, 0.125
        %v944 = vlaneseq
        %v945 = vshrl.u32 %v944, 7
        %v946 = vsub.s32 0, %v945
        %v947 = vrot.slane %v668, %v946
        %v949 = vadd.f32 %v927, %v947
        %v950 = vadd.f32 %v928, %v947
        %v951 = vadd.f32 %v929, %v947
        %v952 = vadd.f32 %v930, %v947
        %v953 = vadd.f32 %v931, %v947
        %v954 = vadd.f32 %v932, %v947
        %v955 = vadd.f32 %v933, %v947
        %v956 = vadd.f32 %v934, %v947
        %v957 = vadd.f32 %v935, %v947
        %v958 = vadd.f32 %v936, %v947
        %v959 = vadd.f32 %v937, %v947
        %v960 = vadd.f32 %v938, %v947
        %v961 = vadd.f32 %v939, %v947
        %v962 = vadd.f32 %v940, %v947
        %v963 = vadd.f32 %v941, %v947
        %v964 = vadd.f32 %v942, %v947
        %v965 = vld [vmem:[#allocation2] sm:$0xff]
        %v966 = vld [vmem:[#allocation2 + $0x8] sm:$0xff]
        %v967 = vld [vmem:[#allocation2 + $0x10] sm:$0xff]
        %v968 = vld [vmem:[#allocation2 + $0x18] sm:$0xff]
        %v969 = vld [vmem:[#allocation2 + $0x20] sm:$0xff]
        %v970 = vld [vmem:[#allocation2 + $0x28] sm:$0xff]
        %v971 = vld [vmem:[#allocation2 + $0x30] sm:$0xff]
        %v972 = vld [vmem:[#allocation2 + $0x38] sm:$0xff]
        %v973 = vld [vmem:[#allocation2 + $0x40] sm:$0xff]
        %v974 = vld [vmem:[#allocation2 + $0x48] sm:$0xff]
        %v975 = vld [vmem:[#allocation2 + $0x50] sm:$0xff]
        %v976 = vld [vmem:[#allocation2 + $0x58] sm:$0xff]
        %v977 = vld [vmem:[#allocation2 + $0x60] sm:$0xff]
        %v978 = vld [vmem:[#allocation2 + $0x68] sm:$0xff]
        %v979 = vld [vmem:[#allocation2 + $0x70] sm:$0xff]
        %v980 = vld [vmem:[#allocation2 + $0x78] sm:$0xff]
        %981 = vmax.xlane.f32.xlu0 %v949
        %v982 = vpop.xlane.xlu0 %981
        %983 = vmax.xlane.f32.xlu0 %v950
        %v984 = vpop.xlane.xlu0 %983
        %985 = vmax.xlane.f32.xlu0 %v951
        %v986 = vpop.xlane.xlu0 %985
        %987 = vmax.xlane.f32.xlu0 %v952
        %v988 = vpop.xlane.xlu0 %987
        %989 = vmax.xlane.f32.xlu0 %v953
        %v990 = vpop.xlane.xlu0 %989
        %991 = vmax.xlane.f32.xlu0 %v954
        %v992 = vpop.xlane.xlu0 %991
        %993 = vmax.xlane.f32.xlu0 %v955
        %v994 = vpop.xlane.xlu0 %993
        %995 = vmax.xlane.f32.xlu0 %v956
        %v996 = vpop.xlane.xlu0 %995
        %997 = vmax.xlane.f32.xlu0 %v957
        %v998 = vpop.xlane.xlu0 %997
        %999 = vmax.xlane.f32.xlu0 %v958
        %v1000 = vpop.xlane.xlu0 %999
        %1001 = vmax.xlane.f32.xlu0 %v959
        %v1002 = vpop.xlane.xlu0 %1001
        %1003 = vmax.xlane.f32.xlu0 %v960
        %v1004 = vpop.xlane.xlu0 %1003
        %1005 = vmax.xlane.f32.xlu0 %v961
        %v1006 = vpop.xlane.xlu0 %1005
        %1007 = vmax.xlane.f32.xlu0 %v962
        %v1008 = vpop.xlane.xlu0 %1007
        %1009 = vmax.xlane.f32.xlu0 %v963
        %v1010 = vpop.xlane.xlu0 %1009
        %1011 = vmax.xlane.f32.xlu0 %v964
        %v1012 = vpop.xlane.xlu0 %1011
        %v1013 = vmax.f32 %v965, %v982
        %v1014 = vmax.f32 %v966, %v984
        %v1015 = vmax.f32 %v967, %v986
        %v1016 = vmax.f32 %v968, %v988
        %v1017 = vmax.f32 %v969, %v990
        %v1018 = vmax.f32 %v970, %v992
        %v1019 = vmax.f32 %v971, %v994
        %v1020 = vmax.f32 %v972, %v996
        %v1021 = vmax.f32 %v973, %v998
        %v1022 = vmax.f32 %v974, %v1000
        %v1023 = vmax.f32 %v975, %v1002
        %v1024 = vmax.f32 %v976, %v1004
        %v1025 = vmax.f32 %v977, %v1006
        %v1026 = vmax.f32 %v978, %v1008
        %v1027 = vmax.f32 %v979, %v1010
        %v1028 = vmax.f32 %v980, %v1012
        %v1029 = vsub.f32 %v965, %v1013
        %v1030 = vsub.f32 %v966, %v1014
        %v1031 = vsub.f32 %v967, %v1015
        %v1032 = vsub.f32 %v968, %v1016
        %v1033 = vsub.f32 %v969, %v1017
        %v1034 = vsub.f32 %v970, %v1018
        %v1035 = vsub.f32 %v971, %v1019
        %v1036 = vsub.f32 %v972, %v1020
        %v1037 = vsub.f32 %v973, %v1021
        %v1038 = vsub.f32 %v974, %v1022
        %v1039 = vsub.f32 %v975, %v1023
        %v1040 = vsub.f32 %v976, %v1024
        %v1041 = vsub.f32 %v977, %v1025
        %v1042 = vsub.f32 %v978, %v1026
        %v1043 = vsub.f32 %v979, %v1027
        %v1044 = vsub.f32 %v980, %v1028
        %v1045 = vmul.f32 %v1029, 1.442695
        %v1046 = vpow.pop %v1045
        %v1047 = vmul.f32 %v1030, 1.442695
        %v1048 = vpow.pop %v1047
        %v1049 = vmul.f32 %v1031, 1.442695
        %v1050 = vpow.pop %v1049
        %v1051 = vmul.f32 %v1032, 1.442695
        %v1052 = vpow.pop %v1051
        %v1053 = vmul.f32 %v1033, 1.442695
        %v1054 = vpow.pop %v1053
        %v1055 = vmul.f32 %v1034, 1.442695
        %v1056 = vpow.pop %v1055
        %v1057 = vmul.f32 %v1035, 1.442695
        %v1058 = vpow.pop %v1057
        %v1059 = vmul.f32 %v1036, 1.442695
        %v1060 = vpow.pop %v1059
        %v1061 = vmul.f32 %v1037, 1.442695
        %v1062 = vpow.pop %v1061
        %v1063 = vmul.f32 %v1038, 1.442695
        %v1064 = vpow.pop %v1063
        %v1065 = vmul.f32 %v1039, 1.442695
        %v1066 = vpow.pop %v1065
        %v1067 = vmul.f32 %v1040, 1.442695
        %v1068 = vpow.pop %v1067
        %v1069 = vmul.f32 %v1041, 1.442695
        %v1070 = vpow.pop %v1069
        %v1071 = vmul.f32 %v1042, 1.442695
        %v1072 = vpow.pop %v1071
        %v1073 = vmul.f32 %v1043, 1.442695
        %v1074 = vpow.pop %v1073
        %v1075 = vmul.f32 %v1044, 1.442695
        %v1076 = vpow.pop %v1075
        %1078 = vset.pattern.permute.xlu0 0
        %1079 = vperm.xlu0 %1078, %v1013
        %v1080 = vpop.permute.xlu0 %1079
        %1083 = vset.pattern.permute.xlu0 0
        %1084 = vperm.xlu0 %1083, %v1014
        %v1085 = vpop.permute.xlu0 %1084
        %1088 = vset.pattern.permute.xlu0 0
        %1089 = vperm.xlu0 %1088, %v1015
        %v1090 = vpop.permute.xlu0 %1089
        %1093 = vset.pattern.permute.xlu0 0
        %1094 = vperm.xlu0 %1093, %v1016
        %v1095 = vpop.permute.xlu0 %1094
        %1098 = vset.pattern.permute.xlu0 0
        %1099 = vperm.xlu0 %1098, %v1017
        %v1100 = vpop.permute.xlu0 %1099
        %1103 = vset.pattern.permute.xlu0 0
        %1104 = vperm.xlu0 %1103, %v1018
        %v1105 = vpop.permute.xlu0 %1104
        %1108 = vset.pattern.permute.xlu0 0
        %1109 = vperm.xlu0 %1108, %v1019
        %v1110 = vpop.permute.xlu0 %1109
        %1113 = vset.pattern.permute.xlu0 0
        %1114 = vperm.xlu0 %1113, %v1020
        %v1115 = vpop.permute.xlu0 %1114
        %1118 = vset.pattern.permute.xlu0 0
        %1119 = vperm.xlu0 %1118, %v1021
        %v1120 = vpop.permute.xlu0 %1119
        %1123 = vset.pattern.permute.xlu0 0
        %1124 = vperm.xlu0 %1123, %v1022
        %v1125 = vpop.permute.xlu0 %1124
        %1128 = vset.pattern.permute.xlu0 0
        %1129 = vperm.xlu0 %1128, %v1023
        %v1130 = vpop.permute.xlu0 %1129
        %1133 = vset.pattern.permute.xlu0 0
        %1134 = vperm.xlu0 %1133, %v1024
        %v1135 = vpop.permute.xlu0 %1134
        %1138 = vset.pattern.permute.xlu0 0
        %1139 = vperm.xlu0 %1138, %v1025
        %v1140 = vpop.permute.xlu0 %1139
        %1143 = vset.pattern.permute.xlu0 0
        %1144 = vperm.xlu0 %1143, %v1026
        %v1145 = vpop.permute.xlu0 %1144
        %1148 = vset.pattern.permute.xlu0 0
        %1149 = vperm.xlu0 %1148, %v1027
        %v1150 = vpop.permute.xlu0 %1149
        %1153 = vset.pattern.permute.xlu0 0
        %1154 = vperm.xlu0 %1153, %v1028
        %v1155 = vpop.permute.xlu0 %1154
        %v1157 = vsub.f32 %v949, %v1080
        %v1158 = vsub.f32 %v950, %v1085
        %v1159 = vsub.f32 %v951, %v1090
        %v1160 = vsub.f32 %v952, %v1095
        %v1161 = vsub.f32 %v953, %v1100
        %v1162 = vsub.f32 %v954, %v1105
        %v1163 = vsub.f32 %v955, %v1110
        %v1164 = vsub.f32 %v956, %v1115
        %v1165 = vsub.f32 %v957, %v1120
        %v1166 = vsub.f32 %v958, %v1125
        %v1167 = vsub.f32 %v959, %v1130
        %v1168 = vsub.f32 %v960, %v1135
        %v1169 = vsub.f32 %v961, %v1140
        %v1170 = vsub.f32 %v962, %v1145
        %v1171 = vsub.f32 %v963, %v1150
        %v1172 = vsub.f32 %v964, %v1155
        %v1173 = vmul.f32 %v1157, 1.442695
        %v1174 = vpow.pop %v1173
        %v1175 = vmul.f32 %v1158, 1.442695
        %v1176 = vpow.pop %v1175
        %v1177 = vmul.f32 %v1159, 1.442695
        %v1178 = vpow.pop %v1177
        %v1179 = vmul.f32 %v1160, 1.442695
        %v1180 = vpow.pop %v1179
        %v1181 = vmul.f32 %v1161, 1.442695
        %v1182 = vpow.pop %v1181
        %v1183 = vmul.f32 %v1162, 1.442695
        %v1184 = vpow.pop %v1183
        %v1185 = vmul.f32 %v1163, 1.442695
        %v1186 = vpow.pop %v1185
        %v1187 = vmul.f32 %v1164, 1.442695
        %v1188 = vpow.pop %v1187
        %v1189 = vmul.f32 %v1165, 1.442695
        %v1190 = vpow.pop %v1189
        %v1191 = vmul.f32 %v1166, 1.442695
        %v1192 = vpow.pop %v1191
        %v1193 = vmul.f32 %v1167, 1.442695
        %v1194 = vpow.pop %v1193
        %v1195 = vmul.f32 %v1168, 1.442695
        %v1196 = vpow.pop %v1195
        %v1197 = vmul.f32 %v1169, 1.442695
        %v1198 = vpow.pop %v1197
        %v1199 = vmul.f32 %v1170, 1.442695
        %v1200 = vpow.pop %v1199
        %v1201 = vmul.f32 %v1171, 1.442695
        %v1202 = vpow.pop %v1201
        %v1203 = vmul.f32 %v1172, 1.442695
        %v1204 = vpow.pop %v1203
        %v1205 = vld [vmem:[#allocation3] sm:$0xff]
        %v1206 = vld [vmem:[#allocation3 + $0x8] sm:$0xff]
        %v1207 = vld [vmem:[#allocation3 + $0x10] sm:$0xff]
        %v1208 = vld [vmem:[#allocation3 + $0x18] sm:$0xff]
        %v1209 = vld [vmem:[#allocation3 + $0x20] sm:$0xff]
        %v1210 = vld [vmem:[#allocation3 + $0x28] sm:$0xff]
        %v1211 = vld [vmem:[#allocation3 + $0x30] sm:$0xff]
        %v1212 = vld [vmem:[#allocation3 + $0x38] sm:$0xff]
        %v1213 = vld [vmem:[#allocation3 + $0x40] sm:$0xff]
        %v1214 = vld [vmem:[#allocation3 + $0x48] sm:$0xff]
        %v1215 = vld [vmem:[#allocation3 + $0x50] sm:$0xff]
        %v1216 = vld [vmem:[#allocation3 + $0x58] sm:$0xff]
        %v1217 = vld [vmem:[#allocation3 + $0x60] sm:$0xff]
        %v1218 = vld [vmem:[#allocation3 + $0x68] sm:$0xff]
        %v1219 = vld [vmem:[#allocation3 + $0x70] sm:$0xff]
        %v1220 = vld [vmem:[#allocation3 + $0x78] sm:$0xff]
        %v1221 = vmul.f32 %v1046, %v1205
        %v1222 = vmul.f32 %v1048, %v1206
        %v1223 = vmul.f32 %v1050, %v1207
        %v1224 = vmul.f32 %v1052, %v1208
        %v1225 = vmul.f32 %v1054, %v1209
        %v1226 = vmul.f32 %v1056, %v1210
        %v1227 = vmul.f32 %v1058, %v1211
        %v1228 = vmul.f32 %v1060, %v1212
        %v1229 = vmul.f32 %v1062, %v1213
        %v1230 = vmul.f32 %v1064, %v1214
        %v1231 = vmul.f32 %v1066, %v1215
        %v1232 = vmul.f32 %v1068, %v1216
        %v1233 = vmul.f32 %v1070, %v1217
        %v1234 = vmul.f32 %v1072, %v1218
        %v1235 = vmul.f32 %v1074, %v1219
        %v1236 = vmul.f32 %v1076, %v1220
        %1237 = vadd.xlane.f32.xlu0 %v1174
        %v1238 = vpop.xlane.xlu0 %1237
        %1239 = vadd.xlane.f32.xlu0 %v1176
        %v1240 = vpop.xlane.xlu0 %1239
        %1241 = vadd.xlane.f32.xlu0 %v1178
        %v1242 = vpop.xlane.xlu0 %1241
        %1243 = vadd.xlane.f32.xlu0 %v1180
        %v1244 = vpop.xlane.xlu0 %1243
        %1245 = vadd.xlane.f32.xlu0 %v1182
        %v1246 = vpop.xlane.xlu0 %1245
        %1247 = vadd.xlane.f32.xlu0 %v1184
        %v1248 = vpop.xlane.xlu0 %1247
        %1249 = vadd.xlane.f32.xlu0 %v1186
        %v1250 = vpop.xlane.xlu0 %1249
        %1251 = vadd.xlane.f32.xlu0 %v1188
        %v1252 = vpop.xlane.xlu0 %1251
        %1253 = vadd.xlane.f32.xlu0 %v1190
        %v1254 = vpop.xlane.xlu0 %1253
        %1255 = vadd.xlane.f32.xlu0 %v1192
        %v1256 = vpop.xlane.xlu0 %1255
        %1257 = vadd.xlane.f32.xlu0 %v1194
        %v1258 = vpop.xlane.xlu0 %1257
        %1259 = vadd.xlane.f32.xlu0 %v1196
        %v1260 = vpop.xlane.xlu0 %1259
        %1261 = vadd.xlane.f32.xlu0 %v1198
        %v1262 = vpop.xlane.xlu0 %1261
        %1263 = vadd.xlane.f32.xlu0 %v1200
        %v1264 = vpop.xlane.xlu0 %1263
        %1265 = vadd.xlane.f32.xlu0 %v1202
        %v1266 = vpop.xlane.xlu0 %1265
        %1267 = vadd.xlane.f32.xlu0 %v1204
        %v1268 = vpop.xlane.xlu0 %1267
        %v1269 = vadd.f32 %v1221, %v1238
        %v1270 = vadd.f32 %v1222, %v1240
        %v1271 = vadd.f32 %v1223, %v1242
        %v1272 = vadd.f32 %v1224, %v1244
        %v1273 = vadd.f32 %v1225, %v1246
        %v1274 = vadd.f32 %v1226, %v1248
        %v1275 = vadd.f32 %v1227, %v1250
        %v1276 = vadd.f32 %v1228, %v1252
        %v1277 = vadd.f32 %v1229, %v1254
        %v1278 = vadd.f32 %v1230, %v1256
        %v1279 = vadd.f32 %v1231, %v1258
        %v1280 = vadd.f32 %v1232, %v1260
        %v1281 = vadd.f32 %v1233, %v1262
        %v1282 = vadd.f32 %v1234, %v1264
        %v1283 = vadd.f32 %v1235, %v1266
        %v1284 = vadd.f32 %v1236, %v1268
        %vm1285 = vcmask 7168
        %1286 = vst.msk [vmem:[#allocation3] sm:$0xff] %vm1285, %v1269
        %1287 = vst.msk [vmem:[#allocation3 + $0x8] sm:$0xff] %vm1285, %v1270
        %1288 = vst.msk [vmem:[#allocation3 + $0x10] sm:$0xff] %vm1285, %v1271
        %1289 = vst.msk [vmem:[#allocation3 + $0x18] sm:$0xff] %vm1285, %v1272
        %1290 = vst.msk [vmem:[#allocation3 + $0x20] sm:$0xff] %vm1285, %v1273
        %1291 = vst.msk [vmem:[#allocation3 + $0x28] sm:$0xff] %vm1285, %v1274
        %1292 = vst.msk [vmem:[#allocation3 + $0x30] sm:$0xff] %vm1285, %v1275
        %1293 = vst.msk [vmem:[#allocation3 + $0x38] sm:$0xff] %vm1285, %v1276
        %1294 = vst.msk [vmem:[#allocation3 + $0x40] sm:$0xff] %vm1285, %v1277
        %1295 = vst.msk [vmem:[#allocation3 + $0x48] sm:$0xff] %vm1285, %v1278
        %1296 = vst.msk [vmem:[#allocation3 + $0x50] sm:$0xff] %vm1285, %v1279
        %1297 = vst.msk [vmem:[#allocation3 + $0x58] sm:$0xff] %vm1285, %v1280
        %1298 = vst.msk [vmem:[#allocation3 + $0x60] sm:$0xff] %vm1285, %v1281
        %1299 = vst.msk [vmem:[#allocation3 + $0x68] sm:$0xff] %vm1285, %v1282
        %1300 = vst.msk [vmem:[#allocation3 + $0x70] sm:$0xff] %vm1285, %v1283
        %1301 = vst.msk [vmem:[#allocation3 + $0x78] sm:$0xff] %vm1285, %v1284
        %v1302 = vld [vmem:[#allocation4] sm:$0xff]
        %v1303 = vld [vmem:[#allocation4 + $0x8] sm:$0xff]
        %v1304 = vld [vmem:[#allocation4 + $0x10] sm:$0xff]
        %v1305 = vld [vmem:[#allocation4 + $0x18] sm:$0xff]
        %v1306 = vld [vmem:[#allocation4 + $0x20] sm:$0xff]
        %v1307 = vld [vmem:[#allocation4 + $0x28] sm:$0xff]
        %v1308 = vld [vmem:[#allocation4 + $0x30] sm:$0xff]
        %v1309 = vld [vmem:[#allocation4 + $0x38] sm:$0xff]
        %v1310 = vld [vmem:[#allocation4 + $0x40] sm:$0xff]
        %v1311 = vld [vmem:[#allocation4 + $0x48] sm:$0xff]
        %v1312 = vld [vmem:[#allocation4 + $0x50] sm:$0xff]
        %v1313 = vld [vmem:[#allocation4 + $0x58] sm:$0xff]
        %v1314 = vld [vmem:[#allocation4 + $0x60] sm:$0xff]
        %v1315 = vld [vmem:[#allocation4 + $0x68] sm:$0xff]
        %v1316 = vld [vmem:[#allocation4 + $0x70] sm:$0xff]
        %v1317 = vld [vmem:[#allocation4 + $0x78] sm:$0xff]
        %1319 = vset.pattern.permute.xlu0 0
        %1320 = vperm.xlu0 %1319, %v1046
        %v1321 = vpop.permute.xlu0 %1320
        %1324 = vset.pattern.permute.xlu0 0
        %1325 = vperm.xlu0 %1324, %v1048
        %v1326 = vpop.permute.xlu0 %1325
        %1329 = vset.pattern.permute.xlu0 0
        %1330 = vperm.xlu0 %1329, %v1050
        %v1331 = vpop.permute.xlu0 %1330
        %1334 = vset.pattern.permute.xlu0 0
        %1335 = vperm.xlu0 %1334, %v1052
        %v1336 = vpop.permute.xlu0 %1335
        %1339 = vset.pattern.permute.xlu0 0
        %1340 = vperm.xlu0 %1339, %v1054
        %v1341 = vpop.permute.xlu0 %1340
        %1344 = vset.pattern.permute.xlu0 0
        %1345 = vperm.xlu0 %1344, %v1056
        %v1346 = vpop.permute.xlu0 %1345
        %1349 = vset.pattern.permute.xlu0 0
        %1350 = vperm.xlu0 %1349, %v1058
        %v1351 = vpop.permute.xlu0 %1350
        %1354 = vset.pattern.permute.xlu0 0
        %1355 = vperm.xlu0 %1354, %v1060
        %v1356 = vpop.permute.xlu0 %1355
        %1359 = vset.pattern.permute.xlu0 0
        %1360 = vperm.xlu0 %1359, %v1062
        %v1361 = vpop.permute.xlu0 %1360
        %1364 = vset.pattern.permute.xlu0 0
        %1365 = vperm.xlu0 %1364, %v1064
        %v1366 = vpop.permute.xlu0 %1365
        %1369 = vset.pattern.permute.xlu0 0
        %1370 = vperm.xlu0 %1369, %v1066
        %v1371 = vpop.permute.xlu0 %1370
        %1374 = vset.pattern.permute.xlu0 0
        %1375 = vperm.xlu0 %1374, %v1068
        %v1376 = vpop.permute.xlu0 %1375
        %1379 = vset.pattern.permute.xlu0 0
        %1380 = vperm.xlu0 %1379, %v1070
        %v1381 = vpop.permute.xlu0 %1380
        %1384 = vset.pattern.permute.xlu0 0
        %1385 = vperm.xlu0 %1384, %v1072
        %v1386 = vpop.permute.xlu0 %1385
        %1389 = vset.pattern.permute.xlu0 0
        %1390 = vperm.xlu0 %1389, %v1074
        %v1391 = vpop.permute.xlu0 %1390
        %1394 = vset.pattern.permute.xlu0 0
        %1395 = vperm.xlu0 %1394, %v1076
        %v1396 = vpop.permute.xlu0 %1395
        %v1398 = vmul.f32 %v1321, %v1302
        %v1399 = vmul.f32 %v1326, %v1303
        %v1400 = vmul.f32 %v1331, %v1304
        %v1401 = vmul.f32 %v1336, %v1305
        %v1402 = vmul.f32 %v1341, %v1306
        %v1403 = vmul.f32 %v1346, %v1307
        %v1404 = vmul.f32 %v1351, %v1308
        %v1405 = vmul.f32 %v1356, %v1309
        %v1406 = vmul.f32 %v1361, %v1310
        %v1407 = vmul.f32 %v1366, %v1311
        %v1408 = vmul.f32 %v1371, %v1312
        %v1409 = vmul.f32 %v1376, %v1313
        %v1410 = vmul.f32 %v1381, %v1314
        %v1411 = vmul.f32 %v1386, %v1315
        %v1412 = vmul.f32 %v1391, %v1316
        %v1413 = vmul.f32 %v1396, %v1317
        %v1414 = vpack.c.bf16 %v1176, %v1174
        %v1415 = vpack.c.bf16 %v1180, %v1178
        %v1416 = vpack.c.bf16 %v1184, %v1182
        %v1417 = vpack.c.bf16 %v1188, %v1186
        %v1418 = vpack.c.bf16 %v1192, %v1190
        %v1419 = vpack.c.bf16 %v1196, %v1194
        %v1420 = vpack.c.bf16 %v1200, %v1198
        %v1421 = vpack.c.bf16 %v1204, %v1202
        %v1422 = vld [vmem:[%s556] sm:$0xf]
        %v1423 = vld [vmem:[%s556 + $0x4] sm:$0xf]
        %v1424 = vld [vmem:[%s556 + $0x8] sm:$0xf]
        %v1425 = vld [vmem:[%s556 + $0xc] sm:$0xf]
        %v1426 = vld [vmem:[%s556 + $0x10] sm:$0xf]
        %v1427 = vld [vmem:[%s556 + $0x14] sm:$0xf]
        %v1428 = vld [vmem:[%s556 + $0x18] sm:$0xf]
        %v1429 = vld [vmem:[%s556 + $0x1c] sm:$0xf]
        %v1430 = vld [vmem:[%s556 + $0x20] sm:$0xf]
        %v1431 = vld [vmem:[%s556 + $0x24] sm:$0xf]
        %v1432 = vld [vmem:[%s556 + $0x28] sm:$0xf]
        %v1433 = vld [vmem:[%s556 + $0x2c] sm:$0xf]
        %v1434 = vld [vmem:[%s556 + $0x30] sm:$0xf]
        %v1435 = vld [vmem:[%s556 + $0x34] sm:$0xf]
        %v1436 = vld [vmem:[%s556 + $0x38] sm:$0xf]
        %v1437 = vld [vmem:[%s556 + $0x3c] sm:$0xf]
        %v1454 = vunpack.c.l.b16 %v1422
        %v1455 = vunpack.c.l.b16 %v1423
        %v1456 = vunpack.c.l.b16 %v1424
        %v1457 = vunpack.c.l.b16 %v1425
        %v1458 = vunpack.c.l.b16 %v1426
        %v1459 = vunpack.c.l.b16 %v1427
        %v1460 = vunpack.c.l.b16 %v1428
        %v1461 = vunpack.c.l.b16 %v1429
        %v1462 = vunpack.c.l.b16 %v1430
        %v1463 = vunpack.c.l.b16 %v1431
        %v1464 = vunpack.c.l.b16 %v1432
        %v1465 = vunpack.c.l.b16 %v1433
        %v1466 = vunpack.c.l.b16 %v1434
        %v1467 = vunpack.c.l.b16 %v1435
        %v1468 = vunpack.c.l.b16 %v1436
        %v1469 = vunpack.c.l.b16 %v1437
        %v1470 = vpack.c.b16 %v1455, %v1454
        %v1471 = vpack.c.b16 %v1457, %v1456
        %v1472 = vpack.c.b16 %v1459, %v1458
        %v1473 = vpack.c.b16 %v1461, %v1460
        %v1474 = vpack.c.b16 %v1463, %v1462
        %v1475 = vpack.c.b16 %v1465, %v1464
        %v1476 = vpack.c.b16 %v1467, %v1466
        %v1477 = vpack.c.b16 %v1469, %v1468
        %1486 = vmatprep.subr.bf16.mxu0 0
        %1487 = vmatpush1.bf16.msra.mxu0 %v1470
        %1488 = vmatprep.subr.bf16.mxu0 0
        %1489 = vmatpush1.bf16.msra.mxu0 %v1471
        %1490 = vmatprep.subr.bf16.mxu0 0
        %1491 = vmatpush1.bf16.msra.mxu0 %v1472
        %1492 = vmatprep.subr.bf16.mxu0 0
        %1493 = vmatpush1.bf16.msra.mxu0 %v1473
        %1494 = vmatprep.subr.bf16.mxu0 0
        %1495 = vmatpush1.bf16.msra.mxu0 %v1474
        %1496 = vmatprep.subr.bf16.mxu0 0
        %1497 = vmatpush1.bf16.msra.mxu0 %v1475
        %1498 = vmatprep.subr.bf16.mxu0 0
        %1499 = vmatpush1.bf16.msra.mxu0 %v1476
        %1500 = vmatprep.subr.bf16.mxu0 0
        %1501 = vmatpush1.bf16.msra.mxu0 %v1477
        %1502 = vmatprep.subr.bf16.mxu0 0
        %1503 = vmatpush1.bf16.msra.mxu0 0
        %1504 = vmatprep.subr.bf16.mxu0 0
        %1505 = vmatpush1.bf16.msra.mxu0 0
        %1506 = vmatprep.subr.bf16.mxu0 0
        %1507 = vmatpush1.bf16.msra.mxu0 0
        %1508 = vmatprep.subr.bf16.mxu0 0
        %1509 = vmatpush1.bf16.msra.mxu0 0
        %1510 = vmatprep.subr.bf16.mxu0 0
        %1511 = vmatpush1.bf16.msra.mxu0 0
        %1512 = vmatprep.subr.bf16.mxu0 0
        %1513 = vmatpush1.bf16.msra.mxu0 0
        %1514 = vmatprep.subr.bf16.mxu0 0
        %1515 = vmatpush1.bf16.msra.mxu0 0
        %1516 = vmatprep.subr.bf16.mxu0 0
        %1517 = vmatpush1.bf16.msra.mxu0 0
        %1518 = vmatprep.mubr.bf16.mxu0 0
        %1519 = vmatmul.mubr.bf16.gmra.mrb[0].mxu0 %v1414
        %v1520 = vpop.f32.mrb[0].mxu0
        %v1521 = vadd.f32 0.0, %v1520
        %v1522 = vpop.f32.mrb[0].mxu0
        %v1523 = vpop.f32.mrb[0].mxu0
        %v1524 = vadd.f32 0.0, %v1523
        %v1525 = vpop.f32.mrb[0].mxu0
        %1526 = vmatprep.mubr.bf16.mxu0 0
        %1527 = vmatmul.mubr.bf16.gmra.mrb[0].mxu0 %v1415
        %v1528 = vpop.f32.mrb[0].mxu0
        %v1529 = vadd.f32 0.0, %v1528
        %v1530 = vpop.f32.mrb[0].mxu0
        %v1531 = vpop.f32.mrb[0].mxu0
        %v1532 = vadd.f32 0.0, %v1531
        %v1533 = vpop.f32.mrb[0].mxu0
        %1534 = vmatprep.mubr.bf16.mxu0 0
        %1535 = vmatmul.mubr.bf16.gmra.mrb[0].mxu0 %v1416
        %v1536 = vpop.f32.mrb[0].mxu0
        %v1537 = vadd.f32 0.0, %v1536
        %v1538 = vpop.f32.mrb[0].mxu0
        %v1539 = vpop.f32.mrb[0].mxu0
        %v1540 = vadd.f32 0.0, %v1539
        %v1541 = vpop.f32.mrb[0].mxu0
        %1542 = vmatprep.mubr.bf16.mxu0 0
        %1543 = vmatmul.mubr.bf16.gmra.mrb[0].mxu0 %v1417
        %v1544 = vpop.f32.mrb[0].mxu0
        %v1545 = vadd.f32 0.0, %v1544
        %v1546 = vpop.f32.mrb[0].mxu0
        %v1547 = vpop.f32.mrb[0].mxu0
        %v1548 = vadd.f32 0.0, %v1547
        %v1549 = vpop.f32.mrb[0].mxu0
        %1550 = vmatprep.mubr.bf16.mxu0 0
        %1551 = vmatmul.mubr.bf16.gmra.mrb[0].mxu0 %v1418
        %v1552 = vpop.f32.mrb[0].mxu0
        %v1553 = vadd.f32 0.0, %v1552
        %v1554 = vpop.f32.mrb[0].mxu0
        %v1555 = vpop.f32.mrb[0].mxu0
        %v1556 = vadd.f32 0.0, %v1555
        %v1557 = vpop.f32.mrb[0].mxu0
        %1558 = vmatprep.mubr.bf16.mxu0 0
        %1559 = vmatmul.mubr.bf16.gmra.mrb[0].mxu0 %v1419
        %v1560 = vpop.f32.mrb[0].mxu0
        %v1561 = vadd.f32 0.0, %v1560
        %v1562 = vpop.f32.mrb[0].mxu0
        %v1563 = vpop.f32.mrb[0].mxu0
        %v1564 = vadd.f32 0.0, %v1563
        %v1565 = vpop.f32.mrb[0].mxu0
        %1566 = vmatprep.mubr.bf16.mxu0 0
        %1567 = vmatmul.mubr.bf16.gmra.mrb[0].mxu0 %v1420
        %v1568 = vpop.f32.mrb[0].mxu0
        %v1569 = vadd.f32 0.0, %v1568
        %v1570 = vpop.f32.mrb[0].mxu0
        %v1571 = vpop.f32.mrb[0].mxu0
        %v1572 = vadd.f32 0.0, %v1571
        %v1573 = vpop.f32.mrb[0].mxu0
        %1574 = vmatprep.mubr.bf16.mxu0 0
        %1575 = vmatmul.mubr.bf16.gmra.mrb[0].mxu0 %v1421
        %v1576 = vpop.f32.mrb[0].mxu0
        %v1577 = vadd.f32 0.0, %v1576
        %v1578 = vpop.f32.mrb[0].mxu0
        %v1579 = vpop.f32.mrb[0].mxu0
        %v1580 = vadd.f32 0.0, %v1579
        %v1581 = vpop.f32.mrb[0].mxu0
        %1582 = vdwg.mxu0
        %v1583 = vadd.f32 %v1398, %v1521
        %v1584 = vadd.f32 %v1399, %v1524
        %v1585 = vadd.f32 %v1400, %v1529
        %v1586 = vadd.f32 %v1401, %v1532
        %v1587 = vadd.f32 %v1402, %v1537
        %v1588 = vadd.f32 %v1403, %v1540
        %v1589 = vadd.f32 %v1404, %v1545
        %v1590 = vadd.f32 %v1405, %v1548
        %v1591 = vadd.f32 %v1406, %v1553
        %v1592 = vadd.f32 %v1407, %v1556
        %v1593 = vadd.f32 %v1408, %v1561
        %v1594 = vadd.f32 %v1409, %v1564
        %v1595 = vadd.f32 %v1410, %v1569
        %v1596 = vadd.f32 %v1411, %v1572
        %v1597 = vadd.f32 %v1412, %v1577
        %v1598 = vadd.f32 %v1413, %v1580
        %1599 = vst.msk [vmem:[#allocation4] sm:$0xff] %vm781, %v1583
        %1600 = vst.msk [vmem:[#allocation4 + $0x8] sm:$0xff] %vm781, %v1584
        %1601 = vst.msk [vmem:[#allocation4 + $0x10] sm:$0xff] %vm781, %v1585
        %1602 = vst.msk [vmem:[#allocation4 + $0x18] sm:$0xff] %vm781, %v1586
        %1603 = vst.msk [vmem:[#allocation4 + $0x20] sm:$0xff] %vm781, %v1587
        %1604 = vst.msk [vmem:[#allocation4 + $0x28] sm:$0xff] %vm781, %v1588
        %1605 = vst.msk [vmem:[#allocation4 + $0x30] sm:$0xff] %vm781, %v1589
        %1606 = vst.msk [vmem:[#allocation4 + $0x38] sm:$0xff] %vm781, %v1590
        %1607 = vst.msk [vmem:[#allocation4 + $0x40] sm:$0xff] %vm781, %v1591
        %1608 = vst.msk [vmem:[#allocation4 + $0x48] sm:$0xff] %vm781, %v1592
        %1609 = vst.msk [vmem:[#allocation4 + $0x50] sm:$0xff] %vm781, %v1593
        %1610 = vst.msk [vmem:[#allocation4 + $0x58] sm:$0xff] %vm781, %v1594
        %1611 = vst.msk [vmem:[#allocation4 + $0x60] sm:$0xff] %vm781, %v1595
        %1612 = vst.msk [vmem:[#allocation4 + $0x68] sm:$0xff] %vm781, %v1596
        %1613 = vst.msk [vmem:[#allocation4 + $0x70] sm:$0xff] %vm781, %v1597
        %1614 = vst.msk [vmem:[#allocation4 + $0x78] sm:$0xff] %vm781, %v1598
        %1615 = vst.msk [vmem:[#allocation2] sm:$0xff] %vm1285, %v1013
        %1616 = vst.msk [vmem:[#allocation2 + $0x8] sm:$0xff] %vm1285, %v1014
        %1617 = vst.msk [vmem:[#allocation2 + $0x10] sm:$0xff] %vm1285, %v1015
        %1618 = vst.msk [vmem:[#allocation2 + $0x18] sm:$0xff] %vm1285, %v1016
        %1619 = vst.msk [vmem:[#allocation2 + $0x20] sm:$0xff] %vm1285, %v1017
        %1620 = vst.msk [vmem:[#allocation2 + $0x28] sm:$0xff] %vm1285, %v1018
        %1621 = vst.msk [vmem:[#allocation2 + $0x30] sm:$0xff] %vm1285, %v1019
        %1622 = vst.msk [vmem:[#allocation2 + $0x38] sm:$0xff] %vm1285, %v1020
        %1623 = vst.msk [vmem:[#allocation2 + $0x40] sm:$0xff] %vm1285, %v1021
        %1624 = vst.msk [vmem:[#allocation2 + $0x48] sm:$0xff] %vm1285, %v1022
        %1625 = vst.msk [vmem:[#allocation2 + $0x50] sm:$0xff] %vm1285, %v1023
        %1626 = vst.msk [vmem:[#allocation2 + $0x58] sm:$0xff] %vm1285, %v1024
        %1627 = vst.msk [vmem:[#allocation2 + $0x60] sm:$0xff] %vm1285, %v1025
        %1628 = vst.msk [vmem:[#allocation2 + $0x68] sm:$0xff] %vm1285, %v1026
        %1629 = vst.msk [vmem:[#allocation2 + $0x70] sm:$0xff] %vm1285, %v1027
        %1630 = vst.msk [vmem:[#allocation2 + $0x78] sm:$0xff] %vm1285, %v1028
        %v1631 = vld [vmem:[%s542] sm:$0xf]
        %v1632 = vld [vmem:[%s542 + $0x4] sm:$0xf]
        %v1633 = vld [vmem:[%s542 + $0x8] sm:$0xf]
        %v1634 = vld [vmem:[%s542 + $0xc] sm:$0xf]
        %v1635 = vld [vmem:[%s542 + $0x10] sm:$0xf]
        %v1636 = vld [vmem:[%s542 + $0x14] sm:$0xf]
        %v1637 = vld [vmem:[%s542 + $0x18] sm:$0xf]
        %v1638 = vld [vmem:[%s542 + $0x1c] sm:$0xf]
        %v1639 = vld [vmem:[%s542 + $0x20] sm:$0xf]
        %v1640 = vld [vmem:[%s542 + $0x24] sm:$0xf]
        %v1641 = vld [vmem:[%s542 + $0x28] sm:$0xf]
        %v1642 = vld [vmem:[%s542 + $0x2c] sm:$0xf]
        %v1643 = vld [vmem:[%s542 + $0x30] sm:$0xf]
        %v1644 = vld [vmem:[%s542 + $0x34] sm:$0xf]
        %v1645 = vld [vmem:[%s542 + $0x38] sm:$0xf]
        %v1646 = vld [vmem:[%s542 + $0x3c] sm:$0xf]
        %v1647 = vld [vmem:[%s549] sm:$0xf]
        %v1648 = vld [vmem:[%s549 + $0x4] sm:$0xf]
        %v1649 = vld [vmem:[%s549 + $0x8] sm:$0xf]
        %v1650 = vld [vmem:[%s549 + $0xc] sm:$0xf]
        %v1651 = vld [vmem:[%s549 + $0x10] sm:$0xf]
        %v1652 = vld [vmem:[%s549 + $0x14] sm:$0xf]
        %v1653 = vld [vmem:[%s549 + $0x18] sm:$0xf]
        %v1654 = vld [vmem:[%s549 + $0x1c] sm:$0xf]
        %v1655 = vld [vmem:[%s549 + $0x20] sm:$0xf]
        %v1656 = vld [vmem:[%s549 + $0x24] sm:$0xf]
        %v1657 = vld [vmem:[%s549 + $0x28] sm:$0xf]
        %v1658 = vld [vmem:[%s549 + $0x2c] sm:$0xf]
        %v1659 = vld [vmem:[%s549 + $0x30] sm:$0xf]
        %v1660 = vld [vmem:[%s549 + $0x34] sm:$0xf]
        %v1661 = vld [vmem:[%s549 + $0x38] sm:$0xf]
        %v1662 = vld [vmem:[%s549 + $0x3c] sm:$0xf]
        %v1679 = vunpack.c.l.b16 %v1631
        %v1680 = vunpack.c.l.b16 %v1632
        %v1681 = vunpack.c.l.b16 %v1633
        %v1682 = vunpack.c.l.b16 %v1634
        %v1683 = vunpack.c.l.b16 %v1635
        %v1684 = vunpack.c.l.b16 %v1636
        %v1685 = vunpack.c.l.b16 %v1637
        %v1686 = vunpack.c.l.b16 %v1638
        %v1687 = vunpack.c.l.b16 %v1639
        %v1688 = vunpack.c.l.b16 %v1640
        %v1689 = vunpack.c.l.b16 %v1641
        %v1690 = vunpack.c.l.b16 %v1642
        %v1691 = vunpack.c.l.b16 %v1643
        %v1692 = vunpack.c.l.b16 %v1644
        %v1693 = vunpack.c.l.b16 %v1645
        %v1694 = vunpack.c.l.b16 %v1646
        %v1695 = vpack.c.b16 %v1680, %v1679
        %v1696 = vpack.c.b16 %v1682, %v1681
        %v1697 = vpack.c.b16 %v1684, %v1683
        %v1698 = vpack.c.b16 %v1686, %v1685
        %v1699 = vpack.c.b16 %v1688, %v1687
        %v1700 = vpack.c.b16 %v1690, %v1689
        %v1701 = vpack.c.b16 %v1692, %v1691
        %v1702 = vpack.c.b16 %v1694, %v1693
        %1703 = vrot.lane.b32.xlu0 %v1695, 64
        %v1704 = vpop.permute.xlu0 %1703
        %1705 = vrot.lane.b32.xlu0 %v1696, 64
        %v1706 = vpop.permute.xlu0 %1705
        %1707 = vrot.lane.b32.xlu0 %v1697, 64
        %v1708 = vpop.permute.xlu0 %1707
        %1709 = vrot.lane.b32.xlu0 %v1698, 64
        %v1710 = vpop.permute.xlu0 %1709
        %1711 = vrot.lane.b32.xlu0 %v1699, 64
        %v1712 = vpop.permute.xlu0 %1711
        %1713 = vrot.lane.b32.xlu0 %v1700, 64
        %v1714 = vpop.permute.xlu0 %1713
        %1715 = vrot.lane.b32.xlu0 %v1701, 64
        %v1716 = vpop.permute.xlu0 %1715
        %1717 = vrot.lane.b32.xlu0 %v1702, 64
        %v1718 = vpop.permute.xlu0 %1717
        %v1735 = vunpack.c.l.b16 %v1647
        %v1736 = vunpack.c.l.b16 %v1648
        %v1737 = vunpack.c.l.b16 %v1649
        %v1738 = vunpack.c.l.b16 %v1650
        %v1739 = vunpack.c.l.b16 %v1651
        %v1740 = vunpack.c.l.b16 %v1652
        %v1741 = vunpack.c.l.b16 %v1653
        %v1742 = vunpack.c.l.b16 %v1654
        %v1743 = vunpack.c.l.b16 %v1655
        %v1744 = vunpack.c.l.b16 %v1656
        %v1745 = vunpack.c.l.b16 %v1657
        %v1746 = vunpack.c.l.b16 %v1658
        %v1747 = vunpack.c.l.b16 %v1659
        %v1748 = vunpack.c.l.b16 %v1660
        %v1749 = vunpack.c.l.b16 %v1661
        %v1750 = vunpack.c.l.b16 %v1662
        %v1751 = vpack.c.b16 %v1736, %v1735
        %v1752 = vpack.c.b16 %v1738, %v1737
        %v1753 = vpack.c.b16 %v1740, %v1739
        %v1754 = vpack.c.b16 %v1742, %v1741
        %v1755 = vpack.c.b16 %v1744, %v1743
        %v1756 = vpack.c.b16 %v1746, %v1745
        %v1757 = vpack.c.b16 %v1748, %v1747
        %v1758 = vpack.c.b16 %v1750, %v1749
        %1759 = vrot.lane.b32.xlu0 %v1751, 64
        %v1760 = vpop.permute.xlu0 %1759
        %1761 = vrot.lane.b32.xlu0 %v1752, 64
        %v1762 = vpop.permute.xlu0 %1761
        %1763 = vrot.lane.b32.xlu0 %v1753, 64
        %v1764 = vpop.permute.xlu0 %1763
        %1765 = vrot.lane.b32.xlu0 %v1754, 64
        %v1766 = vpop.permute.xlu0 %1765
        %1767 = vrot.lane.b32.xlu0 %v1755, 64
        %v1768 = vpop.permute.xlu0 %1767
        %1769 = vrot.lane.b32.xlu0 %v1756, 64
        %v1770 = vpop.permute.xlu0 %1769
        %1771 = vrot.lane.b32.xlu0 %v1757, 64
        %v1772 = vpop.permute.xlu0 %1771
        %1773 = vrot.lane.b32.xlu0 %v1758, 64
        %v1774 = vpop.permute.xlu0 %1773
        %v1776 = vsel %vm781, %v1704, 0
        %v1779 = vsel %vm781, %v1706, 0
        %v1782 = vsel %vm781, %v1708, 0
        %v1785 = vsel %vm781, %v1710, 0
        %v1788 = vsel %vm781, %v1712, 0
        %v1791 = vsel %vm781, %v1714, 0
        %v1794 = vsel %vm781, %v1716, 0
        %v1797 = vsel %vm781, %v1718, 0
        %v1800 = vsel %vm781, %v1760, 0
        %v1803 = vsel %vm781, %v1762, 0
        %v1806 = vsel %vm781, %v1764, 0
        %v1809 = vsel %vm781, %v1766, 0
        %v1812 = vsel %vm781, %v1768, 0
        %v1815 = vsel %vm781, %v1770, 0
        %v1818 = vsel %vm781, %v1772, 0
        %v1821 = vsel %vm781, %v1774, 0
        %1823 = vmatprep.subr.bf16.mxu0 0
        %1824 = vmatpush1.bf16.xpose.msra.mxu0 %v1800
        %1825 = vmatprep.subr.bf16.mxu0 0
        %1826 = vmatpush1.bf16.xpose.msra.mxu0 %v1803
        %1827 = vmatprep.subr.bf16.mxu0 0
        %1828 = vmatpush1.bf16.xpose.msra.mxu0 %v1806
        %1829 = vmatprep.subr.bf16.mxu0 0
        %1830 = vmatpush1.bf16.xpose.msra.mxu0 %v1809
        %1831 = vmatprep.subr.bf16.mxu0 0
        %1832 = vmatpush1.bf16.xpose.msra.mxu0 %v1812
        %1833 = vmatprep.subr.bf16.mxu0 0
        %1834 = vmatpush1.bf16.xpose.msra.mxu0 %v1815
        %1835 = vmatprep.subr.bf16.mxu0 0
        %1836 = vmatpush1.bf16.xpose.msra.mxu0 %v1818
        %1837 = vmatprep.subr.bf16.mxu0 0
        %1838 = vmatpush1.bf16.xpose.msra.mxu0 %v1821
        %1839 = vmatprep.subr.bf16.mxu0 0
        %1840 = vmatpush1.bf16.xpose.msra.mxu0 0
        %1841 = vmatprep.subr.bf16.mxu0 0
        %1842 = vmatpush1.bf16.xpose.msra.mxu0 0
        %1843 = vmatprep.subr.bf16.mxu0 0
        %1844 = vmatpush1.bf16.xpose.msra.mxu0 0
        %1845 = vmatprep.subr.bf16.mxu0 0
        %1846 = vmatpush1.bf16.xpose.msra.mxu0 0
        %1847 = vmatprep.subr.bf16.mxu0 0
        %1848 = vmatpush1.bf16.xpose.msra.mxu0 0
        %1849 = vmatprep.subr.bf16.mxu0 0
        %1850 = vmatpush1.bf16.xpose.msra.mxu0 0
        %1851 = vmatprep.subr.bf16.mxu0 0
        %1852 = vmatpush1.bf16.xpose.msra.mxu0 0
        %1853 = vmatprep.subr.bf16.mxu0 0
        %1854 = vmatpush1.bf16.xpose.msra.mxu0 0
        %1855 = vmatprep.mubr.bf16.mxu0 0
        %1856 = vmatmul.mubr.bf16.gmra.mrb[0].mxu0 %v1776
        %v1857 = vpop.f32.mrb[0].mxu0
        %v1858 = vadd.f32 0.0, %v1857
        %v1859 = vpop.f32.mrb[0].mxu0
        %v1860 = vpop.f32.mrb[0].mxu0
        %v1861 = vadd.f32 0.0, %v1860
        %v1862 = vpop.f32.mrb[0].mxu0
        %1863 = vmatprep.mubr.bf16.mxu0 0
        %1864 = vmatmul.mubr.bf16.gmra.mrb[0].mxu0 %v1779
        %v1865 = vpop.f32.mrb[0].mxu0
        %v1866 = vadd.f32 0.0, %v1865
        %v1867 = vpop.f32.mrb[0].mxu0
        %v1868 = vpop.f32.mrb[0].mxu0
        %v1869 = vadd.f32 0.0, %v1868
        %v1870 = vpop.f32.mrb[0].mxu0
        %1871 = vmatprep.mubr.bf16.mxu0 0
        %1872 = vmatmul.mubr.bf16.gmra.mrb[0].mxu0 %v1782
        %v1873 = vpop.f32.mrb[0].mxu0
        %v1874 = vadd.f32 0.0, %v1873
        %v1875 = vpop.f32.mrb[0].mxu0
        %v1876 = vpop.f32.mrb[0].mxu0
        %v1877 = vadd.f32 0.0, %v1876
        %v1878 = vpop.f32.mrb[0].mxu0
        %1879 = vmatprep.mubr.bf16.mxu0 0
        %1880 = vmatmul.mubr.bf16.gmra.mrb[0].mxu0 %v1785
        %v1881 = vpop.f32.mrb[0].mxu0
        %v1882 = vadd.f32 0.0, %v1881
        %v1883 = vpop.f32.mrb[0].mxu0
        %v1884 = vpop.f32.mrb[0].mxu0
        %v1885 = vadd.f32 0.0, %v1884
        %v1886 = vpop.f32.mrb[0].mxu0
        %1887 = vmatprep.mubr.bf16.mxu0 0
        %1888 = vmatmul.mubr.bf16.gmra.mrb[0].mxu0 %v1788
        %v1889 = vpop.f32.mrb[0].mxu0
        %v1890 = vadd.f32 0.0, %v1889
        %v1891 = vpop.f32.mrb[0].mxu0
        %v1892 = vpop.f32.mrb[0].mxu0
        %v1893 = vadd.f32 0.0, %v1892
        %v1894 = vpop.f32.mrb[0].mxu0
        %1895 = vmatprep.mubr.bf16.mxu0 0
        %1896 = vmatmul.mubr.bf16.gmra.mrb[0].mxu0 %v1791
        %v1897 = vpop.f32.mrb[0].mxu0
        %v1898 = vadd.f32 0.0, %v1897
        %v1899 = vpop.f32.mrb[0].mxu0
        %v1900 = vpop.f32.mrb[0].mxu0
        %v1901 = vadd.f32 0.0, %v1900
        %v1902 = vpop.f32.mrb[0].mxu0
        %1903 = vmatprep.mubr.bf16.mxu0 0
        %1904 = vmatmul.mubr.bf16.gmra.mrb[0].mxu0 %v1794
        %v1905 = vpop.f32.mrb[0].mxu0
        %v1906 = vadd.f32 0.0, %v1905
        %v1907 = vpop.f32.mrb[0].mxu0
        %v1908 = vpop.f32.mrb[0].mxu0
        %v1909 = vadd.f32 0.0, %v1908
        %v1910 = vpop.f32.mrb[0].mxu0
        %1911 = vmatprep.mubr.bf16.mxu0 0
        %1912 = vmatmul.mubr.bf16.gmra.mrb[0].mxu0 %v1797
        %v1913 = vpop.f32.mrb[0].mxu0
        %v1914 = vadd.f32 0.0, %v1913
        %v1915 = vpop.f32.mrb[0].mxu0
        %v1916 = vpop.f32.mrb[0].mxu0
        %v1917 = vadd.f32 0.0, %v1916
        %v1918 = vpop.f32.mrb[0].mxu0
        %1919 = vdwg.mxu0
        %v1920 = vmul.f32 %v1858, 0.125
        %v1921 = vmul.f32 %v1861, 0.125
        %v1922 = vmul.f32 %v1866, 0.125
        %v1923 = vmul.f32 %v1869, 0.125
        %v1924 = vmul.f32 %v1874, 0.125
        %v1925 = vmul.f32 %v1877, 0.125
        %v1926 = vmul.f32 %v1882, 0.125
        %v1927 = vmul.f32 %v1885, 0.125
        %v1928 = vmul.f32 %v1890, 0.125
        %v1929 = vmul.f32 %v1893, 0.125
        %v1930 = vmul.f32 %v1898, 0.125
        %v1931 = vmul.f32 %v1901, 0.125
        %v1932 = vmul.f32 %v1906, 0.125
        %v1933 = vmul.f32 %v1909, 0.125
        %v1934 = vmul.f32 %v1914, 0.125
        %v1935 = vmul.f32 %v1917, 0.125
        %v1936 = vadd.f32 %v1920, %v947
        %v1937 = vadd.f32 %v1921, %v947
        %v1938 = vadd.f32 %v1922, %v947
        %v1939 = vadd.f32 %v1923, %v947
        %v1940 = vadd.f32 %v1924, %v947
        %v1941 = vadd.f32 %v1925, %v947
        %v1942 = vadd.f32 %v1926, %v947
        %v1943 = vadd.f32 %v1927, %v947
        %v1944 = vadd.f32 %v1928, %v947
        %v1945 = vadd.f32 %v1929, %v947
        %v1946 = vadd.f32 %v1930, %v947
        %v1947 = vadd.f32 %v1931, %v947
        %v1948 = vadd.f32 %v1932, %v947
        %v1949 = vadd.f32 %v1933, %v947
        %v1950 = vadd.f32 %v1934, %v947
        %v1951 = vadd.f32 %v1935, %v947
        %v1952 = vld [vmem:[#allocation2] sm:$0xff]
        %v1953 = vld [vmem:[#allocation2 + $0x8] sm:$0xff]
        %v1954 = vld [vmem:[#allocation2 + $0x10] sm:$0xff]
        %v1955 = vld [vmem:[#allocation2 + $0x18] sm:$0xff]
        %v1956 = vld [vmem:[#allocation2 + $0x20] sm:$0xff]
        %v1957 = vld [vmem:[#allocation2 + $0x28] sm:$0xff]
        %v1958 = vld [vmem:[#allocation2 + $0x30] sm:$0xff]
        %v1959 = vld [vmem:[#allocation2 + $0x38] sm:$0xff]
        %v1960 = vld [vmem:[#allocation2 + $0x40] sm:$0xff]
        %v1961 = vld [vmem:[#allocation2 + $0x48] sm:$0xff]
        %v1962 = vld [vmem:[#allocation2 + $0x50] sm:$0xff]
        %v1963 = vld [vmem:[#allocation2 + $0x58] sm:$0xff]
        %v1964 = vld [vmem:[#allocation2 + $0x60] sm:$0xff]
        %v1965 = vld [vmem:[#allocation2 + $0x68] sm:$0xff]
        %v1966 = vld [vmem:[#allocation2 + $0x70] sm:$0xff]
        %v1967 = vld [vmem:[#allocation2 + $0x78] sm:$0xff]
        %1968 = vmax.xlane.f32.xlu0 %v1936
        %v1969 = vpop.xlane.xlu0 %1968
        %1970 = vmax.xlane.f32.xlu0 %v1937
        %v1971 = vpop.xlane.xlu0 %1970
        %1972 = vmax.xlane.f32.xlu0 %v1938
        %v1973 = vpop.xlane.xlu0 %1972
        %1974 = vmax.xlane.f32.xlu0 %v1939
        %v1975 = vpop.xlane.xlu0 %1974
        %1976 = vmax.xlane.f32.xlu0 %v1940
        %v1977 = vpop.xlane.xlu0 %1976
        %1978 = vmax.xlane.f32.xlu0 %v1941
        %v1979 = vpop.xlane.xlu0 %1978
        %1980 = vmax.xlane.f32.xlu0 %v1942
        %v1981 = vpop.xlane.xlu0 %1980
        %1982 = vmax.xlane.f32.xlu0 %v1943
        %v1983 = vpop.xlane.xlu0 %1982
        %1984 = vmax.xlane.f32.xlu0 %v1944
        %v1985 = vpop.xlane.xlu0 %1984
        %1986 = vmax.xlane.f32.xlu0 %v1945
        %v1987 = vpop.xlane.xlu0 %1986
        %1988 = vmax.xlane.f32.xlu0 %v1946
        %v1989 = vpop.xlane.xlu0 %1988
        %1990 = vmax.xlane.f32.xlu0 %v1947
        %v1991 = vpop.xlane.xlu0 %1990
        %1992 = vmax.xlane.f32.xlu0 %v1948
        %v1993 = vpop.xlane.xlu0 %1992
        %1994 = vmax.xlane.f32.xlu0 %v1949
        %v1995 = vpop.xlane.xlu0 %1994
        %1996 = vmax.xlane.f32.xlu0 %v1950
        %v1997 = vpop.xlane.xlu0 %1996
        %1998 = vmax.xlane.f32.xlu0 %v1951
        %v1999 = vpop.xlane.xlu0 %1998
        %v2000 = vmax.f32 %v1952, %v1969
        %v2001 = vmax.f32 %v1953, %v1971
        %v2002 = vmax.f32 %v1954, %v1973
        %v2003 = vmax.f32 %v1955, %v1975
        %v2004 = vmax.f32 %v1956, %v1977
        %v2005 = vmax.f32 %v1957, %v1979
        %v2006 = vmax.f32 %v1958, %v1981
        %v2007 = vmax.f32 %v1959, %v1983
        %v2008 = vmax.f32 %v1960, %v1985
        %v2009 = vmax.f32 %v1961, %v1987
        %v2010 = vmax.f32 %v1962, %v1989
        %v2011 = vmax.f32 %v1963, %v1991
        %v2012 = vmax.f32 %v1964, %v1993
        %v2013 = vmax.f32 %v1965, %v1995
        %v2014 = vmax.f32 %v1966, %v1997
        %v2015 = vmax.f32 %v1967, %v1999
        %v2016 = vsub.f32 %v1952, %v2000
        %v2017 = vsub.f32 %v1953, %v2001
        %v2018 = vsub.f32 %v1954, %v2002
        %v2019 = vsub.f32 %v1955, %v2003
        %v2020 = vsub.f32 %v1956, %v2004
        %v2021 = vsub.f32 %v1957, %v2005
        %v2022 = vsub.f32 %v1958, %v2006
        %v2023 = vsub.f32 %v1959, %v2007
        %v2024 = vsub.f32 %v1960, %v2008
        %v2025 = vsub.f32 %v1961, %v2009
        %v2026 = vsub.f32 %v1962, %v2010
        %v2027 = vsub.f32 %v1963, %v2011
        %v2028 = vsub.f32 %v1964, %v2012
        %v2029 = vsub.f32 %v1965, %v2013
        %v2030 = vsub.f32 %v1966, %v2014
        %v2031 = vsub.f32 %v1967, %v2015
        %v2032 = vmul.f32 %v2016, 1.442695
        %v2033 = vpow.pop %v2032
        %v2034 = vmul.f32 %v2017, 1.442695
        %v2035 = vpow.pop %v2034
        %v2036 = vmul.f32 %v2018, 1.442695
        %v2037 = vpow.pop %v2036
        %v2038 = vmul.f32 %v2019, 1.442695
        %v2039 = vpow.pop %v2038
        %v2040 = vmul.f32 %v2020, 1.442695
        %v2041 = vpow.pop %v2040
        %v2042 = vmul.f32 %v2021, 1.442695
        %v2043 = vpow.pop %v2042
        %v2044 = vmul.f32 %v2022, 1.442695
        %v2045 = vpow.pop %v2044
        %v2046 = vmul.f32 %v2023, 1.442695
        %v2047 = vpow.pop %v2046
        %v2048 = vmul.f32 %v2024, 1.442695
        %v2049 = vpow.pop %v2048
        %v2050 = vmul.f32 %v2025, 1.442695
        %v2051 = vpow.pop %v2050
        %v2052 = vmul.f32 %v2026, 1.442695
        %v2053 = vpow.pop %v2052
        %v2054 = vmul.f32 %v2027, 1.442695
        %v2055 = vpow.pop %v2054
        %v2056 = vmul.f32 %v2028, 1.442695
        %v2057 = vpow.pop %v2056
        %v2058 = vmul.f32 %v2029, 1.442695
        %v2059 = vpow.pop %v2058
        %v2060 = vmul.f32 %v2030, 1.442695
        %v2061 = vpow.pop %v2060
        %v2062 = vmul.f32 %v2031, 1.442695
        %v2063 = vpow.pop %v2062
        %2065 = vset.pattern.permute.xlu0 1
        %2066 = vperm.xlu0 %2065, %v2000
        %v2067 = vpop.permute.xlu0 %2066
        %2070 = vset.pattern.permute.xlu0 1
        %2071 = vperm.xlu0 %2070, %v2001
        %v2072 = vpop.permute.xlu0 %2071
        %2075 = vset.pattern.permute.xlu0 1
        %2076 = vperm.xlu0 %2075, %v2002
        %v2077 = vpop.permute.xlu0 %2076
        %2080 = vset.pattern.permute.xlu0 1
        %2081 = vperm.xlu0 %2080, %v2003
        %v2082 = vpop.permute.xlu0 %2081
        %2085 = vset.pattern.permute.xlu0 1
        %2086 = vperm.xlu0 %2085, %v2004
        %v2087 = vpop.permute.xlu0 %2086
        %2090 = vset.pattern.permute.xlu0 1
        %2091 = vperm.xlu0 %2090, %v2005
        %v2092 = vpop.permute.xlu0 %2091
        %2095 = vset.pattern.permute.xlu0 1
        %2096 = vperm.xlu0 %2095, %v2006
        %v2097 = vpop.permute.xlu0 %2096
        %2100 = vset.pattern.permute.xlu0 1
        %2101 = vperm.xlu0 %2100, %v2007
        %v2102 = vpop.permute.xlu0 %2101
        %2105 = vset.pattern.permute.xlu0 1
        %2106 = vperm.xlu0 %2105, %v2008
        %v2107 = vpop.permute.xlu0 %2106
        %2110 = vset.pattern.permute.xlu0 1
        %2111 = vperm.xlu0 %2110, %v2009
        %v2112 = vpop.permute.xlu0 %2111
        %2115 = vset.pattern.permute.xlu0 1
        %2116 = vperm.xlu0 %2115, %v2010
        %v2117 = vpop.permute.xlu0 %2116
        %2120 = vset.pattern.permute.xlu0 1
        %2121 = vperm.xlu0 %2120, %v2011
        %v2122 = vpop.permute.xlu0 %2121
        %2125 = vset.pattern.permute.xlu0 1
        %2126 = vperm.xlu0 %2125, %v2012
        %v2127 = vpop.permute.xlu0 %2126
        %2130 = vset.pattern.permute.xlu0 1
        %2131 = vperm.xlu0 %2130, %v2013
        %v2132 = vpop.permute.xlu0 %2131
        %2135 = vset.pattern.permute.xlu0 1
        %2136 = vperm.xlu0 %2135, %v2014
        %v2137 = vpop.permute.xlu0 %2136
        %2140 = vset.pattern.permute.xlu0 1
        %2141 = vperm.xlu0 %2140, %v2015
        %v2142 = vpop.permute.xlu0 %2141
        %v2144 = vsub.f32 %v1936, %v2067
        %v2145 = vsub.f32 %v1937, %v2072
        %v2146 = vsub.f32 %v1938, %v2077
        %v2147 = vsub.f32 %v1939, %v2082
        %v2148 = vsub.f32 %v1940, %v2087
        %v2149 = vsub.f32 %v1941, %v2092
        %v2150 = vsub.f32 %v1942, %v2097
        %v2151 = vsub.f32 %v1943, %v2102
        %v2152 = vsub.f32 %v1944, %v2107
        %v2153 = vsub.f32 %v1945, %v2112
        %v2154 = vsub.f32 %v1946, %v2117
        %v2155 = vsub.f32 %v1947, %v2122
        %v2156 = vsub.f32 %v1948, %v2127
        %v2157 = vsub.f32 %v1949, %v2132
        %v2158 = vsub.f32 %v1950, %v2137
        %v2159 = vsub.f32 %v1951, %v2142
        %v2160 = vmul.f32 %v2144, 1.442695
        %v2161 = vpow.pop %v2160
        %v2162 = vmul.f32 %v2145, 1.442695
        %v2163 = vpow.pop %v2162
        %v2164 = vmul.f32 %v2146, 1.442695
        %v2165 = vpow.pop %v2164
        %v2166 = vmul.f32 %v2147, 1.442695
        %v2167 = vpow.pop %v2166
        %v2168 = vmul.f32 %v2148, 1.442695
        %v2169 = vpow.pop %v2168
        %v2170 = vmul.f32 %v2149, 1.442695
        %v2171 = vpow.pop %v2170
        %v2172 = vmul.f32 %v2150, 1.442695
        %v2173 = vpow.pop %v2172
        %v2174 = vmul.f32 %v2151, 1.442695
        %v2175 = vpow.pop %v2174
        %v2176 = vmul.f32 %v2152, 1.442695
        %v2177 = vpow.pop %v2176
        %v2178 = vmul.f32 %v2153, 1.442695
        %v2179 = vpow.pop %v2178
        %v2180 = vmul.f32 %v2154, 1.442695
        %v2181 = vpow.pop %v2180
        %v2182 = vmul.f32 %v2155, 1.442695
        %v2183 = vpow.pop %v2182
        %v2184 = vmul.f32 %v2156, 1.442695
        %v2185 = vpow.pop %v2184
        %v2186 = vmul.f32 %v2157, 1.442695
        %v2187 = vpow.pop %v2186
        %v2188 = vmul.f32 %v2158, 1.442695
        %v2189 = vpow.pop %v2188
        %v2190 = vmul.f32 %v2159, 1.442695
        %v2191 = vpow.pop %v2190
        %v2192 = vld [vmem:[#allocation3] sm:$0xff]
        %v2193 = vld [vmem:[#allocation3 + $0x8] sm:$0xff]
        %v2194 = vld [vmem:[#allocation3 + $0x10] sm:$0xff]
        %v2195 = vld [vmem:[#allocation3 + $0x18] sm:$0xff]
        %v2196 = vld [vmem:[#allocation3 + $0x20] sm:$0xff]
        %v2197 = vld [vmem:[#allocation3 + $0x28] sm:$0xff]
        %v2198 = vld [vmem:[#allocation3 + $0x30] sm:$0xff]
        %v2199 = vld [vmem:[#allocation3 + $0x38] sm:$0xff]
        %v2200 = vld [vmem:[#allocation3 + $0x40] sm:$0xff]
        %v2201 = vld [vmem:[#allocation3 + $0x48] sm:$0xff]
        %v2202 = vld [vmem:[#allocation3 + $0x50] sm:$0xff]
        %v2203 = vld [vmem:[#allocation3 + $0x58] sm:$0xff]
        %v2204 = vld [vmem:[#allocation3 + $0x60] sm:$0xff]
        %v2205 = vld [vmem:[#allocation3 + $0x68] sm:$0xff]
        %v2206 = vld [vmem:[#allocation3 + $0x70] sm:$0xff]
        %v2207 = vld [vmem:[#allocation3 + $0x78] sm:$0xff]
        %v2208 = vmul.f32 %v2033, %v2192
        %v2209 = vmul.f32 %v2035, %v2193
        %v2210 = vmul.f32 %v2037, %v2194
        %v2211 = vmul.f32 %v2039, %v2195
        %v2212 = vmul.f32 %v2041, %v2196
        %v2213 = vmul.f32 %v2043, %v2197
        %v2214 = vmul.f32 %v2045, %v2198
        %v2215 = vmul.f32 %v2047, %v2199
        %v2216 = vmul.f32 %v2049, %v2200
        %v2217 = vmul.f32 %v2051, %v2201
        %v2218 = vmul.f32 %v2053, %v2202
        %v2219 = vmul.f32 %v2055, %v2203
        %v2220 = vmul.f32 %v2057, %v2204
        %v2221 = vmul.f32 %v2059, %v2205
        %v2222 = vmul.f32 %v2061, %v2206
        %v2223 = vmul.f32 %v2063, %v2207
        %2224 = vadd.xlane.f32.xlu0 %v2161
        %v2225 = vpop.xlane.xlu0 %2224
        %2226 = vadd.xlane.f32.xlu0 %v2163
        %v2227 = vpop.xlane.xlu0 %2226
        %2228 = vadd.xlane.f32.xlu0 %v2165
        %v2229 = vpop.xlane.xlu0 %2228
        %2230 = vadd.xlane.f32.xlu0 %v2167
        %v2231 = vpop.xlane.xlu0 %2230
        %2232 = vadd.xlane.f32.xlu0 %v2169
        %v2233 = vpop.xlane.xlu0 %2232
        %2234 = vadd.xlane.f32.xlu0 %v2171
        %v2235 = vpop.xlane.xlu0 %2234
        %2236 = vadd.xlane.f32.xlu0 %v2173
        %v2237 = vpop.xlane.xlu0 %2236
        %2238 = vadd.xlane.f32.xlu0 %v2175
        %v2239 = vpop.xlane.xlu0 %2238
        %2240 = vadd.xlane.f32.xlu0 %v2177
        %v2241 = vpop.xlane.xlu0 %2240
        %2242 = vadd.xlane.f32.xlu0 %v2179
        %v2243 = vpop.xlane.xlu0 %2242
        %2244 = vadd.xlane.f32.xlu0 %v2181
        %v2245 = vpop.xlane.xlu0 %2244
        %2246 = vadd.xlane.f32.xlu0 %v2183
        %v2247 = vpop.xlane.xlu0 %2246
        %2248 = vadd.xlane.f32.xlu0 %v2185
        %v2249 = vpop.xlane.xlu0 %2248
        %2250 = vadd.xlane.f32.xlu0 %v2187
        %v2251 = vpop.xlane.xlu0 %2250
        %2252 = vadd.xlane.f32.xlu0 %v2189
        %v2253 = vpop.xlane.xlu0 %2252
        %2254 = vadd.xlane.f32.xlu0 %v2191
        %v2255 = vpop.xlane.xlu0 %2254
        %v2256 = vadd.f32 %v2208, %v2225
        %v2257 = vadd.f32 %v2209, %v2227
        %v2258 = vadd.f32 %v2210, %v2229
        %v2259 = vadd.f32 %v2211, %v2231
        %v2260 = vadd.f32 %v2212, %v2233
        %v2261 = vadd.f32 %v2213, %v2235
        %v2262 = vadd.f32 %v2214, %v2237
        %v2263 = vadd.f32 %v2215, %v2239
        %v2264 = vadd.f32 %v2216, %v2241
        %v2265 = vadd.f32 %v2217, %v2243
        %v2266 = vadd.f32 %v2218, %v2245
        %v2267 = vadd.f32 %v2219, %v2247
        %v2268 = vadd.f32 %v2220, %v2249
        %v2269 = vadd.f32 %v2221, %v2251
        %v2270 = vadd.f32 %v2222, %v2253
        %v2271 = vadd.f32 %v2223, %v2255
        %vm2272 = vcmask 15368
        %2273 = vst.msk [vmem:[#allocation3] sm:$0xff] %vm2272, %v2256
        %2274 = vst.msk [vmem:[#allocation3 + $0x8] sm:$0xff] %vm2272, %v2257
        %2275 = vst.msk [vmem:[#allocation3 + $0x10] sm:$0xff] %vm2272, %v2258
        %2276 = vst.msk [vmem:[#allocation3 + $0x18] sm:$0xff] %vm2272, %v2259
        %2277 = vst.msk [vmem:[#allocation3 + $0x20] sm:$0xff] %vm2272, %v2260
        %2278 = vst.msk [vmem:[#allocation3 + $0x28] sm:$0xff] %vm2272, %v2261
        %2279 = vst.msk [vmem:[#allocation3 + $0x30] sm:$0xff] %vm2272, %v2262
        %2280 = vst.msk [vmem:[#allocation3 + $0x38] sm:$0xff] %vm2272, %v2263
        %2281 = vst.msk [vmem:[#allocation3 + $0x40] sm:$0xff] %vm2272, %v2264
        %2282 = vst.msk [vmem:[#allocation3 + $0x48] sm:$0xff] %vm2272, %v2265
        %2283 = vst.msk [vmem:[#allocation3 + $0x50] sm:$0xff] %vm2272, %v2266
        %2284 = vst.msk [vmem:[#allocation3 + $0x58] sm:$0xff] %vm2272, %v2267
        %2285 = vst.msk [vmem:[#allocation3 + $0x60] sm:$0xff] %vm2272, %v2268
        %2286 = vst.msk [vmem:[#allocation3 + $0x68] sm:$0xff] %vm2272, %v2269
        %2287 = vst.msk [vmem:[#allocation3 + $0x70] sm:$0xff] %vm2272, %v2270
        %2288 = vst.msk [vmem:[#allocation3 + $0x78] sm:$0xff] %vm2272, %v2271
        %v2289 = vld [vmem:[#allocation4] sm:$0xff]
        %v2290 = vld [vmem:[#allocation4 + $0x8] sm:$0xff]
        %v2291 = vld [vmem:[#allocation4 + $0x10] sm:$0xff]
        %v2292 = vld [vmem:[#allocation4 + $0x18] sm:$0xff]
        %v2293 = vld [vmem:[#allocation4 + $0x20] sm:$0xff]
        %v2294 = vld [vmem:[#allocation4 + $0x28] sm:$0xff]
        %v2295 = vld [vmem:[#allocation4 + $0x30] sm:$0xff]
        %v2296 = vld [vmem:[#allocation4 + $0x38] sm:$0xff]
        %v2297 = vld [vmem:[#allocation4 + $0x40] sm:$0xff]
        %v2298 = vld [vmem:[#allocation4 + $0x48] sm:$0xff]
        %v2299 = vld [vmem:[#allocation4 + $0x50] sm:$0xff]
        %v2300 = vld [vmem:[#allocation4 + $0x58] sm:$0xff]
        %v2301 = vld [vmem:[#allocation4 + $0x60] sm:$0xff]
        %v2302 = vld [vmem:[#allocation4 + $0x68] sm:$0xff]
        %v2303 = vld [vmem:[#allocation4 + $0x70] sm:$0xff]
        %v2304 = vld [vmem:[#allocation4 + $0x78] sm:$0xff]
        %2306 = vset.pattern.permute.xlu0 1
        %2307 = vperm.xlu0 %2306, %v2033
        %v2308 = vpop.permute.xlu0 %2307
        %2311 = vset.pattern.permute.xlu0 1
        %2312 = vperm.xlu0 %2311, %v2035
        %v2313 = vpop.permute.xlu0 %2312
        %2316 = vset.pattern.permute.xlu0 1
        %2317 = vperm.xlu0 %2316, %v2037
        %v2318 = vpop.permute.xlu0 %2317
        %2321 = vset.pattern.permute.xlu0 1
        %2322 = vperm.xlu0 %2321, %v2039
        %v2323 = vpop.permute.xlu0 %2322
        %2326 = vset.pattern.permute.xlu0 1
        %2327 = vperm.xlu0 %2326, %v2041
        %v2328 = vpop.permute.xlu0 %2327
        %2331 = vset.pattern.permute.xlu0 1
        %2332 = vperm.xlu0 %2331, %v2043
        %v2333 = vpop.permute.xlu0 %2332
        %2336 = vset.pattern.permute.xlu0 1
        %2337 = vperm.xlu0 %2336, %v2045
        %v2338 = vpop.permute.xlu0 %2337
        %2341 = vset.pattern.permute.xlu0 1
        %2342 = vperm.xlu0 %2341, %v2047
        %v2343 = vpop.permute.xlu0 %2342
        %2346 = vset.pattern.permute.xlu0 1
        %2347 = vperm.xlu0 %2346, %v2049
        %v2348 = vpop.permute.xlu0 %2347
        %2351 = vset.pattern.permute.xlu0 1
        %2352 = vperm.xlu0 %2351, %v2051
        %v2353 = vpop.permute.xlu0 %2352
        %2356 = vset.pattern.permute.xlu0 1
        %2357 = vperm.xlu0 %2356, %v2053
        %v2358 = vpop.permute.xlu0 %2357
        %2361 = vset.pattern.permute.xlu0 1
        %2362 = vperm.xlu0 %2361, %v2055
        %v2363 = vpop.permute.xlu0 %2362
        %2366 = vset.pattern.permute.xlu0 1
        %2367 = vperm.xlu0 %2366, %v2057
        %v2368 = vpop.permute.xlu0 %2367
        %2371 = vset.pattern.permute.xlu0 1
        %2372 = vperm.xlu0 %2371, %v2059
        %v2373 = vpop.permute.xlu0 %2372
        %2376 = vset.pattern.permute.xlu0 1
        %2377 = vperm.xlu0 %2376, %v2061
        %v2378 = vpop.permute.xlu0 %2377
        %2381 = vset.pattern.permute.xlu0 1
        %2382 = vperm.xlu0 %2381, %v2063
        %v2383 = vpop.permute.xlu0 %2382
        %v2385 = vmul.f32 %v2308, %v2289
        %v2386 = vmul.f32 %v2313, %v2290
        %v2387 = vmul.f32 %v2318, %v2291
        %v2388 = vmul.f32 %v2323, %v2292
        %v2389 = vmul.f32 %v2328, %v2293
        %v2390 = vmul.f32 %v2333, %v2294
        %v2391 = vmul.f32 %v2338, %v2295
        %v2392 = vmul.f32 %v2343, %v2296
        %v2393 = vmul.f32 %v2348, %v2297
        %v2394 = vmul.f32 %v2353, %v2298
        %v2395 = vmul.f32 %v2358, %v2299
        %v2396 = vmul.f32 %v2363, %v2300
        %v2397 = vmul.f32 %v2368, %v2301
        %v2398 = vmul.f32 %v2373, %v2302
        %v2399 = vmul.f32 %v2378, %v2303
        %v2400 = vmul.f32 %v2383, %v2304
        %v2401 = vpack.c.bf16 %v2163, %v2161
        %v2402 = vpack.c.bf16 %v2167, %v2165
        %v2403 = vpack.c.bf16 %v2171, %v2169
        %v2404 = vpack.c.bf16 %v2175, %v2173
        %v2405 = vpack.c.bf16 %v2179, %v2177
        %v2406 = vpack.c.bf16 %v2183, %v2181
        %v2407 = vpack.c.bf16 %v2187, %v2185
        %v2408 = vpack.c.bf16 %v2191, %v2189
        %v2409 = vld [vmem:[%s556] sm:$0xf]
        %v2410 = vld [vmem:[%s556 + $0x4] sm:$0xf]
        %v2411 = vld [vmem:[%s556 + $0x8] sm:$0xf]
        %v2412 = vld [vmem:[%s556 + $0xc] sm:$0xf]
        %v2413 = vld [vmem:[%s556 + $0x10] sm:$0xf]
        %v2414 = vld [vmem:[%s556 + $0x14] sm:$0xf]
        %v2415 = vld [vmem:[%s556 + $0x18] sm:$0xf]
        %v2416 = vld [vmem:[%s556 + $0x1c] sm:$0xf]
        %v2417 = vld [vmem:[%s556 + $0x20] sm:$0xf]
        %v2418 = vld [vmem:[%s556 + $0x24] sm:$0xf]
        %v2419 = vld [vmem:[%s556 + $0x28] sm:$0xf]
        %v2420 = vld [vmem:[%s556 + $0x2c] sm:$0xf]
        %v2421 = vld [vmem:[%s556 + $0x30] sm:$0xf]
        %v2422 = vld [vmem:[%s556 + $0x34] sm:$0xf]
        %v2423 = vld [vmem:[%s556 + $0x38] sm:$0xf]
        %v2424 = vld [vmem:[%s556 + $0x3c] sm:$0xf]
        %v2441 = vunpack.c.l.b16 %v2409
        %v2442 = vunpack.c.l.b16 %v2410
        %v2443 = vunpack.c.l.b16 %v2411
        %v2444 = vunpack.c.l.b16 %v2412
        %v2445 = vunpack.c.l.b16 %v2413
        %v2446 = vunpack.c.l.b16 %v2414
        %v2447 = vunpack.c.l.b16 %v2415
        %v2448 = vunpack.c.l.b16 %v2416
        %v2449 = vunpack.c.l.b16 %v2417
        %v2450 = vunpack.c.l.b16 %v2418
        %v2451 = vunpack.c.l.b16 %v2419
        %v2452 = vunpack.c.l.b16 %v2420
        %v2453 = vunpack.c.l.b16 %v2421
        %v2454 = vunpack.c.l.b16 %v2422
        %v2455 = vunpack.c.l.b16 %v2423
        %v2456 = vunpack.c.l.b16 %v2424
        %v2457 = vpack.c.b16 %v2442, %v2441
        %v2458 = vpack.c.b16 %v2444, %v2443
        %v2459 = vpack.c.b16 %v2446, %v2445
        %v2460 = vpack.c.b16 %v2448, %v2447
        %v2461 = vpack.c.b16 %v2450, %v2449
        %v2462 = vpack.c.b16 %v2452, %v2451
        %v2463 = vpack.c.b16 %v2454, %v2453
        %v2464 = vpack.c.b16 %v2456, %v2455
        %2465 = vrot.lane.b32.xlu0 %v2457, 64
        %v2466 = vpop.permute.xlu0 %2465
        %2467 = vrot.lane.b32.xlu0 %v2458, 64
        %v2468 = vpop.permute.xlu0 %2467
        %2469 = vrot.lane.b32.xlu0 %v2459, 64
        %v2470 = vpop.permute.xlu0 %2469
        %2471 = vrot.lane.b32.xlu0 %v2460, 64
        %v2472 = vpop.permute.xlu0 %2471
        %2473 = vrot.lane.b32.xlu0 %v2461, 64
        %v2474 = vpop.permute.xlu0 %2473
        %2475 = vrot.lane.b32.xlu0 %v2462, 64
        %v2476 = vpop.permute.xlu0 %2475
        %2477 = vrot.lane.b32.xlu0 %v2463, 64
        %v2478 = vpop.permute.xlu0 %2477
        %2479 = vrot.lane.b32.xlu0 %v2464, 64
        %v2480 = vpop.permute.xlu0 %2479
        %2489 = vmatprep.subr.bf16.mxu0 0
        %2490 = vmatpush1.bf16.msra.mxu0 %v2466
        %2491 = vmatprep.subr.bf16.mxu0 0
        %2492 = vmatpush1.bf16.msra.mxu0 %v2468
        %2493 = vmatprep.subr.bf16.mxu0 0
        %2494 = vmatpush1.bf16.msra.mxu0 %v2470
        %2495 = vmatprep.subr.bf16.mxu0 0
        %2496 = vmatpush1.bf16.msra.mxu0 %v2472
        %2497 = vmatprep.subr.bf16.mxu0 0
        %2498 = vmatpush1.bf16.msra.mxu0 %v2474
        %2499 = vmatprep.subr.bf16.mxu0 0
        %2500 = vmatpush1.bf16.msra.mxu0 %v2476
        %2501 = vmatprep.subr.bf16.mxu0 0
        %2502 = vmatpush1.bf16.msra.mxu0 %v2478
        %2503 = vmatprep.subr.bf16.mxu0 0
        %2504 = vmatpush1.bf16.msra.mxu0 %v2480
        %2505 = vmatprep.subr.bf16.mxu0 0
        %2506 = vmatpush1.bf16.msra.mxu0 0
        %2507 = vmatprep.subr.bf16.mxu0 0
        %2508 = vmatpush1.bf16.msra.mxu0 0
        %2509 = vmatprep.subr.bf16.mxu0 0
        %2510 = vmatpush1.bf16.msra.mxu0 0
        %2511 = vmatprep.subr.bf16.mxu0 0
        %2512 = vmatpush1.bf16.msra.mxu0 0
        %2513 = vmatprep.subr.bf16.mxu0 0
        %2514 = vmatpush1.bf16.msra.mxu0 0
        %2515 = vmatprep.subr.bf16.mxu0 0
        %2516 = vmatpush1.bf16.msra.mxu0 0
        %2517 = vmatprep.subr.bf16.mxu0 0
        %2518 = vmatpush1.bf16.msra.mxu0 0
        %2519 = vmatprep.subr.bf16.mxu0 0
        %2520 = vmatpush1.bf16.msra.mxu0 0
        %2521 = vmatprep.mubr.bf16.mxu0 0
        %2522 = vmatmul.mubr.bf16.gmra.mrb[0].mxu0 %v2401
        %v2523 = vpop.f32.mrb[0].mxu0
        %v2524 = vadd.f32 0.0, %v2523
        %v2525 = vpop.f32.mrb[0].mxu0
        %v2526 = vpop.f32.mrb[0].mxu0
        %v2527 = vadd.f32 0.0, %v2526
        %v2528 = vpop.f32.mrb[0].mxu0
        %2529 = vmatprep.mubr.bf16.mxu0 0
        %2530 = vmatmul.mubr.bf16.gmra.mrb[0].mxu0 %v2402
        %v2531 = vpop.f32.mrb[0].mxu0
        %v2532 = vadd.f32 0.0, %v2531
        %v2533 = vpop.f32.mrb[0].mxu0
        %v2534 = vpop.f32.mrb[0].mxu0
        %v2535 = vadd.f32 0.0, %v2534
        %v2536 = vpop.f32.mrb[0].mxu0
        %2537 = vmatprep.mubr.bf16.mxu0 0
        %2538 = vmatmul.mubr.bf16.gmra.mrb[0].mxu0 %v2403
        %v2539 = vpop.f32.mrb[0].mxu0
        %v2540 = vadd.f32 0.0, %v2539
        %v2541 = vpop.f32.mrb[0].mxu0
        %v2542 = vpop.f32.mrb[0].mxu0
        %v2543 = vadd.f32 0.0, %v2542
        %v2544 = vpop.f32.mrb[0].mxu0
        %2545 = vmatprep.mubr.bf16.mxu0 0
        %2546 = vmatmul.mubr.bf16.gmra.mrb[0].mxu0 %v2404
        %v2547 = vpop.f32.mrb[0].mxu0
        %v2548 = vadd.f32 0.0, %v2547
        %v2549 = vpop.f32.mrb[0].mxu0
        %v2550 = vpop.f32.mrb[0].mxu0
        %v2551 = vadd.f32 0.0, %v2550
        %v2552 = vpop.f32.mrb[0].mxu0
        %2553 = vmatprep.mubr.bf16.mxu0 0
        %2554 = vmatmul.mubr.bf16.gmra.mrb[0].mxu0 %v2405
        %v2555 = vpop.f32.mrb[0].mxu0
        %v2556 = vadd.f32 0.0, %v2555
        %v2557 = vpop.f32.mrb[0].mxu0
        %v2558 = vpop.f32.mrb[0].mxu0
        %v2559 = vadd.f32 0.0, %v2558
        %v2560 = vpop.f32.mrb[0].mxu0
        %2561 = vmatprep.mubr.bf16.mxu0 0
        %2562 = vmatmul.mubr.bf16.gmra.mrb[0].mxu0 %v2406
        %v2563 = vpop.f32.mrb[0].mxu0
        %v2564 = vadd.f32 0.0, %v2563
        %v2565 = vpop.f32.mrb[0].mxu0
        %v2566 = vpop.f32.mrb[0].mxu0
        %v2567 = vadd.f32 0.0, %v2566
        %v2568 = vpop.f32.mrb[0].mxu0
        %2569 = vmatprep.mubr.bf16.mxu0 0
        %2570 = vmatmul.mubr.bf16.gmra.mrb[0].mxu0 %v2407
        %v2571 = vpop.f32.mrb[0].mxu0
        %v2572 = vadd.f32 0.0, %v2571
        %v2573 = vpop.f32.mrb[0].mxu0
        %v2574 = vpop.f32.mrb[0].mxu0
        %v2575 = vadd.f32 0.0, %v2574
        %v2576 = vpop.f32.mrb[0].mxu0
        %2577 = vmatprep.mubr.bf16.mxu0 0
        %2578 = vmatmul.mubr.bf16.gmra.mrb[0].mxu0 %v2408
        %v2579 = vpop.f32.mrb[0].mxu0
        %v2580 = vadd.f32 0.0, %v2579
        %v2581 = vpop.f32.mrb[0].mxu0
        %v2582 = vpop.f32.mrb[0].mxu0
        %v2583 = vadd.f32 0.0, %v2582
        %v2584 = vpop.f32.mrb[0].mxu0
        %2585 = vdwg.mxu0
        %2602 = vrot.lane.b32.xlu0 %v2524, 64
        %v2603 = vpop.permute.xlu0 %2602
        %2604 = vrot.lane.b32.xlu0 %v2527, 64
        %v2605 = vpop.permute.xlu0 %2604
        %2606 = vrot.lane.b32.xlu0 %v2532, 64
        %v2607 = vpop.permute.xlu0 %2606
        %2608 = vrot.lane.b32.xlu0 %v2535, 64
        %v2609 = vpop.permute.xlu0 %2608
        %2610 = vrot.lane.b32.xlu0 %v2540, 64
        %v2611 = vpop.permute.xlu0 %2610
        %2612 = vrot.lane.b32.xlu0 %v2543, 64
        %v2613 = vpop.permute.xlu0 %2612
        %2614 = vrot.lane.b32.xlu0 %v2548, 64
        %v2615 = vpop.permute.xlu0 %2614
        %2616 = vrot.lane.b32.xlu0 %v2551, 64
        %v2617 = vpop.permute.xlu0 %2616
        %2618 = vrot.lane.b32.xlu0 %v2556, 64
        %v2619 = vpop.permute.xlu0 %2618
        %2620 = vrot.lane.b32.xlu0 %v2559, 64
        %v2621 = vpop.permute.xlu0 %2620
        %2622 = vrot.lane.b32.xlu0 %v2564, 64
        %v2623 = vpop.permute.xlu0 %2622
        %2624 = vrot.lane.b32.xlu0 %v2567, 64
        %v2625 = vpop.permute.xlu0 %2624
        %2626 = vrot.lane.b32.xlu0 %v2572, 64
        %v2627 = vpop.permute.xlu0 %2626
        %2628 = vrot.lane.b32.xlu0 %v2575, 64
        %v2629 = vpop.permute.xlu0 %2628
        %2630 = vrot.lane.b32.xlu0 %v2580, 64
        %v2631 = vpop.permute.xlu0 %2630
        %2632 = vrot.lane.b32.xlu0 %v2583, 64
        %v2633 = vpop.permute.xlu0 %2632
        %v2650 = vadd.f32 %v2385, %v2603
        %v2651 = vadd.f32 %v2386, %v2605
        %v2652 = vadd.f32 %v2387, %v2607
        %v2653 = vadd.f32 %v2388, %v2609
        %v2654 = vadd.f32 %v2389, %v2611
        %v2655 = vadd.f32 %v2390, %v2613
        %v2656 = vadd.f32 %v2391, %v2615
        %v2657 = vadd.f32 %v2392, %v2617
        %v2658 = vadd.f32 %v2393, %v2619
        %v2659 = vadd.f32 %v2394, %v2621
        %v2660 = vadd.f32 %v2395, %v2623
        %v2661 = vadd.f32 %v2396, %v2625
        %v2662 = vadd.f32 %v2397, %v2627
        %v2663 = vadd.f32 %v2398, %v2629
        %v2664 = vadd.f32 %v2399, %v2631
        %v2665 = vadd.f32 %v2400, %v2633
        %vm2666 = vcmask 1048064
        %2667 = vst.msk [vmem:[#allocation4] sm:$0xff] %vm2666, %v2650
        %2668 = vst.msk [vmem:[#allocation4 + $0x8] sm:$0xff] %vm2666, %v2651
        %2669 = vst.msk [vmem:[#allocation4 + $0x10] sm:$0xff] %vm2666, %v2652
        %2670 = vst.msk [vmem:[#allocation4 + $0x18] sm:$0xff] %vm2666, %v2653
        %2671 = vst.msk [vmem:[#allocation4 + $0x20] sm:$0xff] %vm2666, %v2654
        %2672 = vst.msk [vmem:[#allocation4 + $0x28] sm:$0xff] %vm2666, %v2655
        %2673 = vst.msk [vmem:[#allocation4 + $0x30] sm:$0xff] %vm2666, %v2656
        %2674 = vst.msk [vmem:[#allocation4 + $0x38] sm:$0xff] %vm2666, %v2657
        %2675 = vst.msk [vmem:[#allocation4 + $0x40] sm:$0xff] %vm2666, %v2658
        %2676 = vst.msk [vmem:[#allocation4 + $0x48] sm:$0xff] %vm2666, %v2659
        %2677 = vst.msk [vmem:[#allocation4 + $0x50] sm:$0xff] %vm2666, %v2660
        %2678 = vst.msk [vmem:[#allocation4 + $0x58] sm:$0xff] %vm2666, %v2661
        %2679 = vst.msk [vmem:[#allocation4 + $0x60] sm:$0xff] %vm2666, %v2662
        %2680 = vst.msk [vmem:[#allocation4 + $0x68] sm:$0xff] %vm2666, %v2663
        %2681 = vst.msk [vmem:[#allocation4 + $0x70] sm:$0xff] %vm2666, %v2664
        %2682 = vst.msk [vmem:[#allocation4 + $0x78] sm:$0xff] %vm2666, %v2665
        %2683 = vst.msk [vmem:[#allocation2] sm:$0xff] %vm2272, %v2000
        %2684 = vst.msk [vmem:[#allocation2 + $0x8] sm:$0xff] %vm2272, %v2001
        %2685 = vst.msk [vmem:[#allocation2 + $0x10] sm:$0xff] %vm2272, %v2002
        %2686 = vst.msk [vmem:[#allocation2 + $0x18] sm:$0xff] %vm2272, %v2003
        %2687 = vst.msk [vmem:[#allocation2 + $0x20] sm:$0xff] %vm2272, %v2004
        %2688 = vst.msk [vmem:[#allocation2 + $0x28] sm:$0xff] %vm2272, %v2005
        %2689 = vst.msk [vmem:[#allocation2 + $0x30] sm:$0xff] %vm2272, %v2006
        %2690 = vst.msk [vmem:[#allocation2 + $0x38] sm:$0xff] %vm2272, %v2007
        %2691 = vst.msk [vmem:[#allocation2 + $0x40] sm:$0xff] %vm2272, %v2008
        %2692 = vst.msk [vmem:[#allocation2 + $0x48] sm:$0xff] %vm2272, %v2009
        %2693 = vst.msk [vmem:[#allocation2 + $0x50] sm:$0xff] %vm2272, %v2010
        %2694 = vst.msk [vmem:[#allocation2 + $0x58] sm:$0xff] %vm2272, %v2011
        %2695 = vst.msk [vmem:[#allocation2 + $0x60] sm:$0xff] %vm2272, %v2012
        %2696 = vst.msk [vmem:[#allocation2 + $0x68] sm:$0xff] %vm2272, %v2013
        %2697 = vst.msk [vmem:[#allocation2 + $0x70] sm:$0xff] %vm2272, %v2014
        %2698 = vst.msk [vmem:[#allocation2 + $0x78] sm:$0xff] %vm2272, %v2015
        // Predicated region
        $region164: #{bert_classifier_forward.13} parent=146 // pred_check
          %p2699 = pneg %p615
        $region165: #{bert_classifier_forward.13} parent=146 // pred_check_branch
          %2701 = sbr.rel (%p2699) target = $region167
        $region166: #{bert_classifier_forward.13} parent=146 // pred_region
          %v2702 = vld [vmem:[#allocation4] sm:$0xff]
          %v2703 = vld [vmem:[#allocation4 + $0x8] sm:$0xff]
          %v2704 = vld [vmem:[#allocation4 + $0x10] sm:$0xff]
          %v2705 = vld [vmem:[#allocation4 + $0x18] sm:$0xff]
          %v2706 = vld [vmem:[#allocation4 + $0x20] sm:$0xff]
          %v2707 = vld [vmem:[#allocation4 + $0x28] sm:$0xff]
          %v2708 = vld [vmem:[#allocation4 + $0x30] sm:$0xff]
          %v2709 = vld [vmem:[#allocation4 + $0x38] sm:$0xff]
          %v2710 = vld [vmem:[#allocation4 + $0x40] sm:$0xff]
          %v2711 = vld [vmem:[#allocation4 + $0x48] sm:$0xff]
          %v2712 = vld [vmem:[#allocation4 + $0x50] sm:$0xff]
          %v2713 = vld [vmem:[#allocation4 + $0x58] sm:$0xff]
          %v2714 = vld [vmem:[#allocation4 + $0x60] sm:$0xff]
          %v2715 = vld [vmem:[#allocation4 + $0x68] sm:$0xff]
          %v2716 = vld [vmem:[#allocation4 + $0x70] sm:$0xff]
          %v2717 = vld [vmem:[#allocation4 + $0x78] sm:$0xff]
          %v2718 = vld [vmem:[#allocation3] sm:$0xff]
          %v2719 = vld [vmem:[#allocation3 + $0x8] sm:$0xff]
          %v2720 = vld [vmem:[#allocation3 + $0x10] sm:$0xff]
          %v2721 = vld [vmem:[#allocation3 + $0x18] sm:$0xff]
          %v2722 = vld [vmem:[#allocation3 + $0x20] sm:$0xff]
          %v2723 = vld [vmem:[#allocation3 + $0x28] sm:$0xff]
          %v2724 = vld [vmem:[#allocation3 + $0x30] sm:$0xff]
          %v2725 = vld [vmem:[#allocation3 + $0x38] sm:$0xff]
          %v2726 = vld [vmem:[#allocation3 + $0x40] sm:$0xff]
          %v2727 = vld [vmem:[#allocation3 + $0x48] sm:$0xff]
          %v2728 = vld [vmem:[#allocation3 + $0x50] sm:$0xff]
          %v2729 = vld [vmem:[#allocation3 + $0x58] sm:$0xff]
          %v2730 = vld [vmem:[#allocation3 + $0x60] sm:$0xff]
          %v2731 = vld [vmem:[#allocation3 + $0x68] sm:$0xff]
          %v2732 = vld [vmem:[#allocation3 + $0x70] sm:$0xff]
          %v2733 = vld [vmem:[#allocation3 + $0x78] sm:$0xff]
          %v2734 = vrcp.pop %v2718
          %v2735 = vrcp.pop %v2719
          %v2736 = vrcp.pop %v2720
          %v2737 = vrcp.pop %v2721
          %v2738 = vrcp.pop %v2722
          %v2739 = vrcp.pop %v2723
          %v2740 = vrcp.pop %v2724
          %v2741 = vrcp.pop %v2725
          %v2742 = vrcp.pop %v2726
          %v2743 = vrcp.pop %v2727
          %v2744 = vrcp.pop %v2728
          %v2745 = vrcp.pop %v2729
          %v2746 = vrcp.pop %v2730
          %v2747 = vrcp.pop %v2731
          %v2748 = vrcp.pop %v2732
          %v2749 = vrcp.pop %v2733
          %2751 = vset.pattern.permute.xlu0 0
          %2752 = vperm.xlu0 %2751, %v2734
          %v2753 = vpop.permute.xlu0 %2752
          %2756 = vset.pattern.permute.xlu0 0
          %2757 = vperm.xlu0 %2756, %v2735
          %v2758 = vpop.permute.xlu0 %2757
          %2761 = vset.pattern.permute.xlu0 0
          %2762 = vperm.xlu0 %2761, %v2736
          %v2763 = vpop.permute.xlu0 %2762
          %2766 = vset.pattern.permute.xlu0 0
          %2767 = vperm.xlu0 %2766, %v2737
          %v2768 = vpop.permute.xlu0 %2767
          %2771 = vset.pattern.permute.xlu0 0
          %2772 = vperm.xlu0 %2771, %v2738
          %v2773 = vpop.permute.xlu0 %2772
          %2776 = vset.pattern.permute.xlu0 0
          %2777 = vperm.xlu0 %2776, %v2739
          %v2778 = vpop.permute.xlu0 %2777
          %2781 = vset.pattern.permute.xlu0 0
          %2782 = vperm.xlu0 %2781, %v2740
          %v2783 = vpop.permute.xlu0 %2782
          %2786 = vset.pattern.permute.xlu0 0
          %2787 = vperm.xlu0 %2786, %v2741
          %v2788 = vpop.permute.xlu0 %2787
          %2791 = vset.pattern.permute.xlu0 0
          %2792 = vperm.xlu0 %2791, %v2742
          %v2793 = vpop.permute.xlu0 %2792
          %2796 = vset.pattern.permute.xlu0 0
          %2797 = vperm.xlu0 %2796, %v2743
          %v2798 = vpop.permute.xlu0 %2797
          %2801 = vset.pattern.permute.xlu0 0
          %2802 = vperm.xlu0 %2801, %v2744
          %v2803 = vpop.permute.xlu0 %2802
          %2806 = vset.pattern.permute.xlu0 0
          %2807 = vperm.xlu0 %2806, %v2745
          %v2808 = vpop.permute.xlu0 %2807
          %2811 = vset.pattern.permute.xlu0 0
          %2812 = vperm.xlu0 %2811, %v2746
          %v2813 = vpop.permute.xlu0 %2812
          %2816 = vset.pattern.permute.xlu0 0
          %2817 = vperm.xlu0 %2816, %v2747
          %v2818 = vpop.permute.xlu0 %2817
          %2821 = vset.pattern.permute.xlu0 0
          %2822 = vperm.xlu0 %2821, %v2748
          %v2823 = vpop.permute.xlu0 %2822
          %2826 = vset.pattern.permute.xlu0 0
          %2827 = vperm.xlu0 %2826, %v2749
          %v2828 = vpop.permute.xlu0 %2827
          %v2830 = vmul.f32 %v2702, %v2753
          %v2831 = vmul.f32 %v2703, %v2758
          %v2832 = vmul.f32 %v2704, %v2763
          %v2833 = vmul.f32 %v2705, %v2768
          %v2834 = vmul.f32 %v2706, %v2773
          %v2835 = vmul.f32 %v2707, %v2778
          %v2836 = vmul.f32 %v2708, %v2783
          %v2837 = vmul.f32 %v2709, %v2788
          %v2838 = vmul.f32 %v2710, %v2793
          %v2839 = vmul.f32 %v2711, %v2798
          %v2840 = vmul.f32 %v2712, %v2803
          %v2841 = vmul.f32 %v2713, %v2808
          %v2842 = vmul.f32 %v2714, %v2813
          %v2843 = vmul.f32 %v2715, %v2818
          %v2844 = vmul.f32 %v2716, %v2823
          %v2845 = vmul.f32 %v2717, %v2828
          %2846 = vset.pattern.permute.xlu0 1
          %2847 = vperm.xlu0 %2846, %v2734
          %v2848 = vpop.permute.xlu0 %2847
          %2850 = vset.pattern.permute.xlu0 1
          %2851 = vperm.xlu0 %2850, %v2735
          %v2852 = vpop.permute.xlu0 %2851
          %2854 = vset.pattern.permute.xlu0 1
          %2855 = vperm.xlu0 %2854, %v2736
          %v2856 = vpop.permute.xlu0 %2855
          %2858 = vset.pattern.permute.xlu0 1
          %2859 = vperm.xlu0 %2858, %v2737
          %v2860 = vpop.permute.xlu0 %2859
          %2862 = vset.pattern.permute.xlu0 1
          %2863 = vperm.xlu0 %2862, %v2738
          %v2864 = vpop.permute.xlu0 %2863
          %2866 = vset.pattern.permute.xlu0 1
          %2867 = vperm.xlu0 %2866, %v2739
          %v2868 = vpop.permute.xlu0 %2867
          %2870 = vset.pattern.permute.xlu0 1
          %2871 = vperm.xlu0 %2870, %v2740
          %v2872 = vpop.permute.xlu0 %2871
          %2874 = vset.pattern.permute.xlu0 1
          %2875 = vperm.xlu0 %2874, %v2741
          %v2876 = vpop.permute.xlu0 %2875
          %2878 = vset.pattern.permute.xlu0 1
          %2879 = vperm.xlu0 %2878, %v2742
          %v2880 = vpop.permute.xlu0 %2879
          %2882 = vset.pattern.permute.xlu0 1
          %2883 = vperm.xlu0 %2882, %v2743
          %v2884 = vpop.permute.xlu0 %2883
          %2886 = vset.pattern.permute.xlu0 1
          %2887 = vperm.xlu0 %2886, %v2744
          %v2888 = vpop.permute.xlu0 %2887
          %2890 = vset.pattern.permute.xlu0 1
          %2891 = vperm.xlu0 %2890, %v2745
          %v2892 = vpop.permute.xlu0 %2891
          %2894 = vset.pattern.permute.xlu0 1
          %2895 = vperm.xlu0 %2894, %v2746
          %v2896 = vpop.permute.xlu0 %2895
          %2898 = vset.pattern.permute.xlu0 1
          %2899 = vperm.xlu0 %2898, %v2747
          %v2900 = vpop.permute.xlu0 %2899
          %2902 = vset.pattern.permute.xlu0 1
          %2903 = vperm.xlu0 %2902, %v2748
          %v2904 = vpop.permute.xlu0 %2903
          %2906 = vset.pattern.permute.xlu0 1
          %2907 = vperm.xlu0 %2906, %v2749
          %v2908 = vpop.permute.xlu0 %2907
          %v2910 = vmul.f32 %v2702, %v2848
          %v2911 = vmul.f32 %v2703, %v2852
          %v2912 = vmul.f32 %v2704, %v2856
          %v2913 = vmul.f32 %v2705, %v2860
          %v2914 = vmul.f32 %v2706, %v2864
          %v2915 = vmul.f32 %v2707, %v2868
          %v2916 = vmul.f32 %v2708, %v2872
          %v2917 = vmul.f32 %v2709, %v2876
          %v2918 = vmul.f32 %v2710, %v2880
          %v2919 = vmul.f32 %v2711, %v2884
          %v2920 = vmul.f32 %v2712, %v2888
          %v2921 = vmul.f32 %v2713, %v2892
          %v2922 = vmul.f32 %v2714, %v2896
          %v2923 = vmul.f32 %v2715, %v2900
          %v2924 = vmul.f32 %v2716, %v2904
          %v2925 = vmul.f32 %v2717, %v2908
          %v2926 = vsel %vm781, %v2830, %v2910
          %v2927 = vsel %vm781, %v2831, %v2911
          %v2928 = vsel %vm781, %v2832, %v2912
          %v2929 = vsel %vm781, %v2833, %v2913
          %v2930 = vsel %vm781, %v2834, %v2914
          %v2931 = vsel %vm781, %v2835, %v2915
          %v2932 = vsel %vm781, %v2836, %v2916
          %v2933 = vsel %vm781, %v2837, %v2917
          %v2934 = vsel %vm781, %v2838, %v2918
          %v2935 = vsel %vm781, %v2839, %v2919
          %v2936 = vsel %vm781, %v2840, %v2920
          %v2937 = vsel %vm781, %v2841, %v2921
          %v2938 = vsel %vm781, %v2842, %v2922
          %v2939 = vsel %vm781, %v2843, %v2923
          %v2940 = vsel %vm781, %v2844, %v2924
          %v2941 = vsel %vm781, %v2845, %v2925
          %v2942 = vpack.c.bf16 %v2927, %v2926
          %v2943 = vpack.c.bf16 %v2929, %v2928
          %v2944 = vpack.c.bf16 %v2931, %v2930
          %v2945 = vpack.c.bf16 %v2933, %v2932
          %v2946 = vpack.c.bf16 %v2935, %v2934
          %v2947 = vpack.c.bf16 %v2937, %v2936
          %v2948 = vpack.c.bf16 %v2939, %v2938
          %v2949 = vpack.c.bf16 %v2941, %v2940
          %v2958 = vunpack.c.l.b16 %v2942
          %v2959 = vunpack.c.h.b16 %v2942
          %v2960 = vunpack.c.l.b16 %v2943
          %v2961 = vunpack.c.h.b16 %v2943
          %v2962 = vunpack.c.l.b16 %v2944
          %v2963 = vunpack.c.h.b16 %v2944
          %v2964 = vunpack.c.l.b16 %v2945
          %v2965 = vunpack.c.h.b16 %v2945
          %v2966 = vunpack.c.l.b16 %v2946
          %v2967 = vunpack.c.h.b16 %v2946
          %v2968 = vunpack.c.l.b16 %v2947
          %v2969 = vunpack.c.h.b16 %v2947
          %v2970 = vunpack.c.l.b16 %v2948
          %v2971 = vunpack.c.h.b16 %v2948
          %v2972 = vunpack.c.l.b16 %v2949
          %v2973 = vunpack.c.h.b16 %v2949
          %v2974 = vpack.c.b16 %v2958, %v2958
          %v2975 = vpack.c.b16 %v2959, %v2959
          %v2976 = vpack.c.b16 %v2960, %v2960
          %v2977 = vpack.c.b16 %v2961, %v2961
          %v2978 = vpack.c.b16 %v2962, %v2962
          %v2979 = vpack.c.b16 %v2963, %v2963
          %v2980 = vpack.c.b16 %v2964, %v2964
          %v2981 = vpack.c.b16 %v2965, %v2965
          %v2982 = vpack.c.b16 %v2966, %v2966
          %v2983 = vpack.c.b16 %v2967, %v2967
          %v2984 = vpack.c.b16 %v2968, %v2968
          %v2985 = vpack.c.b16 %v2969, %v2969
          %v2986 = vpack.c.b16 %v2970, %v2970
          %v2987 = vpack.c.b16 %v2971, %v2971
          %v2988 = vpack.c.b16 %v2972, %v2972
          %v2989 = vpack.c.b16 %v2973, %v2973
          %3006 = vst [vmem:[%s611] sm:$0xf] %v2974
          %3007 = vst [vmem:[%s611 + $0x4] sm:$0xf] %v2975
          %3008 = vst [vmem:[%s611 + $0x8] sm:$0xf] %v2976
          %3009 = vst [vmem:[%s611 + $0xc] sm:$0xf] %v2977
          %3010 = vst [vmem:[%s611 + $0x10] sm:$0xf] %v2978
          %3011 = vst [vmem:[%s611 + $0x14] sm:$0xf] %v2979
          %3012 = vst [vmem:[%s611 + $0x18] sm:$0xf] %v2980
          %3013 = vst [vmem:[%s611 + $0x1c] sm:$0xf] %v2981
          %3014 = vst [vmem:[%s611 + $0x20] sm:$0xf] %v2982
          %3015 = vst [vmem:[%s611 + $0x24] sm:$0xf] %v2983
          %3016 = vst [vmem:[%s611 + $0x28] sm:$0xf] %v2984
          %3017 = vst [vmem:[%s611 + $0x2c] sm:$0xf] %v2985
          %3018 = vst [vmem:[%s611 + $0x30] sm:$0xf] %v2986
          %3019 = vst [vmem:[%s611 + $0x34] sm:$0xf] %v2987
          %3020 = vst [vmem:[%s611 + $0x38] sm:$0xf] %v2988
          %3021 = vst [vmem:[%s611 + $0x3c] sm:$0xf] %v2989
        $region167: #{bert_classifier_forward.13} parent=146 // pred_fallthru
          _
        %s3022 = sadd.s32 %s20, %s21
        %s3023 = smul.u32 16, %s3022
        %p3024 = scmp.lt.s32.totalorder %s3023, 31
        %s3025 = scalar_select %p3024, %s3023, 31
        %s3026 = smul.addr %s3025, 4
        %s3027 = scalar_lea.vmem %s4, %s3026
        // Predicated region
        $region168: #{bert_classifier_forward.13} parent=146 // pred_check
          %p3028 = pneg %p166
        $region169: #{bert_classifier_forward.13} parent=146 // pred_check_branch
          %3030 = sbr.rel (%p3028) target = $region171
        $region170: #{bert_classifier_forward.13} parent=146 // pred_region
          %s3031 = sadd.s32 %s20, %s21
          %s3032 = smul.u32 16, %s3031
        $region171: #{bert_classifier_forward.13} parent=146 // pred_fallthru
          _
      $region147: #{bert_classifier_forward.13} parent=5 // pred_fallthru
        _
      %p3033 = scmp.le.s32.totalorder 2, %s10
      // Predicated region
      $region172: #{bert_classifier_forward.13} parent=5 // pred_check
        %p3034 = pneg %p3033
      $region173: #{bert_classifier_forward.13} parent=5 // pred_check_branch
        %3036 = sbr.rel (%p3034) target = $region175
      $region174: #{bert_classifier_forward.13} parent=5 // pred_region
        %s3037 = ssub.s32 %s10, 2
        // Predicated region
        $region176: #{bert_classifier_forward.13} parent=174 // pred_check
          %p3038 = pneg %p172
        $region177: #{bert_classifier_forward.13} parent=174 // pred_check_branch
          %3040 = sbr.rel (%p3038) target = $region179
        $region178: #{bert_classifier_forward.13} parent=174 // pred_region
          %s3041 = sadd.s32 %s23, %s24
          %s3042 = smul.u32 16, %s3041
          %p3043 = scmp.lt.s32.totalorder %s3042, 31
          %s3044 = scalar_select %p3043, %s3042, 31
          %s3045 = smul.addr %s3044, 4
          %s3046 = scalar_lea.vmem %s4, %s3045
        $region179: #{bert_classifier_forward.13} parent=174 // pred_fallthru
          _
      $region175: #{bert_classifier_forward.13} parent=5 // pred_fallthru
        _
    $region6: #{bert_classifier_forward.13} parent=1 // loop_footer
      %s14 = sadd.s32 1, %s10
    $region7: #{bert_classifier_forward.13} parent=1 // loop_footer_branch
      %9 = sbr.rel target = $region3
    $region8: #{bert_classifier_forward.13} parent=1 // loop_exit
      _

// kernel: bert_classifier_forward.20
$region0: #{bert_classifier_forward.20}
  #allocation0 [shape = 'u32[]', space=smem, size = 0x4, offset = 0x4, fixed_abs, tag = 'smem constant byte address 0x4 - core index']
  #allocation1 [shape = 'u32[144,128]{1,0:T(1,128)}', space=vmem, size = 0x12000, scoped, tag = 'internal scratch']
  %s0 = inlined_call_operand.vmem [shape: bf16[2,128], index: 0, kind: input, shape index: {}]
  %s1 = inlined_call_operand.vmem [shape: bf16[128,128], index: 1, kind: input, shape index: {}]
  %s2 = inlined_call_operand.vmem [shape: f32[1,128], index: 2, kind: input, shape index: {}, may-alias: {2,4}]
  %s3 = inlined_call_operand.vmem [shape: f32[1,128], index: 3, kind: input, shape index: {}]
  %s4 = inlined_call_operand.vmem [shape: f32[1,128], index: 4, kind: input, shape index: {}, may-alias: {2,4}]
  %s5 = inlined_call_operand.vmem [shape: bf16[2,128], index: 5, kind: output, shape index: {}]
  %s6 = sld [smem:[#allocation0]]
  $region30: #{bert_classifier_forward.20} parent=0
    _
  %s8 = ssub.s32 1, %s6
  %s9 = scalar_select 0, %s8, %s6
  // Predicated region
  $region2: #{bert_classifier_forward.20} parent=0 // pred_check
    _
  $region3: #{bert_classifier_forward.20} parent=0 // pred_check_branch
    %11 = sbr.rel (0) target = $region5
  $region4: #{bert_classifier_forward.20} parent=0 // pred_region
    _
  $region5: #{bert_classifier_forward.20} parent=0 // pred_fallthru
    _
  // Predicated region
  $region6: #{bert_classifier_forward.20} parent=0 // pred_check
    _
  $region7: #{bert_classifier_forward.20} parent=0 // pred_check_branch
    %13 = sbr.rel (0) target = $region9
  $region8: #{bert_classifier_forward.20} parent=0 // pred_region
    _
  $region9: #{bert_classifier_forward.20} parent=0 // pred_fallthru
    _
  // Predicated region
  $region10: #{bert_classifier_forward.20} parent=0 // pred_check
    _
  $region11: #{bert_classifier_forward.20} parent=0 // pred_check_branch
    %15 = sbr.rel (0) target = $region13
  $region12: #{bert_classifier_forward.20} parent=0 // pred_region
    _
  $region13: #{bert_classifier_forward.20} parent=0 // pred_fallthru
    _
  // Predicated region
  $region14: #{bert_classifier_forward.20} parent=0 // pred_check
    _
  $region15: #{bert_classifier_forward.20} parent=0 // pred_check_branch
    %17 = sbr.rel (0) target = $region17
  $region16: #{bert_classifier_forward.20} parent=0 // pred_region
    _
  $region17: #{bert_classifier_forward.20} parent=0 // pred_fallthru
    _
  // Predicated region
  $region18: #{bert_classifier_forward.20} parent=0 // pred_check
    _
  $region19: #{bert_classifier_forward.20} parent=0 // pred_check_branch
    %19 = sbr.rel (0) target = $region21
  $region20: #{bert_classifier_forward.20} parent=0 // pred_region
    _
  $region21: #{bert_classifier_forward.20} parent=0 // pred_fallthru
    _
  %v21 = vld [vmem:[%s0] sm:$0x1]
  %v22 = vld [vmem:[%s1] sm:$0xf]
  %v23 = vld [vmem:[%s1 + $0x4] sm:$0xf]
  %v24 = vld [vmem:[%s1 + $0x8] sm:$0xf]
  %v25 = vld [vmem:[%s1 + $0xc] sm:$0xf]
  %v26 = vld [vmem:[%s1 + $0x10] sm:$0xf]
  %v27 = vld [vmem:[%s1 + $0x14] sm:$0xf]
  %v28 = vld [vmem:[%s1 + $0x18] sm:$0xf]
  %v29 = vld [vmem:[%s1 + $0x1c] sm:$0xf]
  %v30 = vld [vmem:[%s1 + $0x20] sm:$0xf]
  %v31 = vld [vmem:[%s1 + $0x24] sm:$0xf]
  %v32 = vld [vmem:[%s1 + $0x28] sm:$0xf]
  %v33 = vld [vmem:[%s1 + $0x2c] sm:$0xf]
  %v34 = vld [vmem:[%s1 + $0x30] sm:$0xf]
  %v35 = vld [vmem:[%s1 + $0x34] sm:$0xf]
  %v36 = vld [vmem:[%s1 + $0x38] sm:$0xf]
  %v37 = vld [vmem:[%s1 + $0x3c] sm:$0xf]
  %v38 = vld [vmem:[%s2] sm:$0x1]
  %v40 = vlaneseq
  %v41 = vshrl.u32 %v40, 7
  %v42 = vsub.s32 0, %v41
  %v43 = vrot.slane %v38, %v42
  %v61 = vunpack.c.l.b16 %v22
  %v62 = vunpack.c.l.b16 %v23
  %v63 = vunpack.c.l.b16 %v24
  %v64 = vunpack.c.l.b16 %v25
  %v65 = vunpack.c.l.b16 %v26
  %v66 = vunpack.c.l.b16 %v27
  %v67 = vunpack.c.l.b16 %v28
  %v68 = vunpack.c.l.b16 %v29
  %v69 = vunpack.c.l.b16 %v30
  %v70 = vunpack.c.l.b16 %v31
  %v71 = vunpack.c.l.b16 %v32
  %v72 = vunpack.c.l.b16 %v33
  %v73 = vunpack.c.l.b16 %v34
  %v74 = vunpack.c.l.b16 %v35
  %v75 = vunpack.c.l.b16 %v36
  %v76 = vunpack.c.l.b16 %v37
  %v77 = vpack.c.b16 %v62, %v61
  %v78 = vpack.c.b16 %v64, %v63
  %v79 = vpack.c.b16 %v66, %v65
  %v80 = vpack.c.b16 %v68, %v67
  %v81 = vpack.c.b16 %v70, %v69
  %v82 = vpack.c.b16 %v72, %v71
  %v83 = vpack.c.b16 %v74, %v73
  %v84 = vpack.c.b16 %v76, %v75
  %93 = vmatprep.subr.bf16.mxu0 0
  %94 = vmatpush1.bf16.msra.mxu0 %v77
  %95 = vmatprep.subr.bf16.mxu0 0
  %96 = vmatpush1.bf16.msra.mxu0 %v78
  %97 = vmatprep.subr.bf16.mxu0 0
  %98 = vmatpush1.bf16.msra.mxu0 %v79
  %99 = vmatprep.subr.bf16.mxu0 0
  %100 = vmatpush1.bf16.msra.mxu0 %v80
  %101 = vmatprep.subr.bf16.mxu0 0
  %102 = vmatpush1.bf16.msra.mxu0 %v81
  %103 = vmatprep.subr.bf16.mxu0 0
  %104 = vmatpush1.bf16.msra.mxu0 %v82
  %105 = vmatprep.subr.bf16.mxu0 0
  %106 = vmatpush1.bf16.msra.mxu0 %v83
  %107 = vmatprep.subr.bf16.mxu0 0
  %108 = vmatpush1.bf16.msra.mxu0 %v84
  %109 = vmatprep.subr.bf16.mxu0 0
  %110 = vmatpush1.bf16.msra.mxu0 0
  %111 = vmatprep.subr.bf16.mxu0 0
  %112 = vmatpush1.bf16.msra.mxu0 0
  %113 = vmatprep.subr.bf16.mxu0 0
  %114 = vmatpush1.bf16.msra.mxu0 0
  %115 = vmatprep.subr.bf16.mxu0 0
  %116 = vmatpush1.bf16.msra.mxu0 0
  %117 = vmatprep.subr.bf16.mxu0 0
  %118 = vmatpush1.bf16.msra.mxu0 0
  %119 = vmatprep.subr.bf16.mxu0 0
  %120 = vmatpush1.bf16.msra.mxu0 0
  %121 = vmatprep.subr.bf16.mxu0 0
  %122 = vmatpush1.bf16.msra.mxu0 0
  %123 = vmatprep.subr.bf16.mxu0 0
  %124 = vmatpush1.bf16.msra.mxu0 0
  %125 = vmatprep.mubr.bf16.mxu0 0
  %126 = vmatmul.mubr.bf16.gmra.mrb[0].mxu0 %v21
  %v127 = vpop.f32.mrb[0].mxu0
  %v128 = vadd.f32 %v43, %v127
  %v129 = vpop.f32.mrb[0].mxu0
  %v130 = vpop.f32.mrb[0].mxu0
  %v131 = vpop.f32.mrb[0].mxu0
  %132 = vdwg.mxu0
  %v133 = vmul.f32 %v128, %v128
  %v134 = vmul.f32 %v128, %v133
  %v135 = vmul.f32 %v134, 0.044715
  %v136 = vadd.f32 %v128, %v135
  %v137 = vmul.f32 %v136, 0.7978846
  %v138 = vtanh.pop %v137
  %v139 = vadd.f32 %v138, 1.0
  %v140 = vmul.f32 %v139, 0.5
  %v141 = vmul.f32 %v128, %v140
  %vm142 = vcmask 1041408
  %v143 = vsel %vm142, %v141, 0.0
  %144 = vadd.xlane.f32.xlu0 %v143
  %v145 = vpop.xlane.xlu0 %144
  %v146 = vrcp.pop 128.0
  %v147 = vmul.f32 %v145, %v146
  %v148 = vsub.f32 %v141, %v147
  %v149 = vmul.f32 %v148, %v148
  %v150 = vsel %vm142, %v149, 0.0
  %151 = vadd.xlane.f32.xlu0 %v150
  %v152 = vpop.xlane.xlu0 %151
  %v153 = vmul.f32 %v152, %v146
  %v154 = vadd.f32 %v153, 1e-12
  %v155 = vrsqrt.pop %v154
  %v156 = vmul.f32 %v148, %v155
  %v157 = vld [vmem:[%s3] sm:$0x1]
  %v159 = vlaneseq
  %v160 = vshrl.u32 %v159, 7
  %v161 = vsub.s32 0, %v160
  %v162 = vrot.slane %v157, %v161
  %v164 = vmul.f32 %v156, %v162
  %v165 = vld [vmem:[%s4] sm:$0x1]
  %v167 = vlaneseq
  %v168 = vshrl.u32 %v167, 7
  %v169 = vsub.s32 0, %v168
  %v170 = vrot.slane %v165, %v169
  %v172 = vadd.f32 %v164, %v170
  %v173 = vpack.c.bf16 %v172, %v172
  %174 = vst [vmem:[%s5] sm:$0x1] %v173
  // Predicated region
  $region22: #{bert_classifier_forward.20} parent=0 // pred_check
    _
  $region23: #{bert_classifier_forward.20} parent=0 // pred_check_branch
    %176 = sbr.rel (0) target = $region25
  $region24: #{bert_classifier_forward.20} parent=0 // pred_region
    _
  $region25: #{bert_classifier_forward.20} parent=0 // pred_fallthru
    _
  // Predicated region
  $region26: #{bert_classifier_forward.20} parent=0 // pred_check
    _
  $region27: #{bert_classifier_forward.20} parent=0 // pred_check_branch
    %178 = sbr.rel (0) target = $region29
  $region28: #{bert_classifier_forward.20} parent=0 // pred_region
    _
  $region29: #{bert_classifier_forward.20} parent=0 // pred_fallthru
    _

// kernel: bert_classifier_forward.15
$region0: #{bert_classifier_forward.15}
  #allocation0 [shape = 'u32[]', space=smem, size = 0x4, offset = 0x4, fixed_abs, tag = 'smem constant byte address 0x4 - core index']
  #allocation1 [shape = 'u32[144,128]{1,0:T(1,128)}', space=vmem, size = 0x12000, scoped, tag = 'internal scratch']
  %s0 = inlined_call_operand.vmem [shape: bf16[256,128], index: 0, kind: input, shape index: {}]
  %s1 = inlined_call_operand.vmem [shape: bf16[128,256], index: 1, kind: input, shape index: {}]
  %s2 = inlined_call_operand.vmem [shape: f32[1,256], index: 2, kind: input, shape index: {}]
  %s3 = inlined_call_operand.vmem [shape: bf16[256,128], index: 3, kind: input, shape index: {}]
  %s4 = inlined_call_operand.vmem [shape: f32[1,128], index: 4, kind: input, shape index: {}, may-alias: {4,6}]
  %s5 = inlined_call_operand.vmem [shape: f32[1,128], index: 5, kind: input, shape index: {}]
  %s6 = inlined_call_operand.vmem [shape: f32[1,128], index: 6, kind: input, shape index: {}, may-alias: {4,6}]
  %s7 = inlined_call_operand.vmem [shape: bf16[256,128], index: 7, kind: output, shape index: {}]
  %s8 = sld [smem:[#allocation0]]
  $region38: #{bert_classifier_forward.15} parent=0
    _
  %s10 = ssub.s32 1, %s8
  %s11 = scalar_select 0, %s10, %s8
  // Predicated region
  $region2: #{bert_classifier_forward.15} parent=0 // pred_check
    _
  $region3: #{bert_classifier_forward.15} parent=0 // pred_check_branch
    %13 = sbr.rel (0) target = $region5
  $region4: #{bert_classifier_forward.15} parent=0 // pred_region
    _
  $region5: #{bert_classifier_forward.15} parent=0 // pred_fallthru
    _
  // Predicated region
  $region6: #{bert_classifier_forward.15} parent=0 // pred_check
    _
  $region7: #{bert_classifier_forward.15} parent=0 // pred_check_branch
    %15 = sbr.rel (0) target = $region9
  $region8: #{bert_classifier_forward.15} parent=0 // pred_region
    _
  $region9: #{bert_classifier_forward.15} parent=0 // pred_fallthru
    _
  // Predicated region
  $region10: #{bert_classifier_forward.15} parent=0 // pred_check
    _
  $region11: #{bert_classifier_forward.15} parent=0 // pred_check_branch
    %17 = sbr.rel (0) target = $region13
  $region12: #{bert_classifier_forward.15} parent=0 // pred_region
    _
  $region13: #{bert_classifier_forward.15} parent=0 // pred_fallthru
    _
  // Predicated region
  $region14: #{bert_classifier_forward.15} parent=0 // pred_check
    _
  $region15: #{bert_classifier_forward.15} parent=0 // pred_check_branch
    %19 = sbr.rel (0) target = $region17
  $region16: #{bert_classifier_forward.15} parent=0 // pred_region
    _
  $region17: #{bert_classifier_forward.15} parent=0 // pred_fallthru
    _
  // Predicated region
  $region18: #{bert_classifier_forward.15} parent=0 // pred_check
    _
  $region19: #{bert_classifier_forward.15} parent=0 // pred_check_branch
    %21 = sbr.rel (0) target = $region21
  $region20: #{bert_classifier_forward.15} parent=0 // pred_region
    _
  $region21: #{bert_classifier_forward.15} parent=0 // pred_fallthru
    _
  // Predicated region
  $region22: #{bert_classifier_forward.15} parent=0 // pred_check
    _
  $region23: #{bert_classifier_forward.15} parent=0 // pred_check_branch
    %23 = sbr.rel (0) target = $region25
  $region24: #{bert_classifier_forward.15} parent=0 // pred_region
    _
  $region25: #{bert_classifier_forward.15} parent=0 // pred_fallthru
    _
  // Predicated region
  $region26: #{bert_classifier_forward.15} parent=0 // pred_check
    _
  $region27: #{bert_classifier_forward.15} parent=0 // pred_check_branch
    %25 = sbr.rel (0) target = $region29
  $region28: #{bert_classifier_forward.15} parent=0 // pred_region
    _
  $region29: #{bert_classifier_forward.15} parent=0 // pred_fallthru
    _
  %v27 = vld [vmem:[%s0] sm:$0xf]
  %v28 = vld [vmem:[%s0 + $0x4] sm:$0xf]
  %v29 = vld [vmem:[%s0 + $0x8] sm:$0xf]
  %v30 = vld [vmem:[%s0 + $0xc] sm:$0xf]
  %v31 = vld [vmem:[%s0 + $0x10] sm:$0xf]
  %v32 = vld [vmem:[%s0 + $0x14] sm:$0xf]
  %v33 = vld [vmem:[%s0 + $0x18] sm:$0xf]
  %v34 = vld [vmem:[%s0 + $0x1c] sm:$0xf]
  %v35 = vld [vmem:[%s0 + $0x20] sm:$0xf]
  %v36 = vld [vmem:[%s0 + $0x24] sm:$0xf]
  %v37 = vld [vmem:[%s0 + $0x28] sm:$0xf]
  %v38 = vld [vmem:[%s0 + $0x2c] sm:$0xf]
  %v39 = vld [vmem:[%s0 + $0x30] sm:$0xf]
  %v40 = vld [vmem:[%s0 + $0x34] sm:$0xf]
  %v41 = vld [vmem:[%s0 + $0x38] sm:$0xf]
  %v42 = vld [vmem:[%s0 + $0x3c] sm:$0xf]
  %v43 = vld [vmem:[%s0 + $0x40] sm:$0xf]
  %v44 = vld [vmem:[%s0 + $0x44] sm:$0xf]
  %v45 = vld [vmem:[%s0 + $0x48] sm:$0xf]
  %v46 = vld [vmem:[%s0 + $0x4c] sm:$0xf]
  %v47 = vld [vmem:[%s0 + $0x50] sm:$0xf]
  %v48 = vld [vmem:[%s0 + $0x54] sm:$0xf]
  %v49 = vld [vmem:[%s0 + $0x58] sm:$0xf]
  %v50 = vld [vmem:[%s0 + $0x5c] sm:$0xf]
  %v51 = vld [vmem:[%s0 + $0x60] sm:$0xf]
  %v52 = vld [vmem:[%s0 + $0x64] sm:$0xf]
  %v53 = vld [vmem:[%s0 + $0x68] sm:$0xf]
  %v54 = vld [vmem:[%s0 + $0x6c] sm:$0xf]
  %v55 = vld [vmem:[%s0 + $0x70] sm:$0xf]
  %v56 = vld [vmem:[%s0 + $0x74] sm:$0xf]
  %v57 = vld [vmem:[%s0 + $0x78] sm:$0xf]
  %v58 = vld [vmem:[%s0 + $0x7c] sm:$0xf]
  %v59 = vld [vmem:[%s1] sm:$0xff]
  %v60 = vld [vmem:[%s1 + $0x8] sm:$0xff]
  %v61 = vld [vmem:[%s1 + $0x10] sm:$0xff]
  %v62 = vld [vmem:[%s1 + $0x18] sm:$0xff]
  %v63 = vld [vmem:[%s1 + $0x20] sm:$0xff]
  %v64 = vld [vmem:[%s1 + $0x28] sm:$0xff]
  %v65 = vld [vmem:[%s1 + $0x30] sm:$0xff]
  %v66 = vld [vmem:[%s1 + $0x38] sm:$0xff]
  %v67 = vld [vmem:[%s1 + $0x40] sm:$0xff]
  %v68 = vld [vmem:[%s1 + $0x48] sm:$0xff]
  %v69 = vld [vmem:[%s1 + $0x50] sm:$0xff]
  %v70 = vld [vmem:[%s1 + $0x58] sm:$0xff]
  %v71 = vld [vmem:[%s1 + $0x60] sm:$0xff]
  %v72 = vld [vmem:[%s1 + $0x68] sm:$0xff]
  %v73 = vld [vmem:[%s1 + $0x70] sm:$0xff]
  %v74 = vld [vmem:[%s1 + $0x78] sm:$0xff]
  %v75 = vld [vmem:[%s2] sm:$0x3]
  %v77 = vlaneseq
  %v78 = vshrl.u32 %v77, 7
  %v79 = vsub.s32 0, %v78
  %v80 = vrot.slane %v75, %v79
  %v81 = vlaneseq
  %v82 = vshrl.u32 %v81, 7
  %v83 = vsub.s32 1, %v82
  %v84 = vrot.slane %v75, %v83
  %v119 = vunpack.c.l.b16 %v27
  %v120 = vunpack.c.l.b16 %v28
  %v121 = vunpack.c.l.b16 %v29
  %v122 = vunpack.c.l.b16 %v30
  %v123 = vunpack.c.l.b16 %v31
  %v124 = vunpack.c.l.b16 %v32
  %v125 = vunpack.c.l.b16 %v33
  %v126 = vunpack.c.l.b16 %v34
  %v127 = vunpack.c.l.b16 %v35
  %v128 = vunpack.c.l.b16 %v36
  %v129 = vunpack.c.l.b16 %v37
  %v130 = vunpack.c.l.b16 %v38
  %v131 = vunpack.c.l.b16 %v39
  %v132 = vunpack.c.l.b16 %v40
  %v133 = vunpack.c.l.b16 %v41
  %v134 = vunpack.c.l.b16 %v42
  %v135 = vunpack.c.l.b16 %v43
  %v136 = vunpack.c.l.b16 %v44
  %v137 = vunpack.c.l.b16 %v45
  %v138 = vunpack.c.l.b16 %v46
  %v139 = vunpack.c.l.b16 %v47
  %v140 = vunpack.c.l.b16 %v48
  %v141 = vunpack.c.l.b16 %v49
  %v142 = vunpack.c.l.b16 %v50
  %v143 = vunpack.c.l.b16 %v51
  %v144 = vunpack.c.l.b16 %v52
  %v145 = vunpack.c.l.b16 %v53
  %v146 = vunpack.c.l.b16 %v54
  %v147 = vunpack.c.l.b16 %v55
  %v148 = vunpack.c.l.b16 %v56
  %v149 = vunpack.c.l.b16 %v57
  %v150 = vunpack.c.l.b16 %v58
  %v151 = vpack.c.b16 %v120, %v119
  %v152 = vpack.c.b16 %v122, %v121
  %v153 = vpack.c.b16 %v124, %v123
  %v154 = vpack.c.b16 %v126, %v125
  %v155 = vpack.c.b16 %v128, %v127
  %v156 = vpack.c.b16 %v130, %v129
  %v157 = vpack.c.b16 %v132, %v131
  %v158 = vpack.c.b16 %v134, %v133
  %v159 = vpack.c.b16 %v136, %v135
  %v160 = vpack.c.b16 %v138, %v137
  %v161 = vpack.c.b16 %v140, %v139
  %v162 = vpack.c.b16 %v142, %v141
  %v163 = vpack.c.b16 %v144, %v143
  %v164 = vpack.c.b16 %v146, %v145
  %v165 = vpack.c.b16 %v148, %v147
  %v166 = vpack.c.b16 %v150, %v149
  %v199 = vunpack.c.l.b16 %v59
  %v200 = vunpack.c.h.b16 %v59
  %v201 = vunpack.c.l.b16 %v60
  %v202 = vunpack.c.h.b16 %v60
  %v203 = vunpack.c.l.b16 %v61
  %v204 = vunpack.c.h.b16 %v61
  %v205 = vunpack.c.l.b16 %v62
  %v206 = vunpack.c.h.b16 %v62
  %v207 = vunpack.c.l.b16 %v63
  %v208 = vunpack.c.h.b16 %v63
  %v209 = vunpack.c.l.b16 %v64
  %v210 = vunpack.c.h.b16 %v64
  %v211 = vunpack.c.l.b16 %v65
  %v212 = vunpack.c.h.b16 %v65
  %v213 = vunpack.c.l.b16 %v66
  %v214 = vunpack.c.h.b16 %v66
  %v215 = vunpack.c.l.b16 %v67
  %v216 = vunpack.c.h.b16 %v67
  %v217 = vunpack.c.l.b16 %v68
  %v218 = vunpack.c.h.b16 %v68
  %v219 = vunpack.c.l.b16 %v69
  %v220 = vunpack.c.h.b16 %v69
  %v221 = vunpack.c.l.b16 %v70
  %v222 = vunpack.c.h.b16 %v70
  %v223 = vunpack.c.l.b16 %v71
  %v224 = vunpack.c.h.b16 %v71
  %v225 = vunpack.c.l.b16 %v72
  %v226 = vunpack.c.h.b16 %v72
  %v227 = vunpack.c.l.b16 %v73
  %v228 = vunpack.c.h.b16 %v73
  %v229 = vunpack.c.l.b16 %v74
  %v230 = vunpack.c.h.b16 %v74
  %v231 = vpack.c.b16 %v201, %v199
  %v232 = vpack.c.b16 %v202, %v200
  %v233 = vpack.c.b16 %v205, %v203
  %v234 = vpack.c.b16 %v206, %v204
  %v235 = vpack.c.b16 %v209, %v207
  %v236 = vpack.c.b16 %v210, %v208
  %v237 = vpack.c.b16 %v213, %v211
  %v238 = vpack.c.b16 %v214, %v212
  %v239 = vpack.c.b16 %v217, %v215
  %v240 = vpack.c.b16 %v218, %v216
  %v241 = vpack.c.b16 %v221, %v219
  %v242 = vpack.c.b16 %v222, %v220
  %v243 = vpack.c.b16 %v225, %v223
  %v244 = vpack.c.b16 %v226, %v224
  %v245 = vpack.c.b16 %v229, %v227
  %v246 = vpack.c.b16 %v230, %v228
  %263 = vmatprep.subr.bf16.mxu0 %v232
  %264 = vmatpush1.bf16.msra.mxu0 %v231
  %265 = vmatprep.subr.bf16.mxu0 %v234
  %266 = vmatpush1.bf16.msra.mxu0 %v233
  %267 = vmatprep.subr.bf16.mxu0 %v236
  %268 = vmatpush1.bf16.msra.mxu0 %v235
  %269 = vmatprep.subr.bf16.mxu0 %v238
  %270 = vmatpush1.bf16.msra.mxu0 %v237
  %271 = vmatprep.subr.bf16.mxu0 %v240
  %272 = vmatpush1.bf16.msra.mxu0 %v239
  %273 = vmatprep.subr.bf16.mxu0 %v242
  %274 = vmatpush1.bf16.msra.mxu0 %v241
  %275 = vmatprep.subr.bf16.mxu0 %v244
  %276 = vmatpush1.bf16.msra.mxu0 %v243
  %277 = vmatprep.subr.bf16.mxu0 %v246
  %278 = vmatpush1.bf16.msra.mxu0 %v245
  %279 = vmatprep.subr.bf16.mxu0 0
  %280 = vmatpush1.bf16.msra.mxu0 0
  %281 = vmatprep.subr.bf16.mxu0 0
  %282 = vmatpush1.bf16.msra.mxu0 0
  %283 = vmatprep.subr.bf16.mxu0 0
  %284 = vmatpush1.bf16.msra.mxu0 0
  %285 = vmatprep.subr.bf16.mxu0 0
  %286 = vmatpush1.bf16.msra.mxu0 0
  %287 = vmatprep.subr.bf16.mxu0 0
  %288 = vmatpush1.bf16.msra.mxu0 0
  %289 = vmatprep.subr.bf16.mxu0 0
  %290 = vmatpush1.bf16.msra.mxu0 0
  %291 = vmatprep.subr.bf16.mxu0 0
  %292 = vmatpush1.bf16.msra.mxu0 0
  %293 = vmatprep.subr.bf16.mxu0 0
  %294 = vmatpush1.bf16.msra.mxu0 0
  %295 = vmatprep.mubr.bf16.mxu0 0
  %296 = vmatmul.mubr.bf16.gmra.mrb[0].mxu0 %v151
  %v297 = vpop.f32.mrb[0].mxu0
  %v298 = vadd.f32 %v80, %v297
  %v299 = vpop.f32.mrb[0].mxu0
  %v300 = vadd.f32 %v84, %v299
  %v301 = vpop.f32.mrb[0].mxu0
  %v302 = vadd.f32 %v80, %v301
  %v303 = vpop.f32.mrb[0].mxu0
  %v304 = vadd.f32 %v84, %v303
  %305 = vmatprep.mubr.bf16.mxu0 0
  %306 = vmatmul.mubr.bf16.gmra.mrb[0].mxu0 %v152
  %v307 = vpop.f32.mrb[0].mxu0
  %v308 = vadd.f32 %v80, %v307
  %v309 = vpop.f32.mrb[0].mxu0
  %v310 = vadd.f32 %v84, %v309
  %v311 = vpop.f32.mrb[0].mxu0
  %v312 = vadd.f32 %v80, %v311
  %v313 = vpop.f32.mrb[0].mxu0
  %v314 = vadd.f32 %v84, %v313
  %315 = vmatprep.mubr.bf16.mxu0 0
  %316 = vmatmul.mubr.bf16.gmra.mrb[0].mxu0 %v153
  %v317 = vpop.f32.mrb[0].mxu0
  %v318 = vadd.f32 %v80, %v317
  %v319 = vpop.f32.mrb[0].mxu0
  %v320 = vadd.f32 %v84, %v319
  %v321 = vpop.f32.mrb[0].mxu0
  %v322 = vadd.f32 %v80, %v321
  %v323 = vpop.f32.mrb[0].mxu0
  %v324 = vadd.f32 %v84, %v323
  %325 = vmatprep.mubr.bf16.mxu0 0
  %326 = vmatmul.mubr.bf16.gmra.mrb[0].mxu0 %v154
  %v327 = vpop.f32.mrb[0].mxu0
  %v328 = vadd.f32 %v80, %v327
  %v329 = vpop.f32.mrb[0].mxu0
  %v330 = vadd.f32 %v84, %v329
  %v331 = vpop.f32.mrb[0].mxu0
  %v332 = vadd.f32 %v80, %v331
  %v333 = vpop.f32.mrb[0].mxu0
  %v334 = vadd.f32 %v84, %v333
  %335 = vmatprep.mubr.bf16.mxu0 0
  %336 = vmatmul.mubr.bf16.gmra.mrb[0].mxu0 %v155
  %v337 = vpop.f32.mrb[0].mxu0
  %v338 = vadd.f32 %v80, %v337
  %v339 = vpop.f32.mrb[0].mxu0
  %v340 = vadd.f32 %v84, %v339
  %v341 = vpop.f32.mrb[0].mxu0
  %v342 = vadd.f32 %v80, %v341
  %v343 = vpop.f32.mrb[0].mxu0
  %v344 = vadd.f32 %v84, %v343
  %345 = vmatprep.mubr.bf16.mxu0 0
  %346 = vmatmul.mubr.bf16.gmra.mrb[0].mxu0 %v156
  %v347 = vpop.f32.mrb[0].mxu0
  %v348 = vadd.f32 %v80, %v347
  %v349 = vpop.f32.mrb[0].mxu0
  %v350 = vadd.f32 %v84, %v349
  %v351 = vpop.f32.mrb[0].mxu0
  %v352 = vadd.f32 %v80, %v351
  %v353 = vpop.f32.mrb[0].mxu0
  %v354 = vadd.f32 %v84, %v353
  %355 = vmatprep.mubr.bf16.mxu0 0
  %356 = vmatmul.mubr.bf16.gmra.mrb[0].mxu0 %v157
  %v357 = vpop.f32.mrb[0].mxu0
  %v358 = vadd.f32 %v80, %v357
  %v359 = vpop.f32.mrb[0].mxu0
  %v360 = vadd.f32 %v84, %v359
  %v361 = vpop.f32.mrb[0].mxu0
  %v362 = vadd.f32 %v80, %v361
  %v363 = vpop.f32.mrb[0].mxu0
  %v364 = vadd.f32 %v84, %v363
  %365 = vmatprep.mubr.bf16.mxu0 0
  %366 = vmatmul.mubr.bf16.gmra.mrb[0].mxu0 %v158
  %v367 = vpop.f32.mrb[0].mxu0
  %v368 = vadd.f32 %v80, %v367
  %v369 = vpop.f32.mrb[0].mxu0
  %v370 = vadd.f32 %v84, %v369
  %v371 = vpop.f32.mrb[0].mxu0
  %v372 = vadd.f32 %v80, %v371
  %v373 = vpop.f32.mrb[0].mxu0
  %v374 = vadd.f32 %v84, %v373
  %375 = vmatprep.mubr.bf16.mxu0 0
  %376 = vmatmul.mubr.bf16.gmra.mrb[0].mxu0 %v159
  %v377 = vpop.f32.mrb[0].mxu0
  %v378 = vadd.f32 %v80, %v377
  %v379 = vpop.f32.mrb[0].mxu0
  %v380 = vadd.f32 %v84, %v379
  %v381 = vpop.f32.mrb[0].mxu0
  %v382 = vadd.f32 %v80, %v381
  %v383 = vpop.f32.mrb[0].mxu0
  %v384 = vadd.f32 %v84, %v383
  %385 = vmatprep.mubr.bf16.mxu0 0
  %386 = vmatmul.mubr.bf16.gmra.mrb[0].mxu0 %v160
  %v387 = vpop.f32.mrb[0].mxu0
  %v388 = vadd.f32 %v80, %v387
  %v389 = vpop.f32.mrb[0].mxu0
  %v390 = vadd.f32 %v84, %v389
  %v391 = vpop.f32.mrb[0].mxu0
  %v392 = vadd.f32 %v80, %v391
  %v393 = vpop.f32.mrb[0].mxu0
  %v394 = vadd.f32 %v84, %v393
  %395 = vmatprep.mubr.bf16.mxu0 0
  %396 = vmatmul.mubr.bf16.gmra.mrb[0].mxu0 %v161
  %v397 = vpop.f32.mrb[0].mxu0
  %v398 = vadd.f32 %v80, %v397
  %v399 = vpop.f32.mrb[0].mxu0
  %v400 = vadd.f32 %v84, %v399
  %v401 = vpop.f32.mrb[0].mxu0
  %v402 = vadd.f32 %v80, %v401
  %v403 = vpop.f32.mrb[0].mxu0
  %v404 = vadd.f32 %v84, %v403
  %405 = vmatprep.mubr.bf16.mxu0 0
  %406 = vmatmul.mubr.bf16.gmra.mrb[0].mxu0 %v162
  %v407 = vpop.f32.mrb[0].mxu0
  %v408 = vadd.f32 %v80, %v407
  %v409 = vpop.f32.mrb[0].mxu0
  %v410 = vadd.f32 %v84, %v409
  %v411 = vpop.f32.mrb[0].mxu0
  %v412 = vadd.f32 %v80, %v411
  %v413 = vpop.f32.mrb[0].mxu0
  %v414 = vadd.f32 %v84, %v413
  %415 = vmatprep.mubr.bf16.mxu0 0
  %416 = vmatmul.mubr.bf16.gmra.mrb[0].mxu0 %v163
  %v417 = vpop.f32.mrb[0].mxu0
  %v418 = vadd.f32 %v80, %v417
  %v419 = vpop.f32.mrb[0].mxu0
  %v420 = vadd.f32 %v84, %v419
  %v421 = vpop.f32.mrb[0].mxu0
  %v422 = vadd.f32 %v80, %v421
  %v423 = vpop.f32.mrb[0].mxu0
  %v424 = vadd.f32 %v84, %v423
  %425 = vmatprep.mubr.bf16.mxu0 0
  %426 = vmatmul.mubr.bf16.gmra.mrb[0].mxu0 %v164
  %v427 = vpop.f32.mrb[0].mxu0
  %v428 = vadd.f32 %v80, %v427
  %v429 = vpop.f32.mrb[0].mxu0
  %v430 = vadd.f32 %v84, %v429
  %v431 = vpop.f32.mrb[0].mxu0
  %v432 = vadd.f32 %v80, %v431
  %v433 = vpop.f32.mrb[0].mxu0
  %v434 = vadd.f32 %v84, %v433
  %435 = vmatprep.mubr.bf16.mxu0 0
  %436 = vmatmul.mubr.bf16.gmra.mrb[0].mxu0 %v165
  %v437 = vpop.f32.mrb[0].mxu0
  %v438 = vadd.f32 %v80, %v437
  %v439 = vpop.f32.mrb[0].mxu0
  %v440 = vadd.f32 %v84, %v439
  %v441 = vpop.f32.mrb[0].mxu0
  %v442 = vadd.f32 %v80, %v441
  %v443 = vpop.f32.mrb[0].mxu0
  %v444 = vadd.f32 %v84, %v443
  %445 = vmatprep.mubr.bf16.mxu0 0
  %446 = vmatmul.mubr.bf16.gmra.mrb[0].mxu0 %v166
  %v447 = vpop.f32.mrb[0].mxu0
  %v448 = vadd.f32 %v80, %v447
  %v449 = vpop.f32.mrb[0].mxu0
  %v450 = vadd.f32 %v84, %v449
  %v451 = vpop.f32.mrb[0].mxu0
  %v452 = vadd.f32 %v80, %v451
  %v453 = vpop.f32.mrb[0].mxu0
  %v454 = vadd.f32 %v84, %v453
  %455 = vdwg.mxu0
  %v456 = vmul.f32 %v298, %v298
  %v457 = vmul.f32 %v300, %v300
  %v458 = vmul.f32 %v302, %v302
  %v459 = vmul.f32 %v304, %v304
  %v460 = vmul.f32 %v308, %v308
  %v461 = vmul.f32 %v310, %v310
  %v462 = vmul.f32 %v312, %v312
  %v463 = vmul.f32 %v314, %v314
  %v464 = vmul.f32 %v318, %v318
  %v465 = vmul.f32 %v320, %v320
  %v466 = vmul.f32 %v322, %v322
  %v467 = vmul.f32 %v324, %v324
  %v468 = vmul.f32 %v328, %v328
  %v469 = vmul.f32 %v330, %v330
  %v470 = vmul.f32 %v332, %v332
  %v471 = vmul.f32 %v334, %v334
  %v472 = vmul.f32 %v338, %v338
  %v473 = vmul.f32 %v340, %v340
  %v474 = vmul.f32 %v342, %v342
  %v475 = vmul.f32 %v344, %v344
  %v476 = vmul.f32 %v348, %v348
  %v477 = vmul.f32 %v350, %v350
  %v478 = vmul.f32 %v352, %v352
  %v479 = vmul.f32 %v354, %v354
  %v480 = vmul.f32 %v358, %v358
  %v481 = vmul.f32 %v360, %v360
  %v482 = vmul.f32 %v362, %v362
  %v483 = vmul.f32 %v364, %v364
  %v484 = vmul.f32 %v368, %v368
  %v485 = vmul.f32 %v370, %v370
  %v486 = vmul.f32 %v372, %v372
  %v487 = vmul.f32 %v374, %v374
  %v488 = vmul.f32 %v378, %v378
  %v489 = vmul.f32 %v380, %v380
  %v490 = vmul.f32 %v382, %v382
  %v491 = vmul.f32 %v384, %v384
  %v492 = vmul.f32 %v388, %v388
  %v493 = vmul.f32 %v390, %v390
  %v494 = vmul.f32 %v392, %v392
  %v495 = vmul.f32 %v394, %v394
  %v496 = vmul.f32 %v398, %v398
  %v497 = vmul.f32 %v400, %v400
  %v498 = vmul.f32 %v402, %v402
  %v499 = vmul.f32 %v404, %v404
  %v500 = vmul.f32 %v408, %v408
  %v501 = vmul.f32 %v410, %v410
  %v502 = vmul.f32 %v412, %v412
  %v503 = vmul.f32 %v414, %v414
  %v504 = vmul.f32 %v418, %v418
  %v505 = vmul.f32 %v420, %v420
  %v506 = vmul.f32 %v422, %v422
  %v507 = vmul.f32 %v424, %v424
  %v508 = vmul.f32 %v428, %v428
  %v509 = vmul.f32 %v430, %v430
  %v510 = vmul.f32 %v432, %v432
  %v511 = vmul.f32 %v434, %v434
  %v512 = vmul.f32 %v438, %v438
  %v513 = vmul.f32 %v440, %v440
  %v514 = vmul.f32 %v442, %v442
  %v515 = vmul.f32 %v444, %v444
  %v516 = vmul.f32 %v448, %v448
  %v517 = vmul.f32 %v450, %v450
  %v518 = vmul.f32 %v452, %v452
  %v519 = vmul.f32 %v454, %v454
  %v520 = vmul.f32 %v298, %v456
  %v521 = vmul.f32 %v300, %v457
  %v522 = vmul.f32 %v302, %v458
  %v523 = vmul.f32 %v304, %v459
  %v524 = vmul.f32 %v308, %v460
  %v525 = vmul.f32 %v310, %v461
  %v526 = vmul.f32 %v312, %v462
  %v527 = vmul.f32 %v314, %v463
  %v528 = vmul.f32 %v318, %v464
  %v529 = vmul.f32 %v320, %v465
  %v530 = vmul.f32 %v322, %v466
  %v531 = vmul.f32 %v324, %v467
  %v532 = vmul.f32 %v328, %v468
  %v533 = vmul.f32 %v330, %v469
  %v534 = vmul.f32 %v332, %v470
  %v535 = vmul.f32 %v334, %v471
  %v536 = vmul.f32 %v338, %v472
  %v537 = vmul.f32 %v340, %v473
  %v538 = vmul.f32 %v342, %v474
  %v539 = vmul.f32 %v344, %v475
  %v540 = vmul.f32 %v348, %v476
  %v541 = vmul.f32 %v350, %v477
  %v542 = vmul.f32 %v352, %v478
  %v543 = vmul.f32 %v354, %v479
  %v544 = vmul.f32 %v358, %v480
  %v545 = vmul.f32 %v360, %v481
  %v546 = vmul.f32 %v362, %v482
  %v547 = vmul.f32 %v364, %v483
  %v548 = vmul.f32 %v368, %v484
  %v549 = vmul.f32 %v370, %v485
  %v550 = vmul.f32 %v372, %v486
  %v551 = vmul.f32 %v374, %v487
  %v552 = vmul.f32 %v378, %v488
  %v553 = vmul.f32 %v380, %v489
  %v554 = vmul.f32 %v382, %v490
  %v555 = vmul.f32 %v384, %v491
  %v556 = vmul.f32 %v388, %v492
  %v557 = vmul.f32 %v390, %v493
  %v558 = vmul.f32 %v392, %v494
  %v559 = vmul.f32 %v394, %v495
  %v560 = vmul.f32 %v398, %v496
  %v561 = vmul.f32 %v400, %v497
  %v562 = vmul.f32 %v402, %v498
  %v563 = vmul.f32 %v404, %v499
  %v564 = vmul.f32 %v408, %v500
  %v565 = vmul.f32 %v410, %v501
  %v566 = vmul.f32 %v412, %v502
  %v567 = vmul.f32 %v414, %v503
  %v568 = vmul.f32 %v418, %v504
  %v569 = vmul.f32 %v420, %v505
  %v570 = vmul.f32 %v422, %v506
  %v571 = vmul.f32 %v424, %v507
  %v572 = vmul.f32 %v428, %v508
  %v573 = vmul.f32 %v430, %v509
  %v574 = vmul.f32 %v432, %v510
  %v575 = vmul.f32 %v434, %v511
  %v576 = vmul.f32 %v438, %v512
  %v577 = vmul.f32 %v440, %v513
  %v578 = vmul.f32 %v442, %v514
  %v579 = vmul.f32 %v444, %v515
  %v580 = vmul.f32 %v448, %v516
  %v581 = vmul.f32 %v450, %v517
  %v582 = vmul.f32 %v452, %v518
  %v583 = vmul.f32 %v454, %v519
  %v584 = vmul.f32 %v520, 0.044715
  %v585 = vmul.f32 %v521, 0.044715
  %v586 = vmul.f32 %v522, 0.044715
  %v587 = vmul.f32 %v523, 0.044715
  %v588 = vmul.f32 %v524, 0.044715
  %v589 = vmul.f32 %v525, 0.044715
  %v590 = vmul.f32 %v526, 0.044715
  %v591 = vmul.f32 %v527, 0.044715
  %v592 = vmul.f32 %v528, 0.044715
  %v593 = vmul.f32 %v529, 0.044715
  %v594 = vmul.f32 %v530, 0.044715
  %v595 = vmul.f32 %v531, 0.044715
  %v596 = vmul.f32 %v532, 0.044715
  %v597 = vmul.f32 %v533, 0.044715
  %v598 = vmul.f32 %v534, 0.044715
  %v599 = vmul.f32 %v535, 0.044715
  %v600 = vmul.f32 %v536, 0.044715
  %v601 = vmul.f32 %v537, 0.044715
  %v602 = vmul.f32 %v538, 0.044715
  %v603 = vmul.f32 %v539, 0.044715
  %v604 = vmul.f32 %v540, 0.044715
  %v605 = vmul.f32 %v541, 0.044715
  %v606 = vmul.f32 %v542, 0.044715
  %v607 = vmul.f32 %v543, 0.044715
  %v608 = vmul.f32 %v544, 0.044715
  %v609 = vmul.f32 %v545, 0.044715
  %v610 = vmul.f32 %v546, 0.044715
  %v611 = vmul.f32 %v547, 0.044715
  %v612 = vmul.f32 %v548, 0.044715
  %v613 = vmul.f32 %v549, 0.044715
  %v614 = vmul.f32 %v550, 0.044715
  %v615 = vmul.f32 %v551, 0.044715
  %v616 = vmul.f32 %v552, 0.044715
  %v617 = vmul.f32 %v553, 0.044715
  %v618 = vmul.f32 %v554, 0.044715
  %v619 = vmul.f32 %v555, 0.044715
  %v620 = vmul.f32 %v556, 0.044715
  %v621 = vmul.f32 %v557, 0.044715
  %v622 = vmul.f32 %v558, 0.044715
  %v623 = vmul.f32 %v559, 0.044715
  %v624 = vmul.f32 %v560, 0.044715
  %v625 = vmul.f32 %v561, 0.044715
  %v626 = vmul.f32 %v562, 0.044715
  %v627 = vmul.f32 %v563, 0.044715
  %v628 = vmul.f32 %v564, 0.044715
  %v629 = vmul.f32 %v565, 0.044715
  %v630 = vmul.f32 %v566, 0.044715
  %v631 = vmul.f32 %v567, 0.044715
  %v632 = vmul.f32 %v568, 0.044715
  %v633 = vmul.f32 %v569, 0.044715
  %v634 = vmul.f32 %v570, 0.044715
  %v635 = vmul.f32 %v571, 0.044715
  %v636 = vmul.f32 %v572, 0.044715
  %v637 = vmul.f32 %v573, 0.044715
  %v638 = vmul.f32 %v574, 0.044715
  %v639 = vmul.f32 %v575, 0.044715
  %v640 = vmul.f32 %v576, 0.044715
  %v641 = vmul.f32 %v577, 0.044715
  %v642 = vmul.f32 %v578, 0.044715
  %v643 = vmul.f32 %v579, 0.044715
  %v644 = vmul.f32 %v580, 0.044715
  %v645 = vmul.f32 %v581, 0.044715
  %v646 = vmul.f32 %v582, 0.044715
  %v647 = vmul.f32 %v583, 0.044715
  %v648 = vadd.f32 %v298, %v584
  %v649 = vadd.f32 %v300, %v585
  %v650 = vadd.f32 %v302, %v586
  %v651 = vadd.f32 %v304, %v587
  %v652 = vadd.f32 %v308, %v588
  %v653 = vadd.f32 %v310, %v589
  %v654 = vadd.f32 %v312, %v590
  %v655 = vadd.f32 %v314, %v591
  %v656 = vadd.f32 %v318, %v592
  %v657 = vadd.f32 %v320, %v593
  %v658 = vadd.f32 %v322, %v594
  %v659 = vadd.f32 %v324, %v595
  %v660 = vadd.f32 %v328, %v596
  %v661 = vadd.f32 %v330, %v597
  %v662 = vadd.f32 %v332, %v598
  %v663 = vadd.f32 %v334, %v599
  %v664 = vadd.f32 %v338, %v600
  %v665 = vadd.f32 %v340, %v601
  %v666 = vadd.f32 %v342, %v602
  %v667 = vadd.f32 %v344, %v603
  %v668 = vadd.f32 %v348, %v604
  %v669 = vadd.f32 %v350, %v605
  %v670 = vadd.f32 %v352, %v606
  %v671 = vadd.f32 %v354, %v607
  %v672 = vadd.f32 %v358, %v608
  %v673 = vadd.f32 %v360, %v609
  %v674 = vadd.f32 %v362, %v610
  %v675 = vadd.f32 %v364, %v611
  %v676 = vadd.f32 %v368, %v612
  %v677 = vadd.f32 %v370, %v613
  %v678 = vadd.f32 %v372, %v614
  %v679 = vadd.f32 %v374, %v615
  %v680 = vadd.f32 %v378, %v616
  %v681 = vadd.f32 %v380, %v617
  %v682 = vadd.f32 %v382, %v618
  %v683 = vadd.f32 %v384, %v619
  %v684 = vadd.f32 %v388, %v620
  %v685 = vadd.f32 %v390, %v621
  %v686 = vadd.f32 %v392, %v622
  %v687 = vadd.f32 %v394, %v623
  %v688 = vadd.f32 %v398, %v624
  %v689 = vadd.f32 %v400, %v625
  %v690 = vadd.f32 %v402, %v626
  %v691 = vadd.f32 %v404, %v627
  %v692 = vadd.f32 %v408, %v628
  %v693 = vadd.f32 %v410, %v629
  %v694 = vadd.f32 %v412, %v630
  %v695 = vadd.f32 %v414, %v631
  %v696 = vadd.f32 %v418, %v632
  %v697 = vadd.f32 %v420, %v633
  %v698 = vadd.f32 %v422, %v634
  %v699 = vadd.f32 %v424, %v635
  %v700 = vadd.f32 %v428, %v636
  %v701 = vadd.f32 %v430, %v637
  %v702 = vadd.f32 %v432, %v638
  %v703 = vadd.f32 %v434, %v639
  %v704 = vadd.f32 %v438, %v640
  %v705 = vadd.f32 %v440, %v641
  %v706 = vadd.f32 %v442, %v642
  %v707 = vadd.f32 %v444, %v643
  %v708 = vadd.f32 %v448, %v644
  %v709 = vadd.f32 %v450, %v645
  %v710 = vadd.f32 %v452, %v646
  %v711 = vadd.f32 %v454, %v647
  %v712 = vmul.f32 %v648, 0.7978846
  %v713 = vmul.f32 %v649, 0.7978846
  %v714 = vmul.f32 %v650, 0.7978846
  %v715 = vmul.f32 %v651, 0.7978846
  %v716 = vmul.f32 %v652, 0.7978846
  %v717 = vmul.f32 %v653, 0.7978846
  %v718 = vmul.f32 %v654, 0.7978846
  %v719 = vmul.f32 %v655, 0.7978846
  %v720 = vmul.f32 %v656, 0.7978846
  %v721 = vmul.f32 %v657, 0.7978846
  %v722 = vmul.f32 %v658, 0.7978846
  %v723 = vmul.f32 %v659, 0.7978846
  %v724 = vmul.f32 %v660, 0.7978846
  %v725 = vmul.f32 %v661, 0.7978846
  %v726 = vmul.f32 %v662, 0.7978846
  %v727 = vmul.f32 %v663, 0.7978846
  %v728 = vmul.f32 %v664, 0.7978846
  %v729 = vmul.f32 %v665, 0.7978846
  %v730 = vmul.f32 %v666, 0.7978846
  %v731 = vmul.f32 %v667, 0.7978846
  %v732 = vmul.f32 %v668, 0.7978846
  %v733 = vmul.f32 %v669, 0.7978846
  %v734 = vmul.f32 %v670, 0.7978846
  %v735 = vmul.f32 %v671, 0.7978846
  %v736 = vmul.f32 %v672, 0.7978846
  %v737 = vmul.f32 %v673, 0.7978846
  %v738 = vmul.f32 %v674, 0.7978846
  %v739 = vmul.f32 %v675, 0.7978846
  %v740 = vmul.f32 %v676, 0.7978846
  %v741 = vmul.f32 %v677, 0.7978846
  %v742 = vmul.f32 %v678, 0.7978846
  %v743 = vmul.f32 %v679, 0.7978846
  %v744 = vmul.f32 %v680, 0.7978846
  %v745 = vmul.f32 %v681, 0.7978846
  %v746 = vmul.f32 %v682, 0.7978846
  %v747 = vmul.f32 %v683, 0.7978846
  %v748 = vmul.f32 %v684, 0.7978846
  %v749 = vmul.f32 %v685, 0.7978846
  %v750 = vmul.f32 %v686, 0.7978846
  %v751 = vmul.f32 %v687, 0.7978846
  %v752 = vmul.f32 %v688, 0.7978846
  %v753 = vmul.f32 %v689, 0.7978846
  %v754 = vmul.f32 %v690, 0.7978846
  %v755 = vmul.f32 %v691, 0.7978846
  %v756 = vmul.f32 %v692, 0.7978846
  %v757 = vmul.f32 %v693, 0.7978846
  %v758 = vmul.f32 %v694, 0.7978846
  %v759 = vmul.f32 %v695, 0.7978846
  %v760 = vmul.f32 %v696, 0.7978846
  %v761 = vmul.f32 %v697, 0.7978846
  %v762 = vmul.f32 %v698, 0.7978846
  %v763 = vmul.f32 %v699, 0.7978846
  %v764 = vmul.f32 %v700, 0.7978846
  %v765 = vmul.f32 %v701, 0.7978846
  %v766 = vmul.f32 %v702, 0.7978846
  %v767 = vmul.f32 %v703, 0.7978846
  %v768 = vmul.f32 %v704, 0.7978846
  %v769 = vmul.f32 %v705, 0.7978846
  %v770 = vmul.f32 %v706, 0.7978846
  %v771 = vmul.f32 %v707, 0.7978846
  %v772 = vmul.f32 %v708, 0.7978846
  %v773 = vmul.f32 %v709, 0.7978846
  %v774 = vmul.f32 %v710, 0.7978846
  %v775 = vmul.f32 %v711, 0.7978846
  %v776 = vtanh.pop %v712
  %v777 = vtanh.pop %v713
  %v778 = vtanh.pop %v714
  %v779 = vtanh.pop %v715
  %v780 = vtanh.pop %v716
  %v781 = vtanh.pop %v717
  %v782 = vtanh.pop %v718
  %v783 = vtanh.pop %v719
  %v784 = vtanh.pop %v720
  %v785 = vtanh.pop %v721
  %v786 = vtanh.pop %v722
  %v787 = vtanh.pop %v723
  %v788 = vtanh.pop %v724
  %v789 = vtanh.pop %v725
  %v790 = vtanh.pop %v726
  %v791 = vtanh.pop %v727
  %v792 = vtanh.pop %v728
  %v793 = vtanh.pop %v729
  %v794 = vtanh.pop %v730
  %v795 = vtanh.pop %v731
  %v796 = vtanh.pop %v732
  %v797 = vtanh.pop %v733
  %v798 = vtanh.pop %v734
  %v799 = vtanh.pop %v735
  %v800 = vtanh.pop %v736
  %v801 = vtanh.pop %v737
  %v802 = vtanh.pop %v738
  %v803 = vtanh.pop %v739
  %v804 = vtanh.pop %v740
  %v805 = vtanh.pop %v741
  %v806 = vtanh.pop %v742
  %v807 = vtanh.pop %v743
  %v808 = vtanh.pop %v744
  %v809 = vtanh.pop %v745
  %v810 = vtanh.pop %v746
  %v811 = vtanh.pop %v747
  %v812 = vtanh.pop %v748
  %v813 = vtanh.pop %v749
  %v814 = vtanh.pop %v750
  %v815 = vtanh.pop %v751
  %v816 = vtanh.pop %v752
  %v817 = vtanh.pop %v753
  %v818 = vtanh.pop %v754
  %v819 = vtanh.pop %v755
  %v820 = vtanh.pop %v756
  %v821 = vtanh.pop %v757
  %v822 = vtanh.pop %v758
  %v823 = vtanh.pop %v759
  %v824 = vtanh.pop %v760
  %v825 = vtanh.pop %v761
  %v826 = vtanh.pop %v762
  %v827 = vtanh.pop %v763
  %v828 = vtanh.pop %v764
  %v829 = vtanh.pop %v765
  %v830 = vtanh.pop %v766
  %v831 = vtanh.pop %v767
  %v832 = vtanh.pop %v768
  %v833 = vtanh.pop %v769
  %v834 = vtanh.pop %v770
  %v835 = vtanh.pop %v771
  %v836 = vtanh.pop %v772
  %v837 = vtanh.pop %v773
  %v838 = vtanh.pop %v774
  %v839 = vtanh.pop %v775
  %v840 = vadd.f32 %v776, 1.0
  %v841 = vadd.f32 %v777, 1.0
  %v842 = vadd.f32 %v778, 1.0
  %v843 = vadd.f32 %v779, 1.0
  %v844 = vadd.f32 %v780, 1.0
  %v845 = vadd.f32 %v781, 1.0
  %v846 = vadd.f32 %v782, 1.0
  %v847 = vadd.f32 %v783, 1.0
  %v848 = vadd.f32 %v784, 1.0
  %v849 = vadd.f32 %v785, 1.0
  %v850 = vadd.f32 %v786, 1.0
  %v851 = vadd.f32 %v787, 1.0
  %v852 = vadd.f32 %v788, 1.0
  %v853 = vadd.f32 %v789, 1.0
  %v854 = vadd.f32 %v790, 1.0
  %v855 = vadd.f32 %v791, 1.0
  %v856 = vadd.f32 %v792, 1.0
  %v857 = vadd.f32 %v793, 1.0
  %v858 = vadd.f32 %v794, 1.0
  %v859 = vadd.f32 %v795, 1.0
  %v860 = vadd.f32 %v796, 1.0
  %v861 = vadd.f32 %v797, 1.0
  %v862 = vadd.f32 %v798, 1.0
  %v863 = vadd.f32 %v799, 1.0
  %v864 = vadd.f32 %v800, 1.0
  %v865 = vadd.f32 %v801, 1.0
  %v866 = vadd.f32 %v802, 1.0
  %v867 = vadd.f32 %v803, 1.0
  %v868 = vadd.f32 %v804, 1.0
  %v869 = vadd.f32 %v805, 1.0
  %v870 = vadd.f32 %v806, 1.0
  %v871 = vadd.f32 %v807, 1.0
  %v872 = vadd.f32 %v808, 1.0
  %v873 = vadd.f32 %v809, 1.0
  %v874 = vadd.f32 %v810, 1.0
  %v875 = vadd.f32 %v811, 1.0
  %v876 = vadd.f32 %v812, 1.0
  %v877 = vadd.f32 %v813, 1.0
  %v878 = vadd.f32 %v814, 1.0
  %v879 = vadd.f32 %v815, 1.0
  %v880 = vadd.f32 %v816, 1.0
  %v881 = vadd.f32 %v817, 1.0
  %v882 = vadd.f32 %v818, 1.0
  %v883 = vadd.f32 %v819, 1.0
  %v884 = vadd.f32 %v820, 1.0
  %v885 = vadd.f32 %v821, 1.0
  %v886 = vadd.f32 %v822, 1.0
  %v887 = vadd.f32 %v823, 1.0
  %v888 = vadd.f32 %v824, 1.0
  %v889 = vadd.f32 %v825, 1.0
  %v890 = vadd.f32 %v826, 1.0
  %v891 = vadd.f32 %v827, 1.0
  %v892 = vadd.f32 %v828, 1.0
  %v893 = vadd.f32 %v829, 1.0
  %v894 = vadd.f32 %v830, 1.0
  %v895 = vadd.f32 %v831, 1.0
  %v896 = vadd.f32 %v832, 1.0
  %v897 = vadd.f32 %v833, 1.0
  %v898 = vadd.f32 %v834, 1.0
  %v899 = vadd.f32 %v835, 1.0
  %v900 = vadd.f32 %v836, 1.0
  %v901 = vadd.f32 %v837, 1.0
  %v902 = vadd.f32 %v838, 1.0
  %v903 = vadd.f32 %v839, 1.0
  %v904 = vmul.f32 %v840, 0.5
  %v905 = vmul.f32 %v841, 0.5
  %v906 = vmul.f32 %v842, 0.5
  %v907 = vmul.f32 %v843, 0.5
  %v908 = vmul.f32 %v844, 0.5
  %v909 = vmul.f32 %v845, 0.5
  %v910 = vmul.f32 %v846, 0.5
  %v911 = vmul.f32 %v847, 0.5
  %v912 = vmul.f32 %v848, 0.5
  %v913 = vmul.f32 %v849, 0.5
  %v914 = vmul.f32 %v850, 0.5
  %v915 = vmul.f32 %v851, 0.5
  %v916 = vmul.f32 %v852, 0.5
  %v917 = vmul.f32 %v853, 0.5
  %v918 = vmul.f32 %v854, 0.5
  %v919 = vmul.f32 %v855, 0.5
  %v920 = vmul.f32 %v856, 0.5
  %v921 = vmul.f32 %v857, 0.5
  %v922 = vmul.f32 %v858, 0.5
  %v923 = vmul.f32 %v859, 0.5
  %v924 = vmul.f32 %v860, 0.5
  %v925 = vmul.f32 %v861, 0.5
  %v926 = vmul.f32 %v862, 0.5
  %v927 = vmul.f32 %v863, 0.5
  %v928 = vmul.f32 %v864, 0.5
  %v929 = vmul.f32 %v865, 0.5
  %v930 = vmul.f32 %v866, 0.5
  %v931 = vmul.f32 %v867, 0.5
  %v932 = vmul.f32 %v868, 0.5
  %v933 = vmul.f32 %v869, 0.5
  %v934 = vmul.f32 %v870, 0.5
  %v935 = vmul.f32 %v871, 0.5
  %v936 = vmul.f32 %v872, 0.5
  %v937 = vmul.f32 %v873, 0.5
  %v938 = vmul.f32 %v874, 0.5
  %v939 = vmul.f32 %v875, 0.5
  %v940 = vmul.f32 %v876, 0.5
  %v941 = vmul.f32 %v877, 0.5
  %v942 = vmul.f32 %v878, 0.5
  %v943 = vmul.f32 %v879, 0.5
  %v944 = vmul.f32 %v880, 0.5
  %v945 = vmul.f32 %v881, 0.5
  %v946 = vmul.f32 %v882, 0.5
  %v947 = vmul.f32 %v883, 0.5
  %v948 = vmul.f32 %v884, 0.5
  %v949 = vmul.f32 %v885, 0.5
  %v950 = vmul.f32 %v886, 0.5
  %v951 = vmul.f32 %v887, 0.5
  %v952 = vmul.f32 %v888, 0.5
  %v953 = vmul.f32 %v889, 0.5
  %v954 = vmul.f32 %v890, 0.5
  %v955 = vmul.f32 %v891, 0.5
  %v956 = vmul.f32 %v892, 0.5
  %v957 = vmul.f32 %v893, 0.5
  %v958 = vmul.f32 %v894, 0.5
  %v959 = vmul.f32 %v895, 0.5
  %v960 = vmul.f32 %v896, 0.5
  %v961 = vmul.f32 %v897, 0.5
  %v962 = vmul.f32 %v898, 0.5
  %v963 = vmul.f32 %v899, 0.5
  %v964 = vmul.f32 %v900, 0.5
  %v965 = vmul.f32 %v901, 0.5
  %v966 = vmul.f32 %v902, 0.5
  %v967 = vmul.f32 %v903, 0.5
  %v968 = vmul.f32 %v298, %v904
  %v969 = vmul.f32 %v300, %v905
  %v970 = vmul.f32 %v302, %v906
  %v971 = vmul.f32 %v304, %v907
  %v972 = vmul.f32 %v308, %v908
  %v973 = vmul.f32 %v310, %v909
  %v974 = vmul.f32 %v312, %v910
  %v975 = vmul.f32 %v314, %v911
  %v976 = vmul.f32 %v318, %v912
  %v977 = vmul.f32 %v320, %v913
  %v978 = vmul.f32 %v322, %v914
  %v979 = vmul.f32 %v324, %v915
  %v980 = vmul.f32 %v328, %v916
  %v981 = vmul.f32 %v330, %v917
  %v982 = vmul.f32 %v332, %v918
  %v983 = vmul.f32 %v334, %v919
  %v984 = vmul.f32 %v338, %v920
  %v985 = vmul.f32 %v340, %v921
  %v986 = vmul.f32 %v342, %v922
  %v987 = vmul.f32 %v344, %v923
  %v988 = vmul.f32 %v348, %v924
  %v989 = vmul.f32 %v350, %v925
  %v990 = vmul.f32 %v352, %v926
  %v991 = vmul.f32 %v354, %v927
  %v992 = vmul.f32 %v358, %v928
  %v993 = vmul.f32 %v360, %v929
  %v994 = vmul.f32 %v362, %v930
  %v995 = vmul.f32 %v364, %v931
  %v996 = vmul.f32 %v368, %v932
  %v997 = vmul.f32 %v370, %v933
  %v998 = vmul.f32 %v372, %v934
  %v999 = vmul.f32 %v374, %v935
  %v1000 = vmul.f32 %v378, %v936
  %v1001 = vmul.f32 %v380, %v937
  %v1002 = vmul.f32 %v382, %v938
  %v1003 = vmul.f32 %v384, %v939
  %v1004 = vmul.f32 %v388, %v940
  %v1005 = vmul.f32 %v390, %v941
  %v1006 = vmul.f32 %v392, %v942
  %v1007 = vmul.f32 %v394, %v943
  %v1008 = vmul.f32 %v398, %v944
  %v1009 = vmul.f32 %v400, %v945
  %v1010 = vmul.f32 %v402, %v946
  %v1011 = vmul.f32 %v404, %v947
  %v1012 = vmul.f32 %v408, %v948
  %v1013 = vmul.f32 %v410, %v949
  %v1014 = vmul.f32 %v412, %v950
  %v1015 = vmul.f32 %v414, %v951
  %v1016 = vmul.f32 %v418, %v952
  %v1017 = vmul.f32 %v420, %v953
  %v1018 = vmul.f32 %v422, %v954
  %v1019 = vmul.f32 %v424, %v955
  %v1020 = vmul.f32 %v428, %v956
  %v1021 = vmul.f32 %v430, %v957
  %v1022 = vmul.f32 %v432, %v958
  %v1023 = vmul.f32 %v434, %v959
  %v1024 = vmul.f32 %v438, %v960
  %v1025 = vmul.f32 %v440, %v961
  %v1026 = vmul.f32 %v442, %v962
  %v1027 = vmul.f32 %v444, %v963
  %v1028 = vmul.f32 %v448, %v964
  %v1029 = vmul.f32 %v450, %v965
  %v1030 = vmul.f32 %v452, %v966
  %v1031 = vmul.f32 %v454, %v967
  %v1032 = vpack.c.bf16 %v970, %v968
  %v1033 = vpack.c.bf16 %v971, %v969
  %v1034 = vpack.c.bf16 %v974, %v972
  %v1035 = vpack.c.bf16 %v975, %v973
  %v1036 = vpack.c.bf16 %v978, %v976
  %v1037 = vpack.c.bf16 %v979, %v977
  %v1038 = vpack.c.bf16 %v982, %v980
  %v1039 = vpack.c.bf16 %v983, %v981
  %v1040 = vpack.c.bf16 %v986, %v984
  %v1041 = vpack.c.bf16 %v987, %v985
  %v1042 = vpack.c.bf16 %v990, %v988
  %v1043 = vpack.c.bf16 %v991, %v989
  %v1044 = vpack.c.bf16 %v994, %v992
  %v1045 = vpack.c.bf16 %v995, %v993
  %v1046 = vpack.c.bf16 %v998, %v996
  %v1047 = vpack.c.bf16 %v999, %v997
  %v1048 = vpack.c.bf16 %v1002, %v1000
  %v1049 = vpack.c.bf16 %v1003, %v1001
  %v1050 = vpack.c.bf16 %v1006, %v1004
  %v1051 = vpack.c.bf16 %v1007, %v1005
  %v1052 = vpack.c.bf16 %v1010, %v1008
  %v1053 = vpack.c.bf16 %v1011, %v1009
  %v1054 = vpack.c.bf16 %v1014, %v1012
  %v1055 = vpack.c.bf16 %v1015, %v1013
  %v1056 = vpack.c.bf16 %v1018, %v1016
  %v1057 = vpack.c.bf16 %v1019, %v1017
  %v1058 = vpack.c.bf16 %v1022, %v1020
  %v1059 = vpack.c.bf16 %v1023, %v1021
  %v1060 = vpack.c.bf16 %v1026, %v1024
  %v1061 = vpack.c.bf16 %v1027, %v1025
  %v1062 = vpack.c.bf16 %v1030, %v1028
  %v1063 = vpack.c.bf16 %v1031, %v1029
  %v1064 = vld [vmem:[%s3] sm:$0xf]
  %v1065 = vld [vmem:[%s3 + $0x4] sm:$0xf]
  %v1066 = vld [vmem:[%s3 + $0x8] sm:$0xf]
  %v1067 = vld [vmem:[%s3 + $0xc] sm:$0xf]
  %v1068 = vld [vmem:[%s3 + $0x10] sm:$0xf]
  %v1069 = vld [vmem:[%s3 + $0x14] sm:$0xf]
  %v1070 = vld [vmem:[%s3 + $0x18] sm:$0xf]
  %v1071 = vld [vmem:[%s3 + $0x1c] sm:$0xf]
  %v1072 = vld [vmem:[%s3 + $0x20] sm:$0xf]
  %v1073 = vld [vmem:[%s3 + $0x24] sm:$0xf]
  %v1074 = vld [vmem:[%s3 + $0x28] sm:$0xf]
  %v1075 = vld [vmem:[%s3 + $0x2c] sm:$0xf]
  %v1076 = vld [vmem:[%s3 + $0x30] sm:$0xf]
  %v1077 = vld [vmem:[%s3 + $0x34] sm:$0xf]
  %v1078 = vld [vmem:[%s3 + $0x38] sm:$0xf]
  %v1079 = vld [vmem:[%s3 + $0x3c] sm:$0xf]
  %v1080 = vld [vmem:[%s3 + $0x40] sm:$0xf]
  %v1081 = vld [vmem:[%s3 + $0x44] sm:$0xf]
  %v1082 = vld [vmem:[%s3 + $0x48] sm:$0xf]
  %v1083 = vld [vmem:[%s3 + $0x4c] sm:$0xf]
  %v1084 = vld [vmem:[%s3 + $0x50] sm:$0xf]
  %v1085 = vld [vmem:[%s3 + $0x54] sm:$0xf]
  %v1086 = vld [vmem:[%s3 + $0x58] sm:$0xf]
  %v1087 = vld [vmem:[%s3 + $0x5c] sm:$0xf]
  %v1088 = vld [vmem:[%s3 + $0x60] sm:$0xf]
  %v1089 = vld [vmem:[%s3 + $0x64] sm:$0xf]
  %v1090 = vld [vmem:[%s3 + $0x68] sm:$0xf]
  %v1091 = vld [vmem:[%s3 + $0x6c] sm:$0xf]
  %v1092 = vld [vmem:[%s3 + $0x70] sm:$0xf]
  %v1093 = vld [vmem:[%s3 + $0x74] sm:$0xf]
  %v1094 = vld [vmem:[%s3 + $0x78] sm:$0xf]
  %v1095 = vld [vmem:[%s3 + $0x7c] sm:$0xf]
  %v1096 = vld [vmem:[%s4] sm:$0x1]
  %v1098 = vlaneseq
  %v1099 = vshrl.u32 %v1098, 7
  %v1100 = vsub.s32 0, %v1099
  %v1101 = vrot.slane %v1096, %v1100
  %v1135 = vunpack.c.l.b16 %v1064
  %v1136 = vunpack.c.l.b16 %v1065
  %v1137 = vunpack.c.l.b16 %v1066
  %v1138 = vunpack.c.l.b16 %v1067
  %v1139 = vunpack.c.l.b16 %v1068
  %v1140 = vunpack.c.l.b16 %v1069
  %v1141 = vunpack.c.l.b16 %v1070
  %v1142 = vunpack.c.l.b16 %v1071
  %v1143 = vunpack.c.l.b16 %v1072
  %v1144 = vunpack.c.l.b16 %v1073
  %v1145 = vunpack.c.l.b16 %v1074
  %v1146 = vunpack.c.l.b16 %v1075
  %v1147 = vunpack.c.l.b16 %v1076
  %v1148 = vunpack.c.l.b16 %v1077
  %v1149 = vunpack.c.l.b16 %v1078
  %v1150 = vunpack.c.l.b16 %v1079
  %v1151 = vunpack.c.l.b16 %v1080
  %v1152 = vunpack.c.l.b16 %v1081
  %v1153 = vunpack.c.l.b16 %v1082
  %v1154 = vunpack.c.l.b16 %v1083
  %v1155 = vunpack.c.l.b16 %v1084
  %v1156 = vunpack.c.l.b16 %v1085
  %v1157 = vunpack.c.l.b16 %v1086
  %v1158 = vunpack.c.l.b16 %v1087
  %v1159 = vunpack.c.l.b16 %v1088
  %v1160 = vunpack.c.l.b16 %v1089
  %v1161 = vunpack.c.l.b16 %v1090
  %v1162 = vunpack.c.l.b16 %v1091
  %v1163 = vunpack.c.l.b16 %v1092
  %v1164 = vunpack.c.l.b16 %v1093
  %v1165 = vunpack.c.l.b16 %v1094
  %v1166 = vunpack.c.l.b16 %v1095
  %v1167 = vpack.c.b16 %v1136, %v1135
  %v1168 = vpack.c.b16 %v1138, %v1137
  %v1169 = vpack.c.b16 %v1140, %v1139
  %v1170 = vpack.c.b16 %v1142, %v1141
  %v1171 = vpack.c.b16 %v1144, %v1143
  %v1172 = vpack.c.b16 %v1146, %v1145
  %v1173 = vpack.c.b16 %v1148, %v1147
  %v1174 = vpack.c.b16 %v1150, %v1149
  %v1175 = vpack.c.b16 %v1152, %v1151
  %v1176 = vpack.c.b16 %v1154, %v1153
  %v1177 = vpack.c.b16 %v1156, %v1155
  %v1178 = vpack.c.b16 %v1158, %v1157
  %v1179 = vpack.c.b16 %v1160, %v1159
  %v1180 = vpack.c.b16 %v1162, %v1161
  %v1181 = vpack.c.b16 %v1164, %v1163
  %v1182 = vpack.c.b16 %v1166, %v1165
  %1199 = vmatprep.subr.bf16.mxu0 0
  %1200 = vmatpush1.bf16.msra.mxu0 %v1167
  %1201 = vmatprep.subr.bf16.mxu0 0
  %1202 = vmatpush1.bf16.msra.mxu0 %v1168
  %1203 = vmatprep.subr.bf16.mxu0 0
  %1204 = vmatpush1.bf16.msra.mxu0 %v1169
  %1205 = vmatprep.subr.bf16.mxu0 0
  %1206 = vmatpush1.bf16.msra.mxu0 %v1170
  %1207 = vmatprep.subr.bf16.mxu0 0
  %1208 = vmatpush1.bf16.msra.mxu0 %v1171
  %1209 = vmatprep.subr.bf16.mxu0 0
  %1210 = vmatpush1.bf16.msra.mxu0 %v1172
  %1211 = vmatprep.subr.bf16.mxu0 0
  %1212 = vmatpush1.bf16.msra.mxu0 %v1173
  %1213 = vmatprep.subr.bf16.mxu0 0
  %1214 = vmatpush1.bf16.msra.mxu0 %v1174
  %1215 = vmatprep.subr.bf16.mxu0 0
  %1216 = vmatpush1.bf16.msra.mxu0 %v1175
  %1217 = vmatprep.subr.bf16.mxu0 0
  %1218 = vmatpush1.bf16.msra.mxu0 %v1176
  %1219 = vmatprep.subr.bf16.mxu0 0
  %1220 = vmatpush1.bf16.msra.mxu0 %v1177
  %1221 = vmatprep.subr.bf16.mxu0 0
  %1222 = vmatpush1.bf16.msra.mxu0 %v1178
  %1223 = vmatprep.subr.bf16.mxu0 0
  %1224 = vmatpush1.bf16.msra.mxu0 %v1179
  %1225 = vmatprep.subr.bf16.mxu0 0
  %1226 = vmatpush1.bf16.msra.mxu0 %v1180
  %1227 = vmatprep.subr.bf16.mxu0 0
  %1228 = vmatpush1.bf16.msra.mxu0 %v1181
  %1229 = vmatprep.subr.bf16.mxu0 0
  %1230 = vmatpush1.bf16.msra.mxu0 %v1182
  %1231 = vmatprep.mubr.bf16.mxu0 %v1033
  %1232 = vmatmul.mubr.bf16.gmra.mrb[0].mxu0 %v1032
  %v1233 = vpop.f32.mrb[0].mxu0
  %v1234 = vadd.f32 %v1101, %v1233
  %v1235 = vpop.f32.mrb[0].mxu0
  %v1236 = vpop.f32.mrb[0].mxu0
  %v1237 = vadd.f32 %v1101, %v1236
  %v1238 = vpop.f32.mrb[0].mxu0
  %1239 = vmatprep.mubr.bf16.mxu0 %v1035
  %1240 = vmatmul.mubr.bf16.gmra.mrb[0].mxu0 %v1034
  %v1241 = vpop.f32.mrb[0].mxu0
  %v1242 = vadd.f32 %v1101, %v1241
  %v1243 = vpop.f32.mrb[0].mxu0
  %v1244 = vpop.f32.mrb[0].mxu0
  %v1245 = vadd.f32 %v1101, %v1244
  %v1246 = vpop.f32.mrb[0].mxu0
  %1247 = vmatprep.mubr.bf16.mxu0 %v1037
  %1248 = vmatmul.mubr.bf16.gmra.mrb[0].mxu0 %v1036
  %v1249 = vpop.f32.mrb[0].mxu0
  %v1250 = vadd.f32 %v1101, %v1249
  %v1251 = vpop.f32.mrb[0].mxu0
  %v1252 = vpop.f32.mrb[0].mxu0
  %v1253 = vadd.f32 %v1101, %v1252
  %v1254 = vpop.f32.mrb[0].mxu0
  %1255 = vmatprep.mubr.bf16.mxu0 %v1039
  %1256 = vmatmul.mubr.bf16.gmra.mrb[0].mxu0 %v1038
  %v1257 = vpop.f32.mrb[0].mxu0
  %v1258 = vadd.f32 %v1101, %v1257
  %v1259 = vpop.f32.mrb[0].mxu0
  %v1260 = vpop.f32.mrb[0].mxu0
  %v1261 = vadd.f32 %v1101, %v1260
  %v1262 = vpop.f32.mrb[0].mxu0
  %1263 = vmatprep.mubr.bf16.mxu0 %v1041
  %1264 = vmatmul.mubr.bf16.gmra.mrb[0].mxu0 %v1040
  %v1265 = vpop.f32.mrb[0].mxu0
  %v1266 = vadd.f32 %v1101, %v1265
  %v1267 = vpop.f32.mrb[0].mxu0
  %v1268 = vpop.f32.mrb[0].mxu0
  %v1269 = vadd.f32 %v1101, %v1268
  %v1270 = vpop.f32.mrb[0].mxu0
  %1271 = vmatprep.mubr.bf16.mxu0 %v1043
  %1272 = vmatmul.mubr.bf16.gmra.mrb[0].mxu0 %v1042
  %v1273 = vpop.f32.mrb[0].mxu0
  %v1274 = vadd.f32 %v1101, %v1273
  %v1275 = vpop.f32.mrb[0].mxu0
  %v1276 = vpop.f32.mrb[0].mxu0
  %v1277 = vadd.f32 %v1101, %v1276
  %v1278 = vpop.f32.mrb[0].mxu0
  %1279 = vmatprep.mubr.bf16.mxu0 %v1045
  %1280 = vmatmul.mubr.bf16.gmra.mrb[0].mxu0 %v1044
  %v1281 = vpop.f32.mrb[0].mxu0
  %v1282 = vadd.f32 %v1101, %v1281
  %v1283 = vpop.f32.mrb[0].mxu0
  %v1284 = vpop.f32.mrb[0].mxu0
  %v1285 = vadd.f32 %v1101, %v1284
  %v1286 = vpop.f32.mrb[0].mxu0
  %1287 = vmatprep.mubr.bf16.mxu0 %v1047
  %1288 = vmatmul.mubr.bf16.gmra.mrb[0].mxu0 %v1046
  %v1289 = vpop.f32.mrb[0].mxu0
  %v1290 = vadd.f32 %v1101, %v1289
  %v1291 = vpop.f32.mrb[0].mxu0
  %v1292 = vpop.f32.mrb[0].mxu0
  %v1293 = vadd.f32 %v1101, %v1292
  %v1294 = vpop.f32.mrb[0].mxu0
  %1295 = vmatprep.mubr.bf16.mxu0 %v1049
  %1296 = vmatmul.mubr.bf16.gmra.mrb[0].mxu0 %v1048
  %v1297 = vpop.f32.mrb[0].mxu0
  %v1298 = vadd.f32 %v1101, %v1297
  %v1299 = vpop.f32.mrb[0].mxu0
  %v1300 = vpop.f32.mrb[0].mxu0
  %v1301 = vadd.f32 %v1101, %v1300
  %v1302 = vpop.f32.mrb[0].mxu0
  %1303 = vmatprep.mubr.bf16.mxu0 %v1051
  %1304 = vmatmul.mubr.bf16.gmra.mrb[0].mxu0 %v1050
  %v1305 = vpop.f32.mrb[0].mxu0
  %v1306 = vadd.f32 %v1101, %v1305
  %v1307 = vpop.f32.mrb[0].mxu0
  %v1308 = vpop.f32.mrb[0].mxu0
  %v1309 = vadd.f32 %v1101, %v1308
  %v1310 = vpop.f32.mrb[0].mxu0
  %1311 = vmatprep.mubr.bf16.mxu0 %v1053
  %1312 = vmatmul.mubr.bf16.gmra.mrb[0].mxu0 %v1052
  %v1313 = vpop.f32.mrb[0].mxu0
  %v1314 = vadd.f32 %v1101, %v1313
  %v1315 = vpop.f32.mrb[0].mxu0
  %v1316 = vpop.f32.mrb[0].mxu0
  %v1317 = vadd.f32 %v1101, %v1316
  %v1318 = vpop.f32.mrb[0].mxu0
  %1319 = vmatprep.mubr.bf16.mxu0 %v1055
  %1320 = vmatmul.mubr.bf16.gmra.mrb[0].mxu0 %v1054
  %v1321 = vpop.f32.mrb[0].mxu0
  %v1322 = vadd.f32 %v1101, %v1321
  %v1323 = vpop.f32.mrb[0].mxu0
  %v1324 = vpop.f32.mrb[0].mxu0
  %v1325 = vadd.f32 %v1101, %v1324
  %v1326 = vpop.f32.mrb[0].mxu0
  %1327 = vmatprep.mubr.bf16.mxu0 %v1057
  %1328 = vmatmul.mubr.bf16.gmra.mrb[0].mxu0 %v1056
  %v1329 = vpop.f32.mrb[0].mxu0
  %v1330 = vadd.f32 %v1101, %v1329
  %v1331 = vpop.f32.mrb[0].mxu0
  %v1332 = vpop.f32.mrb[0].mxu0
  %v1333 = vadd.f32 %v1101, %v1332
  %v1334 = vpop.f32.mrb[0].mxu0
  %1335 = vmatprep.mubr.bf16.mxu0 %v1059
  %1336 = vmatmul.mubr.bf16.gmra.mrb[0].mxu0 %v1058
  %v1337 = vpop.f32.mrb[0].mxu0
  %v1338 = vadd.f32 %v1101, %v1337
  %v1339 = vpop.f32.mrb[0].mxu0
  %v1340 = vpop.f32.mrb[0].mxu0
  %v1341 = vadd.f32 %v1101, %v1340
  %v1342 = vpop.f32.mrb[0].mxu0
  %1343 = vmatprep.mubr.bf16.mxu0 %v1061
  %1344 = vmatmul.mubr.bf16.gmra.mrb[0].mxu0 %v1060
  %v1345 = vpop.f32.mrb[0].mxu0
  %v1346 = vadd.f32 %v1101, %v1345
  %v1347 = vpop.f32.mrb[0].mxu0
  %v1348 = vpop.f32.mrb[0].mxu0
  %v1349 = vadd.f32 %v1101, %v1348
  %v1350 = vpop.f32.mrb[0].mxu0
  %1351 = vmatprep.mubr.bf16.mxu0 %v1063
  %1352 = vmatmul.mubr.bf16.gmra.mrb[0].mxu0 %v1062
  %v1353 = vpop.f32.mrb[0].mxu0
  %v1354 = vadd.f32 %v1101, %v1353
  %v1355 = vpop.f32.mrb[0].mxu0
  %v1356 = vpop.f32.mrb[0].mxu0
  %v1357 = vadd.f32 %v1101, %v1356
  %v1358 = vpop.f32.mrb[0].mxu0
  %1359 = vdwg.mxu0
  %v1360 = vunpack.c.l.bf16 %v27
  %v1361 = vunpack.c.l.bf16 %v28
  %v1362 = vunpack.c.l.bf16 %v29
  %v1363 = vunpack.c.l.bf16 %v30
  %v1364 = vunpack.c.l.bf16 %v31
  %v1365 = vunpack.c.l.bf16 %v32
  %v1366 = vunpack.c.l.bf16 %v33
  %v1367 = vunpack.c.l.bf16 %v34
  %v1368 = vunpack.c.l.bf16 %v35
  %v1369 = vunpack.c.l.bf16 %v36
  %v1370 = vunpack.c.l.bf16 %v37
  %v1371 = vunpack.c.l.bf16 %v38
  %v1372 = vunpack.c.l.bf16 %v39
  %v1373 = vunpack.c.l.bf16 %v40
  %v1374 = vunpack.c.l.bf16 %v41
  %v1375 = vunpack.c.l.bf16 %v42
  %v1376 = vunpack.c.l.bf16 %v43
  %v1377 = vunpack.c.l.bf16 %v44
  %v1378 = vunpack.c.l.bf16 %v45
  %v1379 = vunpack.c.l.bf16 %v46
  %v1380 = vunpack.c.l.bf16 %v47
  %v1381 = vunpack.c.l.bf16 %v48
  %v1382 = vunpack.c.l.bf16 %v49
  %v1383 = vunpack.c.l.bf16 %v50
  %v1384 = vunpack.c.l.bf16 %v51
  %v1385 = vunpack.c.l.bf16 %v52
  %v1386 = vunpack.c.l.bf16 %v53
  %v1387 = vunpack.c.l.bf16 %v54
  %v1388 = vunpack.c.l.bf16 %v55
  %v1389 = vunpack.c.l.bf16 %v56
  %v1390 = vunpack.c.l.bf16 %v57
  %v1391 = vunpack.c.l.bf16 %v58
  %v1392 = vadd.f32 %v1234, %v1360
  %v1393 = vadd.f32 %v1237, %v1361
  %v1394 = vadd.f32 %v1242, %v1362
  %v1395 = vadd.f32 %v1245, %v1363
  %v1396 = vadd.f32 %v1250, %v1364
  %v1397 = vadd.f32 %v1253, %v1365
  %v1398 = vadd.f32 %v1258, %v1366
  %v1399 = vadd.f32 %v1261, %v1367
  %v1400 = vadd.f32 %v1266, %v1368
  %v1401 = vadd.f32 %v1269, %v1369
  %v1402 = vadd.f32 %v1274, %v1370
  %v1403 = vadd.f32 %v1277, %v1371
  %v1404 = vadd.f32 %v1282, %v1372
  %v1405 = vadd.f32 %v1285, %v1373
  %v1406 = vadd.f32 %v1290, %v1374
  %v1407 = vadd.f32 %v1293, %v1375
  %v1408 = vadd.f32 %v1298, %v1376
  %v1409 = vadd.f32 %v1301, %v1377
  %v1410 = vadd.f32 %v1306, %v1378
  %v1411 = vadd.f32 %v1309, %v1379
  %v1412 = vadd.f32 %v1314, %v1380
  %v1413 = vadd.f32 %v1317, %v1381
  %v1414 = vadd.f32 %v1322, %v1382
  %v1415 = vadd.f32 %v1325, %v1383
  %v1416 = vadd.f32 %v1330, %v1384
  %v1417 = vadd.f32 %v1333, %v1385
  %v1418 = vadd.f32 %v1338, %v1386
  %v1419 = vadd.f32 %v1341, %v1387
  %v1420 = vadd.f32 %v1346, %v1388
  %v1421 = vadd.f32 %v1349, %v1389
  %v1422 = vadd.f32 %v1354, %v1390
  %v1423 = vadd.f32 %v1357, %v1391
  %1424 = vadd.xlane.f32.xlu0 %v1392
  %v1425 = vpop.xlane.xlu0 %1424
  %1426 = vadd.xlane.f32.xlu0 %v1393
  %v1427 = vpop.xlane.xlu0 %1426
  %1428 = vadd.xlane.f32.xlu0 %v1394
  %v1429 = vpop.xlane.xlu0 %1428
  %1430 = vadd.xlane.f32.xlu0 %v1395
  %v1431 = vpop.xlane.xlu0 %1430
  %1432 = vadd.xlane.f32.xlu0 %v1396
  %v1433 = vpop.xlane.xlu0 %1432
  %1434 = vadd.xlane.f32.xlu0 %v1397
  %v1435 = vpop.xlane.xlu0 %1434
  %1436 = vadd.xlane.f32.xlu0 %v1398
  %v1437 = vpop.xlane.xlu0 %1436
  %1438 = vadd.xlane.f32.xlu0 %v1399
  %v1439 = vpop.xlane.xlu0 %1438
  %1440 = vadd.xlane.f32.xlu0 %v1400
  %v1441 = vpop.xlane.xlu0 %1440
  %1442 = vadd.xlane.f32.xlu0 %v1401
  %v1443 = vpop.xlane.xlu0 %1442
  %1444 = vadd.xlane.f32.xlu0 %v1402
  %v1445 = vpop.xlane.xlu0 %1444
  %1446 = vadd.xlane.f32.xlu0 %v1403
  %v1447 = vpop.xlane.xlu0 %1446
  %1448 = vadd.xlane.f32.xlu0 %v1404
  %v1449 = vpop.xlane.xlu0 %1448
  %1450 = vadd.xlane.f32.xlu0 %v1405
  %v1451 = vpop.xlane.xlu0 %1450
  %1452 = vadd.xlane.f32.xlu0 %v1406
  %v1453 = vpop.xlane.xlu0 %1452
  %1454 = vadd.xlane.f32.xlu0 %v1407
  %v1455 = vpop.xlane.xlu0 %1454
  %1456 = vadd.xlane.f32.xlu0 %v1408
  %v1457 = vpop.xlane.xlu0 %1456
  %1458 = vadd.xlane.f32.xlu0 %v1409
  %v1459 = vpop.xlane.xlu0 %1458
  %1460 = vadd.xlane.f32.xlu0 %v1410
  %v1461 = vpop.xlane.xlu0 %1460
  %1462 = vadd.xlane.f32.xlu0 %v1411
  %v1463 = vpop.xlane.xlu0 %1462
  %1464 = vadd.xlane.f32.xlu0 %v1412
  %v1465 = vpop.xlane.xlu0 %1464
  %1466 = vadd.xlane.f32.xlu0 %v1413
  %v1467 = vpop.xlane.xlu0 %1466
  %1468 = vadd.xlane.f32.xlu0 %v1414
  %v1469 = vpop.xlane.xlu0 %1468
  %1470 = vadd.xlane.f32.xlu0 %v1415
  %v1471 = vpop.xlane.xlu0 %1470
  %1472 = vadd.xlane.f32.xlu0 %v1416
  %v1473 = vpop.xlane.xlu0 %1472
  %1474 = vadd.xlane.f32.xlu0 %v1417
  %v1475 = vpop.xlane.xlu0 %1474
  %1476 = vadd.xlane.f32.xlu0 %v1418
  %v1477 = vpop.xlane.xlu0 %1476
  %1478 = vadd.xlane.f32.xlu0 %v1419
  %v1479 = vpop.xlane.xlu0 %1478
  %1480 = vadd.xlane.f32.xlu0 %v1420
  %v1481 = vpop.xlane.xlu0 %1480
  %1482 = vadd.xlane.f32.xlu0 %v1421
  %v1483 = vpop.xlane.xlu0 %1482
  %1484 = vadd.xlane.f32.xlu0 %v1422
  %v1485 = vpop.xlane.xlu0 %1484
  %1486 = vadd.xlane.f32.xlu0 %v1423
  %v1487 = vpop.xlane.xlu0 %1486
  %v1488 = vrcp.pop 128.0
  %v1489 = vmul.f32 %v1425, %v1488
  %v1490 = vmul.f32 %v1427, %v1488
  %v1491 = vmul.f32 %v1429, %v1488
  %v1492 = vmul.f32 %v1431, %v1488
  %v1493 = vmul.f32 %v1433, %v1488
  %v1494 = vmul.f32 %v1435, %v1488
  %v1495 = vmul.f32 %v1437, %v1488
  %v1496 = vmul.f32 %v1439, %v1488
  %v1497 = vmul.f32 %v1441, %v1488
  %v1498 = vmul.f32 %v1443, %v1488
  %v1499 = vmul.f32 %v1445, %v1488
  %v1500 = vmul.f32 %v1447, %v1488
  %v1501 = vmul.f32 %v1449, %v1488
  %v1502 = vmul.f32 %v1451, %v1488
  %v1503 = vmul.f32 %v1453, %v1488
  %v1504 = vmul.f32 %v1455, %v1488
  %v1505 = vmul.f32 %v1457, %v1488
  %v1506 = vmul.f32 %v1459, %v1488
  %v1507 = vmul.f32 %v1461, %v1488
  %v1508 = vmul.f32 %v1463, %v1488
  %v1509 = vmul.f32 %v1465, %v1488
  %v1510 = vmul.f32 %v1467, %v1488
  %v1511 = vmul.f32 %v1469, %v1488
  %v1512 = vmul.f32 %v1471, %v1488
  %v1513 = vmul.f32 %v1473, %v1488
  %v1514 = vmul.f32 %v1475, %v1488
  %v1515 = vmul.f32 %v1477, %v1488
  %v1516 = vmul.f32 %v1479, %v1488
  %v1517 = vmul.f32 %v1481, %v1488
  %v1518 = vmul.f32 %v1483, %v1488
  %v1519 = vmul.f32 %v1485, %v1488
  %v1520 = vmul.f32 %v1487, %v1488
  %v1521 = vsub.f32 %v1392, %v1489
  %v1522 = vsub.f32 %v1393, %v1490
  %v1523 = vsub.f32 %v1394, %v1491
  %v1524 = vsub.f32 %v1395, %v1492
  %v1525 = vsub.f32 %v1396, %v1493
  %v1526 = vsub.f32 %v1397, %v1494
  %v1527 = vsub.f32 %v1398, %v1495
  %v1528 = vsub.f32 %v1399, %v1496
  %v1529 = vsub.f32 %v1400, %v1497
  %v1530 = vsub.f32 %v1401, %v1498
  %v1531 = vsub.f32 %v1402, %v1499
  %v1532 = vsub.f32 %v1403, %v1500
  %v1533 = vsub.f32 %v1404, %v1501
  %v1534 = vsub.f32 %v1405, %v1502
  %v1535 = vsub.f32 %v1406, %v1503
  %v1536 = vsub.f32 %v1407, %v1504
  %v1537 = vsub.f32 %v1408, %v1505
  %v1538 = vsub.f32 %v1409, %v1506
  %v1539 = vsub.f32 %v1410, %v1507
  %v1540 = vsub.f32 %v1411, %v1508
  %v1541 = vsub.f32 %v1412, %v1509
  %v1542 = vsub.f32 %v1413, %v1510
  %v1543 = vsub.f32 %v1414, %v1511
  %v1544 = vsub.f32 %v1415, %v1512
  %v1545 = vsub.f32 %v1416, %v1513
  %v1546 = vsub.f32 %v1417, %v1514
  %v1547 = vsub.f32 %v1418, %v1515
  %v1548 = vsub.f32 %v1419, %v1516
  %v1549 = vsub.f32 %v1420, %v1517
  %v1550 = vsub.f32 %v1421, %v1518
  %v1551 = vsub.f32 %v1422, %v1519
  %v1552 = vsub.f32 %v1423, %v1520
  %v1553 = vmul.f32 %v1521, %v1521
  %v1554 = vmul.f32 %v1522, %v1522
  %v1555 = vmul.f32 %v1523, %v1523
  %v1556 = vmul.f32 %v1524, %v1524
  %v1557 = vmul.f32 %v1525, %v1525
  %v1558 = vmul.f32 %v1526, %v1526
  %v1559 = vmul.f32 %v1527, %v1527
  %v1560 = vmul.f32 %v1528, %v1528
  %v1561 = vmul.f32 %v1529, %v1529
  %v1562 = vmul.f32 %v1530, %v1530
  %v1563 = vmul.f32 %v1531, %v1531
  %v1564 = vmul.f32 %v1532, %v1532
  %v1565 = vmul.f32 %v1533, %v1533
  %v1566 = vmul.f32 %v1534, %v1534
  %v1567 = vmul.f32 %v1535, %v1535
  %v1568 = vmul.f32 %v1536, %v1536
  %v1569 = vmul.f32 %v1537, %v1537
  %v1570 = vmul.f32 %v1538, %v1538
  %v1571 = vmul.f32 %v1539, %v1539
  %v1572 = vmul.f32 %v1540, %v1540
  %v1573 = vmul.f32 %v1541, %v1541
  %v1574 = vmul.f32 %v1542, %v1542
  %v1575 = vmul.f32 %v1543, %v1543
  %v1576 = vmul.f32 %v1544, %v1544
  %v1577 = vmul.f32 %v1545, %v1545
  %v1578 = vmul.f32 %v1546, %v1546
  %v1579 = vmul.f32 %v1547, %v1547
  %v1580 = vmul.f32 %v1548, %v1548
  %v1581 = vmul.f32 %v1549, %v1549
  %v1582 = vmul.f32 %v1550, %v1550
  %v1583 = vmul.f32 %v1551, %v1551
  %v1584 = vmul.f32 %v1552, %v1552
  %1585 = vadd.xlane.f32.xlu0 %v1553
  %v1586 = vpop.xlane.xlu0 %1585
  %1587 = vadd.xlane.f32.xlu0 %v1554
  %v1588 = vpop.xlane.xlu0 %1587
  %1589 = vadd.xlane.f32.xlu0 %v1555
  %v1590 = vpop.xlane.xlu0 %1589
  %1591 = vadd.xlane.f32.xlu0 %v1556
  %v1592 = vpop.xlane.xlu0 %1591
  %1593 = vadd.xlane.f32.xlu0 %v1557
  %v1594 = vpop.xlane.xlu0 %1593
  %1595 = vadd.xlane.f32.xlu0 %v1558
  %v1596 = vpop.xlane.xlu0 %1595
  %1597 = vadd.xlane.f32.xlu0 %v1559
  %v1598 = vpop.xlane.xlu0 %1597
  %1599 = vadd.xlane.f32.xlu0 %v1560
  %v1600 = vpop.xlane.xlu0 %1599
  %1601 = vadd.xlane.f32.xlu0 %v1561
  %v1602 = vpop.xlane.xlu0 %1601
  %1603 = vadd.xlane.f32.xlu0 %v1562
  %v1604 = vpop.xlane.xlu0 %1603
  %1605 = vadd.xlane.f32.xlu0 %v1563
  %v1606 = vpop.xlane.xlu0 %1605
  %1607 = vadd.xlane.f32.xlu0 %v1564
  %v1608 = vpop.xlane.xlu0 %1607
  %1609 = vadd.xlane.f32.xlu0 %v1565
  %v1610 = vpop.xlane.xlu0 %1609
  %1611 = vadd.xlane.f32.xlu0 %v1566
  %v1612 = vpop.xlane.xlu0 %1611
  %1613 = vadd.xlane.f32.xlu0 %v1567
  %v1614 = vpop.xlane.xlu0 %1613
  %1615 = vadd.xlane.f32.xlu0 %v1568
  %v1616 = vpop.xlane.xlu0 %1615
  %1617 = vadd.xlane.f32.xlu0 %v1569
  %v1618 = vpop.xlane.xlu0 %1617
  %1619 = vadd.xlane.f32.xlu0 %v1570
  %v1620 = vpop.xlane.xlu0 %1619
  %1621 = vadd.xlane.f32.xlu0 %v1571
  %v1622 = vpop.xlane.xlu0 %1621
  %1623 = vadd.xlane.f32.xlu0 %v1572
  %v1624 = vpop.xlane.xlu0 %1623
  %1625 = vadd.xlane.f32.xlu0 %v1573
  %v1626 = vpop.xlane.xlu0 %1625
  %1627 = vadd.xlane.f32.xlu0 %v1574
  %v1628 = vpop.xlane.xlu0 %1627
  %1629 = vadd.xlane.f32.xlu0 %v1575
  %v1630 = vpop.xlane.xlu0 %1629
  %1631 = vadd.xlane.f32.xlu0 %v1576
  %v1632 = vpop.xlane.xlu0 %1631
  %1633 = vadd.xlane.f32.xlu0 %v1577
  %v1634 = vpop.xlane.xlu0 %1633
  %1635 = vadd.xlane.f32.xlu0 %v1578
  %v1636 = vpop.xlane.xlu0 %1635
  %1637 = vadd.xlane.f32.xlu0 %v1579
  %v1638 = vpop.xlane.xlu0 %1637
  %1639 = vadd.xlane.f32.xlu0 %v1580
  %v1640 = vpop.xlane.xlu0 %1639
  %1641 = vadd.xlane.f32.xlu0 %v1581
  %v1642 = vpop.xlane.xlu0 %1641
  %1643 = vadd.xlane.f32.xlu0 %v1582
  %v1644 = vpop.xlane.xlu0 %1643
  %1645 = vadd.xlane.f32.xlu0 %v1583
  %v1646 = vpop.xlane.xlu0 %1645
  %1647 = vadd.xlane.f32.xlu0 %v1584
  %v1648 = vpop.xlane.xlu0 %1647
  %v1649 = vmul.f32 %v1586, %v1488
  %v1650 = vmul.f32 %v1588, %v1488
  %v1651 = vmul.f32 %v1590, %v1488
  %v1652 = vmul.f32 %v1592, %v1488
  %v1653 = vmul.f32 %v1594, %v1488
  %v1654 = vmul.f32 %v1596, %v1488
  %v1655 = vmul.f32 %v1598, %v1488
  %v1656 = vmul.f32 %v1600, %v1488
  %v1657 = vmul.f32 %v1602, %v1488
  %v1658 = vmul.f32 %v1604, %v1488
  %v1659 = vmul.f32 %v1606, %v1488
  %v1660 = vmul.f32 %v1608, %v1488
  %v1661 = vmul.f32 %v1610, %v1488
  %v1662 = vmul.f32 %v1612, %v1488
  %v1663 = vmul.f32 %v1614, %v1488
  %v1664 = vmul.f32 %v1616, %v1488
  %v1665 = vmul.f32 %v1618, %v1488
  %v1666 = vmul.f32 %v1620, %v1488
  %v1667 = vmul.f32 %v1622, %v1488
  %v1668 = vmul.f32 %v1624, %v1488
  %v1669 = vmul.f32 %v1626, %v1488
  %v1670 = vmul.f32 %v1628, %v1488
  %v1671 = vmul.f32 %v1630, %v1488
  %v1672 = vmul.f32 %v1632, %v1488
  %v1673 = vmul.f32 %v1634, %v1488
  %v1674 = vmul.f32 %v1636, %v1488
  %v1675 = vmul.f32 %v1638, %v1488
  %v1676 = vmul.f32 %v1640, %v1488
  %v1677 = vmul.f32 %v1642, %v1488
  %v1678 = vmul.f32 %v1644, %v1488
  %v1679 = vmul.f32 %v1646, %v1488
  %v1680 = vmul.f32 %v1648, %v1488
  %v1681 = vadd.f32 %v1649, 1e-12
  %v1682 = vadd.f32 %v1650, 1e-12
  %v1683 = vadd.f32 %v1651, 1e-12
  %v1684 = vadd.f32 %v1652, 1e-12
  %v1685 = vadd.f32 %v1653, 1e-12
  %v1686 = vadd.f32 %v1654, 1e-12
  %v1687 = vadd.f32 %v1655, 1e-12
  %v1688 = vadd.f32 %v1656, 1e-12
  %v1689 = vadd.f32 %v1657, 1e-12
  %v1690 = vadd.f32 %v1658, 1e-12
  %v1691 = vadd.f32 %v1659, 1e-12
  %v1692 = vadd.f32 %v1660, 1e-12
  %v1693 = vadd.f32 %v1661, 1e-12
  %v1694 = vadd.f32 %v1662, 1e-12
  %v1695 = vadd.f32 %v1663, 1e-12
  %v1696 = vadd.f32 %v1664, 1e-12
  %v1697 = vadd.f32 %v1665, 1e-12
  %v1698 = vadd.f32 %v1666, 1e-12
  %v1699 = vadd.f32 %v1667, 1e-12
  %v1700 = vadd.f32 %v1668, 1e-12
  %v1701 = vadd.f32 %v1669, 1e-12
  %v1702 = vadd.f32 %v1670, 1e-12
  %v1703 = vadd.f32 %v1671, 1e-12
  %v1704 = vadd.f32 %v1672, 1e-12
  %v1705 = vadd.f32 %v1673, 1e-12
  %v1706 = vadd.f32 %v1674, 1e-12
  %v1707 = vadd.f32 %v1675, 1e-12
  %v1708 = vadd.f32 %v1676, 1e-12
  %v1709 = vadd.f32 %v1677, 1e-12
  %v1710 = vadd.f32 %v1678, 1e-12
  %v1711 = vadd.f32 %v1679, 1e-12
  %v1712 = vadd.f32 %v1680, 1e-12
  %v1713 = vrsqrt.pop %v1681
  %v1714 = vrsqrt.pop %v1682
  %v1715 = vrsqrt.pop %v1683
  %v1716 = vrsqrt.pop %v1684
  %v1717 = vrsqrt.pop %v1685
  %v1718 = vrsqrt.pop %v1686
  %v1719 = vrsqrt.pop %v1687
  %v1720 = vrsqrt.pop %v1688
  %v1721 = vrsqrt.pop %v1689
  %v1722 = vrsqrt.pop %v1690
  %v1723 = vrsqrt.pop %v1691
  %v1724 = vrsqrt.pop %v1692
  %v1725 = vrsqrt.pop %v1693
  %v1726 = vrsqrt.pop %v1694
  %v1727 = vrsqrt.pop %v1695
  %v1728 = vrsqrt.pop %v1696
  %v1729 = vrsqrt.pop %v1697
  %v1730 = vrsqrt.pop %v1698
  %v1731 = vrsqrt.pop %v1699
  %v1732 = vrsqrt.pop %v1700
  %v1733 = vrsqrt.pop %v1701
  %v1734 = vrsqrt.pop %v1702
  %v1735 = vrsqrt.pop %v1703
  %v1736 = vrsqrt.pop %v1704
  %v1737 = vrsqrt.pop %v1705
  %v1738 = vrsqrt.pop %v1706
  %v1739 = vrsqrt.pop %v1707
  %v1740 = vrsqrt.pop %v1708
  %v1741 = vrsqrt.pop %v1709
  %v1742 = vrsqrt.pop %v1710
  %v1743 = vrsqrt.pop %v1711
  %v1744 = vrsqrt.pop %v1712
  %v1745 = vmul.f32 %v1521, %v1713
  %v1746 = vmul.f32 %v1522, %v1714
  %v1747 = vmul.f32 %v1523, %v1715
  %v1748 = vmul.f32 %v1524, %v1716
  %v1749 = vmul.f32 %v1525, %v1717
  %v1750 = vmul.f32 %v1526, %v1718
  %v1751 = vmul.f32 %v1527, %v1719
  %v1752 = vmul.f32 %v1528, %v1720
  %v1753 = vmul.f32 %v1529, %v1721
  %v1754 = vmul.f32 %v1530, %v1722
  %v1755 = vmul.f32 %v1531, %v1723
  %v1756 = vmul.f32 %v1532, %v1724
  %v1757 = vmul.f32 %v1533, %v1725
  %v1758 = vmul.f32 %v1534, %v1726
  %v1759 = vmul.f32 %v1535, %v1727
  %v1760 = vmul.f32 %v1536, %v1728
  %v1761 = vmul.f32 %v1537, %v1729
  %v1762 = vmul.f32 %v1538, %v1730
  %v1763 = vmul.f32 %v1539, %v1731
  %v1764 = vmul.f32 %v1540, %v1732
  %v1765 = vmul.f32 %v1541, %v1733
  %v1766 = vmul.f32 %v1542, %v1734
  %v1767 = vmul.f32 %v1543, %v1735
  %v1768 = vmul.f32 %v1544, %v1736
  %v1769 = vmul.f32 %v1545, %v1737
  %v1770 = vmul.f32 %v1546, %v1738
  %v1771 = vmul.f32 %v1547, %v1739
  %v1772 = vmul.f32 %v1548, %v1740
  %v1773 = vmul.f32 %v1549, %v1741
  %v1774 = vmul.f32 %v1550, %v1742
  %v1775 = vmul.f32 %v1551, %v1743
  %v1776 = vmul.f32 %v1552, %v1744
  %v1777 = vld [vmem:[%s5] sm:$0x1]
  %v1779 = vlaneseq
  %v1780 = vshrl.u32 %v1779, 7
  %v1781 = vsub.s32 0, %v1780
  %v1782 = vrot.slane %v1777, %v1781
  %v1784 = vmul.f32 %v1745, %v1782
  %v1785 = vmul.f32 %v1746, %v1782
  %v1786 = vmul.f32 %v1747, %v1782
  %v1787 = vmul.f32 %v1748, %v1782
  %v1788 = vmul.f32 %v1749, %v1782
  %v1789 = vmul.f32 %v1750, %v1782
  %v1790 = vmul.f32 %v1751, %v1782
  %v1791 = vmul.f32 %v1752, %v1782
  %v1792 = vmul.f32 %v1753, %v1782
  %v1793 = vmul.f32 %v1754, %v1782
  %v1794 = vmul.f32 %v1755, %v1782
  %v1795 = vmul.f32 %v1756, %v1782
  %v1796 = vmul.f32 %v1757, %v1782
  %v1797 = vmul.f32 %v1758, %v1782
  %v1798 = vmul.f32 %v1759, %v1782
  %v1799 = vmul.f32 %v1760, %v1782
  %v1800 = vmul.f32 %v1761, %v1782
  %v1801 = vmul.f32 %v1762, %v1782
  %v1802 = vmul.f32 %v1763, %v1782
  %v1803 = vmul.f32 %v1764, %v1782
  %v1804 = vmul.f32 %v1765, %v1782
  %v1805 = vmul.f32 %v1766, %v1782
  %v1806 = vmul.f32 %v1767, %v1782
  %v1807 = vmul.f32 %v1768, %v1782
  %v1808 = vmul.f32 %v1769, %v1782
  %v1809 = vmul.f32 %v1770, %v1782
  %v1810 = vmul.f32 %v1771, %v1782
  %v1811 = vmul.f32 %v1772, %v1782
  %v1812 = vmul.f32 %v1773, %v1782
  %v1813 = vmul.f32 %v1774, %v1782
  %v1814 = vmul.f32 %v1775, %v1782
  %v1815 = vmul.f32 %v1776, %v1782
  %v1816 = vld [vmem:[%s6] sm:$0x1]
  %v1818 = vlaneseq
  %v1819 = vshrl.u32 %v1818, 7
  %v1820 = vsub.s32 0, %v1819
  %v1821 = vrot.slane %v1816, %v1820
  %v1823 = vadd.f32 %v1784, %v1821
  %v1824 = vadd.f32 %v1785, %v1821
  %v1825 = vadd.f32 %v1786, %v1821
  %v1826 = vadd.f32 %v1787, %v1821
  %v1827 = vadd.f32 %v1788, %v1821
  %v1828 = vadd.f32 %v1789, %v1821
  %v1829 = vadd.f32 %v1790, %v1821
  %v1830 = vadd.f32 %v1791, %v1821
  %v1831 = vadd.f32 %v1792, %v1821
  %v1832 = vadd.f32 %v1793, %v1821
  %v1833 = vadd.f32 %v1794, %v1821
  %v1834 = vadd.f32 %v1795, %v1821
  %v1835 = vadd.f32 %v1796, %v1821
  %v1836 = vadd.f32 %v1797, %v1821
  %v1837 = vadd.f32 %v1798, %v1821
  %v1838 = vadd.f32 %v1799, %v1821
  %v1839 = vadd.f32 %v1800, %v1821
  %v1840 = vadd.f32 %v1801, %v1821
  %v1841 = vadd.f32 %v1802, %v1821
  %v1842 = vadd.f32 %v1803, %v1821
  %v1843 = vadd.f32 %v1804, %v1821
  %v1844 = vadd.f32 %v1805, %v1821
  %v1845 = vadd.f32 %v1806, %v1821
  %v1846 = vadd.f32 %v1807, %v1821
  %v1847 = vadd.f32 %v1808, %v1821
  %v1848 = vadd.f32 %v1809, %v1821
  %v1849 = vadd.f32 %v1810, %v1821
  %v1850 = vadd.f32 %v1811, %v1821
  %v1851 = vadd.f32 %v1812, %v1821
  %v1852 = vadd.f32 %v1813, %v1821
  %v1853 = vadd.f32 %v1814, %v1821
  %v1854 = vadd.f32 %v1815, %v1821
  %v1855 = vpack.c.bf16 %v1824, %v1823
  %v1856 = vpack.c.bf16 %v1826, %v1825
  %v1857 = vpack.c.bf16 %v1828, %v1827
  %v1858 = vpack.c.bf16 %v1830, %v1829
  %v1859 = vpack.c.bf16 %v1832, %v1831
  %v1860 = vpack.c.bf16 %v1834, %v1833
  %v1861 = vpack.c.bf16 %v1836, %v1835
  %v1862 = vpack.c.bf16 %v1838, %v1837
  %v1863 = vpack.c.bf16 %v1840, %v1839
  %v1864 = vpack.c.bf16 %v1842, %v1841
  %v1865 = vpack.c.bf16 %v1844, %v1843
  %v1866 = vpack.c.bf16 %v1846, %v1845
  %v1867 = vpack.c.bf16 %v1848, %v1847
  %v1868 = vpack.c.bf16 %v1850, %v1849
  %v1869 = vpack.c.bf16 %v1852, %v1851
  %v1870 = vpack.c.bf16 %v1854, %v1853
  %v1887 = vunpack.c.l.b16 %v1855
  %v1888 = vunpack.c.h.b16 %v1855
  %v1889 = vunpack.c.l.b16 %v1856
  %v1890 = vunpack.c.h.b16 %v1856
  %v1891 = vunpack.c.l.b16 %v1857
  %v1892 = vunpack.c.h.b16 %v1857
  %v1893 = vunpack.c.l.b16 %v1858
  %v1894 = vunpack.c.h.b16 %v1858
  %v1895 = vunpack.c.l.b16 %v1859
  %v1896 = vunpack.c.h.b16 %v1859
  %v1897 = vunpack.c.l.b16 %v1860
  %v1898 = vunpack.c.h.b16 %v1860
  %v1899 = vunpack.c.l.b16 %v1861
  %v1900 = vunpack.c.h.b16 %v1861
  %v1901 = vunpack.c.l.b16 %v1862
  %v1902 = vunpack.c.h.b16 %v1862
  %v1903 = vunpack.c.l.b16 %v1863
  %v1904 = vunpack.c.h.b16 %v1863
  %v1905 = vunpack.c.l.b16 %v1864
  %v1906 = vunpack.c.h.b16 %v1864
  %v1907 = vunpack.c.l.b16 %v1865
  %v1908 = vunpack.c.h.b16 %v1865
  %v1909 = vunpack.c.l.b16 %v1866
  %v1910 = vunpack.c.h.b16 %v1866
  %v1911 = vunpack.c.l.b16 %v1867
  %v1912 = vunpack.c.h.b16 %v1867
  %v1913 = vunpack.c.l.b16 %v1868
  %v1914 = vunpack.c.h.b16 %v1868
  %v1915 = vunpack.c.l.b16 %v1869
  %v1916 = vunpack.c.h.b16 %v1869
  %v1917 = vunpack.c.l.b16 %v1870
  %v1918 = vunpack.c.h.b16 %v1870
  %v1919 = vpack.c.b16 %v1887, %v1887
  %v1920 = vpack.c.b16 %v1888, %v1888
  %v1921 = vpack.c.b16 %v1889, %v1889
  %v1922 = vpack.c.b16 %v1890, %v1890
  %v1923 = vpack.c.b16 %v1891, %v1891
  %v1924 = vpack.c.b16 %v1892, %v1892
  %v1925 = vpack.c.b16 %v1893, %v1893
  %v1926 = vpack.c.b16 %v1894, %v1894
  %v1927 = vpack.c.b16 %v1895, %v1895
  %v1928 = vpack.c.b16 %v1896, %v1896
  %v1929 = vpack.c.b16 %v1897, %v1897
  %v1930 = vpack.c.b16 %v1898, %v1898
  %v1931 = vpack.c.b16 %v1899, %v1899
  %v1932 = vpack.c.b16 %v1900, %v1900
  %v1933 = vpack.c.b16 %v1901, %v1901
  %v1934 = vpack.c.b16 %v1902, %v1902
  %v1935 = vpack.c.b16 %v1903, %v1903
  %v1936 = vpack.c.b16 %v1904, %v1904
  %v1937 = vpack.c.b16 %v1905, %v1905
  %v1938 = vpack.c.b16 %v1906, %v1906
  %v1939 = vpack.c.b16 %v1907, %v1907
  %v1940 = vpack.c.b16 %v1908, %v1908
  %v1941 = vpack.c.b16 %v1909, %v1909
  %v1942 = vpack.c.b16 %v1910, %v1910
  %v1943 = vpack.c.b16 %v1911, %v1911
  %v1944 = vpack.c.b16 %v1912, %v1912
  %v1945 = vpack.c.b16 %v1913, %v1913
  %v1946 = vpack.c.b16 %v1914, %v1914
  %v1947 = vpack.c.b16 %v1915, %v1915
  %v1948 = vpack.c.b16 %v1916, %v1916
  %v1949 = vpack.c.b16 %v1917, %v1917
  %v1950 = vpack.c.b16 %v1918, %v1918
  %1983 = vst [vmem:[%s7] sm:$0xf] %v1919
  %1984 = vst [vmem:[%s7 + $0x4] sm:$0xf] %v1920
  %1985 = vst [vmem:[%s7 + $0x8] sm:$0xf] %v1921
  %1986 = vst [vmem:[%s7 + $0xc] sm:$0xf] %v1922
  %1987 = vst [vmem:[%s7 + $0x10] sm:$0xf] %v1923
  %1988 = vst [vmem:[%s7 + $0x14] sm:$0xf] %v1924
  %1989 = vst [vmem:[%s7 + $0x18] sm:$0xf] %v1925
  %1990 = vst [vmem:[%s7 + $0x1c] sm:$0xf] %v1926
  %1991 = vst [vmem:[%s7 + $0x20] sm:$0xf] %v1927
  %1992 = vst [vmem:[%s7 + $0x24] sm:$0xf] %v1928
  %1993 = vst [vmem:[%s7 + $0x28] sm:$0xf] %v1929
  %1994 = vst [vmem:[%s7 + $0x2c] sm:$0xf] %v1930
  %1995 = vst [vmem:[%s7 + $0x30] sm:$0xf] %v1931
  %1996 = vst [vmem:[%s7 + $0x34] sm:$0xf] %v1932
  %1997 = vst [vmem:[%s7 + $0x38] sm:$0xf] %v1933
  %1998 = vst [vmem:[%s7 + $0x3c] sm:$0xf] %v1934
  %1999 = vst [vmem:[%s7 + $0x40] sm:$0xf] %v1935
  %2000 = vst [vmem:[%s7 + $0x44] sm:$0xf] %v1936
  %2001 = vst [vmem:[%s7 + $0x48] sm:$0xf] %v1937
  %2002 = vst [vmem:[%s7 + $0x4c] sm:$0xf] %v1938
  %2003 = vst [vmem:[%s7 + $0x50] sm:$0xf] %v1939
  %2004 = vst [vmem:[%s7 + $0x54] sm:$0xf] %v1940
  %2005 = vst [vmem:[%s7 + $0x58] sm:$0xf] %v1941
  %2006 = vst [vmem:[%s7 + $0x5c] sm:$0xf] %v1942
  %2007 = vst [vmem:[%s7 + $0x60] sm:$0xf] %v1943
  %2008 = vst [vmem:[%s7 + $0x64] sm:$0xf] %v1944
  %2009 = vst [vmem:[%s7 + $0x68] sm:$0xf] %v1945
  %2010 = vst [vmem:[%s7 + $0x6c] sm:$0xf] %v1946
  %2011 = vst [vmem:[%s7 + $0x70] sm:$0xf] %v1947
  %2012 = vst [vmem:[%s7 + $0x74] sm:$0xf] %v1948
  %2013 = vst [vmem:[%s7 + $0x78] sm:$0xf] %v1949
  %2014 = vst [vmem:[%s7 + $0x7c] sm:$0xf] %v1950
  // Predicated region
  $region30: #{bert_classifier_forward.15} parent=0 // pred_check
    _
  $region31: #{bert_classifier_forward.15} parent=0 // pred_check_branch
    %2016 = sbr.rel (0) target = $region33
  $region32: #{bert_classifier_forward.15} parent=0 // pred_region
    _
  $region33: #{bert_classifier_forward.15} parent=0 // pred_fallthru
    _
  // Predicated region
  $region34: #{bert_classifier_forward.15} parent=0 // pred_check
    _
  $region35: #{bert_classifier_forward.15} parent=0 // pred_check_branch
    %2018 = sbr.rel (0) target = $region37
  $region36: #{bert_classifier_forward.15} parent=0 // pred_region
    _
  $region37: #{bert_classifier_forward.15} parent=0 // pred_fallthru
    _

// kernel: bert_classifier_forward.21
$region0: #{bert_classifier_forward.21}
  #allocation0 [shape = 'u32[]', space=smem, size = 0x4, offset = 0x4, fixed_abs, tag = 'smem constant byte address 0x4 - core index']
  #allocation1 [shape = 'u32[144,128]{1,0:T(1,128)}', space=vmem, size = 0x12000, scoped, tag = 'internal scratch']
  #allocation2 [shape = 'f32[2,1]{1,0:T(2,128)}', space=vmem, size = 0x400, scoped, tag = 'scratch operand']
  #allocation3 [shape = 'f32[2,1]{1,0:T(2,128)}', space=vmem, size = 0x400, scoped, tag = 'scratch operand']
  #allocation4 [shape = 'f32[2,9]{1,0:T(2,128)}', space=vmem, size = 0x400, scoped, tag = 'scratch operand']
  %s0 = inlined_call_operand.vmem [shape: bf16[2,128], index: 0, kind: input, shape index: {}]
  %s1 = inlined_call_operand.vmem [shape: bf16[512,128], index: 1, kind: input, shape index: {}]
  %s2 = inlined_call_operand.vmem [shape: f32[1,512], index: 2, kind: input, shape index: {}]
  %s3 = inlined_call_operand.vmem [shape: f32[512,9], index: 3, kind: input, shape index: {}]
  %s4 = inlined_call_operand.vmem [shape: f32[1,2], index: 4, kind: input, shape index: {}]
  %s5 = inlined_call_operand.vmem [shape: f32[1,3], index: 5, kind: input, shape index: {}]
  %s6 = inlined_call_operand.vmem [shape: f32[1,4], index: 6, kind: input, shape index: {}]
  %s7 = inlined_call_operand.hbm [shape: f32[2,3], index: 7, kind: output, shape index: {}]
  %s8 = sld [smem:[#allocation0]]
  $region46: #{bert_classifier_forward.21} parent=0
    _
  %s10 = ssub.s32 1, %s8
  %s11 = scalar_select 0, %s10, %s8
  $region1: #{bert_classifier_forward.21} parent=0
    #allocation5 [shape = 'u8[1024]{0}', space=vmem, size = 0x400, scoped, tag = 'output window, operand 0, single buffered']
    #allocation6 [shape = 's32[1]{0}', space=sflag, size = 0x4, scoped, tag = 'scoped memory for bert_classifier_forward.21']
    %12 = vsyncpa [#allocation6], 0
    // Predicated region
    $region2: #{bert_classifier_forward.21} parent=1 // pred_check
      _
    $region3: #{bert_classifier_forward.21} parent=1 // pred_check_branch
      %14 = sbr.rel (0) target = $region5
    $region4: #{bert_classifier_forward.21} parent=1 // pred_region
      _
    $region5: #{bert_classifier_forward.21} parent=1 // pred_fallthru
      _
    // Predicated region
    $region6: #{bert_classifier_forward.21} parent=1 // pred_check
      _
    $region7: #{bert_classifier_forward.21} parent=1 // pred_check_branch
      %16 = sbr.rel (0) target = $region9
    $region8: #{bert_classifier_forward.21} parent=1 // pred_region
      _
    $region9: #{bert_classifier_forward.21} parent=1 // pred_fallthru
      _
    // Predicated region
    $region10: #{bert_classifier_forward.21} parent=1 // pred_check
      _
    $region11: #{bert_classifier_forward.21} parent=1 // pred_check_branch
      %18 = sbr.rel (0) target = $region13
    $region12: #{bert_classifier_forward.21} parent=1 // pred_region
      _
    $region13: #{bert_classifier_forward.21} parent=1 // pred_fallthru
      _
    // Predicated region
    $region14: #{bert_classifier_forward.21} parent=1 // pred_check
      _
    $region15: #{bert_classifier_forward.21} parent=1 // pred_check_branch
      %20 = sbr.rel (0) target = $region17
    $region16: #{bert_classifier_forward.21} parent=1 // pred_region
      _
    $region17: #{bert_classifier_forward.21} parent=1 // pred_fallthru
      _
    // Predicated region
    $region18: #{bert_classifier_forward.21} parent=1 // pred_check
      _
    $region19: #{bert_classifier_forward.21} parent=1 // pred_check_branch
      %22 = sbr.rel (0) target = $region21
    $region20: #{bert_classifier_forward.21} parent=1 // pred_region
      _
    $region21: #{bert_classifier_forward.21} parent=1 // pred_fallthru
      _
    // Predicated region
    $region22: #{bert_classifier_forward.21} parent=1 // pred_check
      _
    $region23: #{bert_classifier_forward.21} parent=1 // pred_check_branch
      %24 = sbr.rel (0) target = $region25
    $region24: #{bert_classifier_forward.21} parent=1 // pred_region
      _
    $region25: #{bert_classifier_forward.21} parent=1 // pred_fallthru
      _
    // Predicated region
    $region26: #{bert_classifier_forward.21} parent=1 // pred_check
      _
    $region27: #{bert_classifier_forward.21} parent=1 // pred_check_branch
      %26 = sbr.rel (0) target = $region29
    $region28: #{bert_classifier_forward.21} parent=1 // pred_region
      _
    $region29: #{bert_classifier_forward.21} parent=1 // pred_fallthru
      _
    %p28 = scmp.eq.s32.totalorder 0, 0
    // Predicated region
    $region30: #{bert_classifier_forward.21} parent=1 // pred_check
      %p29 = pneg %p28
    $region31: #{bert_classifier_forward.21} parent=1 // pred_check_branch
      %31 = sbr.rel (%p29) target = $region33
    $region32: #{bert_classifier_forward.21} parent=1 // pred_region
      %vm32 = vcmask 1024
      %33 = vst.msk [vmem:[#allocation2] sm:$0x3] %vm32, -inf
      %34 = vst.msk [vmem:[#allocation3] sm:$0x3] %vm32, 0.0
      %vm35 = vcmask 66560
      %36 = vst.msk [vmem:[#allocation4] sm:$0x3] %vm35, 0.0
    $region33: #{bert_classifier_forward.21} parent=1 // pred_fallthru
      _
    %v37 = vld [vmem:[%s0] sm:$0x1]
    %v38 = vld [vmem:[%s1] sm:$0xf]
    %v39 = vld [vmem:[%s1 + $0x4] sm:$0xf]
    %v40 = vld [vmem:[%s1 + $0x8] sm:$0xf]
    %v41 = vld [vmem:[%s1 + $0xc] sm:$0xf]
    %v42 = vld [vmem:[%s1 + $0x10] sm:$0xf]
    %v43 = vld [vmem:[%s1 + $0x14] sm:$0xf]
    %v44 = vld [vmem:[%s1 + $0x18] sm:$0xf]
    %v45 = vld [vmem:[%s1 + $0x1c] sm:$0xf]
    %v46 = vld [vmem:[%s1 + $0x20] sm:$0xf]
    %v47 = vld [vmem:[%s1 + $0x24] sm:$0xf]
    %v48 = vld [vmem:[%s1 + $0x28] sm:$0xf]
    %v49 = vld [vmem:[%s1 + $0x2c] sm:$0xf]
    %v50 = vld [vmem:[%s1 + $0x30] sm:$0xf]
    %v51 = vld [vmem:[%s1 + $0x34] sm:$0xf]
    %v52 = vld [vmem:[%s1 + $0x38] sm:$0xf]
    %v53 = vld [vmem:[%s1 + $0x3c] sm:$0xf]
    %v54 = vld [vmem:[%s1 + $0x40] sm:$0xf]
    %v55 = vld [vmem:[%s1 + $0x44] sm:$0xf]
    %v56 = vld [vmem:[%s1 + $0x48] sm:$0xf]
    %v57 = vld [vmem:[%s1 + $0x4c] sm:$0xf]
    %v58 = vld [vmem:[%s1 + $0x50] sm:$0xf]
    %v59 = vld [vmem:[%s1 + $0x54] sm:$0xf]
    %v60 = vld [vmem:[%s1 + $0x58] sm:$0xf]
    %v61 = vld [vmem:[%s1 + $0x5c] sm:$0xf]
    %v62 = vld [vmem:[%s1 + $0x60] sm:$0xf]
    %v63 = vld [vmem:[%s1 + $0x64] sm:$0xf]
    %v64 = vld [vmem:[%s1 + $0x68] sm:$0xf]
    %v65 = vld [vmem:[%s1 + $0x6c] sm:$0xf]
    %v66 = vld [vmem:[%s1 + $0x70] sm:$0xf]
    %v67 = vld [vmem:[%s1 + $0x74] sm:$0xf]
    %v68 = vld [vmem:[%s1 + $0x78] sm:$0xf]
    %v69 = vld [vmem:[%s1 + $0x7c] sm:$0xf]
    %v70 = vld [vmem:[%s1 + $0x80] sm:$0xf]
    %v71 = vld [vmem:[%s1 + $0x84] sm:$0xf]
    %v72 = vld [vmem:[%s1 + $0x88] sm:$0xf]
    %v73 = vld [vmem:[%s1 + $0x8c] sm:$0xf]
    %v74 = vld [vmem:[%s1 + $0x90] sm:$0xf]
    %v75 = vld [vmem:[%s1 + $0x94] sm:$0xf]
    %v76 = vld [vmem:[%s1 + $0x98] sm:$0xf]
    %v77 = vld [vmem:[%s1 + $0x9c] sm:$0xf]
    %v78 = vld [vmem:[%s1 + $0xa0] sm:$0xf]
    %v79 = vld [vmem:[%s1 + $0xa4] sm:$0xf]
    %v80 = vld [vmem:[%s1 + $0xa8] sm:$0xf]
    %v81 = vld [vmem:[%s1 + $0xac] sm:$0xf]
    %v82 = vld [vmem:[%s1 + $0xb0] sm:$0xf]
    %v83 = vld [vmem:[%s1 + $0xb4] sm:$0xf]
    %v84 = vld [vmem:[%s1 + $0xb8] sm:$0xf]
    %v85 = vld [vmem:[%s1 + $0xbc] sm:$0xf]
    %v86 = vld [vmem:[%s1 + $0xc0] sm:$0xf]
    %v87 = vld [vmem:[%s1 + $0xc4] sm:$0xf]
    %v88 = vld [vmem:[%s1 + $0xc8] sm:$0xf]
    %v89 = vld [vmem:[%s1 + $0xcc] sm:$0xf]
    %v90 = vld [vmem:[%s1 + $0xd0] sm:$0xf]
    %v91 = vld [vmem:[%s1 + $0xd4] sm:$0xf]
    %v92 = vld [vmem:[%s1 + $0xd8] sm:$0xf]
    %v93 = vld [vmem:[%s1 + $0xdc] sm:$0xf]
    %v94 = vld [vmem:[%s1 + $0xe0] sm:$0xf]
    %v95 = vld [vmem:[%s1 + $0xe4] sm:$0xf]
    %v96 = vld [vmem:[%s1 + $0xe8] sm:$0xf]
    %v97 = vld [vmem:[%s1 + $0xec] sm:$0xf]
    %v98 = vld [vmem:[%s1 + $0xf0] sm:$0xf]
    %v99 = vld [vmem:[%s1 + $0xf4] sm:$0xf]
    %v100 = vld [vmem:[%s1 + $0xf8] sm:$0xf]
    %v101 = vld [vmem:[%s1 + $0xfc] sm:$0xf]
    %v102 = vld [vmem:[%s2] sm:$0xf]
    %v104 = vlaneseq
    %v105 = vshrl.u32 %v104, 7
    %v106 = vsub.s32 0, %v105
    %v107 = vrot.slane %v102, %v106
    %v108 = vlaneseq
    %v109 = vshrl.u32 %v108, 7
    %v110 = vsub.s32 1, %v109
    %v111 = vrot.slane %v102, %v110
    %v112 = vlaneseq
    %v113 = vshrl.u32 %v112, 7
    %v114 = vsub.s32 2, %v113
    %v115 = vrot.slane %v102, %v114
    %v116 = vlaneseq
    %v117 = vshrl.u32 %v116, 7
    %v118 = vsub.s32 3, %v117
    %v119 = vrot.slane %v102, %v118
    %v188 = vunpack.c.l.b16 %v38
    %v189 = vunpack.c.l.b16 %v39
    %v190 = vunpack.c.l.b16 %v40
    %v191 = vunpack.c.l.b16 %v41
    %v192 = vunpack.c.l.b16 %v42
    %v193 = vunpack.c.l.b16 %v43
    %v194 = vunpack.c.l.b16 %v44
    %v195 = vunpack.c.l.b16 %v45
    %v196 = vunpack.c.l.b16 %v46
    %v197 = vunpack.c.l.b16 %v47
    %v198 = vunpack.c.l.b16 %v48
    %v199 = vunpack.c.l.b16 %v49
    %v200 = vunpack.c.l.b16 %v50
    %v201 = vunpack.c.l.b16 %v51
    %v202 = vunpack.c.l.b16 %v52
    %v203 = vunpack.c.l.b16 %v53
    %v204 = vunpack.c.l.b16 %v54
    %v205 = vunpack.c.l.b16 %v55
    %v206 = vunpack.c.l.b16 %v56
    %v207 = vunpack.c.l.b16 %v57
    %v208 = vunpack.c.l.b16 %v58
    %v209 = vunpack.c.l.b16 %v59
    %v210 = vunpack.c.l.b16 %v60
    %v211 = vunpack.c.l.b16 %v61
    %v212 = vunpack.c.l.b16 %v62
    %v213 = vunpack.c.l.b16 %v63
    %v214 = vunpack.c.l.b16 %v64
    %v215 = vunpack.c.l.b16 %v65
    %v216 = vunpack.c.l.b16 %v66
    %v217 = vunpack.c.l.b16 %v67
    %v218 = vunpack.c.l.b16 %v68
    %v219 = vunpack.c.l.b16 %v69
    %v220 = vunpack.c.l.b16 %v70
    %v221 = vunpack.c.l.b16 %v71
    %v222 = vunpack.c.l.b16 %v72
    %v223 = vunpack.c.l.b16 %v73
    %v224 = vunpack.c.l.b16 %v74
    %v225 = vunpack.c.l.b16 %v75
    %v226 = vunpack.c.l.b16 %v76
    %v227 = vunpack.c.l.b16 %v77
    %v228 = vunpack.c.l.b16 %v78
    %v229 = vunpack.c.l.b16 %v79
    %v230 = vunpack.c.l.b16 %v80
    %v231 = vunpack.c.l.b16 %v81
    %v232 = vunpack.c.l.b16 %v82
    %v233 = vunpack.c.l.b16 %v83
    %v234 = vunpack.c.l.b16 %v84
    %v235 = vunpack.c.l.b16 %v85
    %v236 = vunpack.c.l.b16 %v86
    %v237 = vunpack.c.l.b16 %v87
    %v238 = vunpack.c.l.b16 %v88
    %v239 = vunpack.c.l.b16 %v89
    %v240 = vunpack.c.l.b16 %v90
    %v241 = vunpack.c.l.b16 %v91
    %v242 = vunpack.c.l.b16 %v92
    %v243 = vunpack.c.l.b16 %v93
    %v244 = vunpack.c.l.b16 %v94
    %v245 = vunpack.c.l.b16 %v95
    %v246 = vunpack.c.l.b16 %v96
    %v247 = vunpack.c.l.b16 %v97
    %v248 = vunpack.c.l.b16 %v98
    %v249 = vunpack.c.l.b16 %v99
    %v250 = vunpack.c.l.b16 %v100
    %v251 = vunpack.c.l.b16 %v101
    %v252 = vpack.c.b16 %v189, %v188
    %v253 = vpack.c.b16 %v191, %v190
    %v254 = vpack.c.b16 %v193, %v192
    %v255 = vpack.c.b16 %v195, %v194
    %v256 = vpack.c.b16 %v197, %v196
    %v257 = vpack.c.b16 %v199, %v198
    %v258 = vpack.c.b16 %v201, %v200
    %v259 = vpack.c.b16 %v203, %v202
    %v260 = vpack.c.b16 %v205, %v204
    %v261 = vpack.c.b16 %v207, %v206
    %v262 = vpack.c.b16 %v209, %v208
    %v263 = vpack.c.b16 %v211, %v210
    %v264 = vpack.c.b16 %v213, %v212
    %v265 = vpack.c.b16 %v215, %v214
    %v266 = vpack.c.b16 %v217, %v216
    %v267 = vpack.c.b16 %v219, %v218
    %v268 = vpack.c.b16 %v221, %v220
    %v269 = vpack.c.b16 %v223, %v222
    %v270 = vpack.c.b16 %v225, %v224
    %v271 = vpack.c.b16 %v227, %v226
    %v272 = vpack.c.b16 %v229, %v228
    %v273 = vpack.c.b16 %v231, %v230
    %v274 = vpack.c.b16 %v233, %v232
    %v275 = vpack.c.b16 %v235, %v234
    %v276 = vpack.c.b16 %v237, %v236
    %v277 = vpack.c.b16 %v239, %v238
    %v278 = vpack.c.b16 %v241, %v240
    %v279 = vpack.c.b16 %v243, %v242
    %v280 = vpack.c.b16 %v245, %v244
    %v281 = vpack.c.b16 %v247, %v246
    %v282 = vpack.c.b16 %v249, %v248
    %v283 = vpack.c.b16 %v251, %v250
    %316 = vmatprep.subr.bf16.mxu0 0
    %317 = vmatpush1.bf16.xpose.msra.mxu0 %v252
    %318 = vmatprep.subr.bf16.mxu0 0
    %319 = vmatpush1.bf16.xpose.msra.mxu0 %v253
    %320 = vmatprep.subr.bf16.mxu0 0
    %321 = vmatpush1.bf16.xpose.msra.mxu0 %v254
    %322 = vmatprep.subr.bf16.mxu0 0
    %323 = vmatpush1.bf16.xpose.msra.mxu0 %v255
    %324 = vmatprep.subr.bf16.mxu0 0
    %325 = vmatpush1.bf16.xpose.msra.mxu0 %v256
    %326 = vmatprep.subr.bf16.mxu0 0
    %327 = vmatpush1.bf16.xpose.msra.mxu0 %v257
    %328 = vmatprep.subr.bf16.mxu0 0
    %329 = vmatpush1.bf16.xpose.msra.mxu0 %v258
    %330 = vmatprep.subr.bf16.mxu0 0
    %331 = vmatpush1.bf16.xpose.msra.mxu0 %v259
    %332 = vmatprep.subr.bf16.mxu0 0
    %333 = vmatpush1.bf16.xpose.msra.mxu0 %v260
    %334 = vmatprep.subr.bf16.mxu0 0
    %335 = vmatpush1.bf16.xpose.msra.mxu0 %v261
    %336 = vmatprep.subr.bf16.mxu0 0
    %337 = vmatpush1.bf16.xpose.msra.mxu0 %v262
    %338 = vmatprep.subr.bf16.mxu0 0
    %339 = vmatpush1.bf16.xpose.msra.mxu0 %v263
    %340 = vmatprep.subr.bf16.mxu0 0
    %341 = vmatpush1.bf16.xpose.msra.mxu0 %v264
    %342 = vmatprep.subr.bf16.mxu0 0
    %343 = vmatpush1.bf16.xpose.msra.mxu0 %v265
    %344 = vmatprep.subr.bf16.mxu0 0
    %345 = vmatpush1.bf16.xpose.msra.mxu0 %v266
    %346 = vmatprep.subr.bf16.mxu0 0
    %347 = vmatpush1.bf16.xpose.msra.mxu0 %v267
    %348 = vmatprep.mubr.bf16.mxu0 0
    %349 = vmatmul.mubr.bf16.gmra.mrb[0].mxu0 %v37
    %v350 = vpop.f32.mrb[0].mxu0
    %v351 = vadd.f32 %v107, %v350
    %v352 = vpop.f32.mrb[0].mxu0
    %v353 = vadd.f32 %v111, %v352
    %v354 = vpop.f32.mrb[0].mxu0
    %v355 = vpop.f32.mrb[0].mxu0
    %356 = vdwg.mxu0
    %357 = vmatprep.subr.bf16.mxu0 0
    %358 = vmatpush1.bf16.xpose.msra.mxu0 %v268
    %359 = vmatprep.subr.bf16.mxu0 0
    %360 = vmatpush1.bf16.xpose.msra.mxu0 %v269
    %361 = vmatprep.subr.bf16.mxu0 0
    %362 = vmatpush1.bf16.xpose.msra.mxu0 %v270
    %363 = vmatprep.subr.bf16.mxu0 0
    %364 = vmatpush1.bf16.xpose.msra.mxu0 %v271
    %365 = vmatprep.subr.bf16.mxu0 0
    %366 = vmatpush1.bf16.xpose.msra.mxu0 %v272
    %367 = vmatprep.subr.bf16.mxu0 0
    %368 = vmatpush1.bf16.xpose.msra.mxu0 %v273
    %369 = vmatprep.subr.bf16.mxu0 0
    %370 = vmatpush1.bf16.xpose.msra.mxu0 %v274
    %371 = vmatprep.subr.bf16.mxu0 0
    %372 = vmatpush1.bf16.xpose.msra.mxu0 %v275
    %373 = vmatprep.subr.bf16.mxu0 0
    %374 = vmatpush1.bf16.xpose.msra.mxu0 %v276
    %375 = vmatprep.subr.bf16.mxu0 0
    %376 = vmatpush1.bf16.xpose.msra.mxu0 %v277
    %377 = vmatprep.subr.bf16.mxu0 0
    %378 = vmatpush1.bf16.xpose.msra.mxu0 %v278
    %379 = vmatprep.subr.bf16.mxu0 0
    %380 = vmatpush1.bf16.xpose.msra.mxu0 %v279
    %381 = vmatprep.subr.bf16.mxu0 0
    %382 = vmatpush1.bf16.xpose.msra.mxu0 %v280
    %383 = vmatprep.subr.bf16.mxu0 0
    %384 = vmatpush1.bf16.xpose.msra.mxu0 %v281
    %385 = vmatprep.subr.bf16.mxu0 0
    %386 = vmatpush1.bf16.xpose.msra.mxu0 %v282
    %387 = vmatprep.subr.bf16.mxu0 0
    %388 = vmatpush1.bf16.xpose.msra.mxu0 %v283
    %389 = vmatprep.mubr.bf16.mxu0 0
    %390 = vmatmul.mubr.bf16.gmra.mrb[0].mxu0 %v37
    %v391 = vpop.f32.mrb[0].mxu0
    %v392 = vadd.f32 %v115, %v391
    %v393 = vpop.f32.mrb[0].mxu0
    %v394 = vadd.f32 %v119, %v393
    %v395 = vpop.f32.mrb[0].mxu0
    %v396 = vpop.f32.mrb[0].mxu0
    %397 = vdwg.mxu0
    %v398 = vld [vmem:[#allocation2] sm:$0x3]
    %vm399 = vcmask 1041408
    %v400 = vsel %vm399, %v351, -inf
    %v401 = vsel %vm399, %v353, -inf
    %v402 = vsel %vm399, %v392, -inf
    %v403 = vsel %vm399, %v394, -inf
    %v404 = vmax.f32 %v400, %v401
    %v405 = vmax.f32 %v402, %v403
    %v406 = vmax.f32 %v404, %v405
    %407 = vmax.xlane.f32.xlu0 %v406
    %v408 = vpop.xlane.xlu0 %407
    %v409 = vmax.f32 %v398, %v408
    %v410 = vsub.f32 %v398, %v409
    %v411 = vmul.f32 %v410, 1.442695
    %v412 = vpow.pop %v411
    %414 = vset.pattern.permute.xlu0 0
    %415 = vperm.xlu0 %414, %v409
    %v416 = vpop.permute.xlu0 %415
    %v418 = vsub.f32 %v351, %v416
    %v419 = vsub.f32 %v353, %v416
    %v420 = vsub.f32 %v392, %v416
    %v421 = vsub.f32 %v394, %v416
    %v422 = vmul.f32 %v418, 1.442695
    %v423 = vpow.pop %v422
    %v424 = vmul.f32 %v419, 1.442695
    %v425 = vpow.pop %v424
    %v426 = vmul.f32 %v420, 1.442695
    %v427 = vpow.pop %v426
    %v428 = vmul.f32 %v421, 1.442695
    %v429 = vpow.pop %v428
    %v430 = vld [vmem:[#allocation3] sm:$0x3]
    %v431 = vmul.f32 %v412, %v430
    %v432 = vsel %vm399, %v423, 0.0
    %v433 = vsel %vm399, %v425, 0.0
    %v434 = vadd.f32 %v432, %v433
    %v435 = vsel %vm399, %v427, 0.0
    %v436 = vadd.f32 %v434, %v435
    %v437 = vsel %vm399, %v429, 0.0
    %v438 = vadd.f32 %v436, %v437
    %439 = vadd.xlane.f32.xlu0 %v438
    %v440 = vpop.xlane.xlu0 %439
    %v441 = vadd.f32 %v431, %v440
    %vm442 = vcmask 1024
    %443 = vst.msk [vmem:[#allocation3] sm:$0x3] %vm442, %v441
    %v444 = vld [vmem:[#allocation4] sm:$0x3]
    %446 = vset.pattern.permute.xlu0 0
    %447 = vperm.xlu0 %446, %v412
    %v448 = vpop.permute.xlu0 %447
    %v450 = vmul.f32 %v448, %v444
    %v451 = vld [vmem:[%s3] sm:$0xff]
    %v452 = vld [vmem:[%s3 + $0x8] sm:$0xff]
    %v453 = vld [vmem:[%s3 + $0x10] sm:$0xff]
    %v454 = vld [vmem:[%s3 + $0x18] sm:$0xff]
    %v455 = vld [vmem:[%s3 + $0x20] sm:$0xff]
    %v456 = vld [vmem:[%s3 + $0x28] sm:$0xff]
    %v457 = vld [vmem:[%s3 + $0x30] sm:$0xff]
    %v458 = vld [vmem:[%s3 + $0x38] sm:$0xff]
    %v459 = vld [vmem:[%s3 + $0x40] sm:$0xff]
    %v460 = vld [vmem:[%s3 + $0x48] sm:$0xff]
    %v461 = vld [vmem:[%s3 + $0x50] sm:$0xff]
    %v462 = vld [vmem:[%s3 + $0x58] sm:$0xff]
    %v463 = vld [vmem:[%s3 + $0x60] sm:$0xff]
    %v464 = vld [vmem:[%s3 + $0x68] sm:$0xff]
    %v465 = vld [vmem:[%s3 + $0x70] sm:$0xff]
    %v466 = vld [vmem:[%s3 + $0x78] sm:$0xff]
    %v467 = vld [vmem:[%s3 + $0x80] sm:$0xff]
    %v468 = vld [vmem:[%s3 + $0x88] sm:$0xff]
    %v469 = vld [vmem:[%s3 + $0x90] sm:$0xff]
    %v470 = vld [vmem:[%s3 + $0x98] sm:$0xff]
    %v471 = vld [vmem:[%s3 + $0xa0] sm:$0xff]
    %v472 = vld [vmem:[%s3 + $0xa8] sm:$0xff]
    %v473 = vld [vmem:[%s3 + $0xb0] sm:$0xff]
    %v474 = vld [vmem:[%s3 + $0xb8] sm:$0xff]
    %v475 = vld [vmem:[%s3 + $0xc0] sm:$0xff]
    %v476 = vld [vmem:[%s3 + $0xc8] sm:$0xff]
    %v477 = vld [vmem:[%s3 + $0xd0] sm:$0xff]
    %v478 = vld [vmem:[%s3 + $0xd8] sm:$0xff]
    %v479 = vld [vmem:[%s3 + $0xe0] sm:$0xff]
    %v480 = vld [vmem:[%s3 + $0xe8] sm:$0xff]
    %v481 = vld [vmem:[%s3 + $0xf0] sm:$0xff]
    %v482 = vld [vmem:[%s3 + $0xf8] sm:$0xff]
    %v483 = vld [vmem:[%s3 + $0x100] sm:$0xff]
    %v484 = vld [vmem:[%s3 + $0x108] sm:$0xff]
    %v485 = vld [vmem:[%s3 + $0x110] sm:$0xff]
    %v486 = vld [vmem:[%s3 + $0x118] sm:$0xff]
    %v487 = vld [vmem:[%s3 + $0x120] sm:$0xff]
    %v488 = vld [vmem:[%s3 + $0x128] sm:$0xff]
    %v489 = vld [vmem:[%s3 + $0x130] sm:$0xff]
    %v490 = vld [vmem:[%s3 + $0x138] sm:$0xff]
    %v491 = vld [vmem:[%s3 + $0x140] sm:$0xff]
    %v492 = vld [vmem:[%s3 + $0x148] sm:$0xff]
    %v493 = vld [vmem:[%s3 + $0x150] sm:$0xff]
    %v494 = vld [vmem:[%s3 + $0x158] sm:$0xff]
    %v495 = vld [vmem:[%s3 + $0x160] sm:$0xff]
    %v496 = vld [vmem:[%s3 + $0x168] sm:$0xff]
    %v497 = vld [vmem:[%s3 + $0x170] sm:$0xff]
    %v498 = vld [vmem:[%s3 + $0x178] sm:$0xff]
    %v499 = vld [vmem:[%s3 + $0x180] sm:$0xff]
    %v500 = vld [vmem:[%s3 + $0x188] sm:$0xff]
    %v501 = vld [vmem:[%s3 + $0x190] sm:$0xff]
    %v502 = vld [vmem:[%s3 + $0x198] sm:$0xff]
    %v503 = vld [vmem:[%s3 + $0x1a0] sm:$0xff]
    %v504 = vld [vmem:[%s3 + $0x1a8] sm:$0xff]
    %v505 = vld [vmem:[%s3 + $0x1b0] sm:$0xff]
    %v506 = vld [vmem:[%s3 + $0x1b8] sm:$0xff]
    %v507 = vld [vmem:[%s3 + $0x1c0] sm:$0xff]
    %v508 = vld [vmem:[%s3 + $0x1c8] sm:$0xff]
    %v509 = vld [vmem:[%s3 + $0x1d0] sm:$0xff]
    %v510 = vld [vmem:[%s3 + $0x1d8] sm:$0xff]
    %v511 = vld [vmem:[%s3 + $0x1e0] sm:$0xff]
    %v512 = vld [vmem:[%s3 + $0x1e8] sm:$0xff]
    %v513 = vld [vmem:[%s3 + $0x1f0] sm:$0xff]
    %v514 = vld [vmem:[%s3 + $0x1f8] sm:$0xff]
    %515 = vmatprep.subr.mxu0 0.0
    %516 = vmatpush1.msra.mxu0 %v451
    %517 = vmatprep.subr.mxu0 0.0
    %518 = vmatpush1.msra.mxu0 %v452
    %519 = vmatprep.subr.mxu0 0.0
    %520 = vmatpush1.msra.mxu0 %v453
    %521 = vmatprep.subr.mxu0 0.0
    %522 = vmatpush1.msra.mxu0 %v454
    %523 = vmatprep.subr.mxu0 0.0
    %524 = vmatpush1.msra.mxu0 %v455
    %525 = vmatprep.subr.mxu0 0.0
    %526 = vmatpush1.msra.mxu0 %v456
    %527 = vmatprep.subr.mxu0 0.0
    %528 = vmatpush1.msra.mxu0 %v457
    %529 = vmatprep.subr.mxu0 0.0
    %530 = vmatpush1.msra.mxu0 %v458
    %531 = vmatprep.subr.mxu0 0.0
    %532 = vmatpush1.msra.mxu0 %v459
    %533 = vmatprep.subr.mxu0 0.0
    %534 = vmatpush1.msra.mxu0 %v460
    %535 = vmatprep.subr.mxu0 0.0
    %536 = vmatpush1.msra.mxu0 %v461
    %537 = vmatprep.subr.mxu0 0.0
    %538 = vmatpush1.msra.mxu0 %v462
    %539 = vmatprep.subr.mxu0 0.0
    %540 = vmatpush1.msra.mxu0 %v463
    %541 = vmatprep.subr.mxu0 0.0
    %542 = vmatpush1.msra.mxu0 %v464
    %543 = vmatprep.subr.mxu0 0.0
    %544 = vmatpush1.msra.mxu0 %v465
    %545 = vmatprep.subr.mxu0 0.0
    %546 = vmatpush1.msra.mxu0 %v466
    %547 = vmatprep.subr.mxu0 0.0
    %548 = vmatpush1.msra.mxu0 %v467
    %549 = vmatprep.subr.mxu0 0.0
    %550 = vmatpush1.msra.mxu0 %v468
    %551 = vmatprep.subr.mxu0 0.0
    %552 = vmatpush1.msra.mxu0 %v469
    %553 = vmatprep.subr.mxu0 0.0
    %554 = vmatpush1.msra.mxu0 %v470
    %555 = vmatprep.subr.mxu0 0.0
    %556 = vmatpush1.msra.mxu0 %v471
    %557 = vmatprep.subr.mxu0 0.0
    %558 = vmatpush1.msra.mxu0 %v472
    %559 = vmatprep.subr.mxu0 0.0
    %560 = vmatpush1.msra.mxu0 %v473
    %561 = vmatprep.subr.mxu0 0.0
    %562 = vmatpush1.msra.mxu0 %v474
    %563 = vmatprep.subr.mxu0 0.0
    %564 = vmatpush1.msra.mxu0 %v475
    %565 = vmatprep.subr.mxu0 0.0
    %566 = vmatpush1.msra.mxu0 %v476
    %567 = vmatprep.subr.mxu0 0.0
    %568 = vmatpush1.msra.mxu0 %v477
    %569 = vmatprep.subr.mxu0 0.0
    %570 = vmatpush1.msra.mxu0 %v478
    %571 = vmatprep.subr.mxu0 0.0
    %572 = vmatpush1.msra.mxu0 %v479
    %573 = vmatprep.subr.mxu0 0.0
    %574 = vmatpush1.msra.mxu0 %v480
    %575 = vmatprep.subr.mxu0 0.0
    %576 = vmatpush1.msra.mxu0 %v481
    %577 = vmatprep.subr.mxu0 0.0
    %578 = vmatpush1.msra.mxu0 %v482
    %579 = vmatprep.mubr.f32.mxu0 %v425
    %580 = vmatmul.mubr.f32.gmra.mrb[0].mxu0 %v423
    %v581 = vpop.f32.mrb[0].mxu0
    %v582 = vadd.f32 0.0, %v581
    %v583 = vpop.f32.mrb[0].mxu0
    %584 = vdwg.mxu0
    %585 = vmatprep.subr.mxu0 0.0
    %586 = vmatpush1.msra.mxu0 %v483
    %587 = vmatprep.subr.mxu0 0.0
    %588 = vmatpush1.msra.mxu0 %v484
    %589 = vmatprep.subr.mxu0 0.0
    %590 = vmatpush1.msra.mxu0 %v485
    %591 = vmatprep.subr.mxu0 0.0
    %592 = vmatpush1.msra.mxu0 %v486
    %593 = vmatprep.subr.mxu0 0.0
    %594 = vmatpush1.msra.mxu0 %v487
    %595 = vmatprep.subr.mxu0 0.0
    %596 = vmatpush1.msra.mxu0 %v488
    %597 = vmatprep.subr.mxu0 0.0
    %598 = vmatpush1.msra.mxu0 %v489
    %599 = vmatprep.subr.mxu0 0.0
    %600 = vmatpush1.msra.mxu0 %v490
    %601 = vmatprep.subr.mxu0 0.0
    %602 = vmatpush1.msra.mxu0 %v491
    %603 = vmatprep.subr.mxu0 0.0
    %604 = vmatpush1.msra.mxu0 %v492
    %605 = vmatprep.subr.mxu0 0.0
    %606 = vmatpush1.msra.mxu0 %v493
    %607 = vmatprep.subr.mxu0 0.0
    %608 = vmatpush1.msra.mxu0 %v494
    %609 = vmatprep.subr.mxu0 0.0
    %610 = vmatpush1.msra.mxu0 %v495
    %611 = vmatprep.subr.mxu0 0.0
    %612 = vmatpush1.msra.mxu0 %v496
    %613 = vmatprep.subr.mxu0 0.0
    %614 = vmatpush1.msra.mxu0 %v497
    %615 = vmatprep.subr.mxu0 0.0
    %616 = vmatpush1.msra.mxu0 %v498
    %617 = vmatprep.subr.mxu0 0.0
    %618 = vmatpush1.msra.mxu0 %v499
    %619 = vmatprep.subr.mxu0 0.0
    %620 = vmatpush1.msra.mxu0 %v500
    %621 = vmatprep.subr.mxu0 0.0
    %622 = vmatpush1.msra.mxu0 %v501
    %623 = vmatprep.subr.mxu0 0.0
    %624 = vmatpush1.msra.mxu0 %v502
    %625 = vmatprep.subr.mxu0 0.0
    %626 = vmatpush1.msra.mxu0 %v503
    %627 = vmatprep.subr.mxu0 0.0
    %628 = vmatpush1.msra.mxu0 %v504
    %629 = vmatprep.subr.mxu0 0.0
    %630 = vmatpush1.msra.mxu0 %v505
    %631 = vmatprep.subr.mxu0 0.0
    %632 = vmatpush1.msra.mxu0 %v506
    %633 = vmatprep.subr.mxu0 0.0
    %634 = vmatpush1.msra.mxu0 %v507
    %635 = vmatprep.subr.mxu0 0.0
    %636 = vmatpush1.msra.mxu0 %v508
    %637 = vmatprep.subr.mxu0 0.0
    %638 = vmatpush1.msra.mxu0 %v509
    %639 = vmatprep.subr.mxu0 0.0
    %640 = vmatpush1.msra.mxu0 %v510
    %641 = vmatprep.subr.mxu0 0.0
    %642 = vmatpush1.msra.mxu0 %v511
    %643 = vmatprep.subr.mxu0 0.0
    %644 = vmatpush1.msra.mxu0 %v512
    %645 = vmatprep.subr.mxu0 0.0
    %646 = vmatpush1.msra.mxu0 %v513
    %647 = vmatprep.subr.mxu0 0.0
    %648 = vmatpush1.msra.mxu0 %v514
    %649 = vmatprep.mubr.f32.mxu0 %v429
    %650 = vmatmul.mubr.f32.gmra.mrb[0].mxu0 %v427
    %v651 = vpop.f32.mrb[0].mxu0
    %v652 = vadd.f32 %v582, %v651
    %v653 = vpop.f32.mrb[0].mxu0
    %654 = vdwg.mxu0
    %v655 = vadd.f32 %v450, %v652
    %vm656 = vcmask 66560
    %657 = vst.msk [vmem:[#allocation4] sm:$0x3] %vm656, %v655
    %658 = vst.msk [vmem:[#allocation2] sm:$0x3] %vm442, %v409
    // Predicated region
    $region34: #{bert_classifier_forward.21} parent=1 // pred_check
      %p659 = pneg %p28
    $region35: #{bert_classifier_forward.21} parent=1 // pred_check_branch
      %661 = sbr.rel (%p659) target = $region37
    $region36: #{bert_classifier_forward.21} parent=1 // pred_region
      %v662 = vld [vmem:[#allocation4] sm:$0x3]
      %v663 = vld [vmem:[#allocation3] sm:$0x3]
      %665 = vset.pattern.permute.xlu0 0
      %666 = vperm.xlu0 %665, %v663
      %v667 = vpop.permute.xlu0 %666
      %v669 = vrcp.pop %v667
      %v670 = vmul.f32 %v662, %v669
      %v671 = vmax.f32 %v670, 1e-30
      %v672 = vlog2.pop %v671
      %v673 = vmul.f32 %v672, 0.6931472
      %v674 = vld [vmem:[%s4] sm:$0x1]
      %v675 = vmul.f32 %v674, 1.442695
      %v676 = vpow.pop %v675
      %vm677 = vcmask 8192
      %v678 = vsel %vm677, %v676, 0.0
      %679 = vadd.xlane.f32.xlu0 %v678
      %v680 = vpop.xlane.xlu0 %679
      %v681 = vrot.slane %v680, 4
      %v682 = vadd.f32 %v680, %v681
      %v683 = vrot.slane %v682, 2
      %v684 = vadd.f32 %v682, %v683
      %v685 = vrot.slane %v684, 1
      %v686 = vadd.f32 %v684, %v685
      %s687 = vtos %v686
      %v688 = vstv %s687
      %v689 = vrcp.pop %v688
      %v690 = vmul.f32 %v676, %v689
      %v692 = vlaneseq
      %v693 = vshrl.u32 %v692, 7
      %v694 = vsub.s32 0, %v693
      %v695 = vrot.slane %v690, %v694
      %v697 = vmul.f32 %v673, %v695
      %vm698 = vcmask 9216
      %v699 = vsel %vm698, %v697, 0.0
      %700 = vadd.xlane.f32.xlu0 %v699
      %v701 = vpop.xlane.xlu0 %700
      %v702 = vld [vmem:[%s5] sm:$0x1]
      %v703 = vmul.f32 %v702, 1.442695
      %v704 = vpow.pop %v703
      %vm705 = vcmask 16384
      %v706 = vsel %vm705, %v704, 0.0
      %707 = vadd.xlane.f32.xlu0 %v706
      %v708 = vpop.xlane.xlu0 %707
      %v709 = vrot.slane %v708, 4
      %v710 = vadd.f32 %v708, %v709
      %v711 = vrot.slane %v710, 2
      %v712 = vadd.f32 %v710, %v711
      %v713 = vrot.slane %v712, 1
      %v714 = vadd.f32 %v712, %v713
      %s715 = vtos %v714
      %v716 = vstv %s715
      %v717 = vrcp.pop %v716
      %v718 = vmul.f32 %v704, %v717
      %v720 = vlaneseq
      %v721 = vshrl.u32 %v720, 7
      %v722 = vsub.s32 0, %v721
      %v723 = vrot.slane %v718, %v722
      %724 = vrot.lane.b32.xlu0 %v723, 2
      %v725 = vpop.permute.xlu0 %724
      %v727 = vmul.f32 %v673, %v725
      %729 = vrot.lane.b32.xlu0 %v727, 126
      %v730 = vpop.permute.xlu0 %729
      %vm732 = vcmask 17408
      %v733 = vsel %vm732, %v730, 0.0
      %734 = vadd.xlane.f32.xlu0 %v733
      %v735 = vpop.xlane.xlu0 %734
      %v736 = vld [vmem:[%s6] sm:$0x1]
      %v737 = vmul.f32 %v736, 1.442695
      %v738 = vpow.pop %v737
      %vm739 = vcmask 24576
      %v740 = vsel %vm739, %v738, 0.0
      %741 = vadd.xlane.f32.xlu0 %v740
      %v742 = vpop.xlane.xlu0 %741
      %v743 = vrot.slane %v742, 4
      %v744 = vadd.f32 %v742, %v743
      %v745 = vrot.slane %v744, 2
      %v746 = vadd.f32 %v744, %v745
      %v747 = vrot.slane %v746, 1
      %v748 = vadd.f32 %v746, %v747
      %s749 = vtos %v748
      %v750 = vstv %s749
      %v751 = vrcp.pop %v750
      %v752 = vmul.f32 %v738, %v751
      %v754 = vlaneseq
      %v755 = vshrl.u32 %v754, 7
      %v756 = vsub.s32 0, %v755
      %v757 = vrot.slane %v752, %v756
      %758 = vrot.lane.b32.xlu0 %v757, 5
      %v759 = vpop.permute.xlu0 %758
      %v761 = vmul.f32 %v673, %v759
      %763 = vrot.lane.b32.xlu0 %v761, 123
      %v764 = vpop.permute.xlu0 %763
      %vm766 = vcmask 25600
      %v767 = vsel %vm766, %v764, 0.0
      %768 = vadd.xlane.f32.xlu0 %v767
      %v769 = vpop.xlane.xlu0 %768
      %vm770 = vcmask 7168
      %v771 = vsel %vm770, %v701, %v735
      %vm772 = vcmask 15360
      %v773 = vsel %vm772, %v771, %v769
      %774 = vst.msk [vmem:[#allocation5] sm:$0x3] %vm732, %v773
    $region37: #{bert_classifier_forward.21} parent=1 // pred_fallthru
      _
    // Predicated region
    $region38: #{bert_classifier_forward.21} parent=1 // pred_check
      _
    $region39: #{bert_classifier_forward.21} parent=1 // pred_check_branch
      %776 = sbr.rel (0) target = $region41
    $region40: #{bert_classifier_forward.21} parent=1 // pred_region
      %s778 = ssub.s32 32, 32
      %779 = vsyncadd [#allocation6], %s778
      %s781 = sshll.u32 [#allocation5], 4
      %s782 = int_to_ptr.vmem [resolvable:$true] %s781
      %784 = dma.vmem_to_hbm [thread:$0]  %s782, 32, %s7, [#allocation6]
    $region41: #{bert_classifier_forward.21} parent=1 // pred_fallthru
      _
    // Predicated region
    $region42: #{bert_classifier_forward.21} parent=1 // pred_check
      _
    $region43: #{bert_classifier_forward.21} parent=1 // pred_check_branch
      %786 = sbr.rel (0) target = $region45
    $region44: #{bert_classifier_forward.21} parent=1 // pred_region
      %787 = dma.done [#allocation6], 32
    $region45: #{bert_classifier_forward.21} parent=1 // pred_fallthru
      _
    %788 = vsyncpa [#allocation6], 1

</llo_original>
